<compile_context>
chip_gen: v7x
topology: tpu7x:2x2x1
jax: 0.10.0
libtpu: 0.0.40
codegen_flags: <defaults>
</compile_context>

<pallas_src>
import functools

import jax
import jax.numpy as jnp
from jax.experimental import pallas as pl
from jax.experimental.pallas import tpu as pltpu


# --------------------------------------------------------------------------
# Generation-aware VMEM budgets
# --------------------------------------------------------------------------
def _detect_vmem_capacity():
    try:
        cap = int(pltpu.get_tpu_info().vmem_capacity_bytes)
        if cap > 0:
            return cap
    except Exception:
        pass
    return 64 * 1024 * 1024            # conservative (v7x-sized) default


_VMEM_CAP = _detect_vmem_capacity()
_VMEM_LIMIT = min((_VMEM_CAP * 3) // 4, 112 * 1024 * 1024)
_TILE_BUDGET = _VMEM_LIMIT // 2
_WEIGHT_RESIDENT_CAP = 4 * 1024 * 1024   # keep resident weights modest (v7x)


def _rup(x, m):
    return ((x + m - 1) // m) * m


# --------------------------------------------------------------------------
# Tile selection helpers
# --------------------------------------------------------------------------
def _pick_tm(M, per_row_bytes, resident_bytes, want_split=True):
    """Largest row tile that fits the VMEM budget (pads M if no divisor fits)."""
    if M <= 16:
        return M

    def fits(tm):
        return 2 * tm * per_row_bytes + resident_bytes <= _TILE_BUDGET

    cands = (4096, 2048, 1024, 512, 256, 128, 64, 32, 16)
    tm = None
    for c in cands:
        if M % c == 0 and fits(c):
            tm = c
            break
    if tm is None:
        tm = 16
        for c in cands:
            if fits(c):
                tm = c
                break
        tm = min(tm, _rup(M, 16))          # caller zero-pads M up to a multiple
    # Keep >= 2 grid steps so both v7x TensorCores get work on small levels.
    if want_split and M % tm == 0 and M // tm <= 1 and M >= 32 and (M // 2) % 16 == 0:
        tm = M // 2
    return tm


def _pick_tco(K, Cout, w_bytes=2):
    """Cout tile: keep the (double-buffered) resident weight block modest."""
    if Cout % 128 != 0:
        return Cout
    tco = Cout
    while tco > 128 and (tco // 2) % 128 == 0 and 2 * K * tco * w_bytes > _WEIGHT_RESIDENT_CAP:
        tco //= 2
    return tco


# --------------------------------------------------------------------------
# Pallas kernel 1: fused  (bf16 A @ bf16 W) * scale + bias [+ SiLU]
# (used for 1x1 convs and the im2col fallback path)
# --------------------------------------------------------------------------
def _matmul_bn_act_kernel(a_ref, w_ref, s_ref, b_ref, o_ref, *, act):
    y = jnp.dot(a_ref[...], w_ref[...], preferred_element_type=jnp.float32)
    y = y * s_ref[...] + b_ref[...]
    if act == "silu":
        # SiLU = y * sigmoid(y); approx reciprocal runs on the EUP slot.
        y = y * pl.reciprocal(1.0 + jnp.exp(-y), approx=True)
    o_ref[...] = y.astype(o_ref.dtype)


def pallas_matmul_bn_act(a, w, scale, bias, act, out_dtype=jnp.bfloat16):
    """a: (M, K) bf16, w: (K, Cout) bf16, scale/bias: (1, Cout) f32."""
    M, K = a.shape
    Cout = int(w.shape[1])
    Kp = _rup(K, 128)
    TCO = _pick_tco(Kp, Cout)
    per_row = Kp * a.dtype.itemsize + _rup(TCO, 128) * jnp.dtype(out_dtype).itemsize
    resident = 2 * Kp * _rup(TCO, 128) * w.dtype.itemsize + 16 * _rup(TCO, 128) * 4
    TM = _pick_tm(M, per_row, resident, want_split=(Cout // TCO) <= 1)
    Mp = _rup(M, TM)
    a_in = a if Mp == M else jnp.pad(a, ((0, Mp - M), (0, 0)))

    grid = (Mp // TM, Cout // TCO)
    out = pl.pallas_call(
        functools.partial(_matmul_bn_act_kernel, act=act),
        out_shape=jax.ShapeDtypeStruct((Mp, Cout), out_dtype),
        grid_spec=pltpu.PrefetchScalarGridSpec(
            num_scalar_prefetch=0,
            grid=grid,
            in_specs=[
                pl.BlockSpec((TM, K), lambda i, j: (i, 0)),
                pl.BlockSpec((K, TCO), lambda i, j: (0, j)),
                pl.BlockSpec((1, TCO), lambda i, j: (0, j)),
                pl.BlockSpec((1, TCO), lambda i, j: (0, j)),
            ],
            out_specs=pl.BlockSpec((TM, TCO), lambda i, j: (i, j)),
        ),
        compiler_params=pltpu.CompilerParams(
            dimension_semantics=("parallel", "parallel"),
            vmem_limit_bytes=int(_VMEM_LIMIT)),
    )(a_in, w, scale, bias)
    return out[:M] if Mp != M else out


# --------------------------------------------------------------------------
# Pallas kernel 2: in-kernel "tap" convolution + BN + SiLU
#   - whole padded image block resident in VMEM per grid step
#   - conv = sum over (dy,dx) taps of a shifted (Ho*Wo, Cin)@(Cin, TCO) matmul
#   - supports multiple inputs (implicit channel concat) via per-input weights
# --------------------------------------------------------------------------
def _make_conv_kernel(n_in, kh, kw, cins, ho, wo, tco, act, f32_patch):
    def kernel(*refs):
        x_refs = refs[:n_in]
        w_refs = refs[n_in:2 * n_in]
        s_ref, b_ref, o_ref = refs[2 * n_in:]
        acc = jnp.zeros((ho * wo, tco), jnp.float32)
        for x_ref, w_ref, cin in zip(x_refs, w_refs, cins):
            for dy in range(kh):
                for dx in range(kw):
                    patch = x_ref[0, pl.ds(dy, ho), pl.ds(dx, wo), :]
                    wtap = w_ref[pl.ds((dy * kw + dx) * cin, cin), :]
                    if f32_patch:
                        # keeps the (ho, wo, cin)->(ho*wo, cin) collapse tile-aligned
                        patch = patch.astype(jnp.float32)
                        wtap = wtap.astype(jnp.float32)
                    patch = patch.reshape(ho * wo, cin)
                    acc = acc + jnp.dot(patch, wtap,
                                        preferred_element_type=jnp.float32)
        y = acc * s_ref[...] + b_ref[...]
        if act == "silu":
            y = y * pl.reciprocal(1.0 + jnp.exp(-y), approx=True)
        o_ref[0] = y.astype(o_ref.dtype)
    return kernel


def pallas_conv2d_bn_act(xs, ws, scale, bias, kh, kw, ho, wo, act,
                         out_dtype=jnp.bfloat16):
    """xs: list of (N, ho+kh-1, wo+kw-1, cin_i) bf16 (already haloed/padded);
       ws: list of (kh*kw*cin_i, Cout) bf16; scale/bias: (1, Cout) f32."""
    n_in = len(xs)
    N = int(xs[0].shape[0])
    cins = [int(x.shape[-1]) for x in xs]
    Cout = int(ws[0].shape[1])
    total_K = sum(kh * kw * c for c in cins)
    TCO = _pick_tco(_rup(total_K, 8), Cout)
    if N * (Cout // TCO) < 2 and TCO % 256 == 0:
        TCO //= 2                       # keep >= 2 grid steps for the 2 v7x TCs
    f32_patch = (wo % 16 != 0)

    kernel = _make_conv_kernel(n_in, kh, kw, cins, ho, wo, TCO, act, f32_patch)
    grid = (N, Cout // TCO)

    in_specs = []
    for x in xs:
        blk = (1,) + tuple(int(d) for d in x.shape[1:])
        in_specs.append(pl.BlockSpec(blk, lambda n, c: (n, 0, 0, 0)))
    for w in ws:
        in_specs.append(pl.BlockSpec((int(w.shape[0]), TCO), lambda n, c: (0, c)))
    in_specs += [pl.BlockSpec((1, TCO), lambda n, c: (0, c)),
                 pl.BlockSpec((1, TCO), lambda n, c: (0, c))]

    out = pl.pallas_call(
        kernel,
        out_shape=jax.ShapeDtypeStruct((N, ho * wo, Cout), out_dtype),
        grid_spec=pltpu.PrefetchScalarGridSpec(
            num_scalar_prefetch=0,
            grid=grid,
            in_specs=in_specs,
            out_specs=pl.BlockSpec((1, ho * wo, TCO), lambda n, c: (n, 0, c)),
        ),
        compiler_params=pltpu.CompilerParams(
            dimension_semantics=("parallel", "parallel"),
            vmem_limit_bytes=int(_VMEM_LIMIT)),
    )(*xs, *ws, scale, bias)
    return out.reshape(N, ho, wo, Cout)


# --------------------------------------------------------------------------
# Pallas kernel 3: fused head prediction + YOLOX decode
#   out = decode(a_reg @ W_reg_obj + a_cls @ W_cls + bias)
# --------------------------------------------------------------------------
def _pred_decode_kernel(ar_ref, ac_ref, wr_ref, wc_ref, b_ref, g_ref, o_ref, *,
                        stride):
    y = jnp.dot(ar_ref[...], wr_ref[...], preferred_element_type=jnp.float32)
    y = y + jnp.dot(ac_ref[...], wc_ref[...], preferred_element_type=jnp.float32)
    y = y + b_ref[...]
    col = jax.lax.broadcasted_iota(jnp.int32, y.shape, 1)
    xy = (y + g_ref[...]) * stride
    wh = jnp.exp(jnp.minimum(y, 50.0)) * stride    # clamp for untrained weights
    sg = pl.reciprocal(1.0 + jnp.exp(-y), approx=True)
    o_ref[...] = jnp.where(col < 2, xy, jnp.where(col < 4, wh, sg))


def pallas_pred_decode(a_reg, a_cls, w_reg, w_cls, bias, grid_xy, stride):
    M, Kr = a_reg.shape
    Kc = a_cls.shape[1]
    CP = int(w_reg.shape[1])
    per_row = (_rup(Kr, 128) + _rup(Kc, 128)) * 2 + 2 * _rup(CP, 128) * 4
    resident = 2 * (Kr + Kc) * _rup(CP, 128) * 2 + 16 * _rup(CP, 128) * 4
    TM = _pick_tm(M, per_row, resident)
    Mp = _rup(M, TM)
    if Mp != M:
        padr = ((0, Mp - M), (0, 0))
        a_reg = jnp.pad(a_reg, padr)
        a_cls = jnp.pad(a_cls, padr)
        grid_xy = jnp.pad(grid_xy, padr)

    out = pl.pallas_call(
        functools.partial(_pred_decode_kernel, stride=float(stride)),
        out_shape=jax.ShapeDtypeStruct((Mp, CP), jnp.float32),
        grid_spec=pltpu.PrefetchScalarGridSpec(
            num_scalar_prefetch=0,
            grid=(Mp // TM,),
            in_specs=[
                pl.BlockSpec((TM, Kr), lambda i: (i, 0)),
                pl.BlockSpec((TM, Kc), lambda i: (i, 0)),
                pl.BlockSpec((Kr, CP), lambda i: (0, 0)),
                pl.BlockSpec((Kc, CP), lambda i: (0, 0)),
                pl.BlockSpec((1, CP), lambda i: (0, 0)),
                pl.BlockSpec((TM, CP), lambda i: (i, 0)),
            ],
            out_specs=pl.BlockSpec((TM, CP), lambda i: (i, 0)),
        ),
        compiler_params=pltpu.CompilerParams(
            dimension_semantics=("parallel",),
            vmem_limit_bytes=int(_VMEM_LIMIT)),
    )(a_reg, a_cls, w_reg, w_cls, bias, grid_xy)
    return out[:M] if Mp != M else out


# --------------------------------------------------------------------------
# Conv dispatch: 1x1 -> matmul kernel, 3x3 -> in-kernel tap conv
# (stride-2 3x3 rewritten via space-to-depth); im2col fallback for tiny shapes
# --------------------------------------------------------------------------
def _space_to_depth_pad(x):
    """pad-1 + 2x2 space-to-depth: (N,H,W,C) -> (N,H/2+1,W/2+1,4C)."""
    N, H, W, C = x.shape
    xp = jnp.pad(x, ((0, 0), (1, 1), (1, 1), (0, 0)))
    z = xp.reshape(N, (H + 2) // 2, 2, (W + 2) // 2, 2, C)
    z = z.transpose(0, 1, 3, 2, 4, 5).reshape(N, (H + 2) // 2, (W + 2) // 2, 4 * C)
    return z


def _s2d_weight(w):
    """Rewrite a 3x3 stride-2 HWIO weight as a 2x2 stride-1 weight on the
    space-to-depth input; returns (2*2*4*C, Cout) rows ordered (tap, p*2+q, c)."""
    kh, kw, C, Co = w.shape
    w2 = jnp.zeros((2, 2, 4, C, Co), jnp.float32)
    for a in (0, 1):
        for b in (0, 1):
            for pq in range(4):
                p, q = pq // 2, pq % 2
                dy, dx = 2 * a + p, 2 * b + q
                if dy < kh and dx < kw:
                    w2 = w2.at[a, b, pq].set(w[dy, dx].astype(jnp.float32))
    return w2.reshape(2 * 2 * 4 * C, Co)


def _im2col(x, ksize, stride, pad):
    """Fallback patch extraction (only tiny-channel / odd-shape convs)."""
    if pad:
        x = jnp.pad(x, ((0, 0), (pad, pad), (pad, pad), (0, 0)))
    N, Hp, Wp, C = x.shape
    Ho = (Hp - ksize) // stride + 1
    Wo = (Wp - ksize) // stride + 1
    cols = []
    for dy in range(ksize):
        for dx in range(ksize):
            cols.append(x[:, dy:dy + stride * Ho:stride,
                          dx:dx + stride * Wo:stride, :])
    cols = jnp.concatenate(cols, axis=-1)
    return cols.reshape(N * Ho * Wo, ksize * ksize * C), (N, Ho, Wo)


def _conv_path_ok(xs_k, cins_k, ho, wo, cout, kk):
    if wo % 8 != 0 or ho < 1:
        return False
    if min(cins_k) < 16:        # lane-padding blow-up; im2col fallback is cheaper
        return False
    est = 0
    for x in xs_k:
        _, hp, wp, c = x.shape
        est += 2 * int(hp) * _rup(int(wp), 16) * _rup(int(c), 128) * 2
    est += 2 * _rup(ho * wo, 16) * _rup(cout, 128) * 2
    est += 2 * sum(kk * kk * c for c in cins_k) * _rup(cout, 128) * 2
    est += _rup(ho * wo, 8) * _rup(cout, 128) * 4
    est += 2 * _rup(ho * wo, 16) * _rup(max(cins_k), 128) * 4
    return est <= _TILE_BUDGET


def conv_bn_act(x, p, stride=1, act="silu"):
    """x: NHWC bf16 array, or tuple of arrays (implicit channel concat).
       p: {'w': (kh,kw,cin_total,cout) bf16, 'scale'/'bias': (1,cout) f32}."""
    xs = list(x) if isinstance(x, (tuple, list)) else [x]
    w = p["w"]
    kh = int(w.shape[0])
    cin_total, cout = int(w.shape[2]), int(w.shape[3])
    cins = [int(xx.shape[-1]) for xx in xs]
    assert sum(cins) == cin_total

    # Split the HWIO weight along Cin to match the (implicitly concatenated) inputs.
    w_splits, off = [], 0
    for c in cins:
        w_splits.append(w[:, :, off:off + c, :])
        off += c

    N, H, W = int(xs[0].shape[0]), int(xs[0].shape[1]), int(xs[0].shape[2])

    if kh == 1 and stride == 1:
        if len(xs) == 1:
            a = xs[0].reshape(N * H * W, cins[0])
        else:
            a = jnp.concatenate([xx.reshape(N * H * W, -1) for xx in xs], axis=-1)
        out = pallas_matmul_bn_act(a, w.reshape(cin_total, cout),
                                   p["scale"], p["bias"], act)
        return out.reshape(N, H, W, cout)

    # 3x3 conv -> stride-1 tap formulation
    if stride == 1:
        ho, wo, kk = H, W, kh
        xs_k = [jnp.pad(xx, ((0, 0), (1, 1), (1, 1), (0, 0))) for xx in xs]
        ws_k = [wi.reshape(kh * kh * c, cout) for wi, c in zip(w_splits, cins)]
        cins_k = cins
    elif stride == 2:
        ho, wo, kk = H // 2, W // 2, 2
        xs_k = [_space_to_depth_pad(xx) for xx in xs]
        ws_k = [_s2d_weight(wi).astype(w.dtype) for wi in w_splits]
        cins_k = [4 * c for c in cins]
    else:
        raise NotImplementedError("only stride 1/2 used by this network")

    if _conv_path_ok(xs_k, cins_k, ho, wo, cout, kk):
        return pallas_conv2d_bn_act(xs_k, ws_k, p["scale"], p["bias"],
                                    kk, kk, ho, wo, act)

    # Fallback: JAX-level im2col + fused matmul (stem's 3-channel input and
    # feature maps too small/odd for the in-kernel path).
    xcat = xs[0] if len(xs) == 1 else jnp.concatenate(xs, axis=-1)
    cols, (Nn, Ho, Wo) = _im2col(xcat, kh, stride, kh // 2)
    out = pallas_matmul_bn_act(cols, w.reshape(-1, cout), p["scale"], p["bias"], act)
    return out.reshape(Nn, Ho, Wo, cout)


def upsample2x(x):
    # TODO(synk): fold the 2x nearest upsample into the consumer conv's gather.
    return jnp.repeat(jnp.repeat(x, 2, axis=1), 2, axis=2)


# --------------------------------------------------------------------------
# Deterministic parameter init
# --------------------------------------------------------------------------
class KeyGen:
    def __init__(self, seed):
        self._key = jax.random.PRNGKey(seed)

    def __call__(self):
        self._key, sub = jax.random.split(self._key)
        return sub


def make_conv(kg, ksize, cin, cout):
    fan_in = ksize * ksize * cin
    w = jax.random.normal(kg(), (ksize, ksize, cin, cout), jnp.float32)
    w = (w / jnp.sqrt(jnp.float32(fan_in))).astype(jnp.bfloat16)
    # BN folded: gamma=1, beta=0, running_mean=0, running_var=1, eps=1e-5
    scale = jnp.full((1, cout), 1.0 / jnp.sqrt(1.0 + 1e-5), jnp.float32)
    bias = jnp.zeros((1, cout), jnp.float32)
    return {"w": w, "scale": scale, "bias": bias}


# --------------------------------------------------------------------------
# Backbone (CSPDarknet-style, simplified: one BaseConv per stage)
# --------------------------------------------------------------------------
def init_backbone(kg, width):
    c1 = int(64 * width)
    c3 = int(128 * width)
    c4 = int(256 * width)
    c5 = int(512 * width)
    # TODO(synk): full CSPDarknet (Focus stem, CSP blocks, SPP) collapsed to
    # one BaseConv per stage; event-representation preprocessing not replicated.
    return {
        "stem":  make_conv(kg, 3, 3, c1),
        "dark2": make_conv(kg, 3, c1, c3),
        "dark3": make_conv(kg, 3, c3, c3),
        "dark4": make_conv(kg, 3, c3, c4),
        "dark5": make_conv(kg, 3, c4, c5),
    }, (c3, c4, c5)


def backbone_forward(p, x):
    x = conv_bn_act(x, p["stem"], stride=2)      # /2
    x = conv_bn_act(x, p["dark2"], stride=2)     # /4
    f3 = conv_bn_act(x, p["dark3"], stride=2)    # /8
    f4 = conv_bn_act(f3, p["dark4"], stride=2)   # /16
    f5 = conv_bn_act(f4, p["dark5"], stride=2)   # /32
    image = x                                    # pass-through "image" slot
    return (f3, f4, f5), image


# --------------------------------------------------------------------------
# YOLOXPAFPN neck (concats replaced by dual-input convs)
# --------------------------------------------------------------------------
def init_neck(kg, cs):
    c3, c4, c5 = cs
    # TODO(synk): CSPLayer (C3_*) simplified to a single BaseConv each.
    return {
        "lateral_conv0": make_conv(kg, 1, c5, c4),
        "C3_p4":         make_conv(kg, 3, 2 * c4, c4),
        "reduce_conv1":  make_conv(kg, 1, c4, c3),
        "C3_p3":         make_conv(kg, 3, 2 * c3, c3),
        "bu_conv2":      make_conv(kg, 3, c3, c3),
        "C3_n3":         make_conv(kg, 3, 2 * c3, c4),
        "bu_conv1":      make_conv(kg, 3, c4, c4),
        "C3_n4":         make_conv(kg, 3, 2 * c4, c5),
    }


def neck_forward(p, feats):
    x2, x1, x0 = feats                                      # strides 8, 16, 32
    fpn_out0 = conv_bn_act(x0, p["lateral_conv0"])          # c5 -> c4
    f_out0 = conv_bn_act((upsample2x(fpn_out0), x1), p["C3_p4"])      # -> c4

    fpn_out1 = conv_bn_act(f_out0, p["reduce_conv1"])       # c4 -> c3
    pan_out2 = conv_bn_act((upsample2x(fpn_out1), x2), p["C3_p3"])    # -> c3 (/8)

    p_out1 = conv_bn_act(pan_out2, p["bu_conv2"], stride=2)
    pan_out1 = conv_bn_act((p_out1, fpn_out1), p["C3_n3"])            # -> c4 (/16)

    p_out0 = conv_bn_act(pan_out1, p["bu_conv1"], stride=2)
    pan_out0 = conv_bn_act((p_out0, fpn_out0), p["C3_n4"])            # -> c5 (/32)

    return (pan_out2, pan_out1, pan_out0)


# --------------------------------------------------------------------------
# YOLOXHead (decoupled head; pred matmul + decode fused in one kernel/level)
# --------------------------------------------------------------------------
def init_head(kg, cs, width, classes_num):
    hidden = int(256 * width)
    co = 5 + classes_num
    cp = _rup(co, 8)

    def rand_linear(cin, cout):
        w = jax.random.normal(kg(), (cin, cout), jnp.float32)
        w = w / jnp.sqrt(jnp.float32(cin))
        b = jax.random.normal(kg(), (cout,), jnp.float32) * 0.01
        return w, b

    levels = []
    for c in cs:
        w_reg, b_reg = rand_linear(hidden, 4)
        w_obj, b_obj = rand_linear(hidden, 1)
        w_cls, b_cls = rand_linear(hidden, classes_num)
        w_ro = jnp.zeros((hidden, cp), jnp.float32)
        w_ro = w_ro.at[:, 0:4].set(w_reg).at[:, 4:5].set(w_obj)
        w_cl = jnp.zeros((hidden, cp), jnp.float32)
        w_cl = w_cl.at[:, 5:5 + classes_num].set(w_cls)
        b = jnp.zeros((1, cp), jnp.float32)
        b = b.at[0, :co].set(jnp.concatenate([b_reg, b_obj, b_cls]))
        levels.append({
            "stem":       make_conv(kg, 1, c, hidden),
            "cls_conv0":  make_conv(kg, 3, hidden, hidden),
            "cls_conv1":  make_conv(kg, 3, hidden, hidden),
            "reg_conv0":  make_conv(kg, 3, hidden, hidden),
            "reg_conv1":  make_conv(kg, 3, hidden, hidden),
            "pred_w_reg": w_ro.astype(jnp.bfloat16),
            "pred_w_cls": w_cl.astype(jnp.bfloat16),
            "pred_b":     b,
        })
    return {"levels": levels, "classes_num": classes_num}


def head_forward(head, feats, strides, labels):
    # TODO(synk): training-mode loss (SimOTA assignment, IoU/focal losses) on
    # `labels` has no clean Pallas equivalent here; inference decode only.
    del labels
    co = 5 + head["classes_num"]
    outputs = []
    for p, x, stride in zip(head["levels"], feats, strides):
        x = conv_bn_act(x, p["stem"])
        cls_x = conv_bn_act(conv_bn_act(x, p["cls_conv0"]), p["cls_conv1"])
        reg_x = conv_bn_act(conv_bn_act(x, p["reg_conv0"]), p["reg_conv1"])

        N, H, W, hidden = reg_x.shape
        M = N * H * W
        cp = int(p["pred_w_reg"].shape[1])
        ys, xs = jnp.meshgrid(jnp.arange(H, dtype=jnp.float32),
                              jnp.arange(W, dtype=jnp.float32), indexing="ij")
        g = jnp.stack([xs, ys], axis=-1).reshape(H * W, 2)
        g = jnp.pad(g, ((0, 0), (0, cp - 2)))
        g = jnp.tile(g, (N, 1))                                # (M, cp)

        dec = pallas_pred_decode(reg_x.reshape(M, hidden),
                                 cls_x.reshape(M, hidden),
                                 p["pred_w_reg"], p["pred_w_cls"],
                                 p["pred_b"], g, stride)
        outputs.append(dec[:, :co].reshape(N, H * W, co))
    return jnp.concatenate(outputs, axis=1)       # (N, sum(HW), 5 + classes)


# --------------------------------------------------------------------------
# Full network
# --------------------------------------------------------------------------
def init_network(seed, classes_num, width):
    kg = KeyGen(seed)
    backbone, cs = init_backbone(kg, width)
    neck = init_neck(kg, cs)
    head = init_head(kg, cs, width, classes_num)
    return {"backbone": backbone, "neck": neck, "head": head}


def network_forward(params, x_nchw, labels, strides=(8, 16, 32)):
    x = jnp.transpose(x_nchw, (0, 2, 3, 1)).astype(jnp.bfloat16)   # NCHW -> NHWC
    feats, _image = backbone_forward(params["backbone"], x)
    feats = neck_forward(params["neck"], feats)
    preds = head_forward(params["head"], feats, strides, labels)
    # TODO(synk): ev_rep_time / bone_time are wall-clock timings in the
    # original backbone; returned as constant 0.0 here.
    ev_rep_time = jnp.float32(0.0)
    bone_time = jnp.float32(0.0)
    return preds, ev_rep_time, bone_time


# --------------------------------------------------------------------------
if __name__ == "__main__":
    classes_num = 3
    width = 0.5                 # backbone channels (32, 64, 128, 256), head 128
    N, H, W = 2, 128, 128

    key = jax.random.PRNGKey(0)
    kx, kl = jax.random.split(key)
    x = jax.random.normal(kx, (N, 3, H, W), jnp.float32)        # NCHW input
    labels = jax.random.uniform(kl, (N, 5, 5), jnp.float32)     # (N, max_obj, 5)

    params = init_network(42, classes_num, width)
    preds, ev_t, bone_t = network_forward(params, x, labels)
    jax.block_until_ready(preds)

    expected_anchors = ((H // 8) * (W // 8) + (H // 16) * (W // 16)
                        + (H // 32) * (W // 32))
    assert preds.shape == (N, expected_anchors, 5 + classes_num), preds.shape
    assert bool(jnp.all(jnp.isfinite(preds)))
    print("KERNEL_OK")
</pallas_src>

<mosaic_0001>
module attributes {stable_mosaic.version = 11 : i64} {
  func.func @_matmul_bn_act_kernel(%arg0: i32, %arg1: i32, %arg2: memref<4096x27xbf16, #tpu.memory_space<vmem>>, %arg3: memref<27x32xbf16, #tpu.memory_space<vmem>>, %arg4: memref<1x32xf32, #tpu.memory_space<vmem>>, %arg5: memref<1x32xf32, #tpu.memory_space<vmem>>, %arg6: memref<4096x32xbf16, #tpu.memory_space<vmem>>) attributes {dimension_semantics = [#tpu.dimension_semantics<parallel>, #tpu.dimension_semantics<parallel>], iteration_bounds = array<i64: 2, 1>, scalar_prefetch = 0 : i64, scratch_operands = 0 : i64, tpu.core_type = #tpu.core_type<tc>, window_params = [{transform_indices = @transform_0, window_bounds = array<i64: 4096, 27>}, {transform_indices = @transform_1, window_bounds = array<i64: 27, 32>}, {transform_indices = @transform_2, window_bounds = array<i64: 1, 32>}, {transform_indices = @transform_3, window_bounds = array<i64: 1, 32>}, {transform_indices = @transform_4, window_bounds = array<i64: 4096, 32>}]} {
    %c0 = arith.constant 0 : index
    %c0_0 = arith.constant 0 : index
    %0 = vector.load %arg2[%c0, %c0_0] : memref<4096x27xbf16, #tpu.memory_space<vmem>>, vector<4096x27xbf16>
    %c0_1 = arith.constant 0 : index
    %c0_2 = arith.constant 0 : index
    %1 = vector.load %arg3[%c0_1, %c0_2] : memref<27x32xbf16, #tpu.memory_space<vmem>>, vector<27x32xbf16>
    %cst = arith.constant dense<0.000000e+00> : vector<4096x32xf32>
    %2 = tpu.matmul %0, %1, %cst {dimension_numbers = #tpu.dot_dimension_numbers<[1], [0], [0], [1], [0, 0, 1, 1], [], []>} : vector<4096x27xbf16>, vector<27x32xbf16>, vector<4096x32xf32> -> vector<4096x32xf32>
    %c0_3 = arith.constant 0 : index
    %c0_4 = arith.constant 0 : index
    %3 = vector.load %arg4[%c0_3, %c0_4] : memref<1x32xf32, #tpu.memory_space<vmem>>, vector<1x32xf32>
    %4 = vector.broadcast %3 : vector<1x32xf32> to vector<4096x32xf32>
    %5 = arith.mulf %2, %4 : vector<4096x32xf32>
    %c0_5 = arith.constant 0 : index
    %c0_6 = arith.constant 0 : index
    %6 = vector.load %arg5[%c0_5, %c0_6] : memref<1x32xf32, #tpu.memory_space<vmem>>, vector<1x32xf32>
    %7 = vector.broadcast %6 : vector<1x32xf32> to vector<4096x32xf32>
    %8 = arith.addf %5, %7 : vector<4096x32xf32>
    %cst_7 = arith.constant 0.000000e+00 : f32
    %9 = vector.broadcast %cst_7 : f32 to vector<4096x32xf32>
    %10 = arith.subf %9, %8 : vector<4096x32xf32>
    %11 = math.exp %10 : vector<4096x32xf32>
    %cst_8 = arith.constant 1.000000e+00 : f32
    %12 = vector.broadcast %cst_8 : f32 to vector<4096x32xf32>
    %13 = arith.addf %12, %11 : vector<4096x32xf32>
    %14 = tpu.reciprocal %13 {approx = true} : vector<4096x32xf32> -> vector<4096x32xf32>
    %15 = arith.mulf %8, %14 : vector<4096x32xf32>
    %16 = arith.truncf %15 : vector<4096x32xf32> to vector<4096x32xbf16>
    %c0_9 = arith.constant 0 : index
    %c0_10 = arith.constant 0 : index
    %17 = vector.load %arg6[%c0_9, %c0_10] : memref<4096x32xbf16, #tpu.memory_space<vmem>>, vector<4096x32xbf16>
    tpu.vector_store %arg6[%c0_9, %c0_10], %16 {strides = array<i32>} : memref<4096x32xbf16, #tpu.memory_space<vmem>>, vector<4096x32xbf16>,
    return
  }
  func.func @transform_0(%arg0: i32, %arg1: i32) -> (i32, i32) {
    %c0_i32 = arith.constant 0 : i32
    %c0_i32_0 = arith.constant 0 : i32
    return %arg0, %c0_i32 : i32, i32
  }
  func.func @transform_1(%arg0: i32, %arg1: i32) -> (i32, i32) {
    %c0_i32 = arith.constant 0 : i32
    %c0_i32_0 = arith.constant 0 : i32
    return %c0_i32, %arg1 : i32, i32
  }
  func.func @transform_2(%arg0: i32, %arg1: i32) -> (i32, i32) {
    %c0_i32 = arith.constant 0 : i32
    %c0_i32_0 = arith.constant 0 : i32
    return %c0_i32, %arg1 : i32, i32
  }
  func.func @transform_3(%arg0: i32, %arg1: i32) -> (i32, i32) {
    %c0_i32 = arith.constant 0 : i32
    %c0_i32_0 = arith.constant 0 : i32
    return %c0_i32, %arg1 : i32, i32
  }
  func.func @transform_4(%arg0: i32, %arg1: i32) -> (i32, i32) {
    %c0_i32 = arith.constant 0 : i32
    return %arg0, %arg1 : i32, i32
  }
}

</mosaic_0001>

<llo_original>
// kernel: tpu_custom_call.1
$region0: #{tpu_custom_call.1}
  #allocation0 [shape = 'u32[]', space=smem, size = 0x4, offset = 0x4, fixed_abs, tag = 'smem constant byte address 0x4 - core index']
  #allocation1 [shape = 'u32[144,128]{1,0:T(1,128)}', space=vmem, size = 0x12000, scoped, tag = 'internal scratch']
  %s0 = inlined_call_operand.vmem [shape: bf16[8192,27], index: 0, kind: input, shape index: {}]
  %s1 = inlined_call_operand.vmem [shape: bf16[27,32], index: 1, kind: input, shape index: {}]
  %s2 = inlined_call_operand.vmem [shape: f32[1,32], index: 2, kind: input, shape index: {}]
  %s3 = inlined_call_operand.vmem [shape: f32[1,32], index: 3, kind: input, shape index: {}]
  %s4 = inlined_call_operand.vmem [shape: bf16[8192,32], index: 4, kind: output, shape index: {}]
  %s5 = sld [smem:[#allocation0]]
  $region49: #{tpu_custom_call.1} parent=0
    _
  %s7 = ssub.s32 1, %s5
  %s8 = scalar_select 0, %s7, %s5
  loop: start=0, step=1, limit=4
  $region2: #{tpu_custom_call.1} parent=0 // loop_pre_header
    _
  $region3: #{tpu_custom_call.1} parent=0 // loop_header
    %s10 = sphi 0, %s14
    %p11 = scmp.ge.s32.totalorder %s10, 4
    %s17 = sphi 0, %s29
    %s18 = sphi 0, %s25
    %s19 = sphi 0, %s17
    %s20 = sphi 0, %s18
    %s21 = sphi 0, %s19
    %s22 = sphi 0, %s20
    %s32 = sphi 0, %s34
    %s35 = sphi 0, %s32
    %s36 = sphi 0, %s35
    %s52 = sphi 0, %s36
    %s58 = sphi 0, %s60
    %s61 = sphi 0, %s58
    %s62 = sphi 0, %s61
    %s78 = sphi 0, %s62
    %s84 = sphi 0, %s86
    %s87 = sphi 0, %s84
    %s88 = sphi 0, %s87
    %s104 = sphi 0, %s88
    %s110 = sphi 0, %s112
    %s113 = sphi 0, %s110
    %s114 = sphi 0, %s113
    %s130 = sphi 0, %s114
    %s138 = sphi 0, %s140
    %s141 = sphi 0, %s138
    %s142 = sphi 0, %s141
    %s158 = sphi 0, %s142
  $region4: #{tpu_custom_call.1} parent=0 // loop_header_branch
    %13 = sbr.rel (%p11) target = $region8
  $region5: #{tpu_custom_call.1} parent=0 // loop_body
    %s15 = ssub.s32 %s10, 1
    %s16 = ssub.s32 %s10, 2
    %s23 = sadd.s32 1, %s18
    %p24 = scmp.ge.s32.totalorder %s23, 1
    %s25 = scalar_select %p24, 0, %s23
    %s26 = sadd.s32 1, %s17
    %s27 = scalar_select %p24, %s26, %s17
    %p28 = scmp.ge.s32.totalorder %s27, 2
    %s29 = scalar_select %p28, 0, %s27
    %s30 = ssub.s32 %s17, %s29
    %p31 = scmp.eq.s32.totalorder %s30, 0
    %s33 = sadd.s32 %s32, 1
    %s34 = scalar_select %p31, %s32, %s33
    %p37 = pneg %p31
    %p38 = scmp.eq.s32.totalorder %s10, 1
    %p39 = por %p37, %p38
    %p40 = scmp.ne.s32.totalorder %s32, %s35
    %p41 = scmp.eq.s32.totalorder %s10, 0
    %p42 = por %p40, %p41
    %p43 = scmp.ne.s32.totalorder %s32, %s35
    %p44 = scmp.eq.s32.totalorder %s15, 1
    %p45 = por %p43, %p44
    %p46 = scmp.ne.s32.totalorder %s35, %s36
    %p47 = scmp.eq.s32.totalorder %s15, 0
    %p48 = por %p46, %p47
    %p49 = scmp.ne.s32.totalorder %s35, %s36
    %p50 = scmp.eq.s32.totalorder %s16, 1
    %p51 = por %p49, %p50
    %p53 = scmp.ne.s32.totalorder %s36, %s52
    %p54 = scmp.eq.s32.totalorder %s16, 0
    %p55 = por %p53, %p54
    %s56 = ssub.s32 %s18, %s25
    %p57 = scmp.eq.s32.totalorder %s56, 0
    %s59 = sadd.s32 %s58, 1
    %s60 = scalar_select %p57, %s58, %s59
    %p63 = pneg %p57
    %p64 = scmp.eq.s32.totalorder %s10, 1
    %p65 = por %p63, %p64
    %p66 = scmp.ne.s32.totalorder %s58, %s61
    %p67 = scmp.eq.s32.totalorder %s10, 0
    %p68 = por %p66, %p67
    %p69 = scmp.ne.s32.totalorder %s58, %s61
    %p70 = scmp.eq.s32.totalorder %s15, 1
    %p71 = por %p69, %p70
    %p72 = scmp.ne.s32.totalorder %s61, %s62
    %p73 = scmp.eq.s32.totalorder %s15, 0
    %p74 = por %p72, %p73
    %p75 = scmp.ne.s32.totalorder %s61, %s62
    %p76 = scmp.eq.s32.totalorder %s16, 1
    %p77 = por %p75, %p76
    %p79 = scmp.ne.s32.totalorder %s62, %s78
    %p80 = scmp.eq.s32.totalorder %s16, 0
    %p81 = por %p79, %p80
    %s82 = ssub.s32 %s18, %s25
    %p83 = scmp.eq.s32.totalorder %s82, 0
    %s85 = sadd.s32 %s84, 1
    %s86 = scalar_select %p83, %s84, %s85
    %p89 = pneg %p83
    %p90 = scmp.eq.s32.totalorder %s10, 1
    %p91 = por %p89, %p90
    %p92 = scmp.ne.s32.totalorder %s84, %s87
    %p93 = scmp.eq.s32.totalorder %s10, 0
    %p94 = por %p92, %p93
    %p95 = scmp.ne.s32.totalorder %s84, %s87
    %p96 = scmp.eq.s32.totalorder %s15, 1
    %p97 = por %p95, %p96
    %p98 = scmp.ne.s32.totalorder %s87, %s88
    %p99 = scmp.eq.s32.totalorder %s15, 0
    %p100 = por %p98, %p99
    %p101 = scmp.ne.s32.totalorder %s87, %s88
    %p102 = scmp.eq.s32.totalorder %s16, 1
    %p103 = por %p101, %p102
    %p105 = scmp.ne.s32.totalorder %s88, %s104
    %p106 = scmp.eq.s32.totalorder %s16, 0
    %p107 = por %p105, %p106
    %s108 = ssub.s32 %s18, %s25
    %p109 = scmp.eq.s32.totalorder %s108, 0
    %s111 = sadd.s32 %s110, 1
    %s112 = scalar_select %p109, %s110, %s111
    %p115 = pneg %p109
    %p116 = scmp.eq.s32.totalorder %s10, 1
    %p117 = por %p115, %p116
    %p118 = scmp.ne.s32.totalorder %s110, %s113
    %p119 = scmp.eq.s32.totalorder %s10, 0
    %p120 = por %p118, %p119
    %p121 = scmp.ne.s32.totalorder %s110, %s113
    %p122 = scmp.eq.s32.totalorder %s15, 1
    %p123 = por %p121, %p122
    %p124 = scmp.ne.s32.totalorder %s113, %s114
    %p125 = scmp.eq.s32.totalorder %s15, 0
    %p126 = por %p124, %p125
    %p127 = scmp.ne.s32.totalorder %s113, %s114
    %p128 = scmp.eq.s32.totalorder %s16, 1
    %p129 = por %p127, %p128
    %p131 = scmp.ne.s32.totalorder %s114, %s130
    %p132 = scmp.eq.s32.totalorder %s16, 0
    %p133 = por %p131, %p132
    %s134 = ssub.s32 %s17, %s29
    %s135 = ssub.s32 %s18, %s25
    %s136 = sor.u32 %s134, %s135
    %p137 = scmp.eq.s32.totalorder %s136, 0
    %s139 = sadd.s32 %s138, 1
    %s140 = scalar_select %p137, %s138, %s139
    %p143 = pneg %p137
    %p144 = scmp.eq.s32.totalorder %s10, 1
    %p145 = por %p143, %p144
    %p146 = scmp.ne.s32.totalorder %s138, %s141
    %p147 = scmp.eq.s32.totalorder %s10, 0
    %p148 = por %p146, %p147
    %p149 = scmp.ne.s32.totalorder %s138, %s141
    %p150 = scmp.eq.s32.totalorder %s15, 1
    %p151 = por %p149, %p150
    %p152 = scmp.ne.s32.totalorder %s141, %s142
    %p153 = scmp.eq.s32.totalorder %s15, 0
    %p154 = por %p152, %p153
    %p155 = scmp.ne.s32.totalorder %s141, %s142
    %p156 = scmp.eq.s32.totalorder %s16, 1
    %p157 = por %p155, %p156
    %p159 = scmp.ne.s32.totalorder %s142, %s158
    %p160 = scmp.eq.s32.totalorder %s16, 0
    %p161 = por %p159, %p160
    %p162 = scmp.le.s32.totalorder 1, %s10
    %p163 = scmp.lt.s32.totalorder %s10, 3
    %p164 = pnand %p162, %p163
    %p165 = pneg %p164
    // Predicated region
    $region9: #{tpu_custom_call.1} parent=5 // pred_check
      _
    $region10: #{tpu_custom_call.1} parent=5 // pred_check_branch
      %167 = sbr.rel (%p164) target = $region12
    $region11: #{tpu_custom_call.1} parent=5 // pred_region
      %s168 = ssub.s32 %s10, 1
      // Predicated region
      $region13: #{tpu_custom_call.1} parent=11 // pred_check
        %p169 = pneg %p74
      $region14: #{tpu_custom_call.1} parent=11 // pred_check_branch
        %171 = sbr.rel (%p169) target = $region16
      $region15: #{tpu_custom_call.1} parent=11 // pred_region
        %p172 = scmp.lt.s32.totalorder %s20, 0
        %s173 = scalar_select %p172, %s20, 0
        %s174 = smul.addr %s173, 4
        %s175 = scalar_lea.vmem %s1, %s174
      $region16: #{tpu_custom_call.1} parent=11 // pred_fallthru
        _
      // Predicated region
      $region17: #{tpu_custom_call.1} parent=11 // pred_check
        %p176 = pneg %p100
      $region18: #{tpu_custom_call.1} parent=11 // pred_check_branch
        %178 = sbr.rel (%p176) target = $region20
      $region19: #{tpu_custom_call.1} parent=11 // pred_region
        %p179 = scmp.lt.s32.totalorder %s20, 0
        %s180 = scalar_select %p179, %s20, 0
        %s181 = scalar_lea.vmem %s2, %s180
      $region20: #{tpu_custom_call.1} parent=11 // pred_fallthru
        _
      // Predicated region
      $region21: #{tpu_custom_call.1} parent=11 // pred_check
        %p182 = pneg %p126
      $region22: #{tpu_custom_call.1} parent=11 // pred_check_branch
        %184 = sbr.rel (%p182) target = $region24
      $region23: #{tpu_custom_call.1} parent=11 // pred_region
        %p185 = scmp.lt.s32.totalorder %s20, 0
        %s186 = scalar_select %p185, %s20, 0
        %s187 = scalar_lea.vmem %s3, %s186
      $region24: #{tpu_custom_call.1} parent=11 // pred_fallthru
        _
    $region12: #{tpu_custom_call.1} parent=5 // pred_fallthru
      _
    %p188 = scmp.lt.s32.totalorder %s10, 2
    // Predicated region
    $region25: #{tpu_custom_call.1} parent=5 // pred_check
      %p189 = pneg %p188
    $region26: #{tpu_custom_call.1} parent=5 // pred_check_branch
      %191 = sbr.rel (%p189) target = $region28
    $region27: #{tpu_custom_call.1} parent=5 // pred_region
      // Predicated region
      $region29: #{tpu_custom_call.1} parent=27 // pred_check
        %p192 = pneg %p42
      $region30: #{tpu_custom_call.1} parent=27 // pred_check_branch
        %194 = sbr.rel (%p192) target = $region32
      $region31: #{tpu_custom_call.1} parent=27 // pred_region
        %s195 = smul.u32 512, %s17
        %p196 = scmp.lt.s32.totalorder %s195, 1023
        %s197 = scalar_select %p196, %s195, 1023
        %s198 = smul.addr %s197, 4
        %s199 = scalar_lea.vmem %s0, %s198
        %s200 = smul.u32 512, %s17
      $region32: #{tpu_custom_call.1} parent=27 // pred_fallthru
        _
    $region28: #{tpu_custom_call.1} parent=5 // pred_fallthru
      _
    %p201 = scmp.le.s32.totalorder 1, %s10
    %p202 = scmp.lt.s32.totalorder %s10, 3
    %p203 = pnand %p201, %p202
    %p204 = pneg %p203
    // Predicated region
    $region33: #{tpu_custom_call.1} parent=5 // pred_check
      _
    $region34: #{tpu_custom_call.1} parent=5 // pred_check_branch
      %206 = sbr.rel (%p203) target = $region36
    $region35: #{tpu_custom_call.1} parent=5 // pred_region
      %s207 = ssub.s32 %s10, 1
      %s208 = smul.u32 512, %s19
      %p209 = scmp.lt.s32.totalorder %s208, 1023
      %s210 = scalar_select %p209, %s208, 1023
      %s211 = smul.addr %s210, 4
      %s212 = scalar_lea.vmem %s0, %s211
      %p213 = pneg %p48
      %p214 = pneg %p45
      %p215 = scmp.lt.s32.totalorder %s20, 0
      %s216 = scalar_select %p215, %s20, 0
      %s217 = smul.addr %s216, 4
      %s218 = scalar_lea.vmem %s1, %s217
      %p219 = pneg %p74
      %p220 = pneg %p71
      %p221 = scmp.lt.s32.totalorder %s20, 0
      %s222 = scalar_select %p221, %s20, 0
      %s223 = scalar_lea.vmem %s2, %s222
      %p224 = pneg %p100
      %p225 = pneg %p97
      %p226 = scmp.lt.s32.totalorder %s20, 0
      %s227 = scalar_select %p226, %s20, 0
      %s228 = scalar_lea.vmem %s3, %s227
      %p229 = pneg %p126
      %p230 = pneg %p123
      %p231 = pneg %p154
      %p232 = pneg %p151
      %s233 = smul.u32 512, %s19
      %p234 = scmp.lt.s32.totalorder %s233, 1023
      %s235 = scalar_select %p234, %s233, 1023
      %p236 = scmp.lt.s32.totalorder %s20, 0
      %s237 = scalar_select %p236, %s20, 0
      %s238 = sadd.s32 %s237, %s235
      %s239 = smul.addr %s238, 4
      %s240 = scalar_lea.vmem %s4, %s239
      %s241 = smul.u32 512, %s19
      %p242 = scmp.lt.s32.totalorder %s241, 1023
      %s243 = scalar_select %p242, %s241, 1023
      %s244 = smul.addr %s243, 4
      %s245 = scalar_lea.vmem %s0, %s244
      %s246 = smul.u32 512, %s19
      %p247 = scmp.lt.s32.totalorder %s20, 0
      %s248 = scalar_select %p247, %s20, 0
      %s249 = smul.addr %s248, 4
      %s250 = scalar_lea.vmem %s1, %s249
      %p251 = scmp.lt.s32.totalorder %s20, 0
      %s252 = scalar_select %p251, %s20, 0
      %s253 = scalar_lea.vmem %s2, %s252
      %p254 = scmp.lt.s32.totalorder %s20, 0
      %s255 = scalar_select %p254, %s20, 0
      %s256 = scalar_lea.vmem %s3, %s255
      %s257 = smul.u32 512, %s19
      %p258 = scmp.lt.s32.totalorder %s257, 1023
      %s259 = scalar_select %p258, %s257, 1023
      %p260 = scmp.lt.s32.totalorder %s20, 0
      %s261 = scalar_select %p260, %s20, 0
      %s262 = sadd.s32 %s261, %s259
      %s263 = smul.addr %s262, 4
      %s264 = scalar_lea.vmem %s4, %s263
      %s265 = smul.u32 512, %s19
      %v267 = vld [vmem:[%s245] sm:$0xf]
      %v268 = vld [vmem:[%s245 + $0x4] sm:$0xf]
      %v269 = vld [vmem:[%s245 + $0x8] sm:$0xf]
      %v270 = vld [vmem:[%s245 + $0xc] sm:$0xf]
      %v271 = vld [vmem:[%s245 + $0x10] sm:$0xf]
      %v272 = vld [vmem:[%s245 + $0x14] sm:$0xf]
      %v273 = vld [vmem:[%s245 + $0x18] sm:$0xf]
      %v274 = vld [vmem:[%s245 + $0x1c] sm:$0xf]
      %v275 = vld [vmem:[%s245 + $0x20] sm:$0xf]
      %v276 = vld [vmem:[%s245 + $0x24] sm:$0xf]
      %v277 = vld [vmem:[%s245 + $0x28] sm:$0xf]
      %v278 = vld [vmem:[%s245 + $0x2c] sm:$0xf]
      %v279 = vld [vmem:[%s245 + $0x30] sm:$0xf]
      %v280 = vld [vmem:[%s245 + $0x34] sm:$0xf]
      %v281 = vld [vmem:[%s245 + $0x38] sm:$0xf]
      %v282 = vld [vmem:[%s245 + $0x3c] sm:$0xf]
      %v283 = vld [vmem:[%s245 + $0x40] sm:$0xf]
      %v284 = vld [vmem:[%s245 + $0x44] sm:$0xf]
      %v285 = vld [vmem:[%s245 + $0x48] sm:$0xf]
      %v286 = vld [vmem:[%s245 + $0x4c] sm:$0xf]
      %v287 = vld [vmem:[%s245 + $0x50] sm:$0xf]
      %v288 = vld [vmem:[%s245 + $0x54] sm:$0xf]
      %v289 = vld [vmem:[%s245 + $0x58] sm:$0xf]
      %v290 = vld [vmem:[%s245 + $0x5c] sm:$0xf]
      %v291 = vld [vmem:[%s245 + $0x60] sm:$0xf]
      %v292 = vld [vmem:[%s245 + $0x64] sm:$0xf]
      %v293 = vld [vmem:[%s245 + $0x68] sm:$0xf]
      %v294 = vld [vmem:[%s245 + $0x6c] sm:$0xf]
      %v295 = vld [vmem:[%s245 + $0x70] sm:$0xf]
      %v296 = vld [vmem:[%s245 + $0x74] sm:$0xf]
      %v297 = vld [vmem:[%s245 + $0x78] sm:$0xf]
      %v298 = vld [vmem:[%s245 + $0x7c] sm:$0xf]
      %v299 = vld [vmem:[%s245 + $0x80] sm:$0xf]
      %v300 = vld [vmem:[%s245 + $0x84] sm:$0xf]
      %v301 = vld [vmem:[%s245 + $0x88] sm:$0xf]
      %v302 = vld [vmem:[%s245 + $0x8c] sm:$0xf]
      %v303 = vld [vmem:[%s245 + $0x90] sm:$0xf]
      %v304 = vld [vmem:[%s245 + $0x94] sm:$0xf]
      %v305 = vld [vmem:[%s245 + $0x98] sm:$0xf]
      %v306 = vld [vmem:[%s245 + $0x9c] sm:$0xf]
      %v307 = vld [vmem:[%s245 + $0xa0] sm:$0xf]
      %v308 = vld [vmem:[%s245 + $0xa4] sm:$0xf]
      %v309 = vld [vmem:[%s245 + $0xa8] sm:$0xf]
      %v310 = vld [vmem:[%s245 + $0xac] sm:$0xf]
      %v311 = vld [vmem:[%s245 + $0xb0] sm:$0xf]
      %v312 = vld [vmem:[%s245 + $0xb4] sm:$0xf]
      %v313 = vld [vmem:[%s245 + $0xb8] sm:$0xf]
      %v314 = vld [vmem:[%s245 + $0xbc] sm:$0xf]
      %v315 = vld [vmem:[%s245 + $0xc0] sm:$0xf]
      %v316 = vld [vmem:[%s245 + $0xc4] sm:$0xf]
      %v317 = vld [vmem:[%s245 + $0xc8] sm:$0xf]
      %v318 = vld [vmem:[%s245 + $0xcc] sm:$0xf]
      %v319 = vld [vmem:[%s245 + $0xd0] sm:$0xf]
      %v320 = vld [vmem:[%s245 + $0xd4] sm:$0xf]
      %v321 = vld [vmem:[%s245 + $0xd8] sm:$0xf]
      %v322 = vld [vmem:[%s245 + $0xdc] sm:$0xf]
      %v323 = vld [vmem:[%s245 + $0xe0] sm:$0xf]
      %v324 = vld [vmem:[%s245 + $0xe4] sm:$0xf]
      %v325 = vld [vmem:[%s245 + $0xe8] sm:$0xf]
      %v326 = vld [vmem:[%s245 + $0xec] sm:$0xf]
      %v327 = vld [vmem:[%s245 + $0xf0] sm:$0xf]
      %v328 = vld [vmem:[%s245 + $0xf4] sm:$0xf]
      %v329 = vld [vmem:[%s245 + $0xf8] sm:$0xf]
      %v330 = vld [vmem:[%s245 + $0xfc] sm:$0xf]
      %v331 = vld [vmem:[%s245 + $0x100] sm:$0xf]
      %v332 = vld [vmem:[%s245 + $0x104] sm:$0xf]
      %v333 = vld [vmem:[%s245 + $0x108] sm:$0xf]
      %v334 = vld [vmem:[%s245 + $0x10c] sm:$0xf]
      %v335 = vld [vmem:[%s245 + $0x110] sm:$0xf]
      %v336 = vld [vmem:[%s245 + $0x114] sm:$0xf]
      %v337 = vld [vmem:[%s245 + $0x118] sm:$0xf]
      %v338 = vld [vmem:[%s245 + $0x11c] sm:$0xf]
      %v339 = vld [vmem:[%s245 + $0x120] sm:$0xf]
      %v340 = vld [vmem:[%s245 + $0x124] sm:$0xf]
      %v341 = vld [vmem:[%s245 + $0x128] sm:$0xf]
      %v342 = vld [vmem:[%s245 + $0x12c] sm:$0xf]
      %v343 = vld [vmem:[%s245 + $0x130] sm:$0xf]
      %v344 = vld [vmem:[%s245 + $0x134] sm:$0xf]
      %v345 = vld [vmem:[%s245 + $0x138] sm:$0xf]
      %v346 = vld [vmem:[%s245 + $0x13c] sm:$0xf]
      %v347 = vld [vmem:[%s245 + $0x140] sm:$0xf]
      %v348 = vld [vmem:[%s245 + $0x144] sm:$0xf]
      %v349 = vld [vmem:[%s245 + $0x148] sm:$0xf]
      %v350 = vld [vmem:[%s245 + $0x14c] sm:$0xf]
      %v351 = vld [vmem:[%s245 + $0x150] sm:$0xf]
      %v352 = vld [vmem:[%s245 + $0x154] sm:$0xf]
      %v353 = vld [vmem:[%s245 + $0x158] sm:$0xf]
      %v354 = vld [vmem:[%s245 + $0x15c] sm:$0xf]
      %v355 = vld [vmem:[%s245 + $0x160] sm:$0xf]
      %v356 = vld [vmem:[%s245 + $0x164] sm:$0xf]
      %v357 = vld [vmem:[%s245 + $0x168] sm:$0xf]
      %v358 = vld [vmem:[%s245 + $0x16c] sm:$0xf]
      %v359 = vld [vmem:[%s245 + $0x170] sm:$0xf]
      %v360 = vld [vmem:[%s245 + $0x174] sm:$0xf]
      %v361 = vld [vmem:[%s245 + $0x178] sm:$0xf]
      %v362 = vld [vmem:[%s245 + $0x17c] sm:$0xf]
      %v363 = vld [vmem:[%s245 + $0x180] sm:$0xf]
      %v364 = vld [vmem:[%s245 + $0x184] sm:$0xf]
      %v365 = vld [vmem:[%s245 + $0x188] sm:$0xf]
      %v366 = vld [vmem:[%s245 + $0x18c] sm:$0xf]
      %v367 = vld [vmem:[%s245 + $0x190] sm:$0xf]
      %v368 = vld [vmem:[%s245 + $0x194] sm:$0xf]
      %v369 = vld [vmem:[%s245 + $0x198] sm:$0xf]
      %v370 = vld [vmem:[%s245 + $0x19c] sm:$0xf]
      %v371 = vld [vmem:[%s245 + $0x1a0] sm:$0xf]
      %v372 = vld [vmem:[%s245 + $0x1a4] sm:$0xf]
      %v373 = vld [vmem:[%s245 + $0x1a8] sm:$0xf]
      %v374 = vld [vmem:[%s245 + $0x1ac] sm:$0xf]
      %v375 = vld [vmem:[%s245 + $0x1b0] sm:$0xf]
      %v376 = vld [vmem:[%s245 + $0x1b4] sm:$0xf]
      %v377 = vld [vmem:[%s245 + $0x1b8] sm:$0xf]
      %v378 = vld [vmem:[%s245 + $0x1bc] sm:$0xf]
      %v379 = vld [vmem:[%s245 + $0x1c0] sm:$0xf]
      %v380 = vld [vmem:[%s245 + $0x1c4] sm:$0xf]
      %v381 = vld [vmem:[%s245 + $0x1c8] sm:$0xf]
      %v382 = vld [vmem:[%s245 + $0x1cc] sm:$0xf]
      %v383 = vld [vmem:[%s245 + $0x1d0] sm:$0xf]
      %v384 = vld [vmem:[%s245 + $0x1d4] sm:$0xf]
      %v385 = vld [vmem:[%s245 + $0x1d8] sm:$0xf]
      %v386 = vld [vmem:[%s245 + $0x1dc] sm:$0xf]
      %v387 = vld [vmem:[%s245 + $0x1e0] sm:$0xf]
      %v388 = vld [vmem:[%s245 + $0x1e4] sm:$0xf]
      %v389 = vld [vmem:[%s245 + $0x1e8] sm:$0xf]
      %v390 = vld [vmem:[%s245 + $0x1ec] sm:$0xf]
      %v391 = vld [vmem:[%s245 + $0x1f0] sm:$0xf]
      %v392 = vld [vmem:[%s245 + $0x1f4] sm:$0xf]
      %v393 = vld [vmem:[%s245 + $0x1f8] sm:$0xf]
      %v394 = vld [vmem:[%s245 + $0x1fc] sm:$0xf]
      %v395 = vld [vmem:[%s245 + $0x200] sm:$0xf]
      %v396 = vld [vmem:[%s245 + $0x204] sm:$0xf]
      %v397 = vld [vmem:[%s245 + $0x208] sm:$0xf]
      %v398 = vld [vmem:[%s245 + $0x20c] sm:$0xf]
      %v399 = vld [vmem:[%s245 + $0x210] sm:$0xf]
      %v400 = vld [vmem:[%s245 + $0x214] sm:$0xf]
      %v401 = vld [vmem:[%s245 + $0x218] sm:$0xf]
      %v402 = vld [vmem:[%s245 + $0x21c] sm:$0xf]
      %v403 = vld [vmem:[%s245 + $0x220] sm:$0xf]
      %v404 = vld [vmem:[%s245 + $0x224] sm:$0xf]
      %v405 = vld [vmem:[%s245 + $0x228] sm:$0xf]
      %v406 = vld [vmem:[%s245 + $0x22c] sm:$0xf]
      %v407 = vld [vmem:[%s245 + $0x230] sm:$0xf]
      %v408 = vld [vmem:[%s245 + $0x234] sm:$0xf]
      %v409 = vld [vmem:[%s245 + $0x238] sm:$0xf]
      %v410 = vld [vmem:[%s245 + $0x23c] sm:$0xf]
      %v411 = vld [vmem:[%s245 + $0x240] sm:$0xf]
      %v412 = vld [vmem:[%s245 + $0x244] sm:$0xf]
      %v413 = vld [vmem:[%s245 + $0x248] sm:$0xf]
      %v414 = vld [vmem:[%s245 + $0x24c] sm:$0xf]
      %v415 = vld [vmem:[%s245 + $0x250] sm:$0xf]
      %v416 = vld [vmem:[%s245 + $0x254] sm:$0xf]
      %v417 = vld [vmem:[%s245 + $0x258] sm:$0xf]
      %v418 = vld [vmem:[%s245 + $0x25c] sm:$0xf]
      %v419 = vld [vmem:[%s245 + $0x260] sm:$0xf]
      %v420 = vld [vmem:[%s245 + $0x264] sm:$0xf]
      %v421 = vld [vmem:[%s245 + $0x268] sm:$0xf]
      %v422 = vld [vmem:[%s245 + $0x26c] sm:$0xf]
      %v423 = vld [vmem:[%s245 + $0x270] sm:$0xf]
      %v424 = vld [vmem:[%s245 + $0x274] sm:$0xf]
      %v425 = vld [vmem:[%s245 + $0x278] sm:$0xf]
      %v426 = vld [vmem:[%s245 + $0x27c] sm:$0xf]
      %v427 = vld [vmem:[%s245 + $0x280] sm:$0xf]
      %v428 = vld [vmem:[%s245 + $0x284] sm:$0xf]
      %v429 = vld [vmem:[%s245 + $0x288] sm:$0xf]
      %v430 = vld [vmem:[%s245 + $0x28c] sm:$0xf]
      %v431 = vld [vmem:[%s245 + $0x290] sm:$0xf]
      %v432 = vld [vmem:[%s245 + $0x294] sm:$0xf]
      %v433 = vld [vmem:[%s245 + $0x298] sm:$0xf]
      %v434 = vld [vmem:[%s245 + $0x29c] sm:$0xf]
      %v435 = vld [vmem:[%s245 + $0x2a0] sm:$0xf]
      %v436 = vld [vmem:[%s245 + $0x2a4] sm:$0xf]
      %v437 = vld [vmem:[%s245 + $0x2a8] sm:$0xf]
      %v438 = vld [vmem:[%s245 + $0x2ac] sm:$0xf]
      %v439 = vld [vmem:[%s245 + $0x2b0] sm:$0xf]
      %v440 = vld [vmem:[%s245 + $0x2b4] sm:$0xf]
      %v441 = vld [vmem:[%s245 + $0x2b8] sm:$0xf]
      %v442 = vld [vmem:[%s245 + $0x2bc] sm:$0xf]
      %v443 = vld [vmem:[%s245 + $0x2c0] sm:$0xf]
      %v444 = vld [vmem:[%s245 + $0x2c4] sm:$0xf]
      %v445 = vld [vmem:[%s245 + $0x2c8] sm:$0xf]
      %v446 = vld [vmem:[%s245 + $0x2cc] sm:$0xf]
      %v447 = vld [vmem:[%s245 + $0x2d0] sm:$0xf]
      %v448 = vld [vmem:[%s245 + $0x2d4] sm:$0xf]
      %v449 = vld [vmem:[%s245 + $0x2d8] sm:$0xf]
      %v450 = vld [vmem:[%s245 + $0x2dc] sm:$0xf]
      %v451 = vld [vmem:[%s245 + $0x2e0] sm:$0xf]
      %v452 = vld [vmem:[%s245 + $0x2e4] sm:$0xf]
      %v453 = vld [vmem:[%s245 + $0x2e8] sm:$0xf]
      %v454 = vld [vmem:[%s245 + $0x2ec] sm:$0xf]
      %v455 = vld [vmem:[%s245 + $0x2f0] sm:$0xf]
      %v456 = vld [vmem:[%s245 + $0x2f4] sm:$0xf]
      %v457 = vld [vmem:[%s245 + $0x2f8] sm:$0xf]
      %v458 = vld [vmem:[%s245 + $0x2fc] sm:$0xf]
      %v459 = vld [vmem:[%s245 + $0x300] sm:$0xf]
      %v460 = vld [vmem:[%s245 + $0x304] sm:$0xf]
      %v461 = vld [vmem:[%s245 + $0x308] sm:$0xf]
      %v462 = vld [vmem:[%s245 + $0x30c] sm:$0xf]
      %v463 = vld [vmem:[%s245 + $0x310] sm:$0xf]
      %v464 = vld [vmem:[%s245 + $0x314] sm:$0xf]
      %v465 = vld [vmem:[%s245 + $0x318] sm:$0xf]
      %v466 = vld [vmem:[%s245 + $0x31c] sm:$0xf]
      %v467 = vld [vmem:[%s245 + $0x320] sm:$0xf]
      %v468 = vld [vmem:[%s245 + $0x324] sm:$0xf]
      %v469 = vld [vmem:[%s245 + $0x328] sm:$0xf]
      %v470 = vld [vmem:[%s245 + $0x32c] sm:$0xf]
      %v471 = vld [vmem:[%s245 + $0x330] sm:$0xf]
      %v472 = vld [vmem:[%s245 + $0x334] sm:$0xf]
      %v473 = vld [vmem:[%s245 + $0x338] sm:$0xf]
      %v474 = vld [vmem:[%s245 + $0x33c] sm:$0xf]
      %v475 = vld [vmem:[%s245 + $0x340] sm:$0xf]
      %v476 = vld [vmem:[%s245 + $0x344] sm:$0xf]
      %v477 = vld [vmem:[%s245 + $0x348] sm:$0xf]
      %v478 = vld [vmem:[%s245 + $0x34c] sm:$0xf]
      %v479 = vld [vmem:[%s245 + $0x350] sm:$0xf]
      %v480 = vld [vmem:[%s245 + $0x354] sm:$0xf]
      %v481 = vld [vmem:[%s245 + $0x358] sm:$0xf]
      %v482 = vld [vmem:[%s245 + $0x35c] sm:$0xf]
      %v483 = vld [vmem:[%s245 + $0x360] sm:$0xf]
      %v484 = vld [vmem:[%s245 + $0x364] sm:$0xf]
      %v485 = vld [vmem:[%s245 + $0x368] sm:$0xf]
      %v486 = vld [vmem:[%s245 + $0x36c] sm:$0xf]
      %v487 = vld [vmem:[%s245 + $0x370] sm:$0xf]
      %v488 = vld [vmem:[%s245 + $0x374] sm:$0xf]
      %v489 = vld [vmem:[%s245 + $0x378] sm:$0xf]
      %v490 = vld [vmem:[%s245 + $0x37c] sm:$0xf]
      %v491 = vld [vmem:[%s245 + $0x380] sm:$0xf]
      %v492 = vld [vmem:[%s245 + $0x384] sm:$0xf]
      %v493 = vld [vmem:[%s245 + $0x388] sm:$0xf]
      %v494 = vld [vmem:[%s245 + $0x38c] sm:$0xf]
      %v495 = vld [vmem:[%s245 + $0x390] sm:$0xf]
      %v496 = vld [vmem:[%s245 + $0x394] sm:$0xf]
      %v497 = vld [vmem:[%s245 + $0x398] sm:$0xf]
      %v498 = vld [vmem:[%s245 + $0x39c] sm:$0xf]
      %v499 = vld [vmem:[%s245 + $0x3a0] sm:$0xf]
      %v500 = vld [vmem:[%s245 + $0x3a4] sm:$0xf]
      %v501 = vld [vmem:[%s245 + $0x3a8] sm:$0xf]
      %v502 = vld [vmem:[%s245 + $0x3ac] sm:$0xf]
      %v503 = vld [vmem:[%s245 + $0x3b0] sm:$0xf]
      %v504 = vld [vmem:[%s245 + $0x3b4] sm:$0xf]
      %v505 = vld [vmem:[%s245 + $0x3b8] sm:$0xf]
      %v506 = vld [vmem:[%s245 + $0x3bc] sm:$0xf]
      %v507 = vld [vmem:[%s245 + $0x3c0] sm:$0xf]
      %v508 = vld [vmem:[%s245 + $0x3c4] sm:$0xf]
      %v509 = vld [vmem:[%s245 + $0x3c8] sm:$0xf]
      %v510 = vld [vmem:[%s245 + $0x3cc] sm:$0xf]
      %v511 = vld [vmem:[%s245 + $0x3d0] sm:$0xf]
      %v512 = vld [vmem:[%s245 + $0x3d4] sm:$0xf]
      %v513 = vld [vmem:[%s245 + $0x3d8] sm:$0xf]
      %v514 = vld [vmem:[%s245 + $0x3dc] sm:$0xf]
      %v515 = vld [vmem:[%s245 + $0x3e0] sm:$0xf]
      %v516 = vld [vmem:[%s245 + $0x3e4] sm:$0xf]
      %v517 = vld [vmem:[%s245 + $0x3e8] sm:$0xf]
      %v518 = vld [vmem:[%s245 + $0x3ec] sm:$0xf]
      %v519 = vld [vmem:[%s245 + $0x3f0] sm:$0xf]
      %v520 = vld [vmem:[%s245 + $0x3f4] sm:$0xf]
      %v521 = vld [vmem:[%s245 + $0x3f8] sm:$0xf]
      %v522 = vld [vmem:[%s245 + $0x3fc] sm:$0xf]
      %v523 = vld [vmem:[%s245 + $0x400] sm:$0xf]
      %v524 = vld [vmem:[%s245 + $0x404] sm:$0xf]
      %v525 = vld [vmem:[%s245 + $0x408] sm:$0xf]
      %v526 = vld [vmem:[%s245 + $0x40c] sm:$0xf]
      %v527 = vld [vmem:[%s245 + $0x410] sm:$0xf]
      %v528 = vld [vmem:[%s245 + $0x414] sm:$0xf]
      %v529 = vld [vmem:[%s245 + $0x418] sm:$0xf]
      %v530 = vld [vmem:[%s245 + $0x41c] sm:$0xf]
      %v531 = vld [vmem:[%s245 + $0x420] sm:$0xf]
      %v532 = vld [vmem:[%s245 + $0x424] sm:$0xf]
      %v533 = vld [vmem:[%s245 + $0x428] sm:$0xf]
      %v534 = vld [vmem:[%s245 + $0x42c] sm:$0xf]
      %v535 = vld [vmem:[%s245 + $0x430] sm:$0xf]
      %v536 = vld [vmem:[%s245 + $0x434] sm:$0xf]
      %v537 = vld [vmem:[%s245 + $0x438] sm:$0xf]
      %v538 = vld [vmem:[%s245 + $0x43c] sm:$0xf]
      %v539 = vld [vmem:[%s245 + $0x440] sm:$0xf]
      %v540 = vld [vmem:[%s245 + $0x444] sm:$0xf]
      %v541 = vld [vmem:[%s245 + $0x448] sm:$0xf]
      %v542 = vld [vmem:[%s245 + $0x44c] sm:$0xf]
      %v543 = vld [vmem:[%s245 + $0x450] sm:$0xf]
      %v544 = vld [vmem:[%s245 + $0x454] sm:$0xf]
      %v545 = vld [vmem:[%s245 + $0x458] sm:$0xf]
      %v546 = vld [vmem:[%s245 + $0x45c] sm:$0xf]
      %v547 = vld [vmem:[%s245 + $0x460] sm:$0xf]
      %v548 = vld [vmem:[%s245 + $0x464] sm:$0xf]
      %v549 = vld [vmem:[%s245 + $0x468] sm:$0xf]
      %v550 = vld [vmem:[%s245 + $0x46c] sm:$0xf]
      %v551 = vld [vmem:[%s245 + $0x470] sm:$0xf]
      %v552 = vld [vmem:[%s245 + $0x474] sm:$0xf]
      %v553 = vld [vmem:[%s245 + $0x478] sm:$0xf]
      %v554 = vld [vmem:[%s245 + $0x47c] sm:$0xf]
      %v555 = vld [vmem:[%s245 + $0x480] sm:$0xf]
      %v556 = vld [vmem:[%s245 + $0x484] sm:$0xf]
      %v557 = vld [vmem:[%s245 + $0x488] sm:$0xf]
      %v558 = vld [vmem:[%s245 + $0x48c] sm:$0xf]
      %v559 = vld [vmem:[%s245 + $0x490] sm:$0xf]
      %v560 = vld [vmem:[%s245 + $0x494] sm:$0xf]
      %v561 = vld [vmem:[%s245 + $0x498] sm:$0xf]
      %v562 = vld [vmem:[%s245 + $0x49c] sm:$0xf]
      %v563 = vld [vmem:[%s245 + $0x4a0] sm:$0xf]
      %v564 = vld [vmem:[%s245 + $0x4a4] sm:$0xf]
      %v565 = vld [vmem:[%s245 + $0x4a8] sm:$0xf]
      %v566 = vld [vmem:[%s245 + $0x4ac] sm:$0xf]
      %v567 = vld [vmem:[%s245 + $0x4b0] sm:$0xf]
      %v568 = vld [vmem:[%s245 + $0x4b4] sm:$0xf]
      %v569 = vld [vmem:[%s245 + $0x4b8] sm:$0xf]
      %v570 = vld [vmem:[%s245 + $0x4bc] sm:$0xf]
      %v571 = vld [vmem:[%s245 + $0x4c0] sm:$0xf]
      %v572 = vld [vmem:[%s245 + $0x4c4] sm:$0xf]
      %v573 = vld [vmem:[%s245 + $0x4c8] sm:$0xf]
      %v574 = vld [vmem:[%s245 + $0x4cc] sm:$0xf]
      %v575 = vld [vmem:[%s245 + $0x4d0] sm:$0xf]
      %v576 = vld [vmem:[%s245 + $0x4d4] sm:$0xf]
      %v577 = vld [vmem:[%s245 + $0x4d8] sm:$0xf]
      %v578 = vld [vmem:[%s245 + $0x4dc] sm:$0xf]
      %v579 = vld [vmem:[%s245 + $0x4e0] sm:$0xf]
      %v580 = vld [vmem:[%s245 + $0x4e4] sm:$0xf]
      %v581 = vld [vmem:[%s245 + $0x4e8] sm:$0xf]
      %v582 = vld [vmem:[%s245 + $0x4ec] sm:$0xf]
      %v583 = vld [vmem:[%s245 + $0x4f0] sm:$0xf]
      %v584 = vld [vmem:[%s245 + $0x4f4] sm:$0xf]
      %v585 = vld [vmem:[%s245 + $0x4f8] sm:$0xf]
      %v586 = vld [vmem:[%s245 + $0x4fc] sm:$0xf]
      %v587 = vld [vmem:[%s245 + $0x500] sm:$0xf]
      %v588 = vld [vmem:[%s245 + $0x504] sm:$0xf]
      %v589 = vld [vmem:[%s245 + $0x508] sm:$0xf]
      %v590 = vld [vmem:[%s245 + $0x50c] sm:$0xf]
      %v591 = vld [vmem:[%s245 + $0x510] sm:$0xf]
      %v592 = vld [vmem:[%s245 + $0x514] sm:$0xf]
      %v593 = vld [vmem:[%s245 + $0x518] sm:$0xf]
      %v594 = vld [vmem:[%s245 + $0x51c] sm:$0xf]
      %v595 = vld [vmem:[%s245 + $0x520] sm:$0xf]
      %v596 = vld [vmem:[%s245 + $0x524] sm:$0xf]
      %v597 = vld [vmem:[%s245 + $0x528] sm:$0xf]
      %v598 = vld [vmem:[%s245 + $0x52c] sm:$0xf]
      %v599 = vld [vmem:[%s245 + $0x530] sm:$0xf]
      %v600 = vld [vmem:[%s245 + $0x534] sm:$0xf]
      %v601 = vld [vmem:[%s245 + $0x538] sm:$0xf]
      %v602 = vld [vmem:[%s245 + $0x53c] sm:$0xf]
      %v603 = vld [vmem:[%s245 + $0x540] sm:$0xf]
      %v604 = vld [vmem:[%s245 + $0x544] sm:$0xf]
      %v605 = vld [vmem:[%s245 + $0x548] sm:$0xf]
      %v606 = vld [vmem:[%s245 + $0x54c] sm:$0xf]
      %v607 = vld [vmem:[%s245 + $0x550] sm:$0xf]
      %v608 = vld [vmem:[%s245 + $0x554] sm:$0xf]
      %v609 = vld [vmem:[%s245 + $0x558] sm:$0xf]
      %v610 = vld [vmem:[%s245 + $0x55c] sm:$0xf]
      %v611 = vld [vmem:[%s245 + $0x560] sm:$0xf]
      %v612 = vld [vmem:[%s245 + $0x564] sm:$0xf]
      %v613 = vld [vmem:[%s245 + $0x568] sm:$0xf]
      %v614 = vld [vmem:[%s245 + $0x56c] sm:$0xf]
      %v615 = vld [vmem:[%s245 + $0x570] sm:$0xf]
      %v616 = vld [vmem:[%s245 + $0x574] sm:$0xf]
      %v617 = vld [vmem:[%s245 + $0x578] sm:$0xf]
      %v618 = vld [vmem:[%s245 + $0x57c] sm:$0xf]
      %v619 = vld [vmem:[%s245 + $0x580] sm:$0xf]
      %v620 = vld [vmem:[%s245 + $0x584] sm:$0xf]
      %v621 = vld [vmem:[%s245 + $0x588] sm:$0xf]
      %v622 = vld [vmem:[%s245 + $0x58c] sm:$0xf]
      %v623 = vld [vmem:[%s245 + $0x590] sm:$0xf]
      %v624 = vld [vmem:[%s245 + $0x594] sm:$0xf]
      %v625 = vld [vmem:[%s245 + $0x598] sm:$0xf]
      %v626 = vld [vmem:[%s245 + $0x59c] sm:$0xf]
      %v627 = vld [vmem:[%s245 + $0x5a0] sm:$0xf]
      %v628 = vld [vmem:[%s245 + $0x5a4] sm:$0xf]
      %v629 = vld [vmem:[%s245 + $0x5a8] sm:$0xf]
      %v630 = vld [vmem:[%s245 + $0x5ac] sm:$0xf]
      %v631 = vld [vmem:[%s245 + $0x5b0] sm:$0xf]
      %v632 = vld [vmem:[%s245 + $0x5b4] sm:$0xf]
      %v633 = vld [vmem:[%s245 + $0x5b8] sm:$0xf]
      %v634 = vld [vmem:[%s245 + $0x5bc] sm:$0xf]
      %v635 = vld [vmem:[%s245 + $0x5c0] sm:$0xf]
      %v636 = vld [vmem:[%s245 + $0x5c4] sm:$0xf]
      %v637 = vld [vmem:[%s245 + $0x5c8] sm:$0xf]
      %v638 = vld [vmem:[%s245 + $0x5cc] sm:$0xf]
      %v639 = vld [vmem:[%s245 + $0x5d0] sm:$0xf]
      %v640 = vld [vmem:[%s245 + $0x5d4] sm:$0xf]
      %v641 = vld [vmem:[%s245 + $0x5d8] sm:$0xf]
      %v642 = vld [vmem:[%s245 + $0x5dc] sm:$0xf]
      %v643 = vld [vmem:[%s245 + $0x5e0] sm:$0xf]
      %v644 = vld [vmem:[%s245 + $0x5e4] sm:$0xf]
      %v645 = vld [vmem:[%s245 + $0x5e8] sm:$0xf]
      %v646 = vld [vmem:[%s245 + $0x5ec] sm:$0xf]
      %v647 = vld [vmem:[%s245 + $0x5f0] sm:$0xf]
      %v648 = vld [vmem:[%s245 + $0x5f4] sm:$0xf]
      %v649 = vld [vmem:[%s245 + $0x5f8] sm:$0xf]
      %v650 = vld [vmem:[%s245 + $0x5fc] sm:$0xf]
      %v651 = vld [vmem:[%s245 + $0x600] sm:$0xf]
      %v652 = vld [vmem:[%s245 + $0x604] sm:$0xf]
      %v653 = vld [vmem:[%s245 + $0x608] sm:$0xf]
      %v654 = vld [vmem:[%s245 + $0x60c] sm:$0xf]
      %v655 = vld [vmem:[%s245 + $0x610] sm:$0xf]
      %v656 = vld [vmem:[%s245 + $0x614] sm:$0xf]
      %v657 = vld [vmem:[%s245 + $0x618] sm:$0xf]
      %v658 = vld [vmem:[%s245 + $0x61c] sm:$0xf]
      %v659 = vld [vmem:[%s245 + $0x620] sm:$0xf]
      %v660 = vld [vmem:[%s245 + $0x624] sm:$0xf]
      %v661 = vld [vmem:[%s245 + $0x628] sm:$0xf]
      %v662 = vld [vmem:[%s245 + $0x62c] sm:$0xf]
      %v663 = vld [vmem:[%s245 + $0x630] sm:$0xf]
      %v664 = vld [vmem:[%s245 + $0x634] sm:$0xf]
      %v665 = vld [vmem:[%s245 + $0x638] sm:$0xf]
      %v666 = vld [vmem:[%s245 + $0x63c] sm:$0xf]
      %v667 = vld [vmem:[%s245 + $0x640] sm:$0xf]
      %v668 = vld [vmem:[%s245 + $0x644] sm:$0xf]
      %v669 = vld [vmem:[%s245 + $0x648] sm:$0xf]
      %v670 = vld [vmem:[%s245 + $0x64c] sm:$0xf]
      %v671 = vld [vmem:[%s245 + $0x650] sm:$0xf]
      %v672 = vld [vmem:[%s245 + $0x654] sm:$0xf]
      %v673 = vld [vmem:[%s245 + $0x658] sm:$0xf]
      %v674 = vld [vmem:[%s245 + $0x65c] sm:$0xf]
      %v675 = vld [vmem:[%s245 + $0x660] sm:$0xf]
      %v676 = vld [vmem:[%s245 + $0x664] sm:$0xf]
      %v677 = vld [vmem:[%s245 + $0x668] sm:$0xf]
      %v678 = vld [vmem:[%s245 + $0x66c] sm:$0xf]
      %v679 = vld [vmem:[%s245 + $0x670] sm:$0xf]
      %v680 = vld [vmem:[%s245 + $0x674] sm:$0xf]
      %v681 = vld [vmem:[%s245 + $0x678] sm:$0xf]
      %v682 = vld [vmem:[%s245 + $0x67c] sm:$0xf]
      %v683 = vld [vmem:[%s245 + $0x680] sm:$0xf]
      %v684 = vld [vmem:[%s245 + $0x684] sm:$0xf]
      %v685 = vld [vmem:[%s245 + $0x688] sm:$0xf]
      %v686 = vld [vmem:[%s245 + $0x68c] sm:$0xf]
      %v687 = vld [vmem:[%s245 + $0x690] sm:$0xf]
      %v688 = vld [vmem:[%s245 + $0x694] sm:$0xf]
      %v689 = vld [vmem:[%s245 + $0x698] sm:$0xf]
      %v690 = vld [vmem:[%s245 + $0x69c] sm:$0xf]
      %v691 = vld [vmem:[%s245 + $0x6a0] sm:$0xf]
      %v692 = vld [vmem:[%s245 + $0x6a4] sm:$0xf]
      %v693 = vld [vmem:[%s245 + $0x6a8] sm:$0xf]
      %v694 = vld [vmem:[%s245 + $0x6ac] sm:$0xf]
      %v695 = vld [vmem:[%s245 + $0x6b0] sm:$0xf]
      %v696 = vld [vmem:[%s245 + $0x6b4] sm:$0xf]
      %v697 = vld [vmem:[%s245 + $0x6b8] sm:$0xf]
      %v698 = vld [vmem:[%s245 + $0x6bc] sm:$0xf]
      %v699 = vld [vmem:[%s245 + $0x6c0] sm:$0xf]
      %v700 = vld [vmem:[%s245 + $0x6c4] sm:$0xf]
      %v701 = vld [vmem:[%s245 + $0x6c8] sm:$0xf]
      %v702 = vld [vmem:[%s245 + $0x6cc] sm:$0xf]
      %v703 = vld [vmem:[%s245 + $0x6d0] sm:$0xf]
      %v704 = vld [vmem:[%s245 + $0x6d4] sm:$0xf]
      %v705 = vld [vmem:[%s245 + $0x6d8] sm:$0xf]
      %v706 = vld [vmem:[%s245 + $0x6dc] sm:$0xf]
      %v707 = vld [vmem:[%s245 + $0x6e0] sm:$0xf]
      %v708 = vld [vmem:[%s245 + $0x6e4] sm:$0xf]
      %v709 = vld [vmem:[%s245 + $0x6e8] sm:$0xf]
      %v710 = vld [vmem:[%s245 + $0x6ec] sm:$0xf]
      %v711 = vld [vmem:[%s245 + $0x6f0] sm:$0xf]
      %v712 = vld [vmem:[%s245 + $0x6f4] sm:$0xf]
      %v713 = vld [vmem:[%s245 + $0x6f8] sm:$0xf]
      %v714 = vld [vmem:[%s245 + $0x6fc] sm:$0xf]
      %v715 = vld [vmem:[%s245 + $0x700] sm:$0xf]
      %v716 = vld [vmem:[%s245 + $0x704] sm:$0xf]
      %v717 = vld [vmem:[%s245 + $0x708] sm:$0xf]
      %v718 = vld [vmem:[%s245 + $0x70c] sm:$0xf]
      %v719 = vld [vmem:[%s245 + $0x710] sm:$0xf]
      %v720 = vld [vmem:[%s245 + $0x714] sm:$0xf]
      %v721 = vld [vmem:[%s245 + $0x718] sm:$0xf]
      %v722 = vld [vmem:[%s245 + $0x71c] sm:$0xf]
      %v723 = vld [vmem:[%s245 + $0x720] sm:$0xf]
      %v724 = vld [vmem:[%s245 + $0x724] sm:$0xf]
      %v725 = vld [vmem:[%s245 + $0x728] sm:$0xf]
      %v726 = vld [vmem:[%s245 + $0x72c] sm:$0xf]
      %v727 = vld [vmem:[%s245 + $0x730] sm:$0xf]
      %v728 = vld [vmem:[%s245 + $0x734] sm:$0xf]
      %v729 = vld [vmem:[%s245 + $0x738] sm:$0xf]
      %v730 = vld [vmem:[%s245 + $0x73c] sm:$0xf]
      %v731 = vld [vmem:[%s245 + $0x740] sm:$0xf]
      %v732 = vld [vmem:[%s245 + $0x744] sm:$0xf]
      %v733 = vld [vmem:[%s245 + $0x748] sm:$0xf]
      %v734 = vld [vmem:[%s245 + $0x74c] sm:$0xf]
      %v735 = vld [vmem:[%s245 + $0x750] sm:$0xf]
      %v736 = vld [vmem:[%s245 + $0x754] sm:$0xf]
      %v737 = vld [vmem:[%s245 + $0x758] sm:$0xf]
      %v738 = vld [vmem:[%s245 + $0x75c] sm:$0xf]
      %v739 = vld [vmem:[%s245 + $0x760] sm:$0xf]
      %v740 = vld [vmem:[%s245 + $0x764] sm:$0xf]
      %v741 = vld [vmem:[%s245 + $0x768] sm:$0xf]
      %v742 = vld [vmem:[%s245 + $0x76c] sm:$0xf]
      %v743 = vld [vmem:[%s245 + $0x770] sm:$0xf]
      %v744 = vld [vmem:[%s245 + $0x774] sm:$0xf]
      %v745 = vld [vmem:[%s245 + $0x778] sm:$0xf]
      %v746 = vld [vmem:[%s245 + $0x77c] sm:$0xf]
      %v747 = vld [vmem:[%s245 + $0x780] sm:$0xf]
      %v748 = vld [vmem:[%s245 + $0x784] sm:$0xf]
      %v749 = vld [vmem:[%s245 + $0x788] sm:$0xf]
      %v750 = vld [vmem:[%s245 + $0x78c] sm:$0xf]
      %v751 = vld [vmem:[%s245 + $0x790] sm:$0xf]
      %v752 = vld [vmem:[%s245 + $0x794] sm:$0xf]
      %v753 = vld [vmem:[%s245 + $0x798] sm:$0xf]
      %v754 = vld [vmem:[%s245 + $0x79c] sm:$0xf]
      %v755 = vld [vmem:[%s245 + $0x7a0] sm:$0xf]
      %v756 = vld [vmem:[%s245 + $0x7a4] sm:$0xf]
      %v757 = vld [vmem:[%s245 + $0x7a8] sm:$0xf]
      %v758 = vld [vmem:[%s245 + $0x7ac] sm:$0xf]
      %v759 = vld [vmem:[%s245 + $0x7b0] sm:$0xf]
      %v760 = vld [vmem:[%s245 + $0x7b4] sm:$0xf]
      %v761 = vld [vmem:[%s245 + $0x7b8] sm:$0xf]
      %v762 = vld [vmem:[%s245 + $0x7bc] sm:$0xf]
      %v763 = vld [vmem:[%s245 + $0x7c0] sm:$0xf]
      %v764 = vld [vmem:[%s245 + $0x7c4] sm:$0xf]
      %v765 = vld [vmem:[%s245 + $0x7c8] sm:$0xf]
      %v766 = vld [vmem:[%s245 + $0x7cc] sm:$0xf]
      %v767 = vld [vmem:[%s245 + $0x7d0] sm:$0xf]
      %v768 = vld [vmem:[%s245 + $0x7d4] sm:$0xf]
      %v769 = vld [vmem:[%s245 + $0x7d8] sm:$0xf]
      %v770 = vld [vmem:[%s245 + $0x7dc] sm:$0xf]
      %v771 = vld [vmem:[%s245 + $0x7e0] sm:$0xf]
      %v772 = vld [vmem:[%s245 + $0x7e4] sm:$0xf]
      %v773 = vld [vmem:[%s245 + $0x7e8] sm:$0xf]
      %v774 = vld [vmem:[%s245 + $0x7ec] sm:$0xf]
      %v775 = vld [vmem:[%s245 + $0x7f0] sm:$0xf]
      %v776 = vld [vmem:[%s245 + $0x7f4] sm:$0xf]
      %v777 = vld [vmem:[%s245 + $0x7f8] sm:$0xf]
      %v778 = vld [vmem:[%s245 + $0x7fc] sm:$0xf]
      %v779 = vld [vmem:[%s250] sm:$0xf]
      %v780 = vld [vmem:[%s250 + $0x4] sm:$0xf]
      %v781 = vld [vmem:[%s250 + $0x8] sm:$0xf]
      %v782 = vld [vmem:[%s250 + $0xc] sm:$0x3]
      %v1295 = vunpack.c.l.b16 %v267
      %v1296 = vunpack.c.l.b16 %v268
      %v1297 = vunpack.c.l.b16 %v269
      %v1298 = vunpack.c.l.b16 %v270
      %v1299 = vunpack.c.l.b16 %v271
      %v1300 = vunpack.c.l.b16 %v272
      %v1301 = vunpack.c.l.b16 %v273
      %v1302 = vunpack.c.l.b16 %v274
      %v1303 = vunpack.c.l.b16 %v275
      %v1304 = vunpack.c.l.b16 %v276
      %v1305 = vunpack.c.l.b16 %v277
      %v1306 = vunpack.c.l.b16 %v278
      %v1307 = vunpack.c.l.b16 %v279
      %v1308 = vunpack.c.l.b16 %v280
      %v1309 = vunpack.c.l.b16 %v281
      %v1310 = vunpack.c.l.b16 %v282
      %v1311 = vunpack.c.l.b16 %v283
      %v1312 = vunpack.c.l.b16 %v284
      %v1313 = vunpack.c.l.b16 %v285
      %v1314 = vunpack.c.l.b16 %v286
      %v1315 = vunpack.c.l.b16 %v287
      %v1316 = vunpack.c.l.b16 %v288
      %v1317 = vunpack.c.l.b16 %v289
      %v1318 = vunpack.c.l.b16 %v290
      %v1319 = vunpack.c.l.b16 %v291
      %v1320 = vunpack.c.l.b16 %v292
      %v1321 = vunpack.c.l.b16 %v293
      %v1322 = vunpack.c.l.b16 %v294
      %v1323 = vunpack.c.l.b16 %v295
      %v1324 = vunpack.c.l.b16 %v296
      %v1325 = vunpack.c.l.b16 %v297
      %v1326 = vunpack.c.l.b16 %v298
      %v1327 = vunpack.c.l.b16 %v299
      %v1328 = vunpack.c.l.b16 %v300
      %v1329 = vunpack.c.l.b16 %v301
      %v1330 = vunpack.c.l.b16 %v302
      %v1331 = vunpack.c.l.b16 %v303
      %v1332 = vunpack.c.l.b16 %v304
      %v1333 = vunpack.c.l.b16 %v305
      %v1334 = vunpack.c.l.b16 %v306
      %v1335 = vunpack.c.l.b16 %v307
      %v1336 = vunpack.c.l.b16 %v308
      %v1337 = vunpack.c.l.b16 %v309
      %v1338 = vunpack.c.l.b16 %v310
      %v1339 = vunpack.c.l.b16 %v311
      %v1340 = vunpack.c.l.b16 %v312
      %v1341 = vunpack.c.l.b16 %v313
      %v1342 = vunpack.c.l.b16 %v314
      %v1343 = vunpack.c.l.b16 %v315
      %v1344 = vunpack.c.l.b16 %v316
      %v1345 = vunpack.c.l.b16 %v317
      %v1346 = vunpack.c.l.b16 %v318
      %v1347 = vunpack.c.l.b16 %v319
      %v1348 = vunpack.c.l.b16 %v320
      %v1349 = vunpack.c.l.b16 %v321
      %v1350 = vunpack.c.l.b16 %v322
      %v1351 = vunpack.c.l.b16 %v323
      %v1352 = vunpack.c.l.b16 %v324
      %v1353 = vunpack.c.l.b16 %v325
      %v1354 = vunpack.c.l.b16 %v326
      %v1355 = vunpack.c.l.b16 %v327
      %v1356 = vunpack.c.l.b16 %v328
      %v1357 = vunpack.c.l.b16 %v329
      %v1358 = vunpack.c.l.b16 %v330
      %v1359 = vunpack.c.l.b16 %v331
      %v1360 = vunpack.c.l.b16 %v332
      %v1361 = vunpack.c.l.b16 %v333
      %v1362 = vunpack.c.l.b16 %v334
      %v1363 = vunpack.c.l.b16 %v335
      %v1364 = vunpack.c.l.b16 %v336
      %v1365 = vunpack.c.l.b16 %v337
      %v1366 = vunpack.c.l.b16 %v338
      %v1367 = vunpack.c.l.b16 %v339
      %v1368 = vunpack.c.l.b16 %v340
      %v1369 = vunpack.c.l.b16 %v341
      %v1370 = vunpack.c.l.b16 %v342
      %v1371 = vunpack.c.l.b16 %v343
      %v1372 = vunpack.c.l.b16 %v344
      %v1373 = vunpack.c.l.b16 %v345
      %v1374 = vunpack.c.l.b16 %v346
      %v1375 = vunpack.c.l.b16 %v347
      %v1376 = vunpack.c.l.b16 %v348
      %v1377 = vunpack.c.l.b16 %v349
      %v1378 = vunpack.c.l.b16 %v350
      %v1379 = vunpack.c.l.b16 %v351
      %v1380 = vunpack.c.l.b16 %v352
      %v1381 = vunpack.c.l.b16 %v353
      %v1382 = vunpack.c.l.b16 %v354
      %v1383 = vunpack.c.l.b16 %v355
      %v1384 = vunpack.c.l.b16 %v356
      %v1385 = vunpack.c.l.b16 %v357
      %v1386 = vunpack.c.l.b16 %v358
      %v1387 = vunpack.c.l.b16 %v359
      %v1388 = vunpack.c.l.b16 %v360
      %v1389 = vunpack.c.l.b16 %v361
      %v1390 = vunpack.c.l.b16 %v362
      %v1391 = vunpack.c.l.b16 %v363
      %v1392 = vunpack.c.l.b16 %v364
      %v1393 = vunpack.c.l.b16 %v365
      %v1394 = vunpack.c.l.b16 %v366
      %v1395 = vunpack.c.l.b16 %v367
      %v1396 = vunpack.c.l.b16 %v368
      %v1397 = vunpack.c.l.b16 %v369
      %v1398 = vunpack.c.l.b16 %v370
      %v1399 = vunpack.c.l.b16 %v371
      %v1400 = vunpack.c.l.b16 %v372
      %v1401 = vunpack.c.l.b16 %v373
      %v1402 = vunpack.c.l.b16 %v374
      %v1403 = vunpack.c.l.b16 %v375
      %v1404 = vunpack.c.l.b16 %v376
      %v1405 = vunpack.c.l.b16 %v377
      %v1406 = vunpack.c.l.b16 %v378
      %v1407 = vunpack.c.l.b16 %v379
      %v1408 = vunpack.c.l.b16 %v380
      %v1409 = vunpack.c.l.b16 %v381
      %v1410 = vunpack.c.l.b16 %v382
      %v1411 = vunpack.c.l.b16 %v383
      %v1412 = vunpack.c.l.b16 %v384
      %v1413 = vunpack.c.l.b16 %v385
      %v1414 = vunpack.c.l.b16 %v386
      %v1415 = vunpack.c.l.b16 %v387
      %v1416 = vunpack.c.l.b16 %v388
      %v1417 = vunpack.c.l.b16 %v389
      %v1418 = vunpack.c.l.b16 %v390
      %v1419 = vunpack.c.l.b16 %v391
      %v1420 = vunpack.c.l.b16 %v392
      %v1421 = vunpack.c.l.b16 %v393
      %v1422 = vunpack.c.l.b16 %v394
      %v1423 = vunpack.c.l.b16 %v395
      %v1424 = vunpack.c.l.b16 %v396
      %v1425 = vunpack.c.l.b16 %v397
      %v1426 = vunpack.c.l.b16 %v398
      %v1427 = vunpack.c.l.b16 %v399
      %v1428 = vunpack.c.l.b16 %v400
      %v1429 = vunpack.c.l.b16 %v401
      %v1430 = vunpack.c.l.b16 %v402
      %v1431 = vunpack.c.l.b16 %v403
      %v1432 = vunpack.c.l.b16 %v404
      %v1433 = vunpack.c.l.b16 %v405
      %v1434 = vunpack.c.l.b16 %v406
      %v1435 = vunpack.c.l.b16 %v407
      %v1436 = vunpack.c.l.b16 %v408
      %v1437 = vunpack.c.l.b16 %v409
      %v1438 = vunpack.c.l.b16 %v410
      %v1439 = vunpack.c.l.b16 %v411
      %v1440 = vunpack.c.l.b16 %v412
      %v1441 = vunpack.c.l.b16 %v413
      %v1442 = vunpack.c.l.b16 %v414
      %v1443 = vunpack.c.l.b16 %v415
      %v1444 = vunpack.c.l.b16 %v416
      %v1445 = vunpack.c.l.b16 %v417
      %v1446 = vunpack.c.l.b16 %v418
      %v1447 = vunpack.c.l.b16 %v419
      %v1448 = vunpack.c.l.b16 %v420
      %v1449 = vunpack.c.l.b16 %v421
      %v1450 = vunpack.c.l.b16 %v422
      %v1451 = vunpack.c.l.b16 %v423
      %v1452 = vunpack.c.l.b16 %v424
      %v1453 = vunpack.c.l.b16 %v425
      %v1454 = vunpack.c.l.b16 %v426
      %v1455 = vunpack.c.l.b16 %v427
      %v1456 = vunpack.c.l.b16 %v428
      %v1457 = vunpack.c.l.b16 %v429
      %v1458 = vunpack.c.l.b16 %v430
      %v1459 = vunpack.c.l.b16 %v431
      %v1460 = vunpack.c.l.b16 %v432
      %v1461 = vunpack.c.l.b16 %v433
      %v1462 = vunpack.c.l.b16 %v434
      %v1463 = vunpack.c.l.b16 %v435
      %v1464 = vunpack.c.l.b16 %v436
      %v1465 = vunpack.c.l.b16 %v437
      %v1466 = vunpack.c.l.b16 %v438
      %v1467 = vunpack.c.l.b16 %v439
      %v1468 = vunpack.c.l.b16 %v440
      %v1469 = vunpack.c.l.b16 %v441
      %v1470 = vunpack.c.l.b16 %v442
      %v1471 = vunpack.c.l.b16 %v443
      %v1472 = vunpack.c.l.b16 %v444
      %v1473 = vunpack.c.l.b16 %v445
      %v1474 = vunpack.c.l.b16 %v446
      %v1475 = vunpack.c.l.b16 %v447
      %v1476 = vunpack.c.l.b16 %v448
      %v1477 = vunpack.c.l.b16 %v449
      %v1478 = vunpack.c.l.b16 %v450
      %v1479 = vunpack.c.l.b16 %v451
      %v1480 = vunpack.c.l.b16 %v452
      %v1481 = vunpack.c.l.b16 %v453
      %v1482 = vunpack.c.l.b16 %v454
      %v1483 = vunpack.c.l.b16 %v455
      %v1484 = vunpack.c.l.b16 %v456
      %v1485 = vunpack.c.l.b16 %v457
      %v1486 = vunpack.c.l.b16 %v458
      %v1487 = vunpack.c.l.b16 %v459
      %v1488 = vunpack.c.l.b16 %v460
      %v1489 = vunpack.c.l.b16 %v461
      %v1490 = vunpack.c.l.b16 %v462
      %v1491 = vunpack.c.l.b16 %v463
      %v1492 = vunpack.c.l.b16 %v464
      %v1493 = vunpack.c.l.b16 %v465
      %v1494 = vunpack.c.l.b16 %v466
      %v1495 = vunpack.c.l.b16 %v467
      %v1496 = vunpack.c.l.b16 %v468
      %v1497 = vunpack.c.l.b16 %v469
      %v1498 = vunpack.c.l.b16 %v470
      %v1499 = vunpack.c.l.b16 %v471
      %v1500 = vunpack.c.l.b16 %v472
      %v1501 = vunpack.c.l.b16 %v473
      %v1502 = vunpack.c.l.b16 %v474
      %v1503 = vunpack.c.l.b16 %v475
      %v1504 = vunpack.c.l.b16 %v476
      %v1505 = vunpack.c.l.b16 %v477
      %v1506 = vunpack.c.l.b16 %v478
      %v1507 = vunpack.c.l.b16 %v479
      %v1508 = vunpack.c.l.b16 %v480
      %v1509 = vunpack.c.l.b16 %v481
      %v1510 = vunpack.c.l.b16 %v482
      %v1511 = vunpack.c.l.b16 %v483
      %v1512 = vunpack.c.l.b16 %v484
      %v1513 = vunpack.c.l.b16 %v485
      %v1514 = vunpack.c.l.b16 %v486
      %v1515 = vunpack.c.l.b16 %v487
      %v1516 = vunpack.c.l.b16 %v488
      %v1517 = vunpack.c.l.b16 %v489
      %v1518 = vunpack.c.l.b16 %v490
      %v1519 = vunpack.c.l.b16 %v491
      %v1520 = vunpack.c.l.b16 %v492
      %v1521 = vunpack.c.l.b16 %v493
      %v1522 = vunpack.c.l.b16 %v494
      %v1523 = vunpack.c.l.b16 %v495
      %v1524 = vunpack.c.l.b16 %v496
      %v1525 = vunpack.c.l.b16 %v497
      %v1526 = vunpack.c.l.b16 %v498
      %v1527 = vunpack.c.l.b16 %v499
      %v1528 = vunpack.c.l.b16 %v500
      %v1529 = vunpack.c.l.b16 %v501
      %v1530 = vunpack.c.l.b16 %v502
      %v1531 = vunpack.c.l.b16 %v503
      %v1532 = vunpack.c.l.b16 %v504
      %v1533 = vunpack.c.l.b16 %v505
      %v1534 = vunpack.c.l.b16 %v506
      %v1535 = vunpack.c.l.b16 %v507
      %v1536 = vunpack.c.l.b16 %v508
      %v1537 = vunpack.c.l.b16 %v509
      %v1538 = vunpack.c.l.b16 %v510
      %v1539 = vunpack.c.l.b16 %v511
      %v1540 = vunpack.c.l.b16 %v512
      %v1541 = vunpack.c.l.b16 %v513
      %v1542 = vunpack.c.l.b16 %v514
      %v1543 = vunpack.c.l.b16 %v515
      %v1544 = vunpack.c.l.b16 %v516
      %v1545 = vunpack.c.l.b16 %v517
      %v1546 = vunpack.c.l.b16 %v518
      %v1547 = vunpack.c.l.b16 %v519
      %v1548 = vunpack.c.l.b16 %v520
      %v1549 = vunpack.c.l.b16 %v521
      %v1550 = vunpack.c.l.b16 %v522
      %v1551 = vunpack.c.l.b16 %v523
      %v1552 = vunpack.c.l.b16 %v524
      %v1553 = vunpack.c.l.b16 %v525
      %v1554 = vunpack.c.l.b16 %v526
      %v1555 = vunpack.c.l.b16 %v527
      %v1556 = vunpack.c.l.b16 %v528
      %v1557 = vunpack.c.l.b16 %v529
      %v1558 = vunpack.c.l.b16 %v530
      %v1559 = vunpack.c.l.b16 %v531
      %v1560 = vunpack.c.l.b16 %v532
      %v1561 = vunpack.c.l.b16 %v533
      %v1562 = vunpack.c.l.b16 %v534
      %v1563 = vunpack.c.l.b16 %v535
      %v1564 = vunpack.c.l.b16 %v536
      %v1565 = vunpack.c.l.b16 %v537
      %v1566 = vunpack.c.l.b16 %v538
      %v1567 = vunpack.c.l.b16 %v539
      %v1568 = vunpack.c.l.b16 %v540
      %v1569 = vunpack.c.l.b16 %v541
      %v1570 = vunpack.c.l.b16 %v542
      %v1571 = vunpack.c.l.b16 %v543
      %v1572 = vunpack.c.l.b16 %v544
      %v1573 = vunpack.c.l.b16 %v545
      %v1574 = vunpack.c.l.b16 %v546
      %v1575 = vunpack.c.l.b16 %v547
      %v1576 = vunpack.c.l.b16 %v548
      %v1577 = vunpack.c.l.b16 %v549
      %v1578 = vunpack.c.l.b16 %v550
      %v1579 = vunpack.c.l.b16 %v551
      %v1580 = vunpack.c.l.b16 %v552
      %v1581 = vunpack.c.l.b16 %v553
      %v1582 = vunpack.c.l.b16 %v554
      %v1583 = vunpack.c.l.b16 %v555
      %v1584 = vunpack.c.l.b16 %v556
      %v1585 = vunpack.c.l.b16 %v557
      %v1586 = vunpack.c.l.b16 %v558
      %v1587 = vunpack.c.l.b16 %v559
      %v1588 = vunpack.c.l.b16 %v560
      %v1589 = vunpack.c.l.b16 %v561
      %v1590 = vunpack.c.l.b16 %v562
      %v1591 = vunpack.c.l.b16 %v563
      %v1592 = vunpack.c.l.b16 %v564
      %v1593 = vunpack.c.l.b16 %v565
      %v1594 = vunpack.c.l.b16 %v566
      %v1595 = vunpack.c.l.b16 %v567
      %v1596 = vunpack.c.l.b16 %v568
      %v1597 = vunpack.c.l.b16 %v569
      %v1598 = vunpack.c.l.b16 %v570
      %v1599 = vunpack.c.l.b16 %v571
      %v1600 = vunpack.c.l.b16 %v572
      %v1601 = vunpack.c.l.b16 %v573
      %v1602 = vunpack.c.l.b16 %v574
      %v1603 = vunpack.c.l.b16 %v575
      %v1604 = vunpack.c.l.b16 %v576
      %v1605 = vunpack.c.l.b16 %v577
      %v1606 = vunpack.c.l.b16 %v578
      %v1607 = vunpack.c.l.b16 %v579
      %v1608 = vunpack.c.l.b16 %v580
      %v1609 = vunpack.c.l.b16 %v581
      %v1610 = vunpack.c.l.b16 %v582
      %v1611 = vunpack.c.l.b16 %v583
      %v1612 = vunpack.c.l.b16 %v584
      %v1613 = vunpack.c.l.b16 %v585
      %v1614 = vunpack.c.l.b16 %v586
      %v1615 = vunpack.c.l.b16 %v587
      %v1616 = vunpack.c.l.b16 %v588
      %v1617 = vunpack.c.l.b16 %v589
      %v1618 = vunpack.c.l.b16 %v590
      %v1619 = vunpack.c.l.b16 %v591
      %v1620 = vunpack.c.l.b16 %v592
      %v1621 = vunpack.c.l.b16 %v593
      %v1622 = vunpack.c.l.b16 %v594
      %v1623 = vunpack.c.l.b16 %v595
      %v1624 = vunpack.c.l.b16 %v596
      %v1625 = vunpack.c.l.b16 %v597
      %v1626 = vunpack.c.l.b16 %v598
      %v1627 = vunpack.c.l.b16 %v599
      %v1628 = vunpack.c.l.b16 %v600
      %v1629 = vunpack.c.l.b16 %v601
      %v1630 = vunpack.c.l.b16 %v602
      %v1631 = vunpack.c.l.b16 %v603
      %v1632 = vunpack.c.l.b16 %v604
      %v1633 = vunpack.c.l.b16 %v605
      %v1634 = vunpack.c.l.b16 %v606
      %v1635 = vunpack.c.l.b16 %v607
      %v1636 = vunpack.c.l.b16 %v608
      %v1637 = vunpack.c.l.b16 %v609
      %v1638 = vunpack.c.l.b16 %v610
      %v1639 = vunpack.c.l.b16 %v611
      %v1640 = vunpack.c.l.b16 %v612
      %v1641 = vunpack.c.l.b16 %v613
      %v1642 = vunpack.c.l.b16 %v614
      %v1643 = vunpack.c.l.b16 %v615
      %v1644 = vunpack.c.l.b16 %v616
      %v1645 = vunpack.c.l.b16 %v617
      %v1646 = vunpack.c.l.b16 %v618
      %v1647 = vunpack.c.l.b16 %v619
      %v1648 = vunpack.c.l.b16 %v620
      %v1649 = vunpack.c.l.b16 %v621
      %v1650 = vunpack.c.l.b16 %v622
      %v1651 = vunpack.c.l.b16 %v623
      %v1652 = vunpack.c.l.b16 %v624
      %v1653 = vunpack.c.l.b16 %v625
      %v1654 = vunpack.c.l.b16 %v626
      %v1655 = vunpack.c.l.b16 %v627
      %v1656 = vunpack.c.l.b16 %v628
      %v1657 = vunpack.c.l.b16 %v629
      %v1658 = vunpack.c.l.b16 %v630
      %v1659 = vunpack.c.l.b16 %v631
      %v1660 = vunpack.c.l.b16 %v632
      %v1661 = vunpack.c.l.b16 %v633
      %v1662 = vunpack.c.l.b16 %v634
      %v1663 = vunpack.c.l.b16 %v635
      %v1664 = vunpack.c.l.b16 %v636
      %v1665 = vunpack.c.l.b16 %v637
      %v1666 = vunpack.c.l.b16 %v638
      %v1667 = vunpack.c.l.b16 %v639
      %v1668 = vunpack.c.l.b16 %v640
      %v1669 = vunpack.c.l.b16 %v641
      %v1670 = vunpack.c.l.b16 %v642
      %v1671 = vunpack.c.l.b16 %v643
      %v1672 = vunpack.c.l.b16 %v644
      %v1673 = vunpack.c.l.b16 %v645
      %v1674 = vunpack.c.l.b16 %v646
      %v1675 = vunpack.c.l.b16 %v647
      %v1676 = vunpack.c.l.b16 %v648
      %v1677 = vunpack.c.l.b16 %v649
      %v1678 = vunpack.c.l.b16 %v650
      %v1679 = vunpack.c.l.b16 %v651
      %v1680 = vunpack.c.l.b16 %v652
      %v1681 = vunpack.c.l.b16 %v653
      %v1682 = vunpack.c.l.b16 %v654
      %v1683 = vunpack.c.l.b16 %v655
      %v1684 = vunpack.c.l.b16 %v656
      %v1685 = vunpack.c.l.b16 %v657
      %v1686 = vunpack.c.l.b16 %v658
      %v1687 = vunpack.c.l.b16 %v659
      %v1688 = vunpack.c.l.b16 %v660
      %v1689 = vunpack.c.l.b16 %v661
      %v1690 = vunpack.c.l.b16 %v662
      %v1691 = vunpack.c.l.b16 %v663
      %v1692 = vunpack.c.l.b16 %v664
      %v1693 = vunpack.c.l.b16 %v665
      %v1694 = vunpack.c.l.b16 %v666
      %v1695 = vunpack.c.l.b16 %v667
      %v1696 = vunpack.c.l.b16 %v668
      %v1697 = vunpack.c.l.b16 %v669
      %v1698 = vunpack.c.l.b16 %v670
      %v1699 = vunpack.c.l.b16 %v671
      %v1700 = vunpack.c.l.b16 %v672
      %v1701 = vunpack.c.l.b16 %v673
      %v1702 = vunpack.c.l.b16 %v674
      %v1703 = vunpack.c.l.b16 %v675
      %v1704 = vunpack.c.l.b16 %v676
      %v1705 = vunpack.c.l.b16 %v677
      %v1706 = vunpack.c.l.b16 %v678
      %v1707 = vunpack.c.l.b16 %v679
      %v1708 = vunpack.c.l.b16 %v680
      %v1709 = vunpack.c.l.b16 %v681
      %v1710 = vunpack.c.l.b16 %v682
      %v1711 = vunpack.c.l.b16 %v683
      %v1712 = vunpack.c.l.b16 %v684
      %v1713 = vunpack.c.l.b16 %v685
      %v1714 = vunpack.c.l.b16 %v686
      %v1715 = vunpack.c.l.b16 %v687
      %v1716 = vunpack.c.l.b16 %v688
      %v1717 = vunpack.c.l.b16 %v689
      %v1718 = vunpack.c.l.b16 %v690
      %v1719 = vunpack.c.l.b16 %v691
      %v1720 = vunpack.c.l.b16 %v692
      %v1721 = vunpack.c.l.b16 %v693
      %v1722 = vunpack.c.l.b16 %v694
      %v1723 = vunpack.c.l.b16 %v695
      %v1724 = vunpack.c.l.b16 %v696
      %v1725 = vunpack.c.l.b16 %v697
      %v1726 = vunpack.c.l.b16 %v698
      %v1727 = vunpack.c.l.b16 %v699
      %v1728 = vunpack.c.l.b16 %v700
      %v1729 = vunpack.c.l.b16 %v701
      %v1730 = vunpack.c.l.b16 %v702
      %v1731 = vunpack.c.l.b16 %v703
      %v1732 = vunpack.c.l.b16 %v704
      %v1733 = vunpack.c.l.b16 %v705
      %v1734 = vunpack.c.l.b16 %v706
      %v1735 = vunpack.c.l.b16 %v707
      %v1736 = vunpack.c.l.b16 %v708
      %v1737 = vunpack.c.l.b16 %v709
      %v1738 = vunpack.c.l.b16 %v710
      %v1739 = vunpack.c.l.b16 %v711
      %v1740 = vunpack.c.l.b16 %v712
      %v1741 = vunpack.c.l.b16 %v713
      %v1742 = vunpack.c.l.b16 %v714
      %v1743 = vunpack.c.l.b16 %v715
      %v1744 = vunpack.c.l.b16 %v716
      %v1745 = vunpack.c.l.b16 %v717
      %v1746 = vunpack.c.l.b16 %v718
      %v1747 = vunpack.c.l.b16 %v719
      %v1748 = vunpack.c.l.b16 %v720
      %v1749 = vunpack.c.l.b16 %v721
      %v1750 = vunpack.c.l.b16 %v722
      %v1751 = vunpack.c.l.b16 %v723
      %v1752 = vunpack.c.l.b16 %v724
      %v1753 = vunpack.c.l.b16 %v725
      %v1754 = vunpack.c.l.b16 %v726
      %v1755 = vunpack.c.l.b16 %v727
      %v1756 = vunpack.c.l.b16 %v728
      %v1757 = vunpack.c.l.b16 %v729
      %v1758 = vunpack.c.l.b16 %v730
      %v1759 = vunpack.c.l.b16 %v731
      %v1760 = vunpack.c.l.b16 %v732
      %v1761 = vunpack.c.l.b16 %v733
      %v1762 = vunpack.c.l.b16 %v734
      %v1763 = vunpack.c.l.b16 %v735
      %v1764 = vunpack.c.l.b16 %v736
      %v1765 = vunpack.c.l.b16 %v737
      %v1766 = vunpack.c.l.b16 %v738
      %v1767 = vunpack.c.l.b16 %v739
      %v1768 = vunpack.c.l.b16 %v740
      %v1769 = vunpack.c.l.b16 %v741
      %v1770 = vunpack.c.l.b16 %v742
      %v1771 = vunpack.c.l.b16 %v743
      %v1772 = vunpack.c.l.b16 %v744
      %v1773 = vunpack.c.l.b16 %v745
      %v1774 = vunpack.c.l.b16 %v746
      %v1775 = vunpack.c.l.b16 %v747
      %v1776 = vunpack.c.l.b16 %v748
      %v1777 = vunpack.c.l.b16 %v749
      %v1778 = vunpack.c.l.b16 %v750
      %v1779 = vunpack.c.l.b16 %v751
      %v1780 = vunpack.c.l.b16 %v752
      %v1781 = vunpack.c.l.b16 %v753
      %v1782 = vunpack.c.l.b16 %v754
      %v1783 = vunpack.c.l.b16 %v755
      %v1784 = vunpack.c.l.b16 %v756
      %v1785 = vunpack.c.l.b16 %v757
      %v1786 = vunpack.c.l.b16 %v758
      %v1787 = vunpack.c.l.b16 %v759
      %v1788 = vunpack.c.l.b16 %v760
      %v1789 = vunpack.c.l.b16 %v761
      %v1790 = vunpack.c.l.b16 %v762
      %v1791 = vunpack.c.l.b16 %v763
      %v1792 = vunpack.c.l.b16 %v764
      %v1793 = vunpack.c.l.b16 %v765
      %v1794 = vunpack.c.l.b16 %v766
      %v1795 = vunpack.c.l.b16 %v767
      %v1796 = vunpack.c.l.b16 %v768
      %v1797 = vunpack.c.l.b16 %v769
      %v1798 = vunpack.c.l.b16 %v770
      %v1799 = vunpack.c.l.b16 %v771
      %v1800 = vunpack.c.l.b16 %v772
      %v1801 = vunpack.c.l.b16 %v773
      %v1802 = vunpack.c.l.b16 %v774
      %v1803 = vunpack.c.l.b16 %v775
      %v1804 = vunpack.c.l.b16 %v776
      %v1805 = vunpack.c.l.b16 %v777
      %v1806 = vunpack.c.l.b16 %v778
      %v1807 = vpack.c.b16 %v1296, %v1295
      %v1808 = vpack.c.b16 %v1298, %v1297
      %v1809 = vpack.c.b16 %v1300, %v1299
      %v1810 = vpack.c.b16 %v1302, %v1301
      %v1811 = vpack.c.b16 %v1304, %v1303
      %v1812 = vpack.c.b16 %v1306, %v1305
      %v1813 = vpack.c.b16 %v1308, %v1307
      %v1814 = vpack.c.b16 %v1310, %v1309
      %v1815 = vpack.c.b16 %v1312, %v1311
      %v1816 = vpack.c.b16 %v1314, %v1313
      %v1817 = vpack.c.b16 %v1316, %v1315
      %v1818 = vpack.c.b16 %v1318, %v1317
      %v1819 = vpack.c.b16 %v1320, %v1319
      %v1820 = vpack.c.b16 %v1322, %v1321
      %v1821 = vpack.c.b16 %v1324, %v1323
      %v1822 = vpack.c.b16 %v1326, %v1325
      %v1823 = vpack.c.b16 %v1328, %v1327
      %v1824 = vpack.c.b16 %v1330, %v1329
      %v1825 = vpack.c.b16 %v1332, %v1331
      %v1826 = vpack.c.b16 %v1334, %v1333
      %v1827 = vpack.c.b16 %v1336, %v1335
      %v1828 = vpack.c.b16 %v1338, %v1337
      %v1829 = vpack.c.b16 %v1340, %v1339
      %v1830 = vpack.c.b16 %v1342, %v1341
      %v1831 = vpack.c.b16 %v1344, %v1343
      %v1832 = vpack.c.b16 %v1346, %v1345
      %v1833 = vpack.c.b16 %v1348, %v1347
      %v1834 = vpack.c.b16 %v1350, %v1349
      %v1835 = vpack.c.b16 %v1352, %v1351
      %v1836 = vpack.c.b16 %v1354, %v1353
      %v1837 = vpack.c.b16 %v1356, %v1355
      %v1838 = vpack.c.b16 %v1358, %v1357
      %v1839 = vpack.c.b16 %v1360, %v1359
      %v1840 = vpack.c.b16 %v1362, %v1361
      %v1841 = vpack.c.b16 %v1364, %v1363
      %v1842 = vpack.c.b16 %v1366, %v1365
      %v1843 = vpack.c.b16 %v1368, %v1367
      %v1844 = vpack.c.b16 %v1370, %v1369
      %v1845 = vpack.c.b16 %v1372, %v1371
      %v1846 = vpack.c.b16 %v1374, %v1373
      %v1847 = vpack.c.b16 %v1376, %v1375
      %v1848 = vpack.c.b16 %v1378, %v1377
      %v1849 = vpack.c.b16 %v1380, %v1379
      %v1850 = vpack.c.b16 %v1382, %v1381
      %v1851 = vpack.c.b16 %v1384, %v1383
      %v1852 = vpack.c.b16 %v1386, %v1385
      %v1853 = vpack.c.b16 %v1388, %v1387
      %v1854 = vpack.c.b16 %v1390, %v1389
      %v1855 = vpack.c.b16 %v1392, %v1391
      %v1856 = vpack.c.b16 %v1394, %v1393
      %v1857 = vpack.c.b16 %v1396, %v1395
      %v1858 = vpack.c.b16 %v1398, %v1397
      %v1859 = vpack.c.b16 %v1400, %v1399
      %v1860 = vpack.c.b16 %v1402, %v1401
      %v1861 = vpack.c.b16 %v1404, %v1403
      %v1862 = vpack.c.b16 %v1406, %v1405
      %v1863 = vpack.c.b16 %v1408, %v1407
      %v1864 = vpack.c.b16 %v1410, %v1409
      %v1865 = vpack.c.b16 %v1412, %v1411
      %v1866 = vpack.c.b16 %v1414, %v1413
      %v1867 = vpack.c.b16 %v1416, %v1415
      %v1868 = vpack.c.b16 %v1418, %v1417
      %v1869 = vpack.c.b16 %v1420, %v1419
      %v1870 = vpack.c.b16 %v1422, %v1421
      %v1871 = vpack.c.b16 %v1424, %v1423
      %v1872 = vpack.c.b16 %v1426, %v1425
      %v1873 = vpack.c.b16 %v1428, %v1427
      %v1874 = vpack.c.b16 %v1430, %v1429
      %v1875 = vpack.c.b16 %v1432, %v1431
      %v1876 = vpack.c.b16 %v1434, %v1433
      %v1877 = vpack.c.b16 %v1436, %v1435
      %v1878 = vpack.c.b16 %v1438, %v1437
      %v1879 = vpack.c.b16 %v1440, %v1439
      %v1880 = vpack.c.b16 %v1442, %v1441
      %v1881 = vpack.c.b16 %v1444, %v1443
      %v1882 = vpack.c.b16 %v1446, %v1445
      %v1883 = vpack.c.b16 %v1448, %v1447
      %v1884 = vpack.c.b16 %v1450, %v1449
      %v1885 = vpack.c.b16 %v1452, %v1451
      %v1886 = vpack.c.b16 %v1454, %v1453
      %v1887 = vpack.c.b16 %v1456, %v1455
      %v1888 = vpack.c.b16 %v1458, %v1457
      %v1889 = vpack.c.b16 %v1460, %v1459
      %v1890 = vpack.c.b16 %v1462, %v1461
      %v1891 = vpack.c.b16 %v1464, %v1463
      %v1892 = vpack.c.b16 %v1466, %v1465
      %v1893 = vpack.c.b16 %v1468, %v1467
      %v1894 = vpack.c.b16 %v1470, %v1469
      %v1895 = vpack.c.b16 %v1472, %v1471
      %v1896 = vpack.c.b16 %v1474, %v1473
      %v1897 = vpack.c.b16 %v1476, %v1475
      %v1898 = vpack.c.b16 %v1478, %v1477
      %v1899 = vpack.c.b16 %v1480, %v1479
      %v1900 = vpack.c.b16 %v1482, %v1481
      %v1901 = vpack.c.b16 %v1484, %v1483
      %v1902 = vpack.c.b16 %v1486, %v1485
      %v1903 = vpack.c.b16 %v1488, %v1487
      %v1904 = vpack.c.b16 %v1490, %v1489
      %v1905 = vpack.c.b16 %v1492, %v1491
      %v1906 = vpack.c.b16 %v1494, %v1493
      %v1907 = vpack.c.b16 %v1496, %v1495
      %v1908 = vpack.c.b16 %v1498, %v1497
      %v1909 = vpack.c.b16 %v1500, %v1499
      %v1910 = vpack.c.b16 %v1502, %v1501
      %v1911 = vpack.c.b16 %v1504, %v1503
      %v1912 = vpack.c.b16 %v1506, %v1505
      %v1913 = vpack.c.b16 %v1508, %v1507
      %v1914 = vpack.c.b16 %v1510, %v1509
      %v1915 = vpack.c.b16 %v1512, %v1511
      %v1916 = vpack.c.b16 %v1514, %v1513
      %v1917 = vpack.c.b16 %v1516, %v1515
      %v1918 = vpack.c.b16 %v1518, %v1517
      %v1919 = vpack.c.b16 %v1520, %v1519
      %v1920 = vpack.c.b16 %v1522, %v1521
      %v1921 = vpack.c.b16 %v1524, %v1523
      %v1922 = vpack.c.b16 %v1526, %v1525
      %v1923 = vpack.c.b16 %v1528, %v1527
      %v1924 = vpack.c.b16 %v1530, %v1529
      %v1925 = vpack.c.b16 %v1532, %v1531
      %v1926 = vpack.c.b16 %v1534, %v1533
      %v1927 = vpack.c.b16 %v1536, %v1535
      %v1928 = vpack.c.b16 %v1538, %v1537
      %v1929 = vpack.c.b16 %v1540, %v1539
      %v1930 = vpack.c.b16 %v1542, %v1541
      %v1931 = vpack.c.b16 %v1544, %v1543
      %v1932 = vpack.c.b16 %v1546, %v1545
      %v1933 = vpack.c.b16 %v1548, %v1547
      %v1934 = vpack.c.b16 %v1550, %v1549
      %v1935 = vpack.c.b16 %v1552, %v1551
      %v1936 = vpack.c.b16 %v1554, %v1553
      %v1937 = vpack.c.b16 %v1556, %v1555
      %v1938 = vpack.c.b16 %v1558, %v1557
      %v1939 = vpack.c.b16 %v1560, %v1559
      %v1940 = vpack.c.b16 %v1562, %v1561
      %v1941 = vpack.c.b16 %v1564, %v1563
      %v1942 = vpack.c.b16 %v1566, %v1565
      %v1943 = vpack.c.b16 %v1568, %v1567
      %v1944 = vpack.c.b16 %v1570, %v1569
      %v1945 = vpack.c.b16 %v1572, %v1571
      %v1946 = vpack.c.b16 %v1574, %v1573
      %v1947 = vpack.c.b16 %v1576, %v1575
      %v1948 = vpack.c.b16 %v1578, %v1577
      %v1949 = vpack.c.b16 %v1580, %v1579
      %v1950 = vpack.c.b16 %v1582, %v1581
      %v1951 = vpack.c.b16 %v1584, %v1583
      %v1952 = vpack.c.b16 %v1586, %v1585
      %v1953 = vpack.c.b16 %v1588, %v1587
      %v1954 = vpack.c.b16 %v1590, %v1589
      %v1955 = vpack.c.b16 %v1592, %v1591
      %v1956 = vpack.c.b16 %v1594, %v1593
      %v1957 = vpack.c.b16 %v1596, %v1595
      %v1958 = vpack.c.b16 %v1598, %v1597
      %v1959 = vpack.c.b16 %v1600, %v1599
      %v1960 = vpack.c.b16 %v1602, %v1601
      %v1961 = vpack.c.b16 %v1604, %v1603
      %v1962 = vpack.c.b16 %v1606, %v1605
      %v1963 = vpack.c.b16 %v1608, %v1607
      %v1964 = vpack.c.b16 %v1610, %v1609
      %v1965 = vpack.c.b16 %v1612, %v1611
      %v1966 = vpack.c.b16 %v1614, %v1613
      %v1967 = vpack.c.b16 %v1616, %v1615
      %v1968 = vpack.c.b16 %v1618, %v1617
      %v1969 = vpack.c.b16 %v1620, %v1619
      %v1970 = vpack.c.b16 %v1622, %v1621
      %v1971 = vpack.c.b16 %v1624, %v1623
      %v1972 = vpack.c.b16 %v1626, %v1625
      %v1973 = vpack.c.b16 %v1628, %v1627
      %v1974 = vpack.c.b16 %v1630, %v1629
      %v1975 = vpack.c.b16 %v1632, %v1631
      %v1976 = vpack.c.b16 %v1634, %v1633
      %v1977 = vpack.c.b16 %v1636, %v1635
      %v1978 = vpack.c.b16 %v1638, %v1637
      %v1979 = vpack.c.b16 %v1640, %v1639
      %v1980 = vpack.c.b16 %v1642, %v1641
      %v1981 = vpack.c.b16 %v1644, %v1643
      %v1982 = vpack.c.b16 %v1646, %v1645
      %v1983 = vpack.c.b16 %v1648, %v1647
      %v1984 = vpack.c.b16 %v1650, %v1649
      %v1985 = vpack.c.b16 %v1652, %v1651
      %v1986 = vpack.c.b16 %v1654, %v1653
      %v1987 = vpack.c.b16 %v1656, %v1655
      %v1988 = vpack.c.b16 %v1658, %v1657
      %v1989 = vpack.c.b16 %v1660, %v1659
      %v1990 = vpack.c.b16 %v1662, %v1661
      %v1991 = vpack.c.b16 %v1664, %v1663
      %v1992 = vpack.c.b16 %v1666, %v1665
      %v1993 = vpack.c.b16 %v1668, %v1667
      %v1994 = vpack.c.b16 %v1670, %v1669
      %v1995 = vpack.c.b16 %v1672, %v1671
      %v1996 = vpack.c.b16 %v1674, %v1673
      %v1997 = vpack.c.b16 %v1676, %v1675
      %v1998 = vpack.c.b16 %v1678, %v1677
      %v1999 = vpack.c.b16 %v1680, %v1679
      %v2000 = vpack.c.b16 %v1682, %v1681
      %v2001 = vpack.c.b16 %v1684, %v1683
      %v2002 = vpack.c.b16 %v1686, %v1685
      %v2003 = vpack.c.b16 %v1688, %v1687
      %v2004 = vpack.c.b16 %v1690, %v1689
      %v2005 = vpack.c.b16 %v1692, %v1691
      %v2006 = vpack.c.b16 %v1694, %v1693
      %v2007 = vpack.c.b16 %v1696, %v1695
      %v2008 = vpack.c.b16 %v1698, %v1697
      %v2009 = vpack.c.b16 %v1700, %v1699
      %v2010 = vpack.c.b16 %v1702, %v1701
      %v2011 = vpack.c.b16 %v1704, %v1703
      %v2012 = vpack.c.b16 %v1706, %v1705
      %v2013 = vpack.c.b16 %v1708, %v1707
      %v2014 = vpack.c.b16 %v1710, %v1709
      %v2015 = vpack.c.b16 %v1712, %v1711
      %v2016 = vpack.c.b16 %v1714, %v1713
      %v2017 = vpack.c.b16 %v1716, %v1715
      %v2018 = vpack.c.b16 %v1718, %v1717
      %v2019 = vpack.c.b16 %v1720, %v1719
      %v2020 = vpack.c.b16 %v1722, %v1721
      %v2021 = vpack.c.b16 %v1724, %v1723
      %v2022 = vpack.c.b16 %v1726, %v1725
      %v2023 = vpack.c.b16 %v1728, %v1727
      %v2024 = vpack.c.b16 %v1730, %v1729
      %v2025 = vpack.c.b16 %v1732, %v1731
      %v2026 = vpack.c.b16 %v1734, %v1733
      %v2027 = vpack.c.b16 %v1736, %v1735
      %v2028 = vpack.c.b16 %v1738, %v1737
      %v2029 = vpack.c.b16 %v1740, %v1739
      %v2030 = vpack.c.b16 %v1742, %v1741
      %v2031 = vpack.c.b16 %v1744, %v1743
      %v2032 = vpack.c.b16 %v1746, %v1745
      %v2033 = vpack.c.b16 %v1748, %v1747
      %v2034 = vpack.c.b16 %v1750, %v1749
      %v2035 = vpack.c.b16 %v1752, %v1751
      %v2036 = vpack.c.b16 %v1754, %v1753
      %v2037 = vpack.c.b16 %v1756, %v1755
      %v2038 = vpack.c.b16 %v1758, %v1757
      %v2039 = vpack.c.b16 %v1760, %v1759
      %v2040 = vpack.c.b16 %v1762, %v1761
      %v2041 = vpack.c.b16 %v1764, %v1763
      %v2042 = vpack.c.b16 %v1766, %v1765
      %v2043 = vpack.c.b16 %v1768, %v1767
      %v2044 = vpack.c.b16 %v1770, %v1769
      %v2045 = vpack.c.b16 %v1772, %v1771
      %v2046 = vpack.c.b16 %v1774, %v1773
      %v2047 = vpack.c.b16 %v1776, %v1775
      %v2048 = vpack.c.b16 %v1778, %v1777
      %v2049 = vpack.c.b16 %v1780, %v1779
      %v2050 = vpack.c.b16 %v1782, %v1781
      %v2051 = vpack.c.b16 %v1784, %v1783
      %v2052 = vpack.c.b16 %v1786, %v1785
      %v2053 = vpack.c.b16 %v1788, %v1787
      %v2054 = vpack.c.b16 %v1790, %v1789
      %v2055 = vpack.c.b16 %v1792, %v1791
      %v2056 = vpack.c.b16 %v1794, %v1793
      %v2057 = vpack.c.b16 %v1796, %v1795
      %v2058 = vpack.c.b16 %v1798, %v1797
      %v2059 = vpack.c.b16 %v1800, %v1799
      %v2060 = vpack.c.b16 %v1802, %v1801
      %v2061 = vpack.c.b16 %v1804, %v1803
      %v2062 = vpack.c.b16 %v1806, %v1805
      %v2067 = vunpack.c.l.b16 %v779
      %v2068 = vunpack.c.l.b16 %v780
      %v2069 = vunpack.c.l.b16 %v781
      %v2070 = vunpack.c.l.b16 %v782
      %v2071 = vpack.c.b16 %v2068, %v2067
      %v2072 = vpack.c.b16 %v2070, %v2069
      %vm2074 = vcmask 220160
      %v2076 = vsel %vm2074, %v1807, 0
      %v2079 = vsel %vm2074, %v1808, 0
      %v2082 = vsel %vm2074, %v1809, 0
      %v2085 = vsel %vm2074, %v1810, 0
      %v2088 = vsel %vm2074, %v1811, 0
      %v2091 = vsel %vm2074, %v1812, 0
      %v2094 = vsel %vm2074, %v1813, 0
      %v2097 = vsel %vm2074, %v1814, 0
      %v2100 = vsel %vm2074, %v1815, 0
      %v2103 = vsel %vm2074, %v1816, 0
      %v2106 = vsel %vm2074, %v1817, 0
      %v2109 = vsel %vm2074, %v1818, 0
      %v2112 = vsel %vm2074, %v1819, 0
      %v2115 = vsel %vm2074, %v1820, 0
      %v2118 = vsel %vm2074, %v1821, 0
      %v2121 = vsel %vm2074, %v1822, 0
      %v2124 = vsel %vm2074, %v1823, 0
      %v2127 = vsel %vm2074, %v1824, 0
      %v2130 = vsel %vm2074, %v1825, 0
      %v2133 = vsel %vm2074, %v1826, 0
      %v2136 = vsel %vm2074, %v1827, 0
      %v2139 = vsel %vm2074, %v1828, 0
      %v2142 = vsel %vm2074, %v1829, 0
      %v2145 = vsel %vm2074, %v1830, 0
      %v2148 = vsel %vm2074, %v1831, 0
      %v2151 = vsel %vm2074, %v1832, 0
      %v2154 = vsel %vm2074, %v1833, 0
      %v2157 = vsel %vm2074, %v1834, 0
      %v2160 = vsel %vm2074, %v1835, 0
      %v2163 = vsel %vm2074, %v1836, 0
      %v2166 = vsel %vm2074, %v1837, 0
      %v2169 = vsel %vm2074, %v1838, 0
      %v2172 = vsel %vm2074, %v1839, 0
      %v2175 = vsel %vm2074, %v1840, 0
      %v2178 = vsel %vm2074, %v1841, 0
      %v2181 = vsel %vm2074, %v1842, 0
      %v2184 = vsel %vm2074, %v1843, 0
      %v2187 = vsel %vm2074, %v1844, 0
      %v2190 = vsel %vm2074, %v1845, 0
      %v2193 = vsel %vm2074, %v1846, 0
      %v2196 = vsel %vm2074, %v1847, 0
      %v2199 = vsel %vm2074, %v1848, 0
      %v2202 = vsel %vm2074, %v1849, 0
      %v2205 = vsel %vm2074, %v1850, 0
      %v2208 = vsel %vm2074, %v1851, 0
      %v2211 = vsel %vm2074, %v1852, 0
      %v2214 = vsel %vm2074, %v1853, 0
      %v2217 = vsel %vm2074, %v1854, 0
      %v2220 = vsel %vm2074, %v1855, 0
      %v2223 = vsel %vm2074, %v1856, 0
      %v2226 = vsel %vm2074, %v1857, 0
      %v2229 = vsel %vm2074, %v1858, 0
      %v2232 = vsel %vm2074, %v1859, 0
      %v2235 = vsel %vm2074, %v1860, 0
      %v2238 = vsel %vm2074, %v1861, 0
      %v2241 = vsel %vm2074, %v1862, 0
      %v2244 = vsel %vm2074, %v1863, 0
      %v2247 = vsel %vm2074, %v1864, 0
      %v2250 = vsel %vm2074, %v1865, 0
      %v2253 = vsel %vm2074, %v1866, 0
      %v2256 = vsel %vm2074, %v1867, 0
      %v2259 = vsel %vm2074, %v1868, 0
      %v2262 = vsel %vm2074, %v1869, 0
      %v2265 = vsel %vm2074, %v1870, 0
      %v2268 = vsel %vm2074, %v1871, 0
      %v2271 = vsel %vm2074, %v1872, 0
      %v2274 = vsel %vm2074, %v1873, 0
      %v2277 = vsel %vm2074, %v1874, 0
      %v2280 = vsel %vm2074, %v1875, 0
      %v2283 = vsel %vm2074, %v1876, 0
      %v2286 = vsel %vm2074, %v1877, 0
      %v2289 = vsel %vm2074, %v1878, 0
      %v2292 = vsel %vm2074, %v1879, 0
      %v2295 = vsel %vm2074, %v1880, 0
      %v2298 = vsel %vm2074, %v1881, 0
      %v2301 = vsel %vm2074, %v1882, 0
      %v2304 = vsel %vm2074, %v1883, 0
      %v2307 = vsel %vm2074, %v1884, 0
      %v2310 = vsel %vm2074, %v1885, 0
      %v2313 = vsel %vm2074, %v1886, 0
      %v2316 = vsel %vm2074, %v1887, 0
      %v2319 = vsel %vm2074, %v1888, 0
      %v2322 = vsel %vm2074, %v1889, 0
      %v2325 = vsel %vm2074, %v1890, 0
      %v2328 = vsel %vm2074, %v1891, 0
      %v2331 = vsel %vm2074, %v1892, 0
      %v2334 = vsel %vm2074, %v1893, 0
      %v2337 = vsel %vm2074, %v1894, 0
      %v2340 = vsel %vm2074, %v1895, 0
      %v2343 = vsel %vm2074, %v1896, 0
      %v2346 = vsel %vm2074, %v1897, 0
      %v2349 = vsel %vm2074, %v1898, 0
      %v2352 = vsel %vm2074, %v1899, 0
      %v2355 = vsel %vm2074, %v1900, 0
      %v2358 = vsel %vm2074, %v1901, 0
      %v2361 = vsel %vm2074, %v1902, 0
      %v2364 = vsel %vm2074, %v1903, 0
      %v2367 = vsel %vm2074, %v1904, 0
      %v2370 = vsel %vm2074, %v1905, 0
      %v2373 = vsel %vm2074, %v1906, 0
      %v2376 = vsel %vm2074, %v1907, 0
      %v2379 = vsel %vm2074, %v1908, 0
      %v2382 = vsel %vm2074, %v1909, 0
      %v2385 = vsel %vm2074, %v1910, 0
      %v2388 = vsel %vm2074, %v1911, 0
      %v2391 = vsel %vm2074, %v1912, 0
      %v2394 = vsel %vm2074, %v1913, 0
      %v2397 = vsel %vm2074, %v1914, 0
      %v2400 = vsel %vm2074, %v1915, 0
      %v2403 = vsel %vm2074, %v1916, 0
      %v2406 = vsel %vm2074, %v1917, 0
      %v2409 = vsel %vm2074, %v1918, 0
      %v2412 = vsel %vm2074, %v1919, 0
      %v2415 = vsel %vm2074, %v1920, 0
      %v2418 = vsel %vm2074, %v1921, 0
      %v2421 = vsel %vm2074, %v1922, 0
      %v2424 = vsel %vm2074, %v1923, 0
      %v2427 = vsel %vm2074, %v1924, 0
      %v2430 = vsel %vm2074, %v1925, 0
      %v2433 = vsel %vm2074, %v1926, 0
      %v2436 = vsel %vm2074, %v1927, 0
      %v2439 = vsel %vm2074, %v1928, 0
      %v2442 = vsel %vm2074, %v1929, 0
      %v2445 = vsel %vm2074, %v1930, 0
      %v2448 = vsel %vm2074, %v1931, 0
      %v2451 = vsel %vm2074, %v1932, 0
      %v2454 = vsel %vm2074, %v1933, 0
      %v2457 = vsel %vm2074, %v1934, 0
      %v2460 = vsel %vm2074, %v1935, 0
      %v2463 = vsel %vm2074, %v1936, 0
      %v2466 = vsel %vm2074, %v1937, 0
      %v2469 = vsel %vm2074, %v1938, 0
      %v2472 = vsel %vm2074, %v1939, 0
      %v2475 = vsel %vm2074, %v1940, 0
      %v2478 = vsel %vm2074, %v1941, 0
      %v2481 = vsel %vm2074, %v1942, 0
      %v2484 = vsel %vm2074, %v1943, 0
      %v2487 = vsel %vm2074, %v1944, 0
      %v2490 = vsel %vm2074, %v1945, 0
      %v2493 = vsel %vm2074, %v1946, 0
      %v2496 = vsel %vm2074, %v1947, 0
      %v2499 = vsel %vm2074, %v1948, 0
      %v2502 = vsel %vm2074, %v1949, 0
      %v2505 = vsel %vm2074, %v1950, 0
      %v2508 = vsel %vm2074, %v1951, 0
      %v2511 = vsel %vm2074, %v1952, 0
      %v2514 = vsel %vm2074, %v1953, 0
      %v2517 = vsel %vm2074, %v1954, 0
      %v2520 = vsel %vm2074, %v1955, 0
      %v2523 = vsel %vm2074, %v1956, 0
      %v2526 = vsel %vm2074, %v1957, 0
      %v2529 = vsel %vm2074, %v1958, 0
      %v2532 = vsel %vm2074, %v1959, 0
      %v2535 = vsel %vm2074, %v1960, 0
      %v2538 = vsel %vm2074, %v1961, 0
      %v2541 = vsel %vm2074, %v1962, 0
      %v2544 = vsel %vm2074, %v1963, 0
      %v2547 = vsel %vm2074, %v1964, 0
      %v2550 = vsel %vm2074, %v1965, 0
      %v2553 = vsel %vm2074, %v1966, 0
      %v2556 = vsel %vm2074, %v1967, 0
      %v2559 = vsel %vm2074, %v1968, 0
      %v2562 = vsel %vm2074, %v1969, 0
      %v2565 = vsel %vm2074, %v1970, 0
      %v2568 = vsel %vm2074, %v1971, 0
      %v2571 = vsel %vm2074, %v1972, 0
      %v2574 = vsel %vm2074, %v1973, 0
      %v2577 = vsel %vm2074, %v1974, 0
      %v2580 = vsel %vm2074, %v1975, 0
      %v2583 = vsel %vm2074, %v1976, 0
      %v2586 = vsel %vm2074, %v1977, 0
      %v2589 = vsel %vm2074, %v1978, 0
      %v2592 = vsel %vm2074, %v1979, 0
      %v2595 = vsel %vm2074, %v1980, 0
      %v2598 = vsel %vm2074, %v1981, 0
      %v2601 = vsel %vm2074, %v1982, 0
      %v2604 = vsel %vm2074, %v1983, 0
      %v2607 = vsel %vm2074, %v1984, 0
      %v2610 = vsel %vm2074, %v1985, 0
      %v2613 = vsel %vm2074, %v1986, 0
      %v2616 = vsel %vm2074, %v1987, 0
      %v2619 = vsel %vm2074, %v1988, 0
      %v2622 = vsel %vm2074, %v1989, 0
      %v2625 = vsel %vm2074, %v1990, 0
      %v2628 = vsel %vm2074, %v1991, 0
      %v2631 = vsel %vm2074, %v1992, 0
      %v2634 = vsel %vm2074, %v1993, 0
      %v2637 = vsel %vm2074, %v1994, 0
      %v2640 = vsel %vm2074, %v1995, 0
      %v2643 = vsel %vm2074, %v1996, 0
      %v2646 = vsel %vm2074, %v1997, 0
      %v2649 = vsel %vm2074, %v1998, 0
      %v2652 = vsel %vm2074, %v1999, 0
      %v2655 = vsel %vm2074, %v2000, 0
      %v2658 = vsel %vm2074, %v2001, 0
      %v2661 = vsel %vm2074, %v2002, 0
      %v2664 = vsel %vm2074, %v2003, 0
      %v2667 = vsel %vm2074, %v2004, 0
      %v2670 = vsel %vm2074, %v2005, 0
      %v2673 = vsel %vm2074, %v2006, 0
      %v2676 = vsel %vm2074, %v2007, 0
      %v2679 = vsel %vm2074, %v2008, 0
      %v2682 = vsel %vm2074, %v2009, 0
      %v2685 = vsel %vm2074, %v2010, 0
      %v2688 = vsel %vm2074, %v2011, 0
      %v2691 = vsel %vm2074, %v2012, 0
      %v2694 = vsel %vm2074, %v2013, 0
      %v2697 = vsel %vm2074, %v2014, 0
      %v2700 = vsel %vm2074, %v2015, 0
      %v2703 = vsel %vm2074, %v2016, 0
      %v2706 = vsel %vm2074, %v2017, 0
      %v2709 = vsel %vm2074, %v2018, 0
      %v2712 = vsel %vm2074, %v2019, 0
      %v2715 = vsel %vm2074, %v2020, 0
      %v2718 = vsel %vm2074, %v2021, 0
      %v2721 = vsel %vm2074, %v2022, 0
      %v2724 = vsel %vm2074, %v2023, 0
      %v2727 = vsel %vm2074, %v2024, 0
      %v2730 = vsel %vm2074, %v2025, 0
      %v2733 = vsel %vm2074, %v2026, 0
      %v2736 = vsel %vm2074, %v2027, 0
      %v2739 = vsel %vm2074, %v2028, 0
      %v2742 = vsel %vm2074, %v2029, 0
      %v2745 = vsel %vm2074, %v2030, 0
      %v2748 = vsel %vm2074, %v2031, 0
      %v2751 = vsel %vm2074, %v2032, 0
      %v2754 = vsel %vm2074, %v2033, 0
      %v2757 = vsel %vm2074, %v2034, 0
      %v2760 = vsel %vm2074, %v2035, 0
      %v2763 = vsel %vm2074, %v2036, 0
      %v2766 = vsel %vm2074, %v2037, 0
      %v2769 = vsel %vm2074, %v2038, 0
      %v2772 = vsel %vm2074, %v2039, 0
      %v2775 = vsel %vm2074, %v2040, 0
      %v2778 = vsel %vm2074, %v2041, 0
      %v2781 = vsel %vm2074, %v2042, 0
      %v2784 = vsel %vm2074, %v2043, 0
      %v2787 = vsel %vm2074, %v2044, 0
      %v2790 = vsel %vm2074, %v2045, 0
      %v2793 = vsel %vm2074, %v2046, 0
      %v2796 = vsel %vm2074, %v2047, 0
      %v2799 = vsel %vm2074, %v2048, 0
      %v2802 = vsel %vm2074, %v2049, 0
      %v2805 = vsel %vm2074, %v2050, 0
      %v2808 = vsel %vm2074, %v2051, 0
      %v2811 = vsel %vm2074, %v2052, 0
      %v2814 = vsel %vm2074, %v2053, 0
      %v2817 = vsel %vm2074, %v2054, 0
      %v2820 = vsel %vm2074, %v2055, 0
      %v2823 = vsel %vm2074, %v2056, 0
      %v2826 = vsel %vm2074, %v2057, 0
      %v2829 = vsel %vm2074, %v2058, 0
      %v2832 = vsel %vm2074, %v2059, 0
      %v2835 = vsel %vm2074, %v2060, 0
      %v2838 = vsel %vm2074, %v2061, 0
      %v2841 = vsel %vm2074, %v2062, 0
      %vm2843 = vcmask 1044480
      %vm2844 = vcmask 1045504
      %v2845 = vsel %vm2843, 4294967295, 65535
      %v2846 = vsel %vm2844, %v2845, 0
      %v2848 = vand.u32 %v2072, %v2846
      %2850 = vmatprep.subr.bf16.mxu0 0
      %2851 = vmatpush1.bf16.msra.mxu0 %v2071
      %2852 = vmatprep.subr.bf16.mxu0 0
      %2853 = vmatpush1.bf16.msra.mxu0 %v2848
      %2854 = vmatprep.subr.bf16.mxu0 0
      %2855 = vmatpush1.bf16.msra.mxu0 0
      %2856 = vmatprep.subr.bf16.mxu0 0
      %2857 = vmatpush1.bf16.msra.mxu0 0
      %2858 = vmatprep.subr.bf16.mxu0 0
      %2859 = vmatpush1.bf16.msra.mxu0 0
      %2860 = vmatprep.subr.bf16.mxu0 0
      %2861 = vmatpush1.bf16.msra.mxu0 0
      %2862 = vmatprep.subr.bf16.mxu0 0
      %2863 = vmatpush1.bf16.msra.mxu0 0
      %2864 = vmatprep.subr.bf16.mxu0 0
      %2865 = vmatpush1.bf16.msra.mxu0 0
      %2866 = vmatprep.subr.bf16.mxu0 0
      %2867 = vmatpush1.bf16.msra.mxu0 0
      %2868 = vmatprep.subr.bf16.mxu0 0
      %2869 = vmatpush1.bf16.msra.mxu0 0
      %2870 = vmatprep.subr.bf16.mxu0 0
      %2871 = vmatpush1.bf16.msra.mxu0 0
      %2872 = vmatprep.subr.bf16.mxu0 0
      %2873 = vmatpush1.bf16.msra.mxu0 0
      %2874 = vmatprep.subr.bf16.mxu0 0
      %2875 = vmatpush1.bf16.msra.mxu0 0
      %2876 = vmatprep.subr.bf16.mxu0 0
      %2877 = vmatpush1.bf16.msra.mxu0 0
      %2878 = vmatprep.subr.bf16.mxu0 0
      %2879 = vmatpush1.bf16.msra.mxu0 0
      %2880 = vmatprep.subr.bf16.mxu0 0
      %2881 = vmatpush1.bf16.msra.mxu0 0
      %2882 = vmatprep.mubr.bf16.mxu0 0
      %2883 = vmatmul.mubr.bf16.gmra.mrb[0].mxu0 %v2076
      %v2884 = vpop.f32.mrb[0].mxu0
      %v2885 = vadd.f32 0.0, %v2884
      %v2886 = vpop.f32.mrb[0].mxu0
      %v2887 = vpop.f32.mrb[0].mxu0
      %v2888 = vadd.f32 0.0, %v2887
      %v2889 = vpop.f32.mrb[0].mxu0
      %2890 = vmatprep.mubr.bf16.mxu0 0
      %2891 = vmatmul.mubr.bf16.gmra.mrb[0].mxu0 %v2079
      %v2892 = vpop.f32.mrb[0].mxu0
      %v2893 = vadd.f32 0.0, %v2892
      %v2894 = vpop.f32.mrb[0].mxu0
      %v2895 = vpop.f32.mrb[0].mxu0
      %v2896 = vadd.f32 0.0, %v2895
      %v2897 = vpop.f32.mrb[0].mxu0
      %2898 = vmatprep.mubr.bf16.mxu0 0
      %2899 = vmatmul.mubr.bf16.gmra.mrb[0].mxu0 %v2082
      %v2900 = vpop.f32.mrb[0].mxu0
      %v2901 = vadd.f32 0.0, %v2900
      %v2902 = vpop.f32.mrb[0].mxu0
      %v2903 = vpop.f32.mrb[0].mxu0
      %v2904 = vadd.f32 0.0, %v2903
      %v2905 = vpop.f32.mrb[0].mxu0
      %2906 = vmatprep.mubr.bf16.mxu0 0
      %2907 = vmatmul.mubr.bf16.gmra.mrb[0].mxu0 %v2085
      %v2908 = vpop.f32.mrb[0].mxu0
      %v2909 = vadd.f32 0.0, %v2908
      %v2910 = vpop.f32.mrb[0].mxu0
      %v2911 = vpop.f32.mrb[0].mxu0
      %v2912 = vadd.f32 0.0, %v2911
      %v2913 = vpop.f32.mrb[0].mxu0
      %2914 = vmatprep.mubr.bf16.mxu0 0
      %2915 = vmatmul.mubr.bf16.gmra.mrb[0].mxu0 %v2088
      %v2916 = vpop.f32.mrb[0].mxu0
      %v2917 = vadd.f32 0.0, %v2916
      %v2918 = vpop.f32.mrb[0].mxu0
      %v2919 = vpop.f32.mrb[0].mxu0
      %v2920 = vadd.f32 0.0, %v2919
      %v2921 = vpop.f32.mrb[0].mxu0
      %2922 = vmatprep.mubr.bf16.mxu0 0
      %2923 = vmatmul.mubr.bf16.gmra.mrb[0].mxu0 %v2091
      %v2924 = vpop.f32.mrb[0].mxu0
      %v2925 = vadd.f32 0.0, %v2924
      %v2926 = vpop.f32.mrb[0].mxu0
      %v2927 = vpop.f32.mrb[0].mxu0
      %v2928 = vadd.f32 0.0, %v2927
      %v2929 = vpop.f32.mrb[0].mxu0
      %2930 = vmatprep.mubr.bf16.mxu0 0
      %2931 = vmatmul.mubr.bf16.gmra.mrb[0].mxu0 %v2094
      %v2932 = vpop.f32.mrb[0].mxu0
      %v2933 = vadd.f32 0.0, %v2932
      %v2934 = vpop.f32.mrb[0].mxu0
      %v2935 = vpop.f32.mrb[0].mxu0
      %v2936 = vadd.f32 0.0, %v2935
      %v2937 = vpop.f32.mrb[0].mxu0
      %2938 = vmatprep.mubr.bf16.mxu0 0
      %2939 = vmatmul.mubr.bf16.gmra.mrb[0].mxu0 %v2097
      %v2940 = vpop.f32.mrb[0].mxu0
      %v2941 = vadd.f32 0.0, %v2940
      %v2942 = vpop.f32.mrb[0].mxu0
      %v2943 = vpop.f32.mrb[0].mxu0
      %v2944 = vadd.f32 0.0, %v2943
      %v2945 = vpop.f32.mrb[0].mxu0
      %2946 = vmatprep.mubr.bf16.mxu0 0
      %2947 = vmatmul.mubr.bf16.gmra.mrb[0].mxu0 %v2100
      %v2948 = vpop.f32.mrb[0].mxu0
      %v2949 = vadd.f32 0.0, %v2948
      %v2950 = vpop.f32.mrb[0].mxu0
      %v2951 = vpop.f32.mrb[0].mxu0
      %v2952 = vadd.f32 0.0, %v2951
      %v2953 = vpop.f32.mrb[0].mxu0
      %2954 = vmatprep.mubr.bf16.mxu0 0
      %2955 = vmatmul.mubr.bf16.gmra.mrb[0].mxu0 %v2103
      %v2956 = vpop.f32.mrb[0].mxu0
      %v2957 = vadd.f32 0.0, %v2956
      %v2958 = vpop.f32.mrb[0].mxu0
      %v2959 = vpop.f32.mrb[0].mxu0
      %v2960 = vadd.f32 0.0, %v2959
      %v2961 = vpop.f32.mrb[0].mxu0
      %2962 = vmatprep.mubr.bf16.mxu0 0
      %2963 = vmatmul.mubr.bf16.gmra.mrb[0].mxu0 %v2106
      %v2964 = vpop.f32.mrb[0].mxu0
      %v2965 = vadd.f32 0.0, %v2964
      %v2966 = vpop.f32.mrb[0].mxu0
      %v2967 = vpop.f32.mrb[0].mxu0
      %v2968 = vadd.f32 0.0, %v2967
      %v2969 = vpop.f32.mrb[0].mxu0
      %2970 = vmatprep.mubr.bf16.mxu0 0
      %2971 = vmatmul.mubr.bf16.gmra.mrb[0].mxu0 %v2109
      %v2972 = vpop.f32.mrb[0].mxu0
      %v2973 = vadd.f32 0.0, %v2972
      %v2974 = vpop.f32.mrb[0].mxu0
      %v2975 = vpop.f32.mrb[0].mxu0
      %v2976 = vadd.f32 0.0, %v2975
      %v2977 = vpop.f32.mrb[0].mxu0
      %2978 = vmatprep.mubr.bf16.mxu0 0
      %2979 = vmatmul.mubr.bf16.gmra.mrb[0].mxu0 %v2112
      %v2980 = vpop.f32.mrb[0].mxu0
      %v2981 = vadd.f32 0.0, %v2980
      %v2982 = vpop.f32.mrb[0].mxu0
      %v2983 = vpop.f32.mrb[0].mxu0
      %v2984 = vadd.f32 0.0, %v2983
      %v2985 = vpop.f32.mrb[0].mxu0
      %2986 = vmatprep.mubr.bf16.mxu0 0
      %2987 = vmatmul.mubr.bf16.gmra.mrb[0].mxu0 %v2115
      %v2988 = vpop.f32.mrb[0].mxu0
      %v2989 = vadd.f32 0.0, %v2988
      %v2990 = vpop.f32.mrb[0].mxu0
      %v2991 = vpop.f32.mrb[0].mxu0
      %v2992 = vadd.f32 0.0, %v2991
      %v2993 = vpop.f32.mrb[0].mxu0
      %2994 = vmatprep.mubr.bf16.mxu0 0
      %2995 = vmatmul.mubr.bf16.gmra.mrb[0].mxu0 %v2118
      %v2996 = vpop.f32.mrb[0].mxu0
      %v2997 = vadd.f32 0.0, %v2996
      %v2998 = vpop.f32.mrb[0].mxu0
      %v2999 = vpop.f32.mrb[0].mxu0
      %v3000 = vadd.f32 0.0, %v2999
      %v3001 = vpop.f32.mrb[0].mxu0
      %3002 = vmatprep.mubr.bf16.mxu0 0
      %3003 = vmatmul.mubr.bf16.gmra.mrb[0].mxu0 %v2121
      %v3004 = vpop.f32.mrb[0].mxu0
      %v3005 = vadd.f32 0.0, %v3004
      %v3006 = vpop.f32.mrb[0].mxu0
      %v3007 = vpop.f32.mrb[0].mxu0
      %v3008 = vadd.f32 0.0, %v3007
      %v3009 = vpop.f32.mrb[0].mxu0
      %3010 = vmatprep.mubr.bf16.mxu0 0
      %3011 = vmatmul.mubr.bf16.gmra.mrb[0].mxu0 %v2124
      %v3012 = vpop.f32.mrb[0].mxu0
      %v3013 = vadd.f32 0.0, %v3012
      %v3014 = vpop.f32.mrb[0].mxu0
      %v3015 = vpop.f32.mrb[0].mxu0
      %v3016 = vadd.f32 0.0, %v3015
      %v3017 = vpop.f32.mrb[0].mxu0
      %3018 = vmatprep.mubr.bf16.mxu0 0
      %3019 = vmatmul.mubr.bf16.gmra.mrb[0].mxu0 %v2127
      %v3020 = vpop.f32.mrb[0].mxu0
      %v3021 = vadd.f32 0.0, %v3020
      %v3022 = vpop.f32.mrb[0].mxu0
      %v3023 = vpop.f32.mrb[0].mxu0
      %v3024 = vadd.f32 0.0, %v3023
      %v3025 = vpop.f32.mrb[0].mxu0
      %3026 = vmatprep.mubr.bf16.mxu0 0
      %3027 = vmatmul.mubr.bf16.gmra.mrb[0].mxu0 %v2130
      %v3028 = vpop.f32.mrb[0].mxu0
      %v3029 = vadd.f32 0.0, %v3028
      %v3030 = vpop.f32.mrb[0].mxu0
      %v3031 = vpop.f32.mrb[0].mxu0
      %v3032 = vadd.f32 0.0, %v3031
      %v3033 = vpop.f32.mrb[0].mxu0
      %3034 = vmatprep.mubr.bf16.mxu0 0
      %3035 = vmatmul.mubr.bf16.gmra.mrb[0].mxu0 %v2133
      %v3036 = vpop.f32.mrb[0].mxu0
      %v3037 = vadd.f32 0.0, %v3036
      %v3038 = vpop.f32.mrb[0].mxu0
      %v3039 = vpop.f32.mrb[0].mxu0
      %v3040 = vadd.f32 0.0, %v3039
      %v3041 = vpop.f32.mrb[0].mxu0
      %3042 = vmatprep.mubr.bf16.mxu0 0
      %3043 = vmatmul.mubr.bf16.gmra.mrb[0].mxu0 %v2136
      %v3044 = vpop.f32.mrb[0].mxu0
      %v3045 = vadd.f32 0.0, %v3044
      %v3046 = vpop.f32.mrb[0].mxu0
      %v3047 = vpop.f32.mrb[0].mxu0
      %v3048 = vadd.f32 0.0, %v3047
      %v3049 = vpop.f32.mrb[0].mxu0
      %3050 = vmatprep.mubr.bf16.mxu0 0
      %3051 = vmatmul.mubr.bf16.gmra.mrb[0].mxu0 %v2139
      %v3052 = vpop.f32.mrb[0].mxu0
      %v3053 = vadd.f32 0.0, %v3052
      %v3054 = vpop.f32.mrb[0].mxu0
      %v3055 = vpop.f32.mrb[0].mxu0
      %v3056 = vadd.f32 0.0, %v3055
      %v3057 = vpop.f32.mrb[0].mxu0
      %3058 = vmatprep.mubr.bf16.mxu0 0
      %3059 = vmatmul.mubr.bf16.gmra.mrb[0].mxu0 %v2142
      %v3060 = vpop.f32.mrb[0].mxu0
      %v3061 = vadd.f32 0.0, %v3060
      %v3062 = vpop.f32.mrb[0].mxu0
      %v3063 = vpop.f32.mrb[0].mxu0
      %v3064 = vadd.f32 0.0, %v3063
      %v3065 = vpop.f32.mrb[0].mxu0
      %3066 = vmatprep.mubr.bf16.mxu0 0
      %3067 = vmatmul.mubr.bf16.gmra.mrb[0].mxu0 %v2145
      %v3068 = vpop.f32.mrb[0].mxu0
      %v3069 = vadd.f32 0.0, %v3068
      %v3070 = vpop.f32.mrb[0].mxu0
      %v3071 = vpop.f32.mrb[0].mxu0
      %v3072 = vadd.f32 0.0, %v3071
      %v3073 = vpop.f32.mrb[0].mxu0
      %3074 = vmatprep.mubr.bf16.mxu0 0
      %3075 = vmatmul.mubr.bf16.gmra.mrb[0].mxu0 %v2148
      %v3076 = vpop.f32.mrb[0].mxu0
      %v3077 = vadd.f32 0.0, %v3076
      %v3078 = vpop.f32.mrb[0].mxu0
      %v3079 = vpop.f32.mrb[0].mxu0
      %v3080 = vadd.f32 0.0, %v3079
      %v3081 = vpop.f32.mrb[0].mxu0
      %3082 = vmatprep.mubr.bf16.mxu0 0
      %3083 = vmatmul.mubr.bf16.gmra.mrb[0].mxu0 %v2151
      %v3084 = vpop.f32.mrb[0].mxu0
      %v3085 = vadd.f32 0.0, %v3084
      %v3086 = vpop.f32.mrb[0].mxu0
      %v3087 = vpop.f32.mrb[0].mxu0
      %v3088 = vadd.f32 0.0, %v3087
      %v3089 = vpop.f32.mrb[0].mxu0
      %3090 = vmatprep.mubr.bf16.mxu0 0
      %3091 = vmatmul.mubr.bf16.gmra.mrb[0].mxu0 %v2154
      %v3092 = vpop.f32.mrb[0].mxu0
      %v3093 = vadd.f32 0.0, %v3092
      %v3094 = vpop.f32.mrb[0].mxu0
      %v3095 = vpop.f32.mrb[0].mxu0
      %v3096 = vadd.f32 0.0, %v3095
      %v3097 = vpop.f32.mrb[0].mxu0
      %3098 = vmatprep.mubr.bf16.mxu0 0
      %3099 = vmatmul.mubr.bf16.gmra.mrb[0].mxu0 %v2157
      %v3100 = vpop.f32.mrb[0].mxu0
      %v3101 = vadd.f32 0.0, %v3100
      %v3102 = vpop.f32.mrb[0].mxu0
      %v3103 = vpop.f32.mrb[0].mxu0
      %v3104 = vadd.f32 0.0, %v3103
      %v3105 = vpop.f32.mrb[0].mxu0
      %3106 = vmatprep.mubr.bf16.mxu0 0
      %3107 = vmatmul.mubr.bf16.gmra.mrb[0].mxu0 %v2160
      %v3108 = vpop.f32.mrb[0].mxu0
      %v3109 = vadd.f32 0.0, %v3108
      %v3110 = vpop.f32.mrb[0].mxu0
      %v3111 = vpop.f32.mrb[0].mxu0
      %v3112 = vadd.f32 0.0, %v3111
      %v3113 = vpop.f32.mrb[0].mxu0
      %3114 = vmatprep.mubr.bf16.mxu0 0
      %3115 = vmatmul.mubr.bf16.gmra.mrb[0].mxu0 %v2163
      %v3116 = vpop.f32.mrb[0].mxu0
      %v3117 = vadd.f32 0.0, %v3116
      %v3118 = vpop.f32.mrb[0].mxu0
      %v3119 = vpop.f32.mrb[0].mxu0
      %v3120 = vadd.f32 0.0, %v3119
      %v3121 = vpop.f32.mrb[0].mxu0
      %3122 = vmatprep.mubr.bf16.mxu0 0
      %3123 = vmatmul.mubr.bf16.gmra.mrb[0].mxu0 %v2166
      %v3124 = vpop.f32.mrb[0].mxu0
      %v3125 = vadd.f32 0.0, %v3124
      %v3126 = vpop.f32.mrb[0].mxu0
      %v3127 = vpop.f32.mrb[0].mxu0
      %v3128 = vadd.f32 0.0, %v3127
      %v3129 = vpop.f32.mrb[0].mxu0
      %3130 = vmatprep.mubr.bf16.mxu0 0
      %3131 = vmatmul.mubr.bf16.gmra.mrb[0].mxu0 %v2169
      %v3132 = vpop.f32.mrb[0].mxu0
      %v3133 = vadd.f32 0.0, %v3132
      %v3134 = vpop.f32.mrb[0].mxu0
      %v3135 = vpop.f32.mrb[0].mxu0
      %v3136 = vadd.f32 0.0, %v3135
      %v3137 = vpop.f32.mrb[0].mxu0
      %3138 = vmatprep.mubr.bf16.mxu0 0
      %3139 = vmatmul.mubr.bf16.gmra.mrb[0].mxu0 %v2172
      %v3140 = vpop.f32.mrb[0].mxu0
      %v3141 = vadd.f32 0.0, %v3140
      %v3142 = vpop.f32.mrb[0].mxu0
      %v3143 = vpop.f32.mrb[0].mxu0
      %v3144 = vadd.f32 0.0, %v3143
      %v3145 = vpop.f32.mrb[0].mxu0
      %3146 = vmatprep.mubr.bf16.mxu0 0
      %3147 = vmatmul.mubr.bf16.gmra.mrb[0].mxu0 %v2175
      %v3148 = vpop.f32.mrb[0].mxu0
      %v3149 = vadd.f32 0.0, %v3148
      %v3150 = vpop.f32.mrb[0].mxu0
      %v3151 = vpop.f32.mrb[0].mxu0
      %v3152 = vadd.f32 0.0, %v3151
      %v3153 = vpop.f32.mrb[0].mxu0
      %3154 = vmatprep.mubr.bf16.mxu0 0
      %3155 = vmatmul.mubr.bf16.gmra.mrb[0].mxu0 %v2178
      %v3156 = vpop.f32.mrb[0].mxu0
      %v3157 = vadd.f32 0.0, %v3156
      %v3158 = vpop.f32.mrb[0].mxu0
      %v3159 = vpop.f32.mrb[0].mxu0
      %v3160 = vadd.f32 0.0, %v3159
      %v3161 = vpop.f32.mrb[0].mxu0
      %3162 = vmatprep.mubr.bf16.mxu0 0
      %3163 = vmatmul.mubr.bf16.gmra.mrb[0].mxu0 %v2181
      %v3164 = vpop.f32.mrb[0].mxu0
      %v3165 = vadd.f32 0.0, %v3164
      %v3166 = vpop.f32.mrb[0].mxu0
      %v3167 = vpop.f32.mrb[0].mxu0
      %v3168 = vadd.f32 0.0, %v3167
      %v3169 = vpop.f32.mrb[0].mxu0
      %3170 = vmatprep.mubr.bf16.mxu0 0
      %3171 = vmatmul.mubr.bf16.gmra.mrb[0].mxu0 %v2184
      %v3172 = vpop.f32.mrb[0].mxu0
      %v3173 = vadd.f32 0.0, %v3172
      %v3174 = vpop.f32.mrb[0].mxu0
      %v3175 = vpop.f32.mrb[0].mxu0
      %v3176 = vadd.f32 0.0, %v3175
      %v3177 = vpop.f32.mrb[0].mxu0
      %3178 = vmatprep.mubr.bf16.mxu0 0
      %3179 = vmatmul.mubr.bf16.gmra.mrb[0].mxu0 %v2187
      %v3180 = vpop.f32.mrb[0].mxu0
      %v3181 = vadd.f32 0.0, %v3180
      %v3182 = vpop.f32.mrb[0].mxu0
      %v3183 = vpop.f32.mrb[0].mxu0
      %v3184 = vadd.f32 0.0, %v3183
      %v3185 = vpop.f32.mrb[0].mxu0
      %3186 = vmatprep.mubr.bf16.mxu0 0
      %3187 = vmatmul.mubr.bf16.gmra.mrb[0].mxu0 %v2190
      %v3188 = vpop.f32.mrb[0].mxu0
      %v3189 = vadd.f32 0.0, %v3188
      %v3190 = vpop.f32.mrb[0].mxu0
      %v3191 = vpop.f32.mrb[0].mxu0
      %v3192 = vadd.f32 0.0, %v3191
      %v3193 = vpop.f32.mrb[0].mxu0
      %3194 = vmatprep.mubr.bf16.mxu0 0
      %3195 = vmatmul.mubr.bf16.gmra.mrb[0].mxu0 %v2193
      %v3196 = vpop.f32.mrb[0].mxu0
      %v3197 = vadd.f32 0.0, %v3196
      %v3198 = vpop.f32.mrb[0].mxu0
      %v3199 = vpop.f32.mrb[0].mxu0
      %v3200 = vadd.f32 0.0, %v3199
      %v3201 = vpop.f32.mrb[0].mxu0
      %3202 = vmatprep.mubr.bf16.mxu0 0
      %3203 = vmatmul.mubr.bf16.gmra.mrb[0].mxu0 %v2196
      %v3204 = vpop.f32.mrb[0].mxu0
      %v3205 = vadd.f32 0.0, %v3204
      %v3206 = vpop.f32.mrb[0].mxu0
      %v3207 = vpop.f32.mrb[0].mxu0
      %v3208 = vadd.f32 0.0, %v3207
      %v3209 = vpop.f32.mrb[0].mxu0
      %3210 = vmatprep.mubr.bf16.mxu0 0
      %3211 = vmatmul.mubr.bf16.gmra.mrb[0].mxu0 %v2199
      %v3212 = vpop.f32.mrb[0].mxu0
      %v3213 = vadd.f32 0.0, %v3212
      %v3214 = vpop.f32.mrb[0].mxu0
      %v3215 = vpop.f32.mrb[0].mxu0
      %v3216 = vadd.f32 0.0, %v3215
      %v3217 = vpop.f32.mrb[0].mxu0
      %3218 = vmatprep.mubr.bf16.mxu0 0
      %3219 = vmatmul.mubr.bf16.gmra.mrb[0].mxu0 %v2202
      %v3220 = vpop.f32.mrb[0].mxu0
      %v3221 = vadd.f32 0.0, %v3220
      %v3222 = vpop.f32.mrb[0].mxu0
      %v3223 = vpop.f32.mrb[0].mxu0
      %v3224 = vadd.f32 0.0, %v3223
      %v3225 = vpop.f32.mrb[0].mxu0
      %3226 = vmatprep.mubr.bf16.mxu0 0
      %3227 = vmatmul.mubr.bf16.gmra.mrb[0].mxu0 %v2205
      %v3228 = vpop.f32.mrb[0].mxu0
      %v3229 = vadd.f32 0.0, %v3228
      %v3230 = vpop.f32.mrb[0].mxu0
      %v3231 = vpop.f32.mrb[0].mxu0
      %v3232 = vadd.f32 0.0, %v3231
      %v3233 = vpop.f32.mrb[0].mxu0
      %3234 = vmatprep.mubr.bf16.mxu0 0
      %3235 = vmatmul.mubr.bf16.gmra.mrb[0].mxu0 %v2208
      %v3236 = vpop.f32.mrb[0].mxu0
      %v3237 = vadd.f32 0.0, %v3236
      %v3238 = vpop.f32.mrb[0].mxu0
      %v3239 = vpop.f32.mrb[0].mxu0
      %v3240 = vadd.f32 0.0, %v3239
      %v3241 = vpop.f32.mrb[0].mxu0
      %3242 = vmatprep.mubr.bf16.mxu0 0
      %3243 = vmatmul.mubr.bf16.gmra.mrb[0].mxu0 %v2211
      %v3244 = vpop.f32.mrb[0].mxu0
      %v3245 = vadd.f32 0.0, %v3244
      %v3246 = vpop.f32.mrb[0].mxu0
      %v3247 = vpop.f32.mrb[0].mxu0
      %v3248 = vadd.f32 0.0, %v3247
      %v3249 = vpop.f32.mrb[0].mxu0
      %3250 = vmatprep.mubr.bf16.mxu0 0
      %3251 = vmatmul.mubr.bf16.gmra.mrb[0].mxu0 %v2214
      %v3252 = vpop.f32.mrb[0].mxu0
      %v3253 = vadd.f32 0.0, %v3252
      %v3254 = vpop.f32.mrb[0].mxu0
      %v3255 = vpop.f32.mrb[0].mxu0
      %v3256 = vadd.f32 0.0, %v3255
      %v3257 = vpop.f32.mrb[0].mxu0
      %3258 = vmatprep.mubr.bf16.mxu0 0
      %3259 = vmatmul.mubr.bf16.gmra.mrb[0].mxu0 %v2217
      %v3260 = vpop.f32.mrb[0].mxu0
      %v3261 = vadd.f32 0.0, %v3260
      %v3262 = vpop.f32.mrb[0].mxu0
      %v3263 = vpop.f32.mrb[0].mxu0
      %v3264 = vadd.f32 0.0, %v3263
      %v3265 = vpop.f32.mrb[0].mxu0
      %3266 = vmatprep.mubr.bf16.mxu0 0
      %3267 = vmatmul.mubr.bf16.gmra.mrb[0].mxu0 %v2220
      %v3268 = vpop.f32.mrb[0].mxu0
      %v3269 = vadd.f32 0.0, %v3268
      %v3270 = vpop.f32.mrb[0].mxu0
      %v3271 = vpop.f32.mrb[0].mxu0
      %v3272 = vadd.f32 0.0, %v3271
      %v3273 = vpop.f32.mrb[0].mxu0
      %3274 = vmatprep.mubr.bf16.mxu0 0
      %3275 = vmatmul.mubr.bf16.gmra.mrb[0].mxu0 %v2223
      %v3276 = vpop.f32.mrb[0].mxu0
      %v3277 = vadd.f32 0.0, %v3276
      %v3278 = vpop.f32.mrb[0].mxu0
      %v3279 = vpop.f32.mrb[0].mxu0
      %v3280 = vadd.f32 0.0, %v3279
      %v3281 = vpop.f32.mrb[0].mxu0
      %3282 = vmatprep.mubr.bf16.mxu0 0
      %3283 = vmatmul.mubr.bf16.gmra.mrb[0].mxu0 %v2226
      %v3284 = vpop.f32.mrb[0].mxu0
      %v3285 = vadd.f32 0.0, %v3284
      %v3286 = vpop.f32.mrb[0].mxu0
      %v3287 = vpop.f32.mrb[0].mxu0
      %v3288 = vadd.f32 0.0, %v3287
      %v3289 = vpop.f32.mrb[0].mxu0
      %3290 = vmatprep.mubr.bf16.mxu0 0
      %3291 = vmatmul.mubr.bf16.gmra.mrb[0].mxu0 %v2229
      %v3292 = vpop.f32.mrb[0].mxu0
      %v3293 = vadd.f32 0.0, %v3292
      %v3294 = vpop.f32.mrb[0].mxu0
      %v3295 = vpop.f32.mrb[0].mxu0
      %v3296 = vadd.f32 0.0, %v3295
      %v3297 = vpop.f32.mrb[0].mxu0
      %3298 = vmatprep.mubr.bf16.mxu0 0
      %3299 = vmatmul.mubr.bf16.gmra.mrb[0].mxu0 %v2232
      %v3300 = vpop.f32.mrb[0].mxu0
      %v3301 = vadd.f32 0.0, %v3300
      %v3302 = vpop.f32.mrb[0].mxu0
      %v3303 = vpop.f32.mrb[0].mxu0
      %v3304 = vadd.f32 0.0, %v3303
      %v3305 = vpop.f32.mrb[0].mxu0
      %3306 = vmatprep.mubr.bf16.mxu0 0
      %3307 = vmatmul.mubr.bf16.gmra.mrb[0].mxu0 %v2235
      %v3308 = vpop.f32.mrb[0].mxu0
      %v3309 = vadd.f32 0.0, %v3308
      %v3310 = vpop.f32.mrb[0].mxu0
      %v3311 = vpop.f32.mrb[0].mxu0
      %v3312 = vadd.f32 0.0, %v3311
      %v3313 = vpop.f32.mrb[0].mxu0
      %3314 = vmatprep.mubr.bf16.mxu0 0
      %3315 = vmatmul.mubr.bf16.gmra.mrb[0].mxu0 %v2238
      %v3316 = vpop.f32.mrb[0].mxu0
      %v3317 = vadd.f32 0.0, %v3316
      %v3318 = vpop.f32.mrb[0].mxu0
      %v3319 = vpop.f32.mrb[0].mxu0
      %v3320 = vadd.f32 0.0, %v3319
      %v3321 = vpop.f32.mrb[0].mxu0
      %3322 = vmatprep.mubr.bf16.mxu0 0
      %3323 = vmatmul.mubr.bf16.gmra.mrb[0].mxu0 %v2241
      %v3324 = vpop.f32.mrb[0].mxu0
      %v3325 = vadd.f32 0.0, %v3324
      %v3326 = vpop.f32.mrb[0].mxu0
      %v3327 = vpop.f32.mrb[0].mxu0
      %v3328 = vadd.f32 0.0, %v3327
      %v3329 = vpop.f32.mrb[0].mxu0
      %3330 = vmatprep.mubr.bf16.mxu0 0
      %3331 = vmatmul.mubr.bf16.gmra.mrb[0].mxu0 %v2244
      %v3332 = vpop.f32.mrb[0].mxu0
      %v3333 = vadd.f32 0.0, %v3332
      %v3334 = vpop.f32.mrb[0].mxu0
      %v3335 = vpop.f32.mrb[0].mxu0
      %v3336 = vadd.f32 0.0, %v3335
      %v3337 = vpop.f32.mrb[0].mxu0
      %3338 = vmatprep.mubr.bf16.mxu0 0
      %3339 = vmatmul.mubr.bf16.gmra.mrb[0].mxu0 %v2247
      %v3340 = vpop.f32.mrb[0].mxu0
      %v3341 = vadd.f32 0.0, %v3340
      %v3342 = vpop.f32.mrb[0].mxu0
      %v3343 = vpop.f32.mrb[0].mxu0
      %v3344 = vadd.f32 0.0, %v3343
      %v3345 = vpop.f32.mrb[0].mxu0
      %3346 = vmatprep.mubr.bf16.mxu0 0
      %3347 = vmatmul.mubr.bf16.gmra.mrb[0].mxu0 %v2250
      %v3348 = vpop.f32.mrb[0].mxu0
      %v3349 = vadd.f32 0.0, %v3348
      %v3350 = vpop.f32.mrb[0].mxu0
      %v3351 = vpop.f32.mrb[0].mxu0
      %v3352 = vadd.f32 0.0, %v3351
      %v3353 = vpop.f32.mrb[0].mxu0
      %3354 = vmatprep.mubr.bf16.mxu0 0
      %3355 = vmatmul.mubr.bf16.gmra.mrb[0].mxu0 %v2253
      %v3356 = vpop.f32.mrb[0].mxu0
      %v3357 = vadd.f32 0.0, %v3356
      %v3358 = vpop.f32.mrb[0].mxu0
      %v3359 = vpop.f32.mrb[0].mxu0
      %v3360 = vadd.f32 0.0, %v3359
      %v3361 = vpop.f32.mrb[0].mxu0
      %3362 = vmatprep.mubr.bf16.mxu0 0
      %3363 = vmatmul.mubr.bf16.gmra.mrb[0].mxu0 %v2256
      %v3364 = vpop.f32.mrb[0].mxu0
      %v3365 = vadd.f32 0.0, %v3364
      %v3366 = vpop.f32.mrb[0].mxu0
      %v3367 = vpop.f32.mrb[0].mxu0
      %v3368 = vadd.f32 0.0, %v3367
      %v3369 = vpop.f32.mrb[0].mxu0
      %3370 = vmatprep.mubr.bf16.mxu0 0
      %3371 = vmatmul.mubr.bf16.gmra.mrb[0].mxu0 %v2259
      %v3372 = vpop.f32.mrb[0].mxu0
      %v3373 = vadd.f32 0.0, %v3372
      %v3374 = vpop.f32.mrb[0].mxu0
      %v3375 = vpop.f32.mrb[0].mxu0
      %v3376 = vadd.f32 0.0, %v3375
      %v3377 = vpop.f32.mrb[0].mxu0
      %3378 = vmatprep.mubr.bf16.mxu0 0
      %3379 = vmatmul.mubr.bf16.gmra.mrb[0].mxu0 %v2262
      %v3380 = vpop.f32.mrb[0].mxu0
      %v3381 = vadd.f32 0.0, %v3380
      %v3382 = vpop.f32.mrb[0].mxu0
      %v3383 = vpop.f32.mrb[0].mxu0
      %v3384 = vadd.f32 0.0, %v3383
      %v3385 = vpop.f32.mrb[0].mxu0
      %3386 = vmatprep.mubr.bf16.mxu0 0
      %3387 = vmatmul.mubr.bf16.gmra.mrb[0].mxu0 %v2265
      %v3388 = vpop.f32.mrb[0].mxu0
      %v3389 = vadd.f32 0.0, %v3388
      %v3390 = vpop.f32.mrb[0].mxu0
      %v3391 = vpop.f32.mrb[0].mxu0
      %v3392 = vadd.f32 0.0, %v3391
      %v3393 = vpop.f32.mrb[0].mxu0
      %3394 = vmatprep.mubr.bf16.mxu0 0
      %3395 = vmatmul.mubr.bf16.gmra.mrb[0].mxu0 %v2268
      %v3396 = vpop.f32.mrb[0].mxu0
      %v3397 = vadd.f32 0.0, %v3396
      %v3398 = vpop.f32.mrb[0].mxu0
      %v3399 = vpop.f32.mrb[0].mxu0
      %v3400 = vadd.f32 0.0, %v3399
      %v3401 = vpop.f32.mrb[0].mxu0
      %3402 = vmatprep.mubr.bf16.mxu0 0
      %3403 = vmatmul.mubr.bf16.gmra.mrb[0].mxu0 %v2271
      %v3404 = vpop.f32.mrb[0].mxu0
      %v3405 = vadd.f32 0.0, %v3404
      %v3406 = vpop.f32.mrb[0].mxu0
      %v3407 = vpop.f32.mrb[0].mxu0
      %v3408 = vadd.f32 0.0, %v3407
      %v3409 = vpop.f32.mrb[0].mxu0
      %3410 = vmatprep.mubr.bf16.mxu0 0
      %3411 = vmatmul.mubr.bf16.gmra.mrb[0].mxu0 %v2274
      %v3412 = vpop.f32.mrb[0].mxu0
      %v3413 = vadd.f32 0.0, %v3412
      %v3414 = vpop.f32.mrb[0].mxu0
      %v3415 = vpop.f32.mrb[0].mxu0
      %v3416 = vadd.f32 0.0, %v3415
      %v3417 = vpop.f32.mrb[0].mxu0
      %3418 = vmatprep.mubr.bf16.mxu0 0
      %3419 = vmatmul.mubr.bf16.gmra.mrb[0].mxu0 %v2277
      %v3420 = vpop.f32.mrb[0].mxu0
      %v3421 = vadd.f32 0.0, %v3420
      %v3422 = vpop.f32.mrb[0].mxu0
      %v3423 = vpop.f32.mrb[0].mxu0
      %v3424 = vadd.f32 0.0, %v3423
      %v3425 = vpop.f32.mrb[0].mxu0
      %3426 = vmatprep.mubr.bf16.mxu0 0
      %3427 = vmatmul.mubr.bf16.gmra.mrb[0].mxu0 %v2280
      %v3428 = vpop.f32.mrb[0].mxu0
      %v3429 = vadd.f32 0.0, %v3428
      %v3430 = vpop.f32.mrb[0].mxu0
      %v3431 = vpop.f32.mrb[0].mxu0
      %v3432 = vadd.f32 0.0, %v3431
      %v3433 = vpop.f32.mrb[0].mxu0
      %3434 = vmatprep.mubr.bf16.mxu0 0
      %3435 = vmatmul.mubr.bf16.gmra.mrb[0].mxu0 %v2283
      %v3436 = vpop.f32.mrb[0].mxu0
      %v3437 = vadd.f32 0.0, %v3436
      %v3438 = vpop.f32.mrb[0].mxu0
      %v3439 = vpop.f32.mrb[0].mxu0
      %v3440 = vadd.f32 0.0, %v3439
      %v3441 = vpop.f32.mrb[0].mxu0
      %3442 = vmatprep.mubr.bf16.mxu0 0
      %3443 = vmatmul.mubr.bf16.gmra.mrb[0].mxu0 %v2286
      %v3444 = vpop.f32.mrb[0].mxu0
      %v3445 = vadd.f32 0.0, %v3444
      %v3446 = vpop.f32.mrb[0].mxu0
      %v3447 = vpop.f32.mrb[0].mxu0
      %v3448 = vadd.f32 0.0, %v3447
      %v3449 = vpop.f32.mrb[0].mxu0
      %3450 = vmatprep.mubr.bf16.mxu0 0
      %3451 = vmatmul.mubr.bf16.gmra.mrb[0].mxu0 %v2289
      %v3452 = vpop.f32.mrb[0].mxu0
      %v3453 = vadd.f32 0.0, %v3452
      %v3454 = vpop.f32.mrb[0].mxu0
      %v3455 = vpop.f32.mrb[0].mxu0
      %v3456 = vadd.f32 0.0, %v3455
      %v3457 = vpop.f32.mrb[0].mxu0
      %3458 = vmatprep.mubr.bf16.mxu0 0
      %3459 = vmatmul.mubr.bf16.gmra.mrb[0].mxu0 %v2292
      %v3460 = vpop.f32.mrb[0].mxu0
      %v3461 = vadd.f32 0.0, %v3460
      %v3462 = vpop.f32.mrb[0].mxu0
      %v3463 = vpop.f32.mrb[0].mxu0
      %v3464 = vadd.f32 0.0, %v3463
      %v3465 = vpop.f32.mrb[0].mxu0
      %3466 = vmatprep.mubr.bf16.mxu0 0
      %3467 = vmatmul.mubr.bf16.gmra.mrb[0].mxu0 %v2295
      %v3468 = vpop.f32.mrb[0].mxu0
      %v3469 = vadd.f32 0.0, %v3468
      %v3470 = vpop.f32.mrb[0].mxu0
      %v3471 = vpop.f32.mrb[0].mxu0
      %v3472 = vadd.f32 0.0, %v3471
      %v3473 = vpop.f32.mrb[0].mxu0
      %3474 = vmatprep.mubr.bf16.mxu0 0
      %3475 = vmatmul.mubr.bf16.gmra.mrb[0].mxu0 %v2298
      %v3476 = vpop.f32.mrb[0].mxu0
      %v3477 = vadd.f32 0.0, %v3476
      %v3478 = vpop.f32.mrb[0].mxu0
      %v3479 = vpop.f32.mrb[0].mxu0
      %v3480 = vadd.f32 0.0, %v3479
      %v3481 = vpop.f32.mrb[0].mxu0
      %3482 = vmatprep.mubr.bf16.mxu0 0
      %3483 = vmatmul.mubr.bf16.gmra.mrb[0].mxu0 %v2301
      %v3484 = vpop.f32.mrb[0].mxu0
      %v3485 = vadd.f32 0.0, %v3484
      %v3486 = vpop.f32.mrb[0].mxu0
      %v3487 = vpop.f32.mrb[0].mxu0
      %v3488 = vadd.f32 0.0, %v3487
      %v3489 = vpop.f32.mrb[0].mxu0
      %3490 = vmatprep.mubr.bf16.mxu0 0
      %3491 = vmatmul.mubr.bf16.gmra.mrb[0].mxu0 %v2304
      %v3492 = vpop.f32.mrb[0].mxu0
      %v3493 = vadd.f32 0.0, %v3492
      %v3494 = vpop.f32.mrb[0].mxu0
      %v3495 = vpop.f32.mrb[0].mxu0
      %v3496 = vadd.f32 0.0, %v3495
      %v3497 = vpop.f32.mrb[0].mxu0
      %3498 = vmatprep.mubr.bf16.mxu0 0
      %3499 = vmatmul.mubr.bf16.gmra.mrb[0].mxu0 %v2307
      %v3500 = vpop.f32.mrb[0].mxu0
      %v3501 = vadd.f32 0.0, %v3500
      %v3502 = vpop.f32.mrb[0].mxu0
      %v3503 = vpop.f32.mrb[0].mxu0
      %v3504 = vadd.f32 0.0, %v3503
      %v3505 = vpop.f32.mrb[0].mxu0
      %3506 = vmatprep.mubr.bf16.mxu0 0
      %3507 = vmatmul.mubr.bf16.gmra.mrb[0].mxu0 %v2310
      %v3508 = vpop.f32.mrb[0].mxu0
      %v3509 = vadd.f32 0.0, %v3508
      %v3510 = vpop.f32.mrb[0].mxu0
      %v3511 = vpop.f32.mrb[0].mxu0
      %v3512 = vadd.f32 0.0, %v3511
      %v3513 = vpop.f32.mrb[0].mxu0
      %3514 = vmatprep.mubr.bf16.mxu0 0
      %3515 = vmatmul.mubr.bf16.gmra.mrb[0].mxu0 %v2313
      %v3516 = vpop.f32.mrb[0].mxu0
      %v3517 = vadd.f32 0.0, %v3516
      %v3518 = vpop.f32.mrb[0].mxu0
      %v3519 = vpop.f32.mrb[0].mxu0
      %v3520 = vadd.f32 0.0, %v3519
      %v3521 = vpop.f32.mrb[0].mxu0
      %3522 = vmatprep.mubr.bf16.mxu0 0
      %3523 = vmatmul.mubr.bf16.gmra.mrb[0].mxu0 %v2316
      %v3524 = vpop.f32.mrb[0].mxu0
      %v3525 = vadd.f32 0.0, %v3524
      %v3526 = vpop.f32.mrb[0].mxu0
      %v3527 = vpop.f32.mrb[0].mxu0
      %v3528 = vadd.f32 0.0, %v3527
      %v3529 = vpop.f32.mrb[0].mxu0
      %3530 = vmatprep.mubr.bf16.mxu0 0
      %3531 = vmatmul.mubr.bf16.gmra.mrb[0].mxu0 %v2319
      %v3532 = vpop.f32.mrb[0].mxu0
      %v3533 = vadd.f32 0.0, %v3532
      %v3534 = vpop.f32.mrb[0].mxu0
      %v3535 = vpop.f32.mrb[0].mxu0
      %v3536 = vadd.f32 0.0, %v3535
      %v3537 = vpop.f32.mrb[0].mxu0
      %3538 = vmatprep.mubr.bf16.mxu0 0
      %3539 = vmatmul.mubr.bf16.gmra.mrb[0].mxu0 %v2322
      %v3540 = vpop.f32.mrb[0].mxu0
      %v3541 = vadd.f32 0.0, %v3540
      %v3542 = vpop.f32.mrb[0].mxu0
      %v3543 = vpop.f32.mrb[0].mxu0
      %v3544 = vadd.f32 0.0, %v3543
      %v3545 = vpop.f32.mrb[0].mxu0
      %3546 = vmatprep.mubr.bf16.mxu0 0
      %3547 = vmatmul.mubr.bf16.gmra.mrb[0].mxu0 %v2325
      %v3548 = vpop.f32.mrb[0].mxu0
      %v3549 = vadd.f32 0.0, %v3548
      %v3550 = vpop.f32.mrb[0].mxu0
      %v3551 = vpop.f32.mrb[0].mxu0
      %v3552 = vadd.f32 0.0, %v3551
      %v3553 = vpop.f32.mrb[0].mxu0
      %3554 = vmatprep.mubr.bf16.mxu0 0
      %3555 = vmatmul.mubr.bf16.gmra.mrb[0].mxu0 %v2328
      %v3556 = vpop.f32.mrb[0].mxu0
      %v3557 = vadd.f32 0.0, %v3556
      %v3558 = vpop.f32.mrb[0].mxu0
      %v3559 = vpop.f32.mrb[0].mxu0
      %v3560 = vadd.f32 0.0, %v3559
      %v3561 = vpop.f32.mrb[0].mxu0
      %3562 = vmatprep.mubr.bf16.mxu0 0
      %3563 = vmatmul.mubr.bf16.gmra.mrb[0].mxu0 %v2331
      %v3564 = vpop.f32.mrb[0].mxu0
      %v3565 = vadd.f32 0.0, %v3564
      %v3566 = vpop.f32.mrb[0].mxu0
      %v3567 = vpop.f32.mrb[0].mxu0
      %v3568 = vadd.f32 0.0, %v3567
      %v3569 = vpop.f32.mrb[0].mxu0
      %3570 = vmatprep.mubr.bf16.mxu0 0
      %3571 = vmatmul.mubr.bf16.gmra.mrb[0].mxu0 %v2334
      %v3572 = vpop.f32.mrb[0].mxu0
      %v3573 = vadd.f32 0.0, %v3572
      %v3574 = vpop.f32.mrb[0].mxu0
      %v3575 = vpop.f32.mrb[0].mxu0
      %v3576 = vadd.f32 0.0, %v3575
      %v3577 = vpop.f32.mrb[0].mxu0
      %3578 = vmatprep.mubr.bf16.mxu0 0
      %3579 = vmatmul.mubr.bf16.gmra.mrb[0].mxu0 %v2337
      %v3580 = vpop.f32.mrb[0].mxu0
      %v3581 = vadd.f32 0.0, %v3580
      %v3582 = vpop.f32.mrb[0].mxu0
      %v3583 = vpop.f32.mrb[0].mxu0
      %v3584 = vadd.f32 0.0, %v3583
      %v3585 = vpop.f32.mrb[0].mxu0
      %3586 = vmatprep.mubr.bf16.mxu0 0
      %3587 = vmatmul.mubr.bf16.gmra.mrb[0].mxu0 %v2340
      %v3588 = vpop.f32.mrb[0].mxu0
      %v3589 = vadd.f32 0.0, %v3588
      %v3590 = vpop.f32.mrb[0].mxu0
      %v3591 = vpop.f32.mrb[0].mxu0
      %v3592 = vadd.f32 0.0, %v3591
      %v3593 = vpop.f32.mrb[0].mxu0
      %3594 = vmatprep.mubr.bf16.mxu0 0
      %3595 = vmatmul.mubr.bf16.gmra.mrb[0].mxu0 %v2343
      %v3596 = vpop.f32.mrb[0].mxu0
      %v3597 = vadd.f32 0.0, %v3596
      %v3598 = vpop.f32.mrb[0].mxu0
      %v3599 = vpop.f32.mrb[0].mxu0
      %v3600 = vadd.f32 0.0, %v3599
      %v3601 = vpop.f32.mrb[0].mxu0
      %3602 = vmatprep.mubr.bf16.mxu0 0
      %3603 = vmatmul.mubr.bf16.gmra.mrb[0].mxu0 %v2346
      %v3604 = vpop.f32.mrb[0].mxu0
      %v3605 = vadd.f32 0.0, %v3604
      %v3606 = vpop.f32.mrb[0].mxu0
      %v3607 = vpop.f32.mrb[0].mxu0
      %v3608 = vadd.f32 0.0, %v3607
      %v3609 = vpop.f32.mrb[0].mxu0
      %3610 = vmatprep.mubr.bf16.mxu0 0
      %3611 = vmatmul.mubr.bf16.gmra.mrb[0].mxu0 %v2349
      %v3612 = vpop.f32.mrb[0].mxu0
      %v3613 = vadd.f32 0.0, %v3612
      %v3614 = vpop.f32.mrb[0].mxu0
      %v3615 = vpop.f32.mrb[0].mxu0
      %v3616 = vadd.f32 0.0, %v3615
      %v3617 = vpop.f32.mrb[0].mxu0
      %3618 = vmatprep.mubr.bf16.mxu0 0
      %3619 = vmatmul.mubr.bf16.gmra.mrb[0].mxu0 %v2352
      %v3620 = vpop.f32.mrb[0].mxu0
      %v3621 = vadd.f32 0.0, %v3620
      %v3622 = vpop.f32.mrb[0].mxu0
      %v3623 = vpop.f32.mrb[0].mxu0
      %v3624 = vadd.f32 0.0, %v3623
      %v3625 = vpop.f32.mrb[0].mxu0
      %3626 = vmatprep.mubr.bf16.mxu0 0
      %3627 = vmatmul.mubr.bf16.gmra.mrb[0].mxu0 %v2355
      %v3628 = vpop.f32.mrb[0].mxu0
      %v3629 = vadd.f32 0.0, %v3628
      %v3630 = vpop.f32.mrb[0].mxu0
      %v3631 = vpop.f32.mrb[0].mxu0
      %v3632 = vadd.f32 0.0, %v3631
      %v3633 = vpop.f32.mrb[0].mxu0
      %3634 = vmatprep.mubr.bf16.mxu0 0
      %3635 = vmatmul.mubr.bf16.gmra.mrb[0].mxu0 %v2358
      %v3636 = vpop.f32.mrb[0].mxu0
      %v3637 = vadd.f32 0.0, %v3636
      %v3638 = vpop.f32.mrb[0].mxu0
      %v3639 = vpop.f32.mrb[0].mxu0
      %v3640 = vadd.f32 0.0, %v3639
      %v3641 = vpop.f32.mrb[0].mxu0
      %3642 = vmatprep.mubr.bf16.mxu0 0
      %3643 = vmatmul.mubr.bf16.gmra.mrb[0].mxu0 %v2361
      %v3644 = vpop.f32.mrb[0].mxu0
      %v3645 = vadd.f32 0.0, %v3644
      %v3646 = vpop.f32.mrb[0].mxu0
      %v3647 = vpop.f32.mrb[0].mxu0
      %v3648 = vadd.f32 0.0, %v3647
      %v3649 = vpop.f32.mrb[0].mxu0
      %3650 = vmatprep.mubr.bf16.mxu0 0
      %3651 = vmatmul.mubr.bf16.gmra.mrb[0].mxu0 %v2364
      %v3652 = vpop.f32.mrb[0].mxu0
      %v3653 = vadd.f32 0.0, %v3652
      %v3654 = vpop.f32.mrb[0].mxu0
      %v3655 = vpop.f32.mrb[0].mxu0
      %v3656 = vadd.f32 0.0, %v3655
      %v3657 = vpop.f32.mrb[0].mxu0
      %3658 = vmatprep.mubr.bf16.mxu0 0
      %3659 = vmatmul.mubr.bf16.gmra.mrb[0].mxu0 %v2367
      %v3660 = vpop.f32.mrb[0].mxu0
      %v3661 = vadd.f32 0.0, %v3660
      %v3662 = vpop.f32.mrb[0].mxu0
      %v3663 = vpop.f32.mrb[0].mxu0
      %v3664 = vadd.f32 0.0, %v3663
      %v3665 = vpop.f32.mrb[0].mxu0
      %3666 = vmatprep.mubr.bf16.mxu0 0
      %3667 = vmatmul.mubr.bf16.gmra.mrb[0].mxu0 %v2370
      %v3668 = vpop.f32.mrb[0].mxu0
      %v3669 = vadd.f32 0.0, %v3668
      %v3670 = vpop.f32.mrb[0].mxu0
      %v3671 = vpop.f32.mrb[0].mxu0
      %v3672 = vadd.f32 0.0, %v3671
      %v3673 = vpop.f32.mrb[0].mxu0
      %3674 = vmatprep.mubr.bf16.mxu0 0
      %3675 = vmatmul.mubr.bf16.gmra.mrb[0].mxu0 %v2373
      %v3676 = vpop.f32.mrb[0].mxu0
      %v3677 = vadd.f32 0.0, %v3676
      %v3678 = vpop.f32.mrb[0].mxu0
      %v3679 = vpop.f32.mrb[0].mxu0
      %v3680 = vadd.f32 0.0, %v3679
      %v3681 = vpop.f32.mrb[0].mxu0
      %3682 = vmatprep.mubr.bf16.mxu0 0
      %3683 = vmatmul.mubr.bf16.gmra.mrb[0].mxu0 %v2376
      %v3684 = vpop.f32.mrb[0].mxu0
      %v3685 = vadd.f32 0.0, %v3684
      %v3686 = vpop.f32.mrb[0].mxu0
      %v3687 = vpop.f32.mrb[0].mxu0
      %v3688 = vadd.f32 0.0, %v3687
      %v3689 = vpop.f32.mrb[0].mxu0
      %3690 = vmatprep.mubr.bf16.mxu0 0
      %3691 = vmatmul.mubr.bf16.gmra.mrb[0].mxu0 %v2379
      %v3692 = vpop.f32.mrb[0].mxu0
      %v3693 = vadd.f32 0.0, %v3692
      %v3694 = vpop.f32.mrb[0].mxu0
      %v3695 = vpop.f32.mrb[0].mxu0
      %v3696 = vadd.f32 0.0, %v3695
      %v3697 = vpop.f32.mrb[0].mxu0
      %3698 = vmatprep.mubr.bf16.mxu0 0
      %3699 = vmatmul.mubr.bf16.gmra.mrb[0].mxu0 %v2382
      %v3700 = vpop.f32.mrb[0].mxu0
      %v3701 = vadd.f32 0.0, %v3700
      %v3702 = vpop.f32.mrb[0].mxu0
      %v3703 = vpop.f32.mrb[0].mxu0
      %v3704 = vadd.f32 0.0, %v3703
      %v3705 = vpop.f32.mrb[0].mxu0
      %3706 = vmatprep.mubr.bf16.mxu0 0
      %3707 = vmatmul.mubr.bf16.gmra.mrb[0].mxu0 %v2385
      %v3708 = vpop.f32.mrb[0].mxu0
      %v3709 = vadd.f32 0.0, %v3708
      %v3710 = vpop.f32.mrb[0].mxu0
      %v3711 = vpop.f32.mrb[0].mxu0
      %v3712 = vadd.f32 0.0, %v3711
      %v3713 = vpop.f32.mrb[0].mxu0
      %3714 = vmatprep.mubr.bf16.mxu0 0
      %3715 = vmatmul.mubr.bf16.gmra.mrb[0].mxu0 %v2388
      %v3716 = vpop.f32.mrb[0].mxu0
      %v3717 = vadd.f32 0.0, %v3716
      %v3718 = vpop.f32.mrb[0].mxu0
      %v3719 = vpop.f32.mrb[0].mxu0
      %v3720 = vadd.f32 0.0, %v3719
      %v3721 = vpop.f32.mrb[0].mxu0
      %3722 = vmatprep.mubr.bf16.mxu0 0
      %3723 = vmatmul.mubr.bf16.gmra.mrb[0].mxu0 %v2391
      %v3724 = vpop.f32.mrb[0].mxu0
      %v3725 = vadd.f32 0.0, %v3724
      %v3726 = vpop.f32.mrb[0].mxu0
      %v3727 = vpop.f32.mrb[0].mxu0
      %v3728 = vadd.f32 0.0, %v3727
      %v3729 = vpop.f32.mrb[0].mxu0
      %3730 = vmatprep.mubr.bf16.mxu0 0
      %3731 = vmatmul.mubr.bf16.gmra.mrb[0].mxu0 %v2394
      %v3732 = vpop.f32.mrb[0].mxu0
      %v3733 = vadd.f32 0.0, %v3732
      %v3734 = vpop.f32.mrb[0].mxu0
      %v3735 = vpop.f32.mrb[0].mxu0
      %v3736 = vadd.f32 0.0, %v3735
      %v3737 = vpop.f32.mrb[0].mxu0
      %3738 = vmatprep.mubr.bf16.mxu0 0
      %3739 = vmatmul.mubr.bf16.gmra.mrb[0].mxu0 %v2397
      %v3740 = vpop.f32.mrb[0].mxu0
      %v3741 = vadd.f32 0.0, %v3740
      %v3742 = vpop.f32.mrb[0].mxu0
      %v3743 = vpop.f32.mrb[0].mxu0
      %v3744 = vadd.f32 0.0, %v3743
      %v3745 = vpop.f32.mrb[0].mxu0
      %3746 = vmatprep.mubr.bf16.mxu0 0
      %3747 = vmatmul.mubr.bf16.gmra.mrb[0].mxu0 %v2400
      %v3748 = vpop.f32.mrb[0].mxu0
      %v3749 = vadd.f32 0.0, %v3748
      %v3750 = vpop.f32.mrb[0].mxu0
      %v3751 = vpop.f32.mrb[0].mxu0
      %v3752 = vadd.f32 0.0, %v3751
      %v3753 = vpop.f32.mrb[0].mxu0
      %3754 = vmatprep.mubr.bf16.mxu0 0
      %3755 = vmatmul.mubr.bf16.gmra.mrb[0].mxu0 %v2403
      %v3756 = vpop.f32.mrb[0].mxu0
      %v3757 = vadd.f32 0.0, %v3756
      %v3758 = vpop.f32.mrb[0].mxu0
      %v3759 = vpop.f32.mrb[0].mxu0
      %v3760 = vadd.f32 0.0, %v3759
      %v3761 = vpop.f32.mrb[0].mxu0
      %3762 = vmatprep.mubr.bf16.mxu0 0
      %3763 = vmatmul.mubr.bf16.gmra.mrb[0].mxu0 %v2406
      %v3764 = vpop.f32.mrb[0].mxu0
      %v3765 = vadd.f32 0.0, %v3764
      %v3766 = vpop.f32.mrb[0].mxu0
      %v3767 = vpop.f32.mrb[0].mxu0
      %v3768 = vadd.f32 0.0, %v3767
      %v3769 = vpop.f32.mrb[0].mxu0
      %3770 = vmatprep.mubr.bf16.mxu0 0
      %3771 = vmatmul.mubr.bf16.gmra.mrb[0].mxu0 %v2409
      %v3772 = vpop.f32.mrb[0].mxu0
      %v3773 = vadd.f32 0.0, %v3772
      %v3774 = vpop.f32.mrb[0].mxu0
      %v3775 = vpop.f32.mrb[0].mxu0
      %v3776 = vadd.f32 0.0, %v3775
      %v3777 = vpop.f32.mrb[0].mxu0
      %3778 = vmatprep.mubr.bf16.mxu0 0
      %3779 = vmatmul.mubr.bf16.gmra.mrb[0].mxu0 %v2412
      %v3780 = vpop.f32.mrb[0].mxu0
      %v3781 = vadd.f32 0.0, %v3780
      %v3782 = vpop.f32.mrb[0].mxu0
      %v3783 = vpop.f32.mrb[0].mxu0
      %v3784 = vadd.f32 0.0, %v3783
      %v3785 = vpop.f32.mrb[0].mxu0
      %3786 = vmatprep.mubr.bf16.mxu0 0
      %3787 = vmatmul.mubr.bf16.gmra.mrb[0].mxu0 %v2415
      %v3788 = vpop.f32.mrb[0].mxu0
      %v3789 = vadd.f32 0.0, %v3788
      %v3790 = vpop.f32.mrb[0].mxu0
      %v3791 = vpop.f32.mrb[0].mxu0
      %v3792 = vadd.f32 0.0, %v3791
      %v3793 = vpop.f32.mrb[0].mxu0
      %3794 = vmatprep.mubr.bf16.mxu0 0
      %3795 = vmatmul.mubr.bf16.gmra.mrb[0].mxu0 %v2418
      %v3796 = vpop.f32.mrb[0].mxu0
      %v3797 = vadd.f32 0.0, %v3796
      %v3798 = vpop.f32.mrb[0].mxu0
      %v3799 = vpop.f32.mrb[0].mxu0
      %v3800 = vadd.f32 0.0, %v3799
      %v3801 = vpop.f32.mrb[0].mxu0
      %3802 = vmatprep.mubr.bf16.mxu0 0
      %3803 = vmatmul.mubr.bf16.gmra.mrb[0].mxu0 %v2421
      %v3804 = vpop.f32.mrb[0].mxu0
      %v3805 = vadd.f32 0.0, %v3804
      %v3806 = vpop.f32.mrb[0].mxu0
      %v3807 = vpop.f32.mrb[0].mxu0
      %v3808 = vadd.f32 0.0, %v3807
      %v3809 = vpop.f32.mrb[0].mxu0
      %3810 = vmatprep.mubr.bf16.mxu0 0
      %3811 = vmatmul.mubr.bf16.gmra.mrb[0].mxu0 %v2424
      %v3812 = vpop.f32.mrb[0].mxu0
      %v3813 = vadd.f32 0.0, %v3812
      %v3814 = vpop.f32.mrb[0].mxu0
      %v3815 = vpop.f32.mrb[0].mxu0
      %v3816 = vadd.f32 0.0, %v3815
      %v3817 = vpop.f32.mrb[0].mxu0
      %3818 = vmatprep.mubr.bf16.mxu0 0
      %3819 = vmatmul.mubr.bf16.gmra.mrb[0].mxu0 %v2427
      %v3820 = vpop.f32.mrb[0].mxu0
      %v3821 = vadd.f32 0.0, %v3820
      %v3822 = vpop.f32.mrb[0].mxu0
      %v3823 = vpop.f32.mrb[0].mxu0
      %v3824 = vadd.f32 0.0, %v3823
      %v3825 = vpop.f32.mrb[0].mxu0
      %3826 = vmatprep.mubr.bf16.mxu0 0
      %3827 = vmatmul.mubr.bf16.gmra.mrb[0].mxu0 %v2430
      %v3828 = vpop.f32.mrb[0].mxu0
      %v3829 = vadd.f32 0.0, %v3828
      %v3830 = vpop.f32.mrb[0].mxu0
      %v3831 = vpop.f32.mrb[0].mxu0
      %v3832 = vadd.f32 0.0, %v3831
      %v3833 = vpop.f32.mrb[0].mxu0
      %3834 = vmatprep.mubr.bf16.mxu0 0
      %3835 = vmatmul.mubr.bf16.gmra.mrb[0].mxu0 %v2433
      %v3836 = vpop.f32.mrb[0].mxu0
      %v3837 = vadd.f32 0.0, %v3836
      %v3838 = vpop.f32.mrb[0].mxu0
      %v3839 = vpop.f32.mrb[0].mxu0
      %v3840 = vadd.f32 0.0, %v3839
      %v3841 = vpop.f32.mrb[0].mxu0
      %3842 = vmatprep.mubr.bf16.mxu0 0
      %3843 = vmatmul.mubr.bf16.gmra.mrb[0].mxu0 %v2436
      %v3844 = vpop.f32.mrb[0].mxu0
      %v3845 = vadd.f32 0.0, %v3844
      %v3846 = vpop.f32.mrb[0].mxu0
      %v3847 = vpop.f32.mrb[0].mxu0
      %v3848 = vadd.f32 0.0, %v3847
      %v3849 = vpop.f32.mrb[0].mxu0
      %3850 = vmatprep.mubr.bf16.mxu0 0
      %3851 = vmatmul.mubr.bf16.gmra.mrb[0].mxu0 %v2439
      %v3852 = vpop.f32.mrb[0].mxu0
      %v3853 = vadd.f32 0.0, %v3852
      %v3854 = vpop.f32.mrb[0].mxu0
      %v3855 = vpop.f32.mrb[0].mxu0
      %v3856 = vadd.f32 0.0, %v3855
      %v3857 = vpop.f32.mrb[0].mxu0
      %3858 = vmatprep.mubr.bf16.mxu0 0
      %3859 = vmatmul.mubr.bf16.gmra.mrb[0].mxu0 %v2442
      %v3860 = vpop.f32.mrb[0].mxu0
      %v3861 = vadd.f32 0.0, %v3860
      %v3862 = vpop.f32.mrb[0].mxu0
      %v3863 = vpop.f32.mrb[0].mxu0
      %v3864 = vadd.f32 0.0, %v3863
      %v3865 = vpop.f32.mrb[0].mxu0
      %3866 = vmatprep.mubr.bf16.mxu0 0
      %3867 = vmatmul.mubr.bf16.gmra.mrb[0].mxu0 %v2445
      %v3868 = vpop.f32.mrb[0].mxu0
      %v3869 = vadd.f32 0.0, %v3868
      %v3870 = vpop.f32.mrb[0].mxu0
      %v3871 = vpop.f32.mrb[0].mxu0
      %v3872 = vadd.f32 0.0, %v3871
      %v3873 = vpop.f32.mrb[0].mxu0
      %3874 = vmatprep.mubr.bf16.mxu0 0
      %3875 = vmatmul.mubr.bf16.gmra.mrb[0].mxu0 %v2448
      %v3876 = vpop.f32.mrb[0].mxu0
      %v3877 = vadd.f32 0.0, %v3876
      %v3878 = vpop.f32.mrb[0].mxu0
      %v3879 = vpop.f32.mrb[0].mxu0
      %v3880 = vadd.f32 0.0, %v3879
      %v3881 = vpop.f32.mrb[0].mxu0
      %3882 = vmatprep.mubr.bf16.mxu0 0
      %3883 = vmatmul.mubr.bf16.gmra.mrb[0].mxu0 %v2451
      %v3884 = vpop.f32.mrb[0].mxu0
      %v3885 = vadd.f32 0.0, %v3884
      %v3886 = vpop.f32.mrb[0].mxu0
      %v3887 = vpop.f32.mrb[0].mxu0
      %v3888 = vadd.f32 0.0, %v3887
      %v3889 = vpop.f32.mrb[0].mxu0
      %3890 = vmatprep.mubr.bf16.mxu0 0
      %3891 = vmatmul.mubr.bf16.gmra.mrb[0].mxu0 %v2454
      %v3892 = vpop.f32.mrb[0].mxu0
      %v3893 = vadd.f32 0.0, %v3892
      %v3894 = vpop.f32.mrb[0].mxu0
      %v3895 = vpop.f32.mrb[0].mxu0
      %v3896 = vadd.f32 0.0, %v3895
      %v3897 = vpop.f32.mrb[0].mxu0
      %3898 = vmatprep.mubr.bf16.mxu0 0
      %3899 = vmatmul.mubr.bf16.gmra.mrb[0].mxu0 %v2457
      %v3900 = vpop.f32.mrb[0].mxu0
      %v3901 = vadd.f32 0.0, %v3900
      %v3902 = vpop.f32.mrb[0].mxu0
      %v3903 = vpop.f32.mrb[0].mxu0
      %v3904 = vadd.f32 0.0, %v3903
      %v3905 = vpop.f32.mrb[0].mxu0
      %3906 = vmatprep.mubr.bf16.mxu0 0
      %3907 = vmatmul.mubr.bf16.gmra.mrb[0].mxu0 %v2460
      %v3908 = vpop.f32.mrb[0].mxu0
      %v3909 = vadd.f32 0.0, %v3908
      %v3910 = vpop.f32.mrb[0].mxu0
      %v3911 = vpop.f32.mrb[0].mxu0
      %v3912 = vadd.f32 0.0, %v3911
      %v3913 = vpop.f32.mrb[0].mxu0
      %3914 = vmatprep.mubr.bf16.mxu0 0
      %3915 = vmatmul.mubr.bf16.gmra.mrb[0].mxu0 %v2463
      %v3916 = vpop.f32.mrb[0].mxu0
      %v3917 = vadd.f32 0.0, %v3916
      %v3918 = vpop.f32.mrb[0].mxu0
      %v3919 = vpop.f32.mrb[0].mxu0
      %v3920 = vadd.f32 0.0, %v3919
      %v3921 = vpop.f32.mrb[0].mxu0
      %3922 = vmatprep.mubr.bf16.mxu0 0
      %3923 = vmatmul.mubr.bf16.gmra.mrb[0].mxu0 %v2466
      %v3924 = vpop.f32.mrb[0].mxu0
      %v3925 = vadd.f32 0.0, %v3924
      %v3926 = vpop.f32.mrb[0].mxu0
      %v3927 = vpop.f32.mrb[0].mxu0
      %v3928 = vadd.f32 0.0, %v3927
      %v3929 = vpop.f32.mrb[0].mxu0
      %3930 = vmatprep.mubr.bf16.mxu0 0
      %3931 = vmatmul.mubr.bf16.gmra.mrb[0].mxu0 %v2469
      %v3932 = vpop.f32.mrb[0].mxu0
      %v3933 = vadd.f32 0.0, %v3932
      %v3934 = vpop.f32.mrb[0].mxu0
      %v3935 = vpop.f32.mrb[0].mxu0
      %v3936 = vadd.f32 0.0, %v3935
      %v3937 = vpop.f32.mrb[0].mxu0
      %3938 = vmatprep.mubr.bf16.mxu0 0
      %3939 = vmatmul.mubr.bf16.gmra.mrb[0].mxu0 %v2472
      %v3940 = vpop.f32.mrb[0].mxu0
      %v3941 = vadd.f32 0.0, %v3940
      %v3942 = vpop.f32.mrb[0].mxu0
      %v3943 = vpop.f32.mrb[0].mxu0
      %v3944 = vadd.f32 0.0, %v3943
      %v3945 = vpop.f32.mrb[0].mxu0
      %3946 = vmatprep.mubr.bf16.mxu0 0
      %3947 = vmatmul.mubr.bf16.gmra.mrb[0].mxu0 %v2475
      %v3948 = vpop.f32.mrb[0].mxu0
      %v3949 = vadd.f32 0.0, %v3948
      %v3950 = vpop.f32.mrb[0].mxu0
      %v3951 = vpop.f32.mrb[0].mxu0
      %v3952 = vadd.f32 0.0, %v3951
      %v3953 = vpop.f32.mrb[0].mxu0
      %3954 = vmatprep.mubr.bf16.mxu0 0
      %3955 = vmatmul.mubr.bf16.gmra.mrb[0].mxu0 %v2478
      %v3956 = vpop.f32.mrb[0].mxu0
      %v3957 = vadd.f32 0.0, %v3956
      %v3958 = vpop.f32.mrb[0].mxu0
      %v3959 = vpop.f32.mrb[0].mxu0
      %v3960 = vadd.f32 0.0, %v3959
      %v3961 = vpop.f32.mrb[0].mxu0
      %3962 = vmatprep.mubr.bf16.mxu0 0
      %3963 = vmatmul.mubr.bf16.gmra.mrb[0].mxu0 %v2481
      %v3964 = vpop.f32.mrb[0].mxu0
      %v3965 = vadd.f32 0.0, %v3964
      %v3966 = vpop.f32.mrb[0].mxu0
      %v3967 = vpop.f32.mrb[0].mxu0
      %v3968 = vadd.f32 0.0, %v3967
      %v3969 = vpop.f32.mrb[0].mxu0
      %3970 = vmatprep.mubr.bf16.mxu0 0
      %3971 = vmatmul.mubr.bf16.gmra.mrb[0].mxu0 %v2484
      %v3972 = vpop.f32.mrb[0].mxu0
      %v3973 = vadd.f32 0.0, %v3972
      %v3974 = vpop.f32.mrb[0].mxu0
      %v3975 = vpop.f32.mrb[0].mxu0
      %v3976 = vadd.f32 0.0, %v3975
      %v3977 = vpop.f32.mrb[0].mxu0
      %3978 = vmatprep.mubr.bf16.mxu0 0
      %3979 = vmatmul.mubr.bf16.gmra.mrb[0].mxu0 %v2487
      %v3980 = vpop.f32.mrb[0].mxu0
      %v3981 = vadd.f32 0.0, %v3980
      %v3982 = vpop.f32.mrb[0].mxu0
      %v3983 = vpop.f32.mrb[0].mxu0
      %v3984 = vadd.f32 0.0, %v3983
      %v3985 = vpop.f32.mrb[0].mxu0
      %3986 = vmatprep.mubr.bf16.mxu0 0
      %3987 = vmatmul.mubr.bf16.gmra.mrb[0].mxu0 %v2490
      %v3988 = vpop.f32.mrb[0].mxu0
      %v3989 = vadd.f32 0.0, %v3988
      %v3990 = vpop.f32.mrb[0].mxu0
      %v3991 = vpop.f32.mrb[0].mxu0
      %v3992 = vadd.f32 0.0, %v3991
      %v3993 = vpop.f32.mrb[0].mxu0
      %3994 = vmatprep.mubr.bf16.mxu0 0
      %3995 = vmatmul.mubr.bf16.gmra.mrb[0].mxu0 %v2493
      %v3996 = vpop.f32.mrb[0].mxu0
      %v3997 = vadd.f32 0.0, %v3996
      %v3998 = vpop.f32.mrb[0].mxu0
      %v3999 = vpop.f32.mrb[0].mxu0
      %v4000 = vadd.f32 0.0, %v3999
      %v4001 = vpop.f32.mrb[0].mxu0
      %4002 = vmatprep.mubr.bf16.mxu0 0
      %4003 = vmatmul.mubr.bf16.gmra.mrb[0].mxu0 %v2496
      %v4004 = vpop.f32.mrb[0].mxu0
      %v4005 = vadd.f32 0.0, %v4004
      %v4006 = vpop.f32.mrb[0].mxu0
      %v4007 = vpop.f32.mrb[0].mxu0
      %v4008 = vadd.f32 0.0, %v4007
      %v4009 = vpop.f32.mrb[0].mxu0
      %4010 = vmatprep.mubr.bf16.mxu0 0
      %4011 = vmatmul.mubr.bf16.gmra.mrb[0].mxu0 %v2499
      %v4012 = vpop.f32.mrb[0].mxu0
      %v4013 = vadd.f32 0.0, %v4012
      %v4014 = vpop.f32.mrb[0].mxu0
      %v4015 = vpop.f32.mrb[0].mxu0
      %v4016 = vadd.f32 0.0, %v4015
      %v4017 = vpop.f32.mrb[0].mxu0
      %4018 = vmatprep.mubr.bf16.mxu0 0
      %4019 = vmatmul.mubr.bf16.gmra.mrb[0].mxu0 %v2502
      %v4020 = vpop.f32.mrb[0].mxu0
      %v4021 = vadd.f32 0.0, %v4020
      %v4022 = vpop.f32.mrb[0].mxu0
      %v4023 = vpop.f32.mrb[0].mxu0
      %v4024 = vadd.f32 0.0, %v4023
      %v4025 = vpop.f32.mrb[0].mxu0
      %4026 = vmatprep.mubr.bf16.mxu0 0
      %4027 = vmatmul.mubr.bf16.gmra.mrb[0].mxu0 %v2505
      %v4028 = vpop.f32.mrb[0].mxu0
      %v4029 = vadd.f32 0.0, %v4028
      %v4030 = vpop.f32.mrb[0].mxu0
      %v4031 = vpop.f32.mrb[0].mxu0
      %v4032 = vadd.f32 0.0, %v4031
      %v4033 = vpop.f32.mrb[0].mxu0
      %4034 = vmatprep.mubr.bf16.mxu0 0
      %4035 = vmatmul.mubr.bf16.gmra.mrb[0].mxu0 %v2508
      %v4036 = vpop.f32.mrb[0].mxu0
      %v4037 = vadd.f32 0.0, %v4036
      %v4038 = vpop.f32.mrb[0].mxu0
      %v4039 = vpop.f32.mrb[0].mxu0
      %v4040 = vadd.f32 0.0, %v4039
      %v4041 = vpop.f32.mrb[0].mxu0
      %4042 = vmatprep.mubr.bf16.mxu0 0
      %4043 = vmatmul.mubr.bf16.gmra.mrb[0].mxu0 %v2511
      %v4044 = vpop.f32.mrb[0].mxu0
      %v4045 = vadd.f32 0.0, %v4044
      %v4046 = vpop.f32.mrb[0].mxu0
      %v4047 = vpop.f32.mrb[0].mxu0
      %v4048 = vadd.f32 0.0, %v4047
      %v4049 = vpop.f32.mrb[0].mxu0
      %4050 = vmatprep.mubr.bf16.mxu0 0
      %4051 = vmatmul.mubr.bf16.gmra.mrb[0].mxu0 %v2514
      %v4052 = vpop.f32.mrb[0].mxu0
      %v4053 = vadd.f32 0.0, %v4052
      %v4054 = vpop.f32.mrb[0].mxu0
      %v4055 = vpop.f32.mrb[0].mxu0
      %v4056 = vadd.f32 0.0, %v4055
      %v4057 = vpop.f32.mrb[0].mxu0
      %4058 = vmatprep.mubr.bf16.mxu0 0
      %4059 = vmatmul.mubr.bf16.gmra.mrb[0].mxu0 %v2517
      %v4060 = vpop.f32.mrb[0].mxu0
      %v4061 = vadd.f32 0.0, %v4060
      %v4062 = vpop.f32.mrb[0].mxu0
      %v4063 = vpop.f32.mrb[0].mxu0
      %v4064 = vadd.f32 0.0, %v4063
      %v4065 = vpop.f32.mrb[0].mxu0
      %4066 = vmatprep.mubr.bf16.mxu0 0
      %4067 = vmatmul.mubr.bf16.gmra.mrb[0].mxu0 %v2520
      %v4068 = vpop.f32.mrb[0].mxu0
      %v4069 = vadd.f32 0.0, %v4068
      %v4070 = vpop.f32.mrb[0].mxu0
      %v4071 = vpop.f32.mrb[0].mxu0
      %v4072 = vadd.f32 0.0, %v4071
      %v4073 = vpop.f32.mrb[0].mxu0
      %4074 = vmatprep.mubr.bf16.mxu0 0
      %4075 = vmatmul.mubr.bf16.gmra.mrb[0].mxu0 %v2523
      %v4076 = vpop.f32.mrb[0].mxu0
      %v4077 = vadd.f32 0.0, %v4076
      %v4078 = vpop.f32.mrb[0].mxu0
      %v4079 = vpop.f32.mrb[0].mxu0
      %v4080 = vadd.f32 0.0, %v4079
      %v4081 = vpop.f32.mrb[0].mxu0
      %4082 = vmatprep.mubr.bf16.mxu0 0
      %4083 = vmatmul.mubr.bf16.gmra.mrb[0].mxu0 %v2526
      %v4084 = vpop.f32.mrb[0].mxu0
      %v4085 = vadd.f32 0.0, %v4084
      %v4086 = vpop.f32.mrb[0].mxu0
      %v4087 = vpop.f32.mrb[0].mxu0
      %v4088 = vadd.f32 0.0, %v4087
      %v4089 = vpop.f32.mrb[0].mxu0
      %4090 = vmatprep.mubr.bf16.mxu0 0
      %4091 = vmatmul.mubr.bf16.gmra.mrb[0].mxu0 %v2529
      %v4092 = vpop.f32.mrb[0].mxu0
      %v4093 = vadd.f32 0.0, %v4092
      %v4094 = vpop.f32.mrb[0].mxu0
      %v4095 = vpop.f32.mrb[0].mxu0
      %v4096 = vadd.f32 0.0, %v4095
      %v4097 = vpop.f32.mrb[0].mxu0
      %4098 = vmatprep.mubr.bf16.mxu0 0
      %4099 = vmatmul.mubr.bf16.gmra.mrb[0].mxu0 %v2532
      %v4100 = vpop.f32.mrb[0].mxu0
      %v4101 = vadd.f32 0.0, %v4100
      %v4102 = vpop.f32.mrb[0].mxu0
      %v4103 = vpop.f32.mrb[0].mxu0
      %v4104 = vadd.f32 0.0, %v4103
      %v4105 = vpop.f32.mrb[0].mxu0
      %4106 = vmatprep.mubr.bf16.mxu0 0
      %4107 = vmatmul.mubr.bf16.gmra.mrb[0].mxu0 %v2535
      %v4108 = vpop.f32.mrb[0].mxu0
      %v4109 = vadd.f32 0.0, %v4108
      %v4110 = vpop.f32.mrb[0].mxu0
      %v4111 = vpop.f32.mrb[0].mxu0
      %v4112 = vadd.f32 0.0, %v4111
      %v4113 = vpop.f32.mrb[0].mxu0
      %4114 = vmatprep.mubr.bf16.mxu0 0
      %4115 = vmatmul.mubr.bf16.gmra.mrb[0].mxu0 %v2538
      %v4116 = vpop.f32.mrb[0].mxu0
      %v4117 = vadd.f32 0.0, %v4116
      %v4118 = vpop.f32.mrb[0].mxu0
      %v4119 = vpop.f32.mrb[0].mxu0
      %v4120 = vadd.f32 0.0, %v4119
      %v4121 = vpop.f32.mrb[0].mxu0
      %4122 = vmatprep.mubr.bf16.mxu0 0
      %4123 = vmatmul.mubr.bf16.gmra.mrb[0].mxu0 %v2541
      %v4124 = vpop.f32.mrb[0].mxu0
      %v4125 = vadd.f32 0.0, %v4124
      %v4126 = vpop.f32.mrb[0].mxu0
      %v4127 = vpop.f32.mrb[0].mxu0
      %v4128 = vadd.f32 0.0, %v4127
      %v4129 = vpop.f32.mrb[0].mxu0
      %4130 = vmatprep.mubr.bf16.mxu0 0
      %4131 = vmatmul.mubr.bf16.gmra.mrb[0].mxu0 %v2544
      %v4132 = vpop.f32.mrb[0].mxu0
      %v4133 = vadd.f32 0.0, %v4132
      %v4134 = vpop.f32.mrb[0].mxu0
      %v4135 = vpop.f32.mrb[0].mxu0
      %v4136 = vadd.f32 0.0, %v4135
      %v4137 = vpop.f32.mrb[0].mxu0
      %4138 = vmatprep.mubr.bf16.mxu0 0
      %4139 = vmatmul.mubr.bf16.gmra.mrb[0].mxu0 %v2547
      %v4140 = vpop.f32.mrb[0].mxu0
      %v4141 = vadd.f32 0.0, %v4140
      %v4142 = vpop.f32.mrb[0].mxu0
      %v4143 = vpop.f32.mrb[0].mxu0
      %v4144 = vadd.f32 0.0, %v4143
      %v4145 = vpop.f32.mrb[0].mxu0
      %4146 = vmatprep.mubr.bf16.mxu0 0
      %4147 = vmatmul.mubr.bf16.gmra.mrb[0].mxu0 %v2550
      %v4148 = vpop.f32.mrb[0].mxu0
      %v4149 = vadd.f32 0.0, %v4148
      %v4150 = vpop.f32.mrb[0].mxu0
      %v4151 = vpop.f32.mrb[0].mxu0
      %v4152 = vadd.f32 0.0, %v4151
      %v4153 = vpop.f32.mrb[0].mxu0
      %4154 = vmatprep.mubr.bf16.mxu0 0
      %4155 = vmatmul.mubr.bf16.gmra.mrb[0].mxu0 %v2553
      %v4156 = vpop.f32.mrb[0].mxu0
      %v4157 = vadd.f32 0.0, %v4156
      %v4158 = vpop.f32.mrb[0].mxu0
      %v4159 = vpop.f32.mrb[0].mxu0
      %v4160 = vadd.f32 0.0, %v4159
      %v4161 = vpop.f32.mrb[0].mxu0
      %4162 = vmatprep.mubr.bf16.mxu0 0
      %4163 = vmatmul.mubr.bf16.gmra.mrb[0].mxu0 %v2556
      %v4164 = vpop.f32.mrb[0].mxu0
      %v4165 = vadd.f32 0.0, %v4164
      %v4166 = vpop.f32.mrb[0].mxu0
      %v4167 = vpop.f32.mrb[0].mxu0
      %v4168 = vadd.f32 0.0, %v4167
      %v4169 = vpop.f32.mrb[0].mxu0
      %4170 = vmatprep.mubr.bf16.mxu0 0
      %4171 = vmatmul.mubr.bf16.gmra.mrb[0].mxu0 %v2559
      %v4172 = vpop.f32.mrb[0].mxu0
      %v4173 = vadd.f32 0.0, %v4172
      %v4174 = vpop.f32.mrb[0].mxu0
      %v4175 = vpop.f32.mrb[0].mxu0
      %v4176 = vadd.f32 0.0, %v4175
      %v4177 = vpop.f32.mrb[0].mxu0
      %4178 = vmatprep.mubr.bf16.mxu0 0
      %4179 = vmatmul.mubr.bf16.gmra.mrb[0].mxu0 %v2562
      %v4180 = vpop.f32.mrb[0].mxu0
      %v4181 = vadd.f32 0.0, %v4180
      %v4182 = vpop.f32.mrb[0].mxu0
      %v4183 = vpop.f32.mrb[0].mxu0
      %v4184 = vadd.f32 0.0, %v4183
      %v4185 = vpop.f32.mrb[0].mxu0
      %4186 = vmatprep.mubr.bf16.mxu0 0
      %4187 = vmatmul.mubr.bf16.gmra.mrb[0].mxu0 %v2565
      %v4188 = vpop.f32.mrb[0].mxu0
      %v4189 = vadd.f32 0.0, %v4188
      %v4190 = vpop.f32.mrb[0].mxu0
      %v4191 = vpop.f32.mrb[0].mxu0
      %v4192 = vadd.f32 0.0, %v4191
      %v4193 = vpop.f32.mrb[0].mxu0
      %4194 = vmatprep.mubr.bf16.mxu0 0
      %4195 = vmatmul.mubr.bf16.gmra.mrb[0].mxu0 %v2568
      %v4196 = vpop.f32.mrb[0].mxu0
      %v4197 = vadd.f32 0.0, %v4196
      %v4198 = vpop.f32.mrb[0].mxu0
      %v4199 = vpop.f32.mrb[0].mxu0
      %v4200 = vadd.f32 0.0, %v4199
      %v4201 = vpop.f32.mrb[0].mxu0
      %4202 = vmatprep.mubr.bf16.mxu0 0
      %4203 = vmatmul.mubr.bf16.gmra.mrb[0].mxu0 %v2571
      %v4204 = vpop.f32.mrb[0].mxu0
      %v4205 = vadd.f32 0.0, %v4204
      %v4206 = vpop.f32.mrb[0].mxu0
      %v4207 = vpop.f32.mrb[0].mxu0
      %v4208 = vadd.f32 0.0, %v4207
      %v4209 = vpop.f32.mrb[0].mxu0
      %4210 = vmatprep.mubr.bf16.mxu0 0
      %4211 = vmatmul.mubr.bf16.gmra.mrb[0].mxu0 %v2574
      %v4212 = vpop.f32.mrb[0].mxu0
      %v4213 = vadd.f32 0.0, %v4212
      %v4214 = vpop.f32.mrb[0].mxu0
      %v4215 = vpop.f32.mrb[0].mxu0
      %v4216 = vadd.f32 0.0, %v4215
      %v4217 = vpop.f32.mrb[0].mxu0
      %4218 = vmatprep.mubr.bf16.mxu0 0
      %4219 = vmatmul.mubr.bf16.gmra.mrb[0].mxu0 %v2577
      %v4220 = vpop.f32.mrb[0].mxu0
      %v4221 = vadd.f32 0.0, %v4220
      %v4222 = vpop.f32.mrb[0].mxu0
      %v4223 = vpop.f32.mrb[0].mxu0
      %v4224 = vadd.f32 0.0, %v4223
      %v4225 = vpop.f32.mrb[0].mxu0
      %4226 = vmatprep.mubr.bf16.mxu0 0
      %4227 = vmatmul.mubr.bf16.gmra.mrb[0].mxu0 %v2580
      %v4228 = vpop.f32.mrb[0].mxu0
      %v4229 = vadd.f32 0.0, %v4228
      %v4230 = vpop.f32.mrb[0].mxu0
      %v4231 = vpop.f32.mrb[0].mxu0
      %v4232 = vadd.f32 0.0, %v4231
      %v4233 = vpop.f32.mrb[0].mxu0
      %4234 = vmatprep.mubr.bf16.mxu0 0
      %4235 = vmatmul.mubr.bf16.gmra.mrb[0].mxu0 %v2583
      %v4236 = vpop.f32.mrb[0].mxu0
      %v4237 = vadd.f32 0.0, %v4236
      %v4238 = vpop.f32.mrb[0].mxu0
      %v4239 = vpop.f32.mrb[0].mxu0
      %v4240 = vadd.f32 0.0, %v4239
      %v4241 = vpop.f32.mrb[0].mxu0
      %4242 = vmatprep.mubr.bf16.mxu0 0
      %4243 = vmatmul.mubr.bf16.gmra.mrb[0].mxu0 %v2586
      %v4244 = vpop.f32.mrb[0].mxu0
      %v4245 = vadd.f32 0.0, %v4244
      %v4246 = vpop.f32.mrb[0].mxu0
      %v4247 = vpop.f32.mrb[0].mxu0
      %v4248 = vadd.f32 0.0, %v4247
      %v4249 = vpop.f32.mrb[0].mxu0
      %4250 = vmatprep.mubr.bf16.mxu0 0
      %4251 = vmatmul.mubr.bf16.gmra.mrb[0].mxu0 %v2589
      %v4252 = vpop.f32.mrb[0].mxu0
      %v4253 = vadd.f32 0.0, %v4252
      %v4254 = vpop.f32.mrb[0].mxu0
      %v4255 = vpop.f32.mrb[0].mxu0
      %v4256 = vadd.f32 0.0, %v4255
      %v4257 = vpop.f32.mrb[0].mxu0
      %4258 = vmatprep.mubr.bf16.mxu0 0
      %4259 = vmatmul.mubr.bf16.gmra.mrb[0].mxu0 %v2592
      %v4260 = vpop.f32.mrb[0].mxu0
      %v4261 = vadd.f32 0.0, %v4260
      %v4262 = vpop.f32.mrb[0].mxu0
      %v4263 = vpop.f32.mrb[0].mxu0
      %v4264 = vadd.f32 0.0, %v4263
      %v4265 = vpop.f32.mrb[0].mxu0
      %4266 = vmatprep.mubr.bf16.mxu0 0
      %4267 = vmatmul.mubr.bf16.gmra.mrb[0].mxu0 %v2595
      %v4268 = vpop.f32.mrb[0].mxu0
      %v4269 = vadd.f32 0.0, %v4268
      %v4270 = vpop.f32.mrb[0].mxu0
      %v4271 = vpop.f32.mrb[0].mxu0
      %v4272 = vadd.f32 0.0, %v4271
      %v4273 = vpop.f32.mrb[0].mxu0
      %4274 = vmatprep.mubr.bf16.mxu0 0
      %4275 = vmatmul.mubr.bf16.gmra.mrb[0].mxu0 %v2598
      %v4276 = vpop.f32.mrb[0].mxu0
      %v4277 = vadd.f32 0.0, %v4276
      %v4278 = vpop.f32.mrb[0].mxu0
      %v4279 = vpop.f32.mrb[0].mxu0
      %v4280 = vadd.f32 0.0, %v4279
      %v4281 = vpop.f32.mrb[0].mxu0
      %4282 = vmatprep.mubr.bf16.mxu0 0
      %4283 = vmatmul.mubr.bf16.gmra.mrb[0].mxu0 %v2601
      %v4284 = vpop.f32.mrb[0].mxu0
      %v4285 = vadd.f32 0.0, %v4284
      %v4286 = vpop.f32.mrb[0].mxu0
      %v4287 = vpop.f32.mrb[0].mxu0
      %v4288 = vadd.f32 0.0, %v4287
      %v4289 = vpop.f32.mrb[0].mxu0
      %4290 = vmatprep.mubr.bf16.mxu0 0
      %4291 = vmatmul.mubr.bf16.gmra.mrb[0].mxu0 %v2604
      %v4292 = vpop.f32.mrb[0].mxu0
      %v4293 = vadd.f32 0.0, %v4292
      %v4294 = vpop.f32.mrb[0].mxu0
      %v4295 = vpop.f32.mrb[0].mxu0
      %v4296 = vadd.f32 0.0, %v4295
      %v4297 = vpop.f32.mrb[0].mxu0
      %4298 = vmatprep.mubr.bf16.mxu0 0
      %4299 = vmatmul.mubr.bf16.gmra.mrb[0].mxu0 %v2607
      %v4300 = vpop.f32.mrb[0].mxu0
      %v4301 = vadd.f32 0.0, %v4300
      %v4302 = vpop.f32.mrb[0].mxu0
      %v4303 = vpop.f32.mrb[0].mxu0
      %v4304 = vadd.f32 0.0, %v4303
      %v4305 = vpop.f32.mrb[0].mxu0
      %4306 = vmatprep.mubr.bf16.mxu0 0
      %4307 = vmatmul.mubr.bf16.gmra.mrb[0].mxu0 %v2610
      %v4308 = vpop.f32.mrb[0].mxu0
      %v4309 = vadd.f32 0.0, %v4308
      %v4310 = vpop.f32.mrb[0].mxu0
      %v4311 = vpop.f32.mrb[0].mxu0
      %v4312 = vadd.f32 0.0, %v4311
      %v4313 = vpop.f32.mrb[0].mxu0
      %4314 = vmatprep.mubr.bf16.mxu0 0
      %4315 = vmatmul.mubr.bf16.gmra.mrb[0].mxu0 %v2613
      %v4316 = vpop.f32.mrb[0].mxu0
      %v4317 = vadd.f32 0.0, %v4316
      %v4318 = vpop.f32.mrb[0].mxu0
      %v4319 = vpop.f32.mrb[0].mxu0
      %v4320 = vadd.f32 0.0, %v4319
      %v4321 = vpop.f32.mrb[0].mxu0
      %4322 = vmatprep.mubr.bf16.mxu0 0
      %4323 = vmatmul.mubr.bf16.gmra.mrb[0].mxu0 %v2616
      %v4324 = vpop.f32.mrb[0].mxu0
      %v4325 = vadd.f32 0.0, %v4324
      %v4326 = vpop.f32.mrb[0].mxu0
      %v4327 = vpop.f32.mrb[0].mxu0
      %v4328 = vadd.f32 0.0, %v4327
      %v4329 = vpop.f32.mrb[0].mxu0
      %4330 = vmatprep.mubr.bf16.mxu0 0
      %4331 = vmatmul.mubr.bf16.gmra.mrb[0].mxu0 %v2619
      %v4332 = vpop.f32.mrb[0].mxu0
      %v4333 = vadd.f32 0.0, %v4332
      %v4334 = vpop.f32.mrb[0].mxu0
      %v4335 = vpop.f32.mrb[0].mxu0
      %v4336 = vadd.f32 0.0, %v4335
      %v4337 = vpop.f32.mrb[0].mxu0
      %4338 = vmatprep.mubr.bf16.mxu0 0
      %4339 = vmatmul.mubr.bf16.gmra.mrb[0].mxu0 %v2622
      %v4340 = vpop.f32.mrb[0].mxu0
      %v4341 = vadd.f32 0.0, %v4340
      %v4342 = vpop.f32.mrb[0].mxu0
      %v4343 = vpop.f32.mrb[0].mxu0
      %v4344 = vadd.f32 0.0, %v4343
      %v4345 = vpop.f32.mrb[0].mxu0
      %4346 = vmatprep.mubr.bf16.mxu0 0
      %4347 = vmatmul.mubr.bf16.gmra.mrb[0].mxu0 %v2625
      %v4348 = vpop.f32.mrb[0].mxu0
      %v4349 = vadd.f32 0.0, %v4348
      %v4350 = vpop.f32.mrb[0].mxu0
      %v4351 = vpop.f32.mrb[0].mxu0
      %v4352 = vadd.f32 0.0, %v4351
      %v4353 = vpop.f32.mrb[0].mxu0
      %4354 = vmatprep.mubr.bf16.mxu0 0
      %4355 = vmatmul.mubr.bf16.gmra.mrb[0].mxu0 %v2628
      %v4356 = vpop.f32.mrb[0].mxu0
      %v4357 = vadd.f32 0.0, %v4356
      %v4358 = vpop.f32.mrb[0].mxu0
      %v4359 = vpop.f32.mrb[0].mxu0
      %v4360 = vadd.f32 0.0, %v4359
      %v4361 = vpop.f32.mrb[0].mxu0
      %4362 = vmatprep.mubr.bf16.mxu0 0
      %4363 = vmatmul.mubr.bf16.gmra.mrb[0].mxu0 %v2631
      %v4364 = vpop.f32.mrb[0].mxu0
      %v4365 = vadd.f32 0.0, %v4364
      %v4366 = vpop.f32.mrb[0].mxu0
      %v4367 = vpop.f32.mrb[0].mxu0
      %v4368 = vadd.f32 0.0, %v4367
      %v4369 = vpop.f32.mrb[0].mxu0
      %4370 = vmatprep.mubr.bf16.mxu0 0
      %4371 = vmatmul.mubr.bf16.gmra.mrb[0].mxu0 %v2634
      %v4372 = vpop.f32.mrb[0].mxu0
      %v4373 = vadd.f32 0.0, %v4372
      %v4374 = vpop.f32.mrb[0].mxu0
      %v4375 = vpop.f32.mrb[0].mxu0
      %v4376 = vadd.f32 0.0, %v4375
      %v4377 = vpop.f32.mrb[0].mxu0
      %4378 = vmatprep.mubr.bf16.mxu0 0
      %4379 = vmatmul.mubr.bf16.gmra.mrb[0].mxu0 %v2637
      %v4380 = vpop.f32.mrb[0].mxu0
      %v4381 = vadd.f32 0.0, %v4380
      %v4382 = vpop.f32.mrb[0].mxu0
      %v4383 = vpop.f32.mrb[0].mxu0
      %v4384 = vadd.f32 0.0, %v4383
      %v4385 = vpop.f32.mrb[0].mxu0
      %4386 = vmatprep.mubr.bf16.mxu0 0
      %4387 = vmatmul.mubr.bf16.gmra.mrb[0].mxu0 %v2640
      %v4388 = vpop.f32.mrb[0].mxu0
      %v4389 = vadd.f32 0.0, %v4388
      %v4390 = vpop.f32.mrb[0].mxu0
      %v4391 = vpop.f32.mrb[0].mxu0
      %v4392 = vadd.f32 0.0, %v4391
      %v4393 = vpop.f32.mrb[0].mxu0
      %4394 = vmatprep.mubr.bf16.mxu0 0
      %4395 = vmatmul.mubr.bf16.gmra.mrb[0].mxu0 %v2643
      %v4396 = vpop.f32.mrb[0].mxu0
      %v4397 = vadd.f32 0.0, %v4396
      %v4398 = vpop.f32.mrb[0].mxu0
      %v4399 = vpop.f32.mrb[0].mxu0
      %v4400 = vadd.f32 0.0, %v4399
      %v4401 = vpop.f32.mrb[0].mxu0
      %4402 = vmatprep.mubr.bf16.mxu0 0
      %4403 = vmatmul.mubr.bf16.gmra.mrb[0].mxu0 %v2646
      %v4404 = vpop.f32.mrb[0].mxu0
      %v4405 = vadd.f32 0.0, %v4404
      %v4406 = vpop.f32.mrb[0].mxu0
      %v4407 = vpop.f32.mrb[0].mxu0
      %v4408 = vadd.f32 0.0, %v4407
      %v4409 = vpop.f32.mrb[0].mxu0
      %4410 = vmatprep.mubr.bf16.mxu0 0
      %4411 = vmatmul.mubr.bf16.gmra.mrb[0].mxu0 %v2649
      %v4412 = vpop.f32.mrb[0].mxu0
      %v4413 = vadd.f32 0.0, %v4412
      %v4414 = vpop.f32.mrb[0].mxu0
      %v4415 = vpop.f32.mrb[0].mxu0
      %v4416 = vadd.f32 0.0, %v4415
      %v4417 = vpop.f32.mrb[0].mxu0
      %4418 = vmatprep.mubr.bf16.mxu0 0
      %4419 = vmatmul.mubr.bf16.gmra.mrb[0].mxu0 %v2652
      %v4420 = vpop.f32.mrb[0].mxu0
      %v4421 = vadd.f32 0.0, %v4420
      %v4422 = vpop.f32.mrb[0].mxu0
      %v4423 = vpop.f32.mrb[0].mxu0
      %v4424 = vadd.f32 0.0, %v4423
      %v4425 = vpop.f32.mrb[0].mxu0
      %4426 = vmatprep.mubr.bf16.mxu0 0
      %4427 = vmatmul.mubr.bf16.gmra.mrb[0].mxu0 %v2655
      %v4428 = vpop.f32.mrb[0].mxu0
      %v4429 = vadd.f32 0.0, %v4428
      %v4430 = vpop.f32.mrb[0].mxu0
      %v4431 = vpop.f32.mrb[0].mxu0
      %v4432 = vadd.f32 0.0, %v4431
      %v4433 = vpop.f32.mrb[0].mxu0
      %4434 = vmatprep.mubr.bf16.mxu0 0
      %4435 = vmatmul.mubr.bf16.gmra.mrb[0].mxu0 %v2658
      %v4436 = vpop.f32.mrb[0].mxu0
      %v4437 = vadd.f32 0.0, %v4436
      %v4438 = vpop.f32.mrb[0].mxu0
      %v4439 = vpop.f32.mrb[0].mxu0
      %v4440 = vadd.f32 0.0, %v4439
      %v4441 = vpop.f32.mrb[0].mxu0
      %4442 = vmatprep.mubr.bf16.mxu0 0
      %4443 = vmatmul.mubr.bf16.gmra.mrb[0].mxu0 %v2661
      %v4444 = vpop.f32.mrb[0].mxu0
      %v4445 = vadd.f32 0.0, %v4444
      %v4446 = vpop.f32.mrb[0].mxu0
      %v4447 = vpop.f32.mrb[0].mxu0
      %v4448 = vadd.f32 0.0, %v4447
      %v4449 = vpop.f32.mrb[0].mxu0
      %4450 = vmatprep.mubr.bf16.mxu0 0
      %4451 = vmatmul.mubr.bf16.gmra.mrb[0].mxu0 %v2664
      %v4452 = vpop.f32.mrb[0].mxu0
      %v4453 = vadd.f32 0.0, %v4452
      %v4454 = vpop.f32.mrb[0].mxu0
      %v4455 = vpop.f32.mrb[0].mxu0
      %v4456 = vadd.f32 0.0, %v4455
      %v4457 = vpop.f32.mrb[0].mxu0
      %4458 = vmatprep.mubr.bf16.mxu0 0
      %4459 = vmatmul.mubr.bf16.gmra.mrb[0].mxu0 %v2667
      %v4460 = vpop.f32.mrb[0].mxu0
      %v4461 = vadd.f32 0.0, %v4460
      %v4462 = vpop.f32.mrb[0].mxu0
      %v4463 = vpop.f32.mrb[0].mxu0
      %v4464 = vadd.f32 0.0, %v4463
      %v4465 = vpop.f32.mrb[0].mxu0
      %4466 = vmatprep.mubr.bf16.mxu0 0
      %4467 = vmatmul.mubr.bf16.gmra.mrb[0].mxu0 %v2670
      %v4468 = vpop.f32.mrb[0].mxu0
      %v4469 = vadd.f32 0.0, %v4468
      %v4470 = vpop.f32.mrb[0].mxu0
      %v4471 = vpop.f32.mrb[0].mxu0
      %v4472 = vadd.f32 0.0, %v4471
      %v4473 = vpop.f32.mrb[0].mxu0
      %4474 = vmatprep.mubr.bf16.mxu0 0
      %4475 = vmatmul.mubr.bf16.gmra.mrb[0].mxu0 %v2673
      %v4476 = vpop.f32.mrb[0].mxu0
      %v4477 = vadd.f32 0.0, %v4476
      %v4478 = vpop.f32.mrb[0].mxu0
      %v4479 = vpop.f32.mrb[0].mxu0
      %v4480 = vadd.f32 0.0, %v4479
      %v4481 = vpop.f32.mrb[0].mxu0
      %4482 = vmatprep.mubr.bf16.mxu0 0
      %4483 = vmatmul.mubr.bf16.gmra.mrb[0].mxu0 %v2676
      %v4484 = vpop.f32.mrb[0].mxu0
      %v4485 = vadd.f32 0.0, %v4484
      %v4486 = vpop.f32.mrb[0].mxu0
      %v4487 = vpop.f32.mrb[0].mxu0
      %v4488 = vadd.f32 0.0, %v4487
      %v4489 = vpop.f32.mrb[0].mxu0
      %4490 = vmatprep.mubr.bf16.mxu0 0
      %4491 = vmatmul.mubr.bf16.gmra.mrb[0].mxu0 %v2679
      %v4492 = vpop.f32.mrb[0].mxu0
      %v4493 = vadd.f32 0.0, %v4492
      %v4494 = vpop.f32.mrb[0].mxu0
      %v4495 = vpop.f32.mrb[0].mxu0
      %v4496 = vadd.f32 0.0, %v4495
      %v4497 = vpop.f32.mrb[0].mxu0
      %4498 = vmatprep.mubr.bf16.mxu0 0
      %4499 = vmatmul.mubr.bf16.gmra.mrb[0].mxu0 %v2682
      %v4500 = vpop.f32.mrb[0].mxu0
      %v4501 = vadd.f32 0.0, %v4500
      %v4502 = vpop.f32.mrb[0].mxu0
      %v4503 = vpop.f32.mrb[0].mxu0
      %v4504 = vadd.f32 0.0, %v4503
      %v4505 = vpop.f32.mrb[0].mxu0
      %4506 = vmatprep.mubr.bf16.mxu0 0
      %4507 = vmatmul.mubr.bf16.gmra.mrb[0].mxu0 %v2685
      %v4508 = vpop.f32.mrb[0].mxu0
      %v4509 = vadd.f32 0.0, %v4508
      %v4510 = vpop.f32.mrb[0].mxu0
      %v4511 = vpop.f32.mrb[0].mxu0
      %v4512 = vadd.f32 0.0, %v4511
      %v4513 = vpop.f32.mrb[0].mxu0
      %4514 = vmatprep.mubr.bf16.mxu0 0
      %4515 = vmatmul.mubr.bf16.gmra.mrb[0].mxu0 %v2688
      %v4516 = vpop.f32.mrb[0].mxu0
      %v4517 = vadd.f32 0.0, %v4516
      %v4518 = vpop.f32.mrb[0].mxu0
      %v4519 = vpop.f32.mrb[0].mxu0
      %v4520 = vadd.f32 0.0, %v4519
      %v4521 = vpop.f32.mrb[0].mxu0
      %4522 = vmatprep.mubr.bf16.mxu0 0
      %4523 = vmatmul.mubr.bf16.gmra.mrb[0].mxu0 %v2691
      %v4524 = vpop.f32.mrb[0].mxu0
      %v4525 = vadd.f32 0.0, %v4524
      %v4526 = vpop.f32.mrb[0].mxu0
      %v4527 = vpop.f32.mrb[0].mxu0
      %v4528 = vadd.f32 0.0, %v4527
      %v4529 = vpop.f32.mrb[0].mxu0
      %4530 = vmatprep.mubr.bf16.mxu0 0
      %4531 = vmatmul.mubr.bf16.gmra.mrb[0].mxu0 %v2694
      %v4532 = vpop.f32.mrb[0].mxu0
      %v4533 = vadd.f32 0.0, %v4532
      %v4534 = vpop.f32.mrb[0].mxu0
      %v4535 = vpop.f32.mrb[0].mxu0
      %v4536 = vadd.f32 0.0, %v4535
      %v4537 = vpop.f32.mrb[0].mxu0
      %4538 = vmatprep.mubr.bf16.mxu0 0
      %4539 = vmatmul.mubr.bf16.gmra.mrb[0].mxu0 %v2697
      %v4540 = vpop.f32.mrb[0].mxu0
      %v4541 = vadd.f32 0.0, %v4540
      %v4542 = vpop.f32.mrb[0].mxu0
      %v4543 = vpop.f32.mrb[0].mxu0
      %v4544 = vadd.f32 0.0, %v4543
      %v4545 = vpop.f32.mrb[0].mxu0
      %4546 = vmatprep.mubr.bf16.mxu0 0
      %4547 = vmatmul.mubr.bf16.gmra.mrb[0].mxu0 %v2700
      %v4548 = vpop.f32.mrb[0].mxu0
      %v4549 = vadd.f32 0.0, %v4548
      %v4550 = vpop.f32.mrb[0].mxu0
      %v4551 = vpop.f32.mrb[0].mxu0
      %v4552 = vadd.f32 0.0, %v4551
      %v4553 = vpop.f32.mrb[0].mxu0
      %4554 = vmatprep.mubr.bf16.mxu0 0
      %4555 = vmatmul.mubr.bf16.gmra.mrb[0].mxu0 %v2703
      %v4556 = vpop.f32.mrb[0].mxu0
      %v4557 = vadd.f32 0.0, %v4556
      %v4558 = vpop.f32.mrb[0].mxu0
      %v4559 = vpop.f32.mrb[0].mxu0
      %v4560 = vadd.f32 0.0, %v4559
      %v4561 = vpop.f32.mrb[0].mxu0
      %4562 = vmatprep.mubr.bf16.mxu0 0
      %4563 = vmatmul.mubr.bf16.gmra.mrb[0].mxu0 %v2706
      %v4564 = vpop.f32.mrb[0].mxu0
      %v4565 = vadd.f32 0.0, %v4564
      %v4566 = vpop.f32.mrb[0].mxu0
      %v4567 = vpop.f32.mrb[0].mxu0
      %v4568 = vadd.f32 0.0, %v4567
      %v4569 = vpop.f32.mrb[0].mxu0
      %4570 = vmatprep.mubr.bf16.mxu0 0
      %4571 = vmatmul.mubr.bf16.gmra.mrb[0].mxu0 %v2709
      %v4572 = vpop.f32.mrb[0].mxu0
      %v4573 = vadd.f32 0.0, %v4572
      %v4574 = vpop.f32.mrb[0].mxu0
      %v4575 = vpop.f32.mrb[0].mxu0
      %v4576 = vadd.f32 0.0, %v4575
      %v4577 = vpop.f32.mrb[0].mxu0
      %4578 = vmatprep.mubr.bf16.mxu0 0
      %4579 = vmatmul.mubr.bf16.gmra.mrb[0].mxu0 %v2712
      %v4580 = vpop.f32.mrb[0].mxu0
      %v4581 = vadd.f32 0.0, %v4580
      %v4582 = vpop.f32.mrb[0].mxu0
      %v4583 = vpop.f32.mrb[0].mxu0
      %v4584 = vadd.f32 0.0, %v4583
      %v4585 = vpop.f32.mrb[0].mxu0
      %4586 = vmatprep.mubr.bf16.mxu0 0
      %4587 = vmatmul.mubr.bf16.gmra.mrb[0].mxu0 %v2715
      %v4588 = vpop.f32.mrb[0].mxu0
      %v4589 = vadd.f32 0.0, %v4588
      %v4590 = vpop.f32.mrb[0].mxu0
      %v4591 = vpop.f32.mrb[0].mxu0
      %v4592 = vadd.f32 0.0, %v4591
      %v4593 = vpop.f32.mrb[0].mxu0
      %4594 = vmatprep.mubr.bf16.mxu0 0
      %4595 = vmatmul.mubr.bf16.gmra.mrb[0].mxu0 %v2718
      %v4596 = vpop.f32.mrb[0].mxu0
      %v4597 = vadd.f32 0.0, %v4596
      %v4598 = vpop.f32.mrb[0].mxu0
      %v4599 = vpop.f32.mrb[0].mxu0
      %v4600 = vadd.f32 0.0, %v4599
      %v4601 = vpop.f32.mrb[0].mxu0
      %4602 = vmatprep.mubr.bf16.mxu0 0
      %4603 = vmatmul.mubr.bf16.gmra.mrb[0].mxu0 %v2721
      %v4604 = vpop.f32.mrb[0].mxu0
      %v4605 = vadd.f32 0.0, %v4604
      %v4606 = vpop.f32.mrb[0].mxu0
      %v4607 = vpop.f32.mrb[0].mxu0
      %v4608 = vadd.f32 0.0, %v4607
      %v4609 = vpop.f32.mrb[0].mxu0
      %4610 = vmatprep.mubr.bf16.mxu0 0
      %4611 = vmatmul.mubr.bf16.gmra.mrb[0].mxu0 %v2724
      %v4612 = vpop.f32.mrb[0].mxu0
      %v4613 = vadd.f32 0.0, %v4612
      %v4614 = vpop.f32.mrb[0].mxu0
      %v4615 = vpop.f32.mrb[0].mxu0
      %v4616 = vadd.f32 0.0, %v4615
      %v4617 = vpop.f32.mrb[0].mxu0
      %4618 = vmatprep.mubr.bf16.mxu0 0
      %4619 = vmatmul.mubr.bf16.gmra.mrb[0].mxu0 %v2727
      %v4620 = vpop.f32.mrb[0].mxu0
      %v4621 = vadd.f32 0.0, %v4620
      %v4622 = vpop.f32.mrb[0].mxu0
      %v4623 = vpop.f32.mrb[0].mxu0
      %v4624 = vadd.f32 0.0, %v4623
      %v4625 = vpop.f32.mrb[0].mxu0
      %4626 = vmatprep.mubr.bf16.mxu0 0
      %4627 = vmatmul.mubr.bf16.gmra.mrb[0].mxu0 %v2730
      %v4628 = vpop.f32.mrb[0].mxu0
      %v4629 = vadd.f32 0.0, %v4628
      %v4630 = vpop.f32.mrb[0].mxu0
      %v4631 = vpop.f32.mrb[0].mxu0
      %v4632 = vadd.f32 0.0, %v4631
      %v4633 = vpop.f32.mrb[0].mxu0
      %4634 = vmatprep.mubr.bf16.mxu0 0
      %4635 = vmatmul.mubr.bf16.gmra.mrb[0].mxu0 %v2733
      %v4636 = vpop.f32.mrb[0].mxu0
      %v4637 = vadd.f32 0.0, %v4636
      %v4638 = vpop.f32.mrb[0].mxu0
      %v4639 = vpop.f32.mrb[0].mxu0
      %v4640 = vadd.f32 0.0, %v4639
      %v4641 = vpop.f32.mrb[0].mxu0
      %4642 = vmatprep.mubr.bf16.mxu0 0
      %4643 = vmatmul.mubr.bf16.gmra.mrb[0].mxu0 %v2736
      %v4644 = vpop.f32.mrb[0].mxu0
      %v4645 = vadd.f32 0.0, %v4644
      %v4646 = vpop.f32.mrb[0].mxu0
      %v4647 = vpop.f32.mrb[0].mxu0
      %v4648 = vadd.f32 0.0, %v4647
      %v4649 = vpop.f32.mrb[0].mxu0
      %4650 = vmatprep.mubr.bf16.mxu0 0
      %4651 = vmatmul.mubr.bf16.gmra.mrb[0].mxu0 %v2739
      %v4652 = vpop.f32.mrb[0].mxu0
      %v4653 = vadd.f32 0.0, %v4652
      %v4654 = vpop.f32.mrb[0].mxu0
      %v4655 = vpop.f32.mrb[0].mxu0
      %v4656 = vadd.f32 0.0, %v4655
      %v4657 = vpop.f32.mrb[0].mxu0
      %4658 = vmatprep.mubr.bf16.mxu0 0
      %4659 = vmatmul.mubr.bf16.gmra.mrb[0].mxu0 %v2742
      %v4660 = vpop.f32.mrb[0].mxu0
      %v4661 = vadd.f32 0.0, %v4660
      %v4662 = vpop.f32.mrb[0].mxu0
      %v4663 = vpop.f32.mrb[0].mxu0
      %v4664 = vadd.f32 0.0, %v4663
      %v4665 = vpop.f32.mrb[0].mxu0
      %4666 = vmatprep.mubr.bf16.mxu0 0
      %4667 = vmatmul.mubr.bf16.gmra.mrb[0].mxu0 %v2745
      %v4668 = vpop.f32.mrb[0].mxu0
      %v4669 = vadd.f32 0.0, %v4668
      %v4670 = vpop.f32.mrb[0].mxu0
      %v4671 = vpop.f32.mrb[0].mxu0
      %v4672 = vadd.f32 0.0, %v4671
      %v4673 = vpop.f32.mrb[0].mxu0
      %4674 = vmatprep.mubr.bf16.mxu0 0
      %4675 = vmatmul.mubr.bf16.gmra.mrb[0].mxu0 %v2748
      %v4676 = vpop.f32.mrb[0].mxu0
      %v4677 = vadd.f32 0.0, %v4676
      %v4678 = vpop.f32.mrb[0].mxu0
      %v4679 = vpop.f32.mrb[0].mxu0
      %v4680 = vadd.f32 0.0, %v4679
      %v4681 = vpop.f32.mrb[0].mxu0
      %4682 = vmatprep.mubr.bf16.mxu0 0
      %4683 = vmatmul.mubr.bf16.gmra.mrb[0].mxu0 %v2751
      %v4684 = vpop.f32.mrb[0].mxu0
      %v4685 = vadd.f32 0.0, %v4684
      %v4686 = vpop.f32.mrb[0].mxu0
      %v4687 = vpop.f32.mrb[0].mxu0
      %v4688 = vadd.f32 0.0, %v4687
      %v4689 = vpop.f32.mrb[0].mxu0
      %4690 = vmatprep.mubr.bf16.mxu0 0
      %4691 = vmatmul.mubr.bf16.gmra.mrb[0].mxu0 %v2754
      %v4692 = vpop.f32.mrb[0].mxu0
      %v4693 = vadd.f32 0.0, %v4692
      %v4694 = vpop.f32.mrb[0].mxu0
      %v4695 = vpop.f32.mrb[0].mxu0
      %v4696 = vadd.f32 0.0, %v4695
      %v4697 = vpop.f32.mrb[0].mxu0
      %4698 = vmatprep.mubr.bf16.mxu0 0
      %4699 = vmatmul.mubr.bf16.gmra.mrb[0].mxu0 %v2757
      %v4700 = vpop.f32.mrb[0].mxu0
      %v4701 = vadd.f32 0.0, %v4700
      %v4702 = vpop.f32.mrb[0].mxu0
      %v4703 = vpop.f32.mrb[0].mxu0
      %v4704 = vadd.f32 0.0, %v4703
      %v4705 = vpop.f32.mrb[0].mxu0
      %4706 = vmatprep.mubr.bf16.mxu0 0
      %4707 = vmatmul.mubr.bf16.gmra.mrb[0].mxu0 %v2760
      %v4708 = vpop.f32.mrb[0].mxu0
      %v4709 = vadd.f32 0.0, %v4708
      %v4710 = vpop.f32.mrb[0].mxu0
      %v4711 = vpop.f32.mrb[0].mxu0
      %v4712 = vadd.f32 0.0, %v4711
      %v4713 = vpop.f32.mrb[0].mxu0
      %4714 = vmatprep.mubr.bf16.mxu0 0
      %4715 = vmatmul.mubr.bf16.gmra.mrb[0].mxu0 %v2763
      %v4716 = vpop.f32.mrb[0].mxu0
      %v4717 = vadd.f32 0.0, %v4716
      %v4718 = vpop.f32.mrb[0].mxu0
      %v4719 = vpop.f32.mrb[0].mxu0
      %v4720 = vadd.f32 0.0, %v4719
      %v4721 = vpop.f32.mrb[0].mxu0
      %4722 = vmatprep.mubr.bf16.mxu0 0
      %4723 = vmatmul.mubr.bf16.gmra.mrb[0].mxu0 %v2766
      %v4724 = vpop.f32.mrb[0].mxu0
      %v4725 = vadd.f32 0.0, %v4724
      %v4726 = vpop.f32.mrb[0].mxu0
      %v4727 = vpop.f32.mrb[0].mxu0
      %v4728 = vadd.f32 0.0, %v4727
      %v4729 = vpop.f32.mrb[0].mxu0
      %4730 = vmatprep.mubr.bf16.mxu0 0
      %4731 = vmatmul.mubr.bf16.gmra.mrb[0].mxu0 %v2769
      %v4732 = vpop.f32.mrb[0].mxu0
      %v4733 = vadd.f32 0.0, %v4732
      %v4734 = vpop.f32.mrb[0].mxu0
      %v4735 = vpop.f32.mrb[0].mxu0
      %v4736 = vadd.f32 0.0, %v4735
      %v4737 = vpop.f32.mrb[0].mxu0
      %4738 = vmatprep.mubr.bf16.mxu0 0
      %4739 = vmatmul.mubr.bf16.gmra.mrb[0].mxu0 %v2772
      %v4740 = vpop.f32.mrb[0].mxu0
      %v4741 = vadd.f32 0.0, %v4740
      %v4742 = vpop.f32.mrb[0].mxu0
      %v4743 = vpop.f32.mrb[0].mxu0
      %v4744 = vadd.f32 0.0, %v4743
      %v4745 = vpop.f32.mrb[0].mxu0
      %4746 = vmatprep.mubr.bf16.mxu0 0
      %4747 = vmatmul.mubr.bf16.gmra.mrb[0].mxu0 %v2775
      %v4748 = vpop.f32.mrb[0].mxu0
      %v4749 = vadd.f32 0.0, %v4748
      %v4750 = vpop.f32.mrb[0].mxu0
      %v4751 = vpop.f32.mrb[0].mxu0
      %v4752 = vadd.f32 0.0, %v4751
      %v4753 = vpop.f32.mrb[0].mxu0
      %4754 = vmatprep.mubr.bf16.mxu0 0
      %4755 = vmatmul.mubr.bf16.gmra.mrb[0].mxu0 %v2778
      %v4756 = vpop.f32.mrb[0].mxu0
      %v4757 = vadd.f32 0.0, %v4756
      %v4758 = vpop.f32.mrb[0].mxu0
      %v4759 = vpop.f32.mrb[0].mxu0
      %v4760 = vadd.f32 0.0, %v4759
      %v4761 = vpop.f32.mrb[0].mxu0
      %4762 = vmatprep.mubr.bf16.mxu0 0
      %4763 = vmatmul.mubr.bf16.gmra.mrb[0].mxu0 %v2781
      %v4764 = vpop.f32.mrb[0].mxu0
      %v4765 = vadd.f32 0.0, %v4764
      %v4766 = vpop.f32.mrb[0].mxu0
      %v4767 = vpop.f32.mrb[0].mxu0
      %v4768 = vadd.f32 0.0, %v4767
      %v4769 = vpop.f32.mrb[0].mxu0
      %4770 = vmatprep.mubr.bf16.mxu0 0
      %4771 = vmatmul.mubr.bf16.gmra.mrb[0].mxu0 %v2784
      %v4772 = vpop.f32.mrb[0].mxu0
      %v4773 = vadd.f32 0.0, %v4772
      %v4774 = vpop.f32.mrb[0].mxu0
      %v4775 = vpop.f32.mrb[0].mxu0
      %v4776 = vadd.f32 0.0, %v4775
      %v4777 = vpop.f32.mrb[0].mxu0
      %4778 = vmatprep.mubr.bf16.mxu0 0
      %4779 = vmatmul.mubr.bf16.gmra.mrb[0].mxu0 %v2787
      %v4780 = vpop.f32.mrb[0].mxu0
      %v4781 = vadd.f32 0.0, %v4780
      %v4782 = vpop.f32.mrb[0].mxu0
      %v4783 = vpop.f32.mrb[0].mxu0
      %v4784 = vadd.f32 0.0, %v4783
      %v4785 = vpop.f32.mrb[0].mxu0
      %4786 = vmatprep.mubr.bf16.mxu0 0
      %4787 = vmatmul.mubr.bf16.gmra.mrb[0].mxu0 %v2790
      %v4788 = vpop.f32.mrb[0].mxu0
      %v4789 = vadd.f32 0.0, %v4788
      %v4790 = vpop.f32.mrb[0].mxu0
      %v4791 = vpop.f32.mrb[0].mxu0
      %v4792 = vadd.f32 0.0, %v4791
      %v4793 = vpop.f32.mrb[0].mxu0
      %4794 = vmatprep.mubr.bf16.mxu0 0
      %4795 = vmatmul.mubr.bf16.gmra.mrb[0].mxu0 %v2793
      %v4796 = vpop.f32.mrb[0].mxu0
      %v4797 = vadd.f32 0.0, %v4796
      %v4798 = vpop.f32.mrb[0].mxu0
      %v4799 = vpop.f32.mrb[0].mxu0
      %v4800 = vadd.f32 0.0, %v4799
      %v4801 = vpop.f32.mrb[0].mxu0
      %4802 = vmatprep.mubr.bf16.mxu0 0
      %4803 = vmatmul.mubr.bf16.gmra.mrb[0].mxu0 %v2796
      %v4804 = vpop.f32.mrb[0].mxu0
      %v4805 = vadd.f32 0.0, %v4804
      %v4806 = vpop.f32.mrb[0].mxu0
      %v4807 = vpop.f32.mrb[0].mxu0
      %v4808 = vadd.f32 0.0, %v4807
      %v4809 = vpop.f32.mrb[0].mxu0
      %4810 = vmatprep.mubr.bf16.mxu0 0
      %4811 = vmatmul.mubr.bf16.gmra.mrb[0].mxu0 %v2799
      %v4812 = vpop.f32.mrb[0].mxu0
      %v4813 = vadd.f32 0.0, %v4812
      %v4814 = vpop.f32.mrb[0].mxu0
      %v4815 = vpop.f32.mrb[0].mxu0
      %v4816 = vadd.f32 0.0, %v4815
      %v4817 = vpop.f32.mrb[0].mxu0
      %4818 = vmatprep.mubr.bf16.mxu0 0
      %4819 = vmatmul.mubr.bf16.gmra.mrb[0].mxu0 %v2802
      %v4820 = vpop.f32.mrb[0].mxu0
      %v4821 = vadd.f32 0.0, %v4820
      %v4822 = vpop.f32.mrb[0].mxu0
      %v4823 = vpop.f32.mrb[0].mxu0
      %v4824 = vadd.f32 0.0, %v4823
      %v4825 = vpop.f32.mrb[0].mxu0
      %4826 = vmatprep.mubr.bf16.mxu0 0
      %4827 = vmatmul.mubr.bf16.gmra.mrb[0].mxu0 %v2805
      %v4828 = vpop.f32.mrb[0].mxu0
      %v4829 = vadd.f32 0.0, %v4828
      %v4830 = vpop.f32.mrb[0].mxu0
      %v4831 = vpop.f32.mrb[0].mxu0
      %v4832 = vadd.f32 0.0, %v4831
      %v4833 = vpop.f32.mrb[0].mxu0
      %4834 = vmatprep.mubr.bf16.mxu0 0
      %4835 = vmatmul.mubr.bf16.gmra.mrb[0].mxu0 %v2808
      %v4836 = vpop.f32.mrb[0].mxu0
      %v4837 = vadd.f32 0.0, %v4836
      %v4838 = vpop.f32.mrb[0].mxu0
      %v4839 = vpop.f32.mrb[0].mxu0
      %v4840 = vadd.f32 0.0, %v4839
      %v4841 = vpop.f32.mrb[0].mxu0
      %4842 = vmatprep.mubr.bf16.mxu0 0
      %4843 = vmatmul.mubr.bf16.gmra.mrb[0].mxu0 %v2811
      %v4844 = vpop.f32.mrb[0].mxu0
      %v4845 = vadd.f32 0.0, %v4844
      %v4846 = vpop.f32.mrb[0].mxu0
      %v4847 = vpop.f32.mrb[0].mxu0
      %v4848 = vadd.f32 0.0, %v4847
      %v4849 = vpop.f32.mrb[0].mxu0
      %4850 = vmatprep.mubr.bf16.mxu0 0
      %4851 = vmatmul.mubr.bf16.gmra.mrb[0].mxu0 %v2814
      %v4852 = vpop.f32.mrb[0].mxu0
      %v4853 = vadd.f32 0.0, %v4852
      %v4854 = vpop.f32.mrb[0].mxu0
      %v4855 = vpop.f32.mrb[0].mxu0
      %v4856 = vadd.f32 0.0, %v4855
      %v4857 = vpop.f32.mrb[0].mxu0
      %4858 = vmatprep.mubr.bf16.mxu0 0
      %4859 = vmatmul.mubr.bf16.gmra.mrb[0].mxu0 %v2817
      %v4860 = vpop.f32.mrb[0].mxu0
      %v4861 = vadd.f32 0.0, %v4860
      %v4862 = vpop.f32.mrb[0].mxu0
      %v4863 = vpop.f32.mrb[0].mxu0
      %v4864 = vadd.f32 0.0, %v4863
      %v4865 = vpop.f32.mrb[0].mxu0
      %4866 = vmatprep.mubr.bf16.mxu0 0
      %4867 = vmatmul.mubr.bf16.gmra.mrb[0].mxu0 %v2820
      %v4868 = vpop.f32.mrb[0].mxu0
      %v4869 = vadd.f32 0.0, %v4868
      %v4870 = vpop.f32.mrb[0].mxu0
      %v4871 = vpop.f32.mrb[0].mxu0
      %v4872 = vadd.f32 0.0, %v4871
      %v4873 = vpop.f32.mrb[0].mxu0
      %4874 = vmatprep.mubr.bf16.mxu0 0
      %4875 = vmatmul.mubr.bf16.gmra.mrb[0].mxu0 %v2823
      %v4876 = vpop.f32.mrb[0].mxu0
      %v4877 = vadd.f32 0.0, %v4876
      %v4878 = vpop.f32.mrb[0].mxu0
      %v4879 = vpop.f32.mrb[0].mxu0
      %v4880 = vadd.f32 0.0, %v4879
      %v4881 = vpop.f32.mrb[0].mxu0
      %4882 = vmatprep.mubr.bf16.mxu0 0
      %4883 = vmatmul.mubr.bf16.gmra.mrb[0].mxu0 %v2826
      %v4884 = vpop.f32.mrb[0].mxu0
      %v4885 = vadd.f32 0.0, %v4884
      %v4886 = vpop.f32.mrb[0].mxu0
      %v4887 = vpop.f32.mrb[0].mxu0
      %v4888 = vadd.f32 0.0, %v4887
      %v4889 = vpop.f32.mrb[0].mxu0
      %4890 = vmatprep.mubr.bf16.mxu0 0
      %4891 = vmatmul.mubr.bf16.gmra.mrb[0].mxu0 %v2829
      %v4892 = vpop.f32.mrb[0].mxu0
      %v4893 = vadd.f32 0.0, %v4892
      %v4894 = vpop.f32.mrb[0].mxu0
      %v4895 = vpop.f32.mrb[0].mxu0
      %v4896 = vadd.f32 0.0, %v4895
      %v4897 = vpop.f32.mrb[0].mxu0
      %4898 = vmatprep.mubr.bf16.mxu0 0
      %4899 = vmatmul.mubr.bf16.gmra.mrb[0].mxu0 %v2832
      %v4900 = vpop.f32.mrb[0].mxu0
      %v4901 = vadd.f32 0.0, %v4900
      %v4902 = vpop.f32.mrb[0].mxu0
      %v4903 = vpop.f32.mrb[0].mxu0
      %v4904 = vadd.f32 0.0, %v4903
      %v4905 = vpop.f32.mrb[0].mxu0
      %4906 = vmatprep.mubr.bf16.mxu0 0
      %4907 = vmatmul.mubr.bf16.gmra.mrb[0].mxu0 %v2835
      %v4908 = vpop.f32.mrb[0].mxu0
      %v4909 = vadd.f32 0.0, %v4908
      %v4910 = vpop.f32.mrb[0].mxu0
      %v4911 = vpop.f32.mrb[0].mxu0
      %v4912 = vadd.f32 0.0, %v4911
      %v4913 = vpop.f32.mrb[0].mxu0
      %4914 = vmatprep.mubr.bf16.mxu0 0
      %4915 = vmatmul.mubr.bf16.gmra.mrb[0].mxu0 %v2838
      %v4916 = vpop.f32.mrb[0].mxu0
      %v4917 = vadd.f32 0.0, %v4916
      %v4918 = vpop.f32.mrb[0].mxu0
      %v4919 = vpop.f32.mrb[0].mxu0
      %v4920 = vadd.f32 0.0, %v4919
      %v4921 = vpop.f32.mrb[0].mxu0
      %4922 = vmatprep.mubr.bf16.mxu0 0
      %4923 = vmatmul.mubr.bf16.gmra.mrb[0].mxu0 %v2841
      %v4924 = vpop.f32.mrb[0].mxu0
      %v4925 = vadd.f32 0.0, %v4924
      %v4926 = vpop.f32.mrb[0].mxu0
      %v4927 = vpop.f32.mrb[0].mxu0
      %v4928 = vadd.f32 0.0, %v4927
      %v4929 = vpop.f32.mrb[0].mxu0
      %4930 = vdwg.mxu0
      %v4931 = vld [vmem:[%s253] sm:$0x1]
      %v4933 = vlaneseq
      %v4934 = vshrl.u32 %v4933, 7
      %v4935 = vsub.s32 0, %v4934
      %v4936 = vrot.slane %v4931, %v4935
      %v4938 = vmul.f32 %v2885, %v4936
      %v4939 = vmul.f32 %v2888, %v4936
      %v4940 = vmul.f32 %v2893, %v4936
      %v4941 = vmul.f32 %v2896, %v4936
      %v4942 = vmul.f32 %v2901, %v4936
      %v4943 = vmul.f32 %v2904, %v4936
      %v4944 = vmul.f32 %v2909, %v4936
      %v4945 = vmul.f32 %v2912, %v4936
      %v4946 = vmul.f32 %v2917, %v4936
      %v4947 = vmul.f32 %v2920, %v4936
      %v4948 = vmul.f32 %v2925, %v4936
      %v4949 = vmul.f32 %v2928, %v4936
      %v4950 = vmul.f32 %v2933, %v4936
      %v4951 = vmul.f32 %v2936, %v4936
      %v4952 = vmul.f32 %v2941, %v4936
      %v4953 = vmul.f32 %v2944, %v4936
      %v4954 = vmul.f32 %v2949, %v4936
      %v4955 = vmul.f32 %v2952, %v4936
      %v4956 = vmul.f32 %v2957, %v4936
      %v4957 = vmul.f32 %v2960, %v4936
      %v4958 = vmul.f32 %v2965, %v4936
      %v4959 = vmul.f32 %v2968, %v4936
      %v4960 = vmul.f32 %v2973, %v4936
      %v4961 = vmul.f32 %v2976, %v4936
      %v4962 = vmul.f32 %v2981, %v4936
      %v4963 = vmul.f32 %v2984, %v4936
      %v4964 = vmul.f32 %v2989, %v4936
      %v4965 = vmul.f32 %v2992, %v4936
      %v4966 = vmul.f32 %v2997, %v4936
      %v4967 = vmul.f32 %v3000, %v4936
      %v4968 = vmul.f32 %v3005, %v4936
      %v4969 = vmul.f32 %v3008, %v4936
      %v4970 = vmul.f32 %v3013, %v4936
      %v4971 = vmul.f32 %v3016, %v4936
      %v4972 = vmul.f32 %v3021, %v4936
      %v4973 = vmul.f32 %v3024, %v4936
      %v4974 = vmul.f32 %v3029, %v4936
      %v4975 = vmul.f32 %v3032, %v4936
      %v4976 = vmul.f32 %v3037, %v4936
      %v4977 = vmul.f32 %v3040, %v4936
      %v4978 = vmul.f32 %v3045, %v4936
      %v4979 = vmul.f32 %v3048, %v4936
      %v4980 = vmul.f32 %v3053, %v4936
      %v4981 = vmul.f32 %v3056, %v4936
      %v4982 = vmul.f32 %v3061, %v4936
      %v4983 = vmul.f32 %v3064, %v4936
      %v4984 = vmul.f32 %v3069, %v4936
      %v4985 = vmul.f32 %v3072, %v4936
      %v4986 = vmul.f32 %v3077, %v4936
      %v4987 = vmul.f32 %v3080, %v4936
      %v4988 = vmul.f32 %v3085, %v4936
      %v4989 = vmul.f32 %v3088, %v4936
      %v4990 = vmul.f32 %v3093, %v4936
      %v4991 = vmul.f32 %v3096, %v4936
      %v4992 = vmul.f32 %v3101, %v4936
      %v4993 = vmul.f32 %v3104, %v4936
      %v4994 = vmul.f32 %v3109, %v4936
      %v4995 = vmul.f32 %v3112, %v4936
      %v4996 = vmul.f32 %v3117, %v4936
      %v4997 = vmul.f32 %v3120, %v4936
      %v4998 = vmul.f32 %v3125, %v4936
      %v4999 = vmul.f32 %v3128, %v4936
      %v5000 = vmul.f32 %v3133, %v4936
      %v5001 = vmul.f32 %v3136, %v4936
      %v5002 = vmul.f32 %v3141, %v4936
      %v5003 = vmul.f32 %v3144, %v4936
      %v5004 = vmul.f32 %v3149, %v4936
      %v5005 = vmul.f32 %v3152, %v4936
      %v5006 = vmul.f32 %v3157, %v4936
      %v5007 = vmul.f32 %v3160, %v4936
      %v5008 = vmul.f32 %v3165, %v4936
      %v5009 = vmul.f32 %v3168, %v4936
      %v5010 = vmul.f32 %v3173, %v4936
      %v5011 = vmul.f32 %v3176, %v4936
      %v5012 = vmul.f32 %v3181, %v4936
      %v5013 = vmul.f32 %v3184, %v4936
      %v5014 = vmul.f32 %v3189, %v4936
      %v5015 = vmul.f32 %v3192, %v4936
      %v5016 = vmul.f32 %v3197, %v4936
      %v5017 = vmul.f32 %v3200, %v4936
      %v5018 = vmul.f32 %v3205, %v4936
      %v5019 = vmul.f32 %v3208, %v4936
      %v5020 = vmul.f32 %v3213, %v4936
      %v5021 = vmul.f32 %v3216, %v4936
      %v5022 = vmul.f32 %v3221, %v4936
      %v5023 = vmul.f32 %v3224, %v4936
      %v5024 = vmul.f32 %v3229, %v4936
      %v5025 = vmul.f32 %v3232, %v4936
      %v5026 = vmul.f32 %v3237, %v4936
      %v5027 = vmul.f32 %v3240, %v4936
      %v5028 = vmul.f32 %v3245, %v4936
      %v5029 = vmul.f32 %v3248, %v4936
      %v5030 = vmul.f32 %v3253, %v4936
      %v5031 = vmul.f32 %v3256, %v4936
      %v5032 = vmul.f32 %v3261, %v4936
      %v5033 = vmul.f32 %v3264, %v4936
      %v5034 = vmul.f32 %v3269, %v4936
      %v5035 = vmul.f32 %v3272, %v4936
      %v5036 = vmul.f32 %v3277, %v4936
      %v5037 = vmul.f32 %v3280, %v4936
      %v5038 = vmul.f32 %v3285, %v4936
      %v5039 = vmul.f32 %v3288, %v4936
      %v5040 = vmul.f32 %v3293, %v4936
      %v5041 = vmul.f32 %v3296, %v4936
      %v5042 = vmul.f32 %v3301, %v4936
      %v5043 = vmul.f32 %v3304, %v4936
      %v5044 = vmul.f32 %v3309, %v4936
      %v5045 = vmul.f32 %v3312, %v4936
      %v5046 = vmul.f32 %v3317, %v4936
      %v5047 = vmul.f32 %v3320, %v4936
      %v5048 = vmul.f32 %v3325, %v4936
      %v5049 = vmul.f32 %v3328, %v4936
      %v5050 = vmul.f32 %v3333, %v4936
      %v5051 = vmul.f32 %v3336, %v4936
      %v5052 = vmul.f32 %v3341, %v4936
      %v5053 = vmul.f32 %v3344, %v4936
      %v5054 = vmul.f32 %v3349, %v4936
      %v5055 = vmul.f32 %v3352, %v4936
      %v5056 = vmul.f32 %v3357, %v4936
      %v5057 = vmul.f32 %v3360, %v4936
      %v5058 = vmul.f32 %v3365, %v4936
      %v5059 = vmul.f32 %v3368, %v4936
      %v5060 = vmul.f32 %v3373, %v4936
      %v5061 = vmul.f32 %v3376, %v4936
      %v5062 = vmul.f32 %v3381, %v4936
      %v5063 = vmul.f32 %v3384, %v4936
      %v5064 = vmul.f32 %v3389, %v4936
      %v5065 = vmul.f32 %v3392, %v4936
      %v5066 = vmul.f32 %v3397, %v4936
      %v5067 = vmul.f32 %v3400, %v4936
      %v5068 = vmul.f32 %v3405, %v4936
      %v5069 = vmul.f32 %v3408, %v4936
      %v5070 = vmul.f32 %v3413, %v4936
      %v5071 = vmul.f32 %v3416, %v4936
      %v5072 = vmul.f32 %v3421, %v4936
      %v5073 = vmul.f32 %v3424, %v4936
      %v5074 = vmul.f32 %v3429, %v4936
      %v5075 = vmul.f32 %v3432, %v4936
      %v5076 = vmul.f32 %v3437, %v4936
      %v5077 = vmul.f32 %v3440, %v4936
      %v5078 = vmul.f32 %v3445, %v4936
      %v5079 = vmul.f32 %v3448, %v4936
      %v5080 = vmul.f32 %v3453, %v4936
      %v5081 = vmul.f32 %v3456, %v4936
      %v5082 = vmul.f32 %v3461, %v4936
      %v5083 = vmul.f32 %v3464, %v4936
      %v5084 = vmul.f32 %v3469, %v4936
      %v5085 = vmul.f32 %v3472, %v4936
      %v5086 = vmul.f32 %v3477, %v4936
      %v5087 = vmul.f32 %v3480, %v4936
      %v5088 = vmul.f32 %v3485, %v4936
      %v5089 = vmul.f32 %v3488, %v4936
      %v5090 = vmul.f32 %v3493, %v4936
      %v5091 = vmul.f32 %v3496, %v4936
      %v5092 = vmul.f32 %v3501, %v4936
      %v5093 = vmul.f32 %v3504, %v4936
      %v5094 = vmul.f32 %v3509, %v4936
      %v5095 = vmul.f32 %v3512, %v4936
      %v5096 = vmul.f32 %v3517, %v4936
      %v5097 = vmul.f32 %v3520, %v4936
      %v5098 = vmul.f32 %v3525, %v4936
      %v5099 = vmul.f32 %v3528, %v4936
      %v5100 = vmul.f32 %v3533, %v4936
      %v5101 = vmul.f32 %v3536, %v4936
      %v5102 = vmul.f32 %v3541, %v4936
      %v5103 = vmul.f32 %v3544, %v4936
      %v5104 = vmul.f32 %v3549, %v4936
      %v5105 = vmul.f32 %v3552, %v4936
      %v5106 = vmul.f32 %v3557, %v4936
      %v5107 = vmul.f32 %v3560, %v4936
      %v5108 = vmul.f32 %v3565, %v4936
      %v5109 = vmul.f32 %v3568, %v4936
      %v5110 = vmul.f32 %v3573, %v4936
      %v5111 = vmul.f32 %v3576, %v4936
      %v5112 = vmul.f32 %v3581, %v4936
      %v5113 = vmul.f32 %v3584, %v4936
      %v5114 = vmul.f32 %v3589, %v4936
      %v5115 = vmul.f32 %v3592, %v4936
      %v5116 = vmul.f32 %v3597, %v4936
      %v5117 = vmul.f32 %v3600, %v4936
      %v5118 = vmul.f32 %v3605, %v4936
      %v5119 = vmul.f32 %v3608, %v4936
      %v5120 = vmul.f32 %v3613, %v4936
      %v5121 = vmul.f32 %v3616, %v4936
      %v5122 = vmul.f32 %v3621, %v4936
      %v5123 = vmul.f32 %v3624, %v4936
      %v5124 = vmul.f32 %v3629, %v4936
      %v5125 = vmul.f32 %v3632, %v4936
      %v5126 = vmul.f32 %v3637, %v4936
      %v5127 = vmul.f32 %v3640, %v4936
      %v5128 = vmul.f32 %v3645, %v4936
      %v5129 = vmul.f32 %v3648, %v4936
      %v5130 = vmul.f32 %v3653, %v4936
      %v5131 = vmul.f32 %v3656, %v4936
      %v5132 = vmul.f32 %v3661, %v4936
      %v5133 = vmul.f32 %v3664, %v4936
      %v5134 = vmul.f32 %v3669, %v4936
      %v5135 = vmul.f32 %v3672, %v4936
      %v5136 = vmul.f32 %v3677, %v4936
      %v5137 = vmul.f32 %v3680, %v4936
      %v5138 = vmul.f32 %v3685, %v4936
      %v5139 = vmul.f32 %v3688, %v4936
      %v5140 = vmul.f32 %v3693, %v4936
      %v5141 = vmul.f32 %v3696, %v4936
      %v5142 = vmul.f32 %v3701, %v4936
      %v5143 = vmul.f32 %v3704, %v4936
      %v5144 = vmul.f32 %v3709, %v4936
      %v5145 = vmul.f32 %v3712, %v4936
      %v5146 = vmul.f32 %v3717, %v4936
      %v5147 = vmul.f32 %v3720, %v4936
      %v5148 = vmul.f32 %v3725, %v4936
      %v5149 = vmul.f32 %v3728, %v4936
      %v5150 = vmul.f32 %v3733, %v4936
      %v5151 = vmul.f32 %v3736, %v4936
      %v5152 = vmul.f32 %v3741, %v4936
      %v5153 = vmul.f32 %v3744, %v4936
      %v5154 = vmul.f32 %v3749, %v4936
      %v5155 = vmul.f32 %v3752, %v4936
      %v5156 = vmul.f32 %v3757, %v4936
      %v5157 = vmul.f32 %v3760, %v4936
      %v5158 = vmul.f32 %v3765, %v4936
      %v5159 = vmul.f32 %v3768, %v4936
      %v5160 = vmul.f32 %v3773, %v4936
      %v5161 = vmul.f32 %v3776, %v4936
      %v5162 = vmul.f32 %v3781, %v4936
      %v5163 = vmul.f32 %v3784, %v4936
      %v5164 = vmul.f32 %v3789, %v4936
      %v5165 = vmul.f32 %v3792, %v4936
      %v5166 = vmul.f32 %v3797, %v4936
      %v5167 = vmul.f32 %v3800, %v4936
      %v5168 = vmul.f32 %v3805, %v4936
      %v5169 = vmul.f32 %v3808, %v4936
      %v5170 = vmul.f32 %v3813, %v4936
      %v5171 = vmul.f32 %v3816, %v4936
      %v5172 = vmul.f32 %v3821, %v4936
      %v5173 = vmul.f32 %v3824, %v4936
      %v5174 = vmul.f32 %v3829, %v4936
      %v5175 = vmul.f32 %v3832, %v4936
      %v5176 = vmul.f32 %v3837, %v4936
      %v5177 = vmul.f32 %v3840, %v4936
      %v5178 = vmul.f32 %v3845, %v4936
      %v5179 = vmul.f32 %v3848, %v4936
      %v5180 = vmul.f32 %v3853, %v4936
      %v5181 = vmul.f32 %v3856, %v4936
      %v5182 = vmul.f32 %v3861, %v4936
      %v5183 = vmul.f32 %v3864, %v4936
      %v5184 = vmul.f32 %v3869, %v4936
      %v5185 = vmul.f32 %v3872, %v4936
      %v5186 = vmul.f32 %v3877, %v4936
      %v5187 = vmul.f32 %v3880, %v4936
      %v5188 = vmul.f32 %v3885, %v4936
      %v5189 = vmul.f32 %v3888, %v4936
      %v5190 = vmul.f32 %v3893, %v4936
      %v5191 = vmul.f32 %v3896, %v4936
      %v5192 = vmul.f32 %v3901, %v4936
      %v5193 = vmul.f32 %v3904, %v4936
      %v5194 = vmul.f32 %v3909, %v4936
      %v5195 = vmul.f32 %v3912, %v4936
      %v5196 = vmul.f32 %v3917, %v4936
      %v5197 = vmul.f32 %v3920, %v4936
      %v5198 = vmul.f32 %v3925, %v4936
      %v5199 = vmul.f32 %v3928, %v4936
      %v5200 = vmul.f32 %v3933, %v4936
      %v5201 = vmul.f32 %v3936, %v4936
      %v5202 = vmul.f32 %v3941, %v4936
      %v5203 = vmul.f32 %v3944, %v4936
      %v5204 = vmul.f32 %v3949, %v4936
      %v5205 = vmul.f32 %v3952, %v4936
      %v5206 = vmul.f32 %v3957, %v4936
      %v5207 = vmul.f32 %v3960, %v4936
      %v5208 = vmul.f32 %v3965, %v4936
      %v5209 = vmul.f32 %v3968, %v4936
      %v5210 = vmul.f32 %v3973, %v4936
      %v5211 = vmul.f32 %v3976, %v4936
      %v5212 = vmul.f32 %v3981, %v4936
      %v5213 = vmul.f32 %v3984, %v4936
      %v5214 = vmul.f32 %v3989, %v4936
      %v5215 = vmul.f32 %v3992, %v4936
      %v5216 = vmul.f32 %v3997, %v4936
      %v5217 = vmul.f32 %v4000, %v4936
      %v5218 = vmul.f32 %v4005, %v4936
      %v5219 = vmul.f32 %v4008, %v4936
      %v5220 = vmul.f32 %v4013, %v4936
      %v5221 = vmul.f32 %v4016, %v4936
      %v5222 = vmul.f32 %v4021, %v4936
      %v5223 = vmul.f32 %v4024, %v4936
      %v5224 = vmul.f32 %v4029, %v4936
      %v5225 = vmul.f32 %v4032, %v4936
      %v5226 = vmul.f32 %v4037, %v4936
      %v5227 = vmul.f32 %v4040, %v4936
      %v5228 = vmul.f32 %v4045, %v4936
      %v5229 = vmul.f32 %v4048, %v4936
      %v5230 = vmul.f32 %v4053, %v4936
      %v5231 = vmul.f32 %v4056, %v4936
      %v5232 = vmul.f32 %v4061, %v4936
      %v5233 = vmul.f32 %v4064, %v4936
      %v5234 = vmul.f32 %v4069, %v4936
      %v5235 = vmul.f32 %v4072, %v4936
      %v5236 = vmul.f32 %v4077, %v4936
      %v5237 = vmul.f32 %v4080, %v4936
      %v5238 = vmul.f32 %v4085, %v4936
      %v5239 = vmul.f32 %v4088, %v4936
      %v5240 = vmul.f32 %v4093, %v4936
      %v5241 = vmul.f32 %v4096, %v4936
      %v5242 = vmul.f32 %v4101, %v4936
      %v5243 = vmul.f32 %v4104, %v4936
      %v5244 = vmul.f32 %v4109, %v4936
      %v5245 = vmul.f32 %v4112, %v4936
      %v5246 = vmul.f32 %v4117, %v4936
      %v5247 = vmul.f32 %v4120, %v4936
      %v5248 = vmul.f32 %v4125, %v4936
      %v5249 = vmul.f32 %v4128, %v4936
      %v5250 = vmul.f32 %v4133, %v4936
      %v5251 = vmul.f32 %v4136, %v4936
      %v5252 = vmul.f32 %v4141, %v4936
      %v5253 = vmul.f32 %v4144, %v4936
      %v5254 = vmul.f32 %v4149, %v4936
      %v5255 = vmul.f32 %v4152, %v4936
      %v5256 = vmul.f32 %v4157, %v4936
      %v5257 = vmul.f32 %v4160, %v4936
      %v5258 = vmul.f32 %v4165, %v4936
      %v5259 = vmul.f32 %v4168, %v4936
      %v5260 = vmul.f32 %v4173, %v4936
      %v5261 = vmul.f32 %v4176, %v4936
      %v5262 = vmul.f32 %v4181, %v4936
      %v5263 = vmul.f32 %v4184, %v4936
      %v5264 = vmul.f32 %v4189, %v4936
      %v5265 = vmul.f32 %v4192, %v4936
      %v5266 = vmul.f32 %v4197, %v4936
      %v5267 = vmul.f32 %v4200, %v4936
      %v5268 = vmul.f32 %v4205, %v4936
      %v5269 = vmul.f32 %v4208, %v4936
      %v5270 = vmul.f32 %v4213, %v4936
      %v5271 = vmul.f32 %v4216, %v4936
      %v5272 = vmul.f32 %v4221, %v4936
      %v5273 = vmul.f32 %v4224, %v4936
      %v5274 = vmul.f32 %v4229, %v4936
      %v5275 = vmul.f32 %v4232, %v4936
      %v5276 = vmul.f32 %v4237, %v4936
      %v5277 = vmul.f32 %v4240, %v4936
      %v5278 = vmul.f32 %v4245, %v4936
      %v5279 = vmul.f32 %v4248, %v4936
      %v5280 = vmul.f32 %v4253, %v4936
      %v5281 = vmul.f32 %v4256, %v4936
      %v5282 = vmul.f32 %v4261, %v4936
      %v5283 = vmul.f32 %v4264, %v4936
      %v5284 = vmul.f32 %v4269, %v4936
      %v5285 = vmul.f32 %v4272, %v4936
      %v5286 = vmul.f32 %v4277, %v4936
      %v5287 = vmul.f32 %v4280, %v4936
      %v5288 = vmul.f32 %v4285, %v4936
      %v5289 = vmul.f32 %v4288, %v4936
      %v5290 = vmul.f32 %v4293, %v4936
      %v5291 = vmul.f32 %v4296, %v4936
      %v5292 = vmul.f32 %v4301, %v4936
      %v5293 = vmul.f32 %v4304, %v4936
      %v5294 = vmul.f32 %v4309, %v4936
      %v5295 = vmul.f32 %v4312, %v4936
      %v5296 = vmul.f32 %v4317, %v4936
      %v5297 = vmul.f32 %v4320, %v4936
      %v5298 = vmul.f32 %v4325, %v4936
      %v5299 = vmul.f32 %v4328, %v4936
      %v5300 = vmul.f32 %v4333, %v4936
      %v5301 = vmul.f32 %v4336, %v4936
      %v5302 = vmul.f32 %v4341, %v4936
      %v5303 = vmul.f32 %v4344, %v4936
      %v5304 = vmul.f32 %v4349, %v4936
      %v5305 = vmul.f32 %v4352, %v4936
      %v5306 = vmul.f32 %v4357, %v4936
      %v5307 = vmul.f32 %v4360, %v4936
      %v5308 = vmul.f32 %v4365, %v4936
      %v5309 = vmul.f32 %v4368, %v4936
      %v5310 = vmul.f32 %v4373, %v4936
      %v5311 = vmul.f32 %v4376, %v4936
      %v5312 = vmul.f32 %v4381, %v4936
      %v5313 = vmul.f32 %v4384, %v4936
      %v5314 = vmul.f32 %v4389, %v4936
      %v5315 = vmul.f32 %v4392, %v4936
      %v5316 = vmul.f32 %v4397, %v4936
      %v5317 = vmul.f32 %v4400, %v4936
      %v5318 = vmul.f32 %v4405, %v4936
      %v5319 = vmul.f32 %v4408, %v4936
      %v5320 = vmul.f32 %v4413, %v4936
      %v5321 = vmul.f32 %v4416, %v4936
      %v5322 = vmul.f32 %v4421, %v4936
      %v5323 = vmul.f32 %v4424, %v4936
      %v5324 = vmul.f32 %v4429, %v4936
      %v5325 = vmul.f32 %v4432, %v4936
      %v5326 = vmul.f32 %v4437, %v4936
      %v5327 = vmul.f32 %v4440, %v4936
      %v5328 = vmul.f32 %v4445, %v4936
      %v5329 = vmul.f32 %v4448, %v4936
      %v5330 = vmul.f32 %v4453, %v4936
      %v5331 = vmul.f32 %v4456, %v4936
      %v5332 = vmul.f32 %v4461, %v4936
      %v5333 = vmul.f32 %v4464, %v4936
      %v5334 = vmul.f32 %v4469, %v4936
      %v5335 = vmul.f32 %v4472, %v4936
      %v5336 = vmul.f32 %v4477, %v4936
      %v5337 = vmul.f32 %v4480, %v4936
      %v5338 = vmul.f32 %v4485, %v4936
      %v5339 = vmul.f32 %v4488, %v4936
      %v5340 = vmul.f32 %v4493, %v4936
      %v5341 = vmul.f32 %v4496, %v4936
      %v5342 = vmul.f32 %v4501, %v4936
      %v5343 = vmul.f32 %v4504, %v4936
      %v5344 = vmul.f32 %v4509, %v4936
      %v5345 = vmul.f32 %v4512, %v4936
      %v5346 = vmul.f32 %v4517, %v4936
      %v5347 = vmul.f32 %v4520, %v4936
      %v5348 = vmul.f32 %v4525, %v4936
      %v5349 = vmul.f32 %v4528, %v4936
      %v5350 = vmul.f32 %v4533, %v4936
      %v5351 = vmul.f32 %v4536, %v4936
      %v5352 = vmul.f32 %v4541, %v4936
      %v5353 = vmul.f32 %v4544, %v4936
      %v5354 = vmul.f32 %v4549, %v4936
      %v5355 = vmul.f32 %v4552, %v4936
      %v5356 = vmul.f32 %v4557, %v4936
      %v5357 = vmul.f32 %v4560, %v4936
      %v5358 = vmul.f32 %v4565, %v4936
      %v5359 = vmul.f32 %v4568, %v4936
      %v5360 = vmul.f32 %v4573, %v4936
      %v5361 = vmul.f32 %v4576, %v4936
      %v5362 = vmul.f32 %v4581, %v4936
      %v5363 = vmul.f32 %v4584, %v4936
      %v5364 = vmul.f32 %v4589, %v4936
      %v5365 = vmul.f32 %v4592, %v4936
      %v5366 = vmul.f32 %v4597, %v4936
      %v5367 = vmul.f32 %v4600, %v4936
      %v5368 = vmul.f32 %v4605, %v4936
      %v5369 = vmul.f32 %v4608, %v4936
      %v5370 = vmul.f32 %v4613, %v4936
      %v5371 = vmul.f32 %v4616, %v4936
      %v5372 = vmul.f32 %v4621, %v4936
      %v5373 = vmul.f32 %v4624, %v4936
      %v5374 = vmul.f32 %v4629, %v4936
      %v5375 = vmul.f32 %v4632, %v4936
      %v5376 = vmul.f32 %v4637, %v4936
      %v5377 = vmul.f32 %v4640, %v4936
      %v5378 = vmul.f32 %v4645, %v4936
      %v5379 = vmul.f32 %v4648, %v4936
      %v5380 = vmul.f32 %v4653, %v4936
      %v5381 = vmul.f32 %v4656, %v4936
      %v5382 = vmul.f32 %v4661, %v4936
      %v5383 = vmul.f32 %v4664, %v4936
      %v5384 = vmul.f32 %v4669, %v4936
      %v5385 = vmul.f32 %v4672, %v4936
      %v5386 = vmul.f32 %v4677, %v4936
      %v5387 = vmul.f32 %v4680, %v4936
      %v5388 = vmul.f32 %v4685, %v4936
      %v5389 = vmul.f32 %v4688, %v4936
      %v5390 = vmul.f32 %v4693, %v4936
      %v5391 = vmul.f32 %v4696, %v4936
      %v5392 = vmul.f32 %v4701, %v4936
      %v5393 = vmul.f32 %v4704, %v4936
      %v5394 = vmul.f32 %v4709, %v4936
      %v5395 = vmul.f32 %v4712, %v4936
      %v5396 = vmul.f32 %v4717, %v4936
      %v5397 = vmul.f32 %v4720, %v4936
      %v5398 = vmul.f32 %v4725, %v4936
      %v5399 = vmul.f32 %v4728, %v4936
      %v5400 = vmul.f32 %v4733, %v4936
      %v5401 = vmul.f32 %v4736, %v4936
      %v5402 = vmul.f32 %v4741, %v4936
      %v5403 = vmul.f32 %v4744, %v4936
      %v5404 = vmul.f32 %v4749, %v4936
      %v5405 = vmul.f32 %v4752, %v4936
      %v5406 = vmul.f32 %v4757, %v4936
      %v5407 = vmul.f32 %v4760, %v4936
      %v5408 = vmul.f32 %v4765, %v4936
      %v5409 = vmul.f32 %v4768, %v4936
      %v5410 = vmul.f32 %v4773, %v4936
      %v5411 = vmul.f32 %v4776, %v4936
      %v5412 = vmul.f32 %v4781, %v4936
      %v5413 = vmul.f32 %v4784, %v4936
      %v5414 = vmul.f32 %v4789, %v4936
      %v5415 = vmul.f32 %v4792, %v4936
      %v5416 = vmul.f32 %v4797, %v4936
      %v5417 = vmul.f32 %v4800, %v4936
      %v5418 = vmul.f32 %v4805, %v4936
      %v5419 = vmul.f32 %v4808, %v4936
      %v5420 = vmul.f32 %v4813, %v4936
      %v5421 = vmul.f32 %v4816, %v4936
      %v5422 = vmul.f32 %v4821, %v4936
      %v5423 = vmul.f32 %v4824, %v4936
      %v5424 = vmul.f32 %v4829, %v4936
      %v5425 = vmul.f32 %v4832, %v4936
      %v5426 = vmul.f32 %v4837, %v4936
      %v5427 = vmul.f32 %v4840, %v4936
      %v5428 = vmul.f32 %v4845, %v4936
      %v5429 = vmul.f32 %v4848, %v4936
      %v5430 = vmul.f32 %v4853, %v4936
      %v5431 = vmul.f32 %v4856, %v4936
      %v5432 = vmul.f32 %v4861, %v4936
      %v5433 = vmul.f32 %v4864, %v4936
      %v5434 = vmul.f32 %v4869, %v4936
      %v5435 = vmul.f32 %v4872, %v4936
      %v5436 = vmul.f32 %v4877, %v4936
      %v5437 = vmul.f32 %v4880, %v4936
      %v5438 = vmul.f32 %v4885, %v4936
      %v5439 = vmul.f32 %v4888, %v4936
      %v5440 = vmul.f32 %v4893, %v4936
      %v5441 = vmul.f32 %v4896, %v4936
      %v5442 = vmul.f32 %v4901, %v4936
      %v5443 = vmul.f32 %v4904, %v4936
      %v5444 = vmul.f32 %v4909, %v4936
      %v5445 = vmul.f32 %v4912, %v4936
      %v5446 = vmul.f32 %v4917, %v4936
      %v5447 = vmul.f32 %v4920, %v4936
      %v5448 = vmul.f32 %v4925, %v4936
      %v5449 = vmul.f32 %v4928, %v4936
      %v5450 = vld [vmem:[%s256] sm:$0x1]
      %v5452 = vlaneseq
      %v5453 = vshrl.u32 %v5452, 7
      %v5454 = vsub.s32 0, %v5453
      %v5455 = vrot.slane %v5450, %v5454
      %v5457 = vadd.f32 %v4938, %v5455
      %v5458 = vadd.f32 %v4939, %v5455
      %v5459 = vadd.f32 %v4940, %v5455
      %v5460 = vadd.f32 %v4941, %v5455
      %v5461 = vadd.f32 %v4942, %v5455
      %v5462 = vadd.f32 %v4943, %v5455
      %v5463 = vadd.f32 %v4944, %v5455
      %v5464 = vadd.f32 %v4945, %v5455
      %v5465 = vadd.f32 %v4946, %v5455
      %v5466 = vadd.f32 %v4947, %v5455
      %v5467 = vadd.f32 %v4948, %v5455
      %v5468 = vadd.f32 %v4949, %v5455
      %v5469 = vadd.f32 %v4950, %v5455
      %v5470 = vadd.f32 %v4951, %v5455
      %v5471 = vadd.f32 %v4952, %v5455
      %v5472 = vadd.f32 %v4953, %v5455
      %v5473 = vadd.f32 %v4954, %v5455
      %v5474 = vadd.f32 %v4955, %v5455
      %v5475 = vadd.f32 %v4956, %v5455
      %v5476 = vadd.f32 %v4957, %v5455
      %v5477 = vadd.f32 %v4958, %v5455
      %v5478 = vadd.f32 %v4959, %v5455
      %v5479 = vadd.f32 %v4960, %v5455
      %v5480 = vadd.f32 %v4961, %v5455
      %v5481 = vadd.f32 %v4962, %v5455
      %v5482 = vadd.f32 %v4963, %v5455
      %v5483 = vadd.f32 %v4964, %v5455
      %v5484 = vadd.f32 %v4965, %v5455
      %v5485 = vadd.f32 %v4966, %v5455
      %v5486 = vadd.f32 %v4967, %v5455
      %v5487 = vadd.f32 %v4968, %v5455
      %v5488 = vadd.f32 %v4969, %v5455
      %v5489 = vadd.f32 %v4970, %v5455
      %v5490 = vadd.f32 %v4971, %v5455
      %v5491 = vadd.f32 %v4972, %v5455
      %v5492 = vadd.f32 %v4973, %v5455
      %v5493 = vadd.f32 %v4974, %v5455
      %v5494 = vadd.f32 %v4975, %v5455
      %v5495 = vadd.f32 %v4976, %v5455
      %v5496 = vadd.f32 %v4977, %v5455
      %v5497 = vadd.f32 %v4978, %v5455
      %v5498 = vadd.f32 %v4979, %v5455
      %v5499 = vadd.f32 %v4980, %v5455
      %v5500 = vadd.f32 %v4981, %v5455
      %v5501 = vadd.f32 %v4982, %v5455
      %v5502 = vadd.f32 %v4983, %v5455
      %v5503 = vadd.f32 %v4984, %v5455
      %v5504 = vadd.f32 %v4985, %v5455
      %v5505 = vadd.f32 %v4986, %v5455
      %v5506 = vadd.f32 %v4987, %v5455
      %v5507 = vadd.f32 %v4988, %v5455
      %v5508 = vadd.f32 %v4989, %v5455
      %v5509 = vadd.f32 %v4990, %v5455
      %v5510 = vadd.f32 %v4991, %v5455
      %v5511 = vadd.f32 %v4992, %v5455
      %v5512 = vadd.f32 %v4993, %v5455
      %v5513 = vadd.f32 %v4994, %v5455
      %v5514 = vadd.f32 %v4995, %v5455
      %v5515 = vadd.f32 %v4996, %v5455
      %v5516 = vadd.f32 %v4997, %v5455
      %v5517 = vadd.f32 %v4998, %v5455
      %v5518 = vadd.f32 %v4999, %v5455
      %v5519 = vadd.f32 %v5000, %v5455
      %v5520 = vadd.f32 %v5001, %v5455
      %v5521 = vadd.f32 %v5002, %v5455
      %v5522 = vadd.f32 %v5003, %v5455
      %v5523 = vadd.f32 %v5004, %v5455
      %v5524 = vadd.f32 %v5005, %v5455
      %v5525 = vadd.f32 %v5006, %v5455
      %v5526 = vadd.f32 %v5007, %v5455
      %v5527 = vadd.f32 %v5008, %v5455
      %v5528 = vadd.f32 %v5009, %v5455
      %v5529 = vadd.f32 %v5010, %v5455
      %v5530 = vadd.f32 %v5011, %v5455
      %v5531 = vadd.f32 %v5012, %v5455
      %v5532 = vadd.f32 %v5013, %v5455
      %v5533 = vadd.f32 %v5014, %v5455
      %v5534 = vadd.f32 %v5015, %v5455
      %v5535 = vadd.f32 %v5016, %v5455
      %v5536 = vadd.f32 %v5017, %v5455
      %v5537 = vadd.f32 %v5018, %v5455
      %v5538 = vadd.f32 %v5019, %v5455
      %v5539 = vadd.f32 %v5020, %v5455
      %v5540 = vadd.f32 %v5021, %v5455
      %v5541 = vadd.f32 %v5022, %v5455
      %v5542 = vadd.f32 %v5023, %v5455
      %v5543 = vadd.f32 %v5024, %v5455
      %v5544 = vadd.f32 %v5025, %v5455
      %v5545 = vadd.f32 %v5026, %v5455
      %v5546 = vadd.f32 %v5027, %v5455
      %v5547 = vadd.f32 %v5028, %v5455
      %v5548 = vadd.f32 %v5029, %v5455
      %v5549 = vadd.f32 %v5030, %v5455
      %v5550 = vadd.f32 %v5031, %v5455
      %v5551 = vadd.f32 %v5032, %v5455
      %v5552 = vadd.f32 %v5033, %v5455
      %v5553 = vadd.f32 %v5034, %v5455
      %v5554 = vadd.f32 %v5035, %v5455
      %v5555 = vadd.f32 %v5036, %v5455
      %v5556 = vadd.f32 %v5037, %v5455
      %v5557 = vadd.f32 %v5038, %v5455
      %v5558 = vadd.f32 %v5039, %v5455
      %v5559 = vadd.f32 %v5040, %v5455
      %v5560 = vadd.f32 %v5041, %v5455
      %v5561 = vadd.f32 %v5042, %v5455
      %v5562 = vadd.f32 %v5043, %v5455
      %v5563 = vadd.f32 %v5044, %v5455
      %v5564 = vadd.f32 %v5045, %v5455
      %v5565 = vadd.f32 %v5046, %v5455
      %v5566 = vadd.f32 %v5047, %v5455
      %v5567 = vadd.f32 %v5048, %v5455
      %v5568 = vadd.f32 %v5049, %v5455
      %v5569 = vadd.f32 %v5050, %v5455
      %v5570 = vadd.f32 %v5051, %v5455
      %v5571 = vadd.f32 %v5052, %v5455
      %v5572 = vadd.f32 %v5053, %v5455
      %v5573 = vadd.f32 %v5054, %v5455
      %v5574 = vadd.f32 %v5055, %v5455
      %v5575 = vadd.f32 %v5056, %v5455
      %v5576 = vadd.f32 %v5057, %v5455
      %v5577 = vadd.f32 %v5058, %v5455
      %v5578 = vadd.f32 %v5059, %v5455
      %v5579 = vadd.f32 %v5060, %v5455
      %v5580 = vadd.f32 %v5061, %v5455
      %v5581 = vadd.f32 %v5062, %v5455
      %v5582 = vadd.f32 %v5063, %v5455
      %v5583 = vadd.f32 %v5064, %v5455
      %v5584 = vadd.f32 %v5065, %v5455
      %v5585 = vadd.f32 %v5066, %v5455
      %v5586 = vadd.f32 %v5067, %v5455
      %v5587 = vadd.f32 %v5068, %v5455
      %v5588 = vadd.f32 %v5069, %v5455
      %v5589 = vadd.f32 %v5070, %v5455
      %v5590 = vadd.f32 %v5071, %v5455
      %v5591 = vadd.f32 %v5072, %v5455
      %v5592 = vadd.f32 %v5073, %v5455
      %v5593 = vadd.f32 %v5074, %v5455
      %v5594 = vadd.f32 %v5075, %v5455
      %v5595 = vadd.f32 %v5076, %v5455
      %v5596 = vadd.f32 %v5077, %v5455
      %v5597 = vadd.f32 %v5078, %v5455
      %v5598 = vadd.f32 %v5079, %v5455
      %v5599 = vadd.f32 %v5080, %v5455
      %v5600 = vadd.f32 %v5081, %v5455
      %v5601 = vadd.f32 %v5082, %v5455
      %v5602 = vadd.f32 %v5083, %v5455
      %v5603 = vadd.f32 %v5084, %v5455
      %v5604 = vadd.f32 %v5085, %v5455
      %v5605 = vadd.f32 %v5086, %v5455
      %v5606 = vadd.f32 %v5087, %v5455
      %v5607 = vadd.f32 %v5088, %v5455
      %v5608 = vadd.f32 %v5089, %v5455
      %v5609 = vadd.f32 %v5090, %v5455
      %v5610 = vadd.f32 %v5091, %v5455
      %v5611 = vadd.f32 %v5092, %v5455
      %v5612 = vadd.f32 %v5093, %v5455
      %v5613 = vadd.f32 %v5094, %v5455
      %v5614 = vadd.f32 %v5095, %v5455
      %v5615 = vadd.f32 %v5096, %v5455
      %v5616 = vadd.f32 %v5097, %v5455
      %v5617 = vadd.f32 %v5098, %v5455
      %v5618 = vadd.f32 %v5099, %v5455
      %v5619 = vadd.f32 %v5100, %v5455
      %v5620 = vadd.f32 %v5101, %v5455
      %v5621 = vadd.f32 %v5102, %v5455
      %v5622 = vadd.f32 %v5103, %v5455
      %v5623 = vadd.f32 %v5104, %v5455
      %v5624 = vadd.f32 %v5105, %v5455
      %v5625 = vadd.f32 %v5106, %v5455
      %v5626 = vadd.f32 %v5107, %v5455
      %v5627 = vadd.f32 %v5108, %v5455
      %v5628 = vadd.f32 %v5109, %v5455
      %v5629 = vadd.f32 %v5110, %v5455
      %v5630 = vadd.f32 %v5111, %v5455
      %v5631 = vadd.f32 %v5112, %v5455
      %v5632 = vadd.f32 %v5113, %v5455
      %v5633 = vadd.f32 %v5114, %v5455
      %v5634 = vadd.f32 %v5115, %v5455
      %v5635 = vadd.f32 %v5116, %v5455
      %v5636 = vadd.f32 %v5117, %v5455
      %v5637 = vadd.f32 %v5118, %v5455
      %v5638 = vadd.f32 %v5119, %v5455
      %v5639 = vadd.f32 %v5120, %v5455
      %v5640 = vadd.f32 %v5121, %v5455
      %v5641 = vadd.f32 %v5122, %v5455
      %v5642 = vadd.f32 %v5123, %v5455
      %v5643 = vadd.f32 %v5124, %v5455
      %v5644 = vadd.f32 %v5125, %v5455
      %v5645 = vadd.f32 %v5126, %v5455
      %v5646 = vadd.f32 %v5127, %v5455
      %v5647 = vadd.f32 %v5128, %v5455
      %v5648 = vadd.f32 %v5129, %v5455
      %v5649 = vadd.f32 %v5130, %v5455
      %v5650 = vadd.f32 %v5131, %v5455
      %v5651 = vadd.f32 %v5132, %v5455
      %v5652 = vadd.f32 %v5133, %v5455
      %v5653 = vadd.f32 %v5134, %v5455
      %v5654 = vadd.f32 %v5135, %v5455
      %v5655 = vadd.f32 %v5136, %v5455
      %v5656 = vadd.f32 %v5137, %v5455
      %v5657 = vadd.f32 %v5138, %v5455
      %v5658 = vadd.f32 %v5139, %v5455
      %v5659 = vadd.f32 %v5140, %v5455
      %v5660 = vadd.f32 %v5141, %v5455
      %v5661 = vadd.f32 %v5142, %v5455
      %v5662 = vadd.f32 %v5143, %v5455
      %v5663 = vadd.f32 %v5144, %v5455
      %v5664 = vadd.f32 %v5145, %v5455
      %v5665 = vadd.f32 %v5146, %v5455
      %v5666 = vadd.f32 %v5147, %v5455
      %v5667 = vadd.f32 %v5148, %v5455
      %v5668 = vadd.f32 %v5149, %v5455
      %v5669 = vadd.f32 %v5150, %v5455
      %v5670 = vadd.f32 %v5151, %v5455
      %v5671 = vadd.f32 %v5152, %v5455
      %v5672 = vadd.f32 %v5153, %v5455
      %v5673 = vadd.f32 %v5154, %v5455
      %v5674 = vadd.f32 %v5155, %v5455
      %v5675 = vadd.f32 %v5156, %v5455
      %v5676 = vadd.f32 %v5157, %v5455
      %v5677 = vadd.f32 %v5158, %v5455
      %v5678 = vadd.f32 %v5159, %v5455
      %v5679 = vadd.f32 %v5160, %v5455
      %v5680 = vadd.f32 %v5161, %v5455
      %v5681 = vadd.f32 %v5162, %v5455
      %v5682 = vadd.f32 %v5163, %v5455
      %v5683 = vadd.f32 %v5164, %v5455
      %v5684 = vadd.f32 %v5165, %v5455
      %v5685 = vadd.f32 %v5166, %v5455
      %v5686 = vadd.f32 %v5167, %v5455
      %v5687 = vadd.f32 %v5168, %v5455
      %v5688 = vadd.f32 %v5169, %v5455
      %v5689 = vadd.f32 %v5170, %v5455
      %v5690 = vadd.f32 %v5171, %v5455
      %v5691 = vadd.f32 %v5172, %v5455
      %v5692 = vadd.f32 %v5173, %v5455
      %v5693 = vadd.f32 %v5174, %v5455
      %v5694 = vadd.f32 %v5175, %v5455
      %v5695 = vadd.f32 %v5176, %v5455
      %v5696 = vadd.f32 %v5177, %v5455
      %v5697 = vadd.f32 %v5178, %v5455
      %v5698 = vadd.f32 %v5179, %v5455
      %v5699 = vadd.f32 %v5180, %v5455
      %v5700 = vadd.f32 %v5181, %v5455
      %v5701 = vadd.f32 %v5182, %v5455
      %v5702 = vadd.f32 %v5183, %v5455
      %v5703 = vadd.f32 %v5184, %v5455
      %v5704 = vadd.f32 %v5185, %v5455
      %v5705 = vadd.f32 %v5186, %v5455
      %v5706 = vadd.f32 %v5187, %v5455
      %v5707 = vadd.f32 %v5188, %v5455
      %v5708 = vadd.f32 %v5189, %v5455
      %v5709 = vadd.f32 %v5190, %v5455
      %v5710 = vadd.f32 %v5191, %v5455
      %v5711 = vadd.f32 %v5192, %v5455
      %v5712 = vadd.f32 %v5193, %v5455
      %v5713 = vadd.f32 %v5194, %v5455
      %v5714 = vadd.f32 %v5195, %v5455
      %v5715 = vadd.f32 %v5196, %v5455
      %v5716 = vadd.f32 %v5197, %v5455
      %v5717 = vadd.f32 %v5198, %v5455
      %v5718 = vadd.f32 %v5199, %v5455
      %v5719 = vadd.f32 %v5200, %v5455
      %v5720 = vadd.f32 %v5201, %v5455
      %v5721 = vadd.f32 %v5202, %v5455
      %v5722 = vadd.f32 %v5203, %v5455
      %v5723 = vadd.f32 %v5204, %v5455
      %v5724 = vadd.f32 %v5205, %v5455
      %v5725 = vadd.f32 %v5206, %v5455
      %v5726 = vadd.f32 %v5207, %v5455
      %v5727 = vadd.f32 %v5208, %v5455
      %v5728 = vadd.f32 %v5209, %v5455
      %v5729 = vadd.f32 %v5210, %v5455
      %v5730 = vadd.f32 %v5211, %v5455
      %v5731 = vadd.f32 %v5212, %v5455
      %v5732 = vadd.f32 %v5213, %v5455
      %v5733 = vadd.f32 %v5214, %v5455
      %v5734 = vadd.f32 %v5215, %v5455
      %v5735 = vadd.f32 %v5216, %v5455
      %v5736 = vadd.f32 %v5217, %v5455
      %v5737 = vadd.f32 %v5218, %v5455
      %v5738 = vadd.f32 %v5219, %v5455
      %v5739 = vadd.f32 %v5220, %v5455
      %v5740 = vadd.f32 %v5221, %v5455
      %v5741 = vadd.f32 %v5222, %v5455
      %v5742 = vadd.f32 %v5223, %v5455
      %v5743 = vadd.f32 %v5224, %v5455
      %v5744 = vadd.f32 %v5225, %v5455
      %v5745 = vadd.f32 %v5226, %v5455
      %v5746 = vadd.f32 %v5227, %v5455
      %v5747 = vadd.f32 %v5228, %v5455
      %v5748 = vadd.f32 %v5229, %v5455
      %v5749 = vadd.f32 %v5230, %v5455
      %v5750 = vadd.f32 %v5231, %v5455
      %v5751 = vadd.f32 %v5232, %v5455
      %v5752 = vadd.f32 %v5233, %v5455
      %v5753 = vadd.f32 %v5234, %v5455
      %v5754 = vadd.f32 %v5235, %v5455
      %v5755 = vadd.f32 %v5236, %v5455
      %v5756 = vadd.f32 %v5237, %v5455
      %v5757 = vadd.f32 %v5238, %v5455
      %v5758 = vadd.f32 %v5239, %v5455
      %v5759 = vadd.f32 %v5240, %v5455
      %v5760 = vadd.f32 %v5241, %v5455
      %v5761 = vadd.f32 %v5242, %v5455
      %v5762 = vadd.f32 %v5243, %v5455
      %v5763 = vadd.f32 %v5244, %v5455
      %v5764 = vadd.f32 %v5245, %v5455
      %v5765 = vadd.f32 %v5246, %v5455
      %v5766 = vadd.f32 %v5247, %v5455
      %v5767 = vadd.f32 %v5248, %v5455
      %v5768 = vadd.f32 %v5249, %v5455
      %v5769 = vadd.f32 %v5250, %v5455
      %v5770 = vadd.f32 %v5251, %v5455
      %v5771 = vadd.f32 %v5252, %v5455
      %v5772 = vadd.f32 %v5253, %v5455
      %v5773 = vadd.f32 %v5254, %v5455
      %v5774 = vadd.f32 %v5255, %v5455
      %v5775 = vadd.f32 %v5256, %v5455
      %v5776 = vadd.f32 %v5257, %v5455
      %v5777 = vadd.f32 %v5258, %v5455
      %v5778 = vadd.f32 %v5259, %v5455
      %v5779 = vadd.f32 %v5260, %v5455
      %v5780 = vadd.f32 %v5261, %v5455
      %v5781 = vadd.f32 %v5262, %v5455
      %v5782 = vadd.f32 %v5263, %v5455
      %v5783 = vadd.f32 %v5264, %v5455
      %v5784 = vadd.f32 %v5265, %v5455
      %v5785 = vadd.f32 %v5266, %v5455
      %v5786 = vadd.f32 %v5267, %v5455
      %v5787 = vadd.f32 %v5268, %v5455
      %v5788 = vadd.f32 %v5269, %v5455
      %v5789 = vadd.f32 %v5270, %v5455
      %v5790 = vadd.f32 %v5271, %v5455
      %v5791 = vadd.f32 %v5272, %v5455
      %v5792 = vadd.f32 %v5273, %v5455
      %v5793 = vadd.f32 %v5274, %v5455
      %v5794 = vadd.f32 %v5275, %v5455
      %v5795 = vadd.f32 %v5276, %v5455
      %v5796 = vadd.f32 %v5277, %v5455
      %v5797 = vadd.f32 %v5278, %v5455
      %v5798 = vadd.f32 %v5279, %v5455
      %v5799 = vadd.f32 %v5280, %v5455
      %v5800 = vadd.f32 %v5281, %v5455
      %v5801 = vadd.f32 %v5282, %v5455
      %v5802 = vadd.f32 %v5283, %v5455
      %v5803 = vadd.f32 %v5284, %v5455
      %v5804 = vadd.f32 %v5285, %v5455
      %v5805 = vadd.f32 %v5286, %v5455
      %v5806 = vadd.f32 %v5287, %v5455
      %v5807 = vadd.f32 %v5288, %v5455
      %v5808 = vadd.f32 %v5289, %v5455
      %v5809 = vadd.f32 %v5290, %v5455
      %v5810 = vadd.f32 %v5291, %v5455
      %v5811 = vadd.f32 %v5292, %v5455
      %v5812 = vadd.f32 %v5293, %v5455
      %v5813 = vadd.f32 %v5294, %v5455
      %v5814 = vadd.f32 %v5295, %v5455
      %v5815 = vadd.f32 %v5296, %v5455
      %v5816 = vadd.f32 %v5297, %v5455
      %v5817 = vadd.f32 %v5298, %v5455
      %v5818 = vadd.f32 %v5299, %v5455
      %v5819 = vadd.f32 %v5300, %v5455
      %v5820 = vadd.f32 %v5301, %v5455
      %v5821 = vadd.f32 %v5302, %v5455
      %v5822 = vadd.f32 %v5303, %v5455
      %v5823 = vadd.f32 %v5304, %v5455
      %v5824 = vadd.f32 %v5305, %v5455
      %v5825 = vadd.f32 %v5306, %v5455
      %v5826 = vadd.f32 %v5307, %v5455
      %v5827 = vadd.f32 %v5308, %v5455
      %v5828 = vadd.f32 %v5309, %v5455
      %v5829 = vadd.f32 %v5310, %v5455
      %v5830 = vadd.f32 %v5311, %v5455
      %v5831 = vadd.f32 %v5312, %v5455
      %v5832 = vadd.f32 %v5313, %v5455
      %v5833 = vadd.f32 %v5314, %v5455
      %v5834 = vadd.f32 %v5315, %v5455
      %v5835 = vadd.f32 %v5316, %v5455
      %v5836 = vadd.f32 %v5317, %v5455
      %v5837 = vadd.f32 %v5318, %v5455
      %v5838 = vadd.f32 %v5319, %v5455
      %v5839 = vadd.f32 %v5320, %v5455
      %v5840 = vadd.f32 %v5321, %v5455
      %v5841 = vadd.f32 %v5322, %v5455
      %v5842 = vadd.f32 %v5323, %v5455
      %v5843 = vadd.f32 %v5324, %v5455
      %v5844 = vadd.f32 %v5325, %v5455
      %v5845 = vadd.f32 %v5326, %v5455
      %v5846 = vadd.f32 %v5327, %v5455
      %v5847 = vadd.f32 %v5328, %v5455
      %v5848 = vadd.f32 %v5329, %v5455
      %v5849 = vadd.f32 %v5330, %v5455
      %v5850 = vadd.f32 %v5331, %v5455
      %v5851 = vadd.f32 %v5332, %v5455
      %v5852 = vadd.f32 %v5333, %v5455
      %v5853 = vadd.f32 %v5334, %v5455
      %v5854 = vadd.f32 %v5335, %v5455
      %v5855 = vadd.f32 %v5336, %v5455
      %v5856 = vadd.f32 %v5337, %v5455
      %v5857 = vadd.f32 %v5338, %v5455
      %v5858 = vadd.f32 %v5339, %v5455
      %v5859 = vadd.f32 %v5340, %v5455
      %v5860 = vadd.f32 %v5341, %v5455
      %v5861 = vadd.f32 %v5342, %v5455
      %v5862 = vadd.f32 %v5343, %v5455
      %v5863 = vadd.f32 %v5344, %v5455
      %v5864 = vadd.f32 %v5345, %v5455
      %v5865 = vadd.f32 %v5346, %v5455
      %v5866 = vadd.f32 %v5347, %v5455
      %v5867 = vadd.f32 %v5348, %v5455
      %v5868 = vadd.f32 %v5349, %v5455
      %v5869 = vadd.f32 %v5350, %v5455
      %v5870 = vadd.f32 %v5351, %v5455
      %v5871 = vadd.f32 %v5352, %v5455
      %v5872 = vadd.f32 %v5353, %v5455
      %v5873 = vadd.f32 %v5354, %v5455
      %v5874 = vadd.f32 %v5355, %v5455
      %v5875 = vadd.f32 %v5356, %v5455
      %v5876 = vadd.f32 %v5357, %v5455
      %v5877 = vadd.f32 %v5358, %v5455
      %v5878 = vadd.f32 %v5359, %v5455
      %v5879 = vadd.f32 %v5360, %v5455
      %v5880 = vadd.f32 %v5361, %v5455
      %v5881 = vadd.f32 %v5362, %v5455
      %v5882 = vadd.f32 %v5363, %v5455
      %v5883 = vadd.f32 %v5364, %v5455
      %v5884 = vadd.f32 %v5365, %v5455
      %v5885 = vadd.f32 %v5366, %v5455
      %v5886 = vadd.f32 %v5367, %v5455
      %v5887 = vadd.f32 %v5368, %v5455
      %v5888 = vadd.f32 %v5369, %v5455
      %v5889 = vadd.f32 %v5370, %v5455
      %v5890 = vadd.f32 %v5371, %v5455
      %v5891 = vadd.f32 %v5372, %v5455
      %v5892 = vadd.f32 %v5373, %v5455
      %v5893 = vadd.f32 %v5374, %v5455
      %v5894 = vadd.f32 %v5375, %v5455
      %v5895 = vadd.f32 %v5376, %v5455
      %v5896 = vadd.f32 %v5377, %v5455
      %v5897 = vadd.f32 %v5378, %v5455
      %v5898 = vadd.f32 %v5379, %v5455
      %v5899 = vadd.f32 %v5380, %v5455
      %v5900 = vadd.f32 %v5381, %v5455
      %v5901 = vadd.f32 %v5382, %v5455
      %v5902 = vadd.f32 %v5383, %v5455
      %v5903 = vadd.f32 %v5384, %v5455
      %v5904 = vadd.f32 %v5385, %v5455
      %v5905 = vadd.f32 %v5386, %v5455
      %v5906 = vadd.f32 %v5387, %v5455
      %v5907 = vadd.f32 %v5388, %v5455
      %v5908 = vadd.f32 %v5389, %v5455
      %v5909 = vadd.f32 %v5390, %v5455
      %v5910 = vadd.f32 %v5391, %v5455
      %v5911 = vadd.f32 %v5392, %v5455
      %v5912 = vadd.f32 %v5393, %v5455
      %v5913 = vadd.f32 %v5394, %v5455
      %v5914 = vadd.f32 %v5395, %v5455
      %v5915 = vadd.f32 %v5396, %v5455
      %v5916 = vadd.f32 %v5397, %v5455
      %v5917 = vadd.f32 %v5398, %v5455
      %v5918 = vadd.f32 %v5399, %v5455
      %v5919 = vadd.f32 %v5400, %v5455
      %v5920 = vadd.f32 %v5401, %v5455
      %v5921 = vadd.f32 %v5402, %v5455
      %v5922 = vadd.f32 %v5403, %v5455
      %v5923 = vadd.f32 %v5404, %v5455
      %v5924 = vadd.f32 %v5405, %v5455
      %v5925 = vadd.f32 %v5406, %v5455
      %v5926 = vadd.f32 %v5407, %v5455
      %v5927 = vadd.f32 %v5408, %v5455
      %v5928 = vadd.f32 %v5409, %v5455
      %v5929 = vadd.f32 %v5410, %v5455
      %v5930 = vadd.f32 %v5411, %v5455
      %v5931 = vadd.f32 %v5412, %v5455
      %v5932 = vadd.f32 %v5413, %v5455
      %v5933 = vadd.f32 %v5414, %v5455
      %v5934 = vadd.f32 %v5415, %v5455
      %v5935 = vadd.f32 %v5416, %v5455
      %v5936 = vadd.f32 %v5417, %v5455
      %v5937 = vadd.f32 %v5418, %v5455
      %v5938 = vadd.f32 %v5419, %v5455
      %v5939 = vadd.f32 %v5420, %v5455
      %v5940 = vadd.f32 %v5421, %v5455
      %v5941 = vadd.f32 %v5422, %v5455
      %v5942 = vadd.f32 %v5423, %v5455
      %v5943 = vadd.f32 %v5424, %v5455
      %v5944 = vadd.f32 %v5425, %v5455
      %v5945 = vadd.f32 %v5426, %v5455
      %v5946 = vadd.f32 %v5427, %v5455
      %v5947 = vadd.f32 %v5428, %v5455
      %v5948 = vadd.f32 %v5429, %v5455
      %v5949 = vadd.f32 %v5430, %v5455
      %v5950 = vadd.f32 %v5431, %v5455
      %v5951 = vadd.f32 %v5432, %v5455
      %v5952 = vadd.f32 %v5433, %v5455
      %v5953 = vadd.f32 %v5434, %v5455
      %v5954 = vadd.f32 %v5435, %v5455
      %v5955 = vadd.f32 %v5436, %v5455
      %v5956 = vadd.f32 %v5437, %v5455
      %v5957 = vadd.f32 %v5438, %v5455
      %v5958 = vadd.f32 %v5439, %v5455
      %v5959 = vadd.f32 %v5440, %v5455
      %v5960 = vadd.f32 %v5441, %v5455
      %v5961 = vadd.f32 %v5442, %v5455
      %v5962 = vadd.f32 %v5443, %v5455
      %v5963 = vadd.f32 %v5444, %v5455
      %v5964 = vadd.f32 %v5445, %v5455
      %v5965 = vadd.f32 %v5446, %v5455
      %v5966 = vadd.f32 %v5447, %v5455
      %v5967 = vadd.f32 %v5448, %v5455
      %v5968 = vadd.f32 %v5449, %v5455
      %v5969 = vsub.f32 0.0, %v5457
      %v5970 = vsub.f32 0.0, %v5458
      %v5971 = vsub.f32 0.0, %v5459
      %v5972 = vsub.f32 0.0, %v5460
      %v5973 = vsub.f32 0.0, %v5461
      %v5974 = vsub.f32 0.0, %v5462
      %v5975 = vsub.f32 0.0, %v5463
      %v5976 = vsub.f32 0.0, %v5464
      %v5977 = vsub.f32 0.0, %v5465
      %v5978 = vsub.f32 0.0, %v5466
      %v5979 = vsub.f32 0.0, %v5467
      %v5980 = vsub.f32 0.0, %v5468
      %v5981 = vsub.f32 0.0, %v5469
      %v5982 = vsub.f32 0.0, %v5470
      %v5983 = vsub.f32 0.0, %v5471
      %v5984 = vsub.f32 0.0, %v5472
      %v5985 = vsub.f32 0.0, %v5473
      %v5986 = vsub.f32 0.0, %v5474
      %v5987 = vsub.f32 0.0, %v5475
      %v5988 = vsub.f32 0.0, %v5476
      %v5989 = vsub.f32 0.0, %v5477
      %v5990 = vsub.f32 0.0, %v5478
      %v5991 = vsub.f32 0.0, %v5479
      %v5992 = vsub.f32 0.0, %v5480
      %v5993 = vsub.f32 0.0, %v5481
      %v5994 = vsub.f32 0.0, %v5482
      %v5995 = vsub.f32 0.0, %v5483
      %v5996 = vsub.f32 0.0, %v5484
      %v5997 = vsub.f32 0.0, %v5485
      %v5998 = vsub.f32 0.0, %v5486
      %v5999 = vsub.f32 0.0, %v5487
      %v6000 = vsub.f32 0.0, %v5488
      %v6001 = vsub.f32 0.0, %v5489
      %v6002 = vsub.f32 0.0, %v5490
      %v6003 = vsub.f32 0.0, %v5491
      %v6004 = vsub.f32 0.0, %v5492
      %v6005 = vsub.f32 0.0, %v5493
      %v6006 = vsub.f32 0.0, %v5494
      %v6007 = vsub.f32 0.0, %v5495
      %v6008 = vsub.f32 0.0, %v5496
      %v6009 = vsub.f32 0.0, %v5497
      %v6010 = vsub.f32 0.0, %v5498
      %v6011 = vsub.f32 0.0, %v5499
      %v6012 = vsub.f32 0.0, %v5500
      %v6013 = vsub.f32 0.0, %v5501
      %v6014 = vsub.f32 0.0, %v5502
      %v6015 = vsub.f32 0.0, %v5503
      %v6016 = vsub.f32 0.0, %v5504
      %v6017 = vsub.f32 0.0, %v5505
      %v6018 = vsub.f32 0.0, %v5506
      %v6019 = vsub.f32 0.0, %v5507
      %v6020 = vsub.f32 0.0, %v5508
      %v6021 = vsub.f32 0.0, %v5509
      %v6022 = vsub.f32 0.0, %v5510
      %v6023 = vsub.f32 0.0, %v5511
      %v6024 = vsub.f32 0.0, %v5512
      %v6025 = vsub.f32 0.0, %v5513
      %v6026 = vsub.f32 0.0, %v5514
      %v6027 = vsub.f32 0.0, %v5515
      %v6028 = vsub.f32 0.0, %v5516
      %v6029 = vsub.f32 0.0, %v5517
      %v6030 = vsub.f32 0.0, %v5518
      %v6031 = vsub.f32 0.0, %v5519
      %v6032 = vsub.f32 0.0, %v5520
      %v6033 = vsub.f32 0.0, %v5521
      %v6034 = vsub.f32 0.0, %v5522
      %v6035 = vsub.f32 0.0, %v5523
      %v6036 = vsub.f32 0.0, %v5524
      %v6037 = vsub.f32 0.0, %v5525
      %v6038 = vsub.f32 0.0, %v5526
      %v6039 = vsub.f32 0.0, %v5527
      %v6040 = vsub.f32 0.0, %v5528
      %v6041 = vsub.f32 0.0, %v5529
      %v6042 = vsub.f32 0.0, %v5530
      %v6043 = vsub.f32 0.0, %v5531
      %v6044 = vsub.f32 0.0, %v5532
      %v6045 = vsub.f32 0.0, %v5533
      %v6046 = vsub.f32 0.0, %v5534
      %v6047 = vsub.f32 0.0, %v5535
      %v6048 = vsub.f32 0.0, %v5536
      %v6049 = vsub.f32 0.0, %v5537
      %v6050 = vsub.f32 0.0, %v5538
      %v6051 = vsub.f32 0.0, %v5539
      %v6052 = vsub.f32 0.0, %v5540
      %v6053 = vsub.f32 0.0, %v5541
      %v6054 = vsub.f32 0.0, %v5542
      %v6055 = vsub.f32 0.0, %v5543
      %v6056 = vsub.f32 0.0, %v5544
      %v6057 = vsub.f32 0.0, %v5545
      %v6058 = vsub.f32 0.0, %v5546
      %v6059 = vsub.f32 0.0, %v5547
      %v6060 = vsub.f32 0.0, %v5548
      %v6061 = vsub.f32 0.0, %v5549
      %v6062 = vsub.f32 0.0, %v5550
      %v6063 = vsub.f32 0.0, %v5551
      %v6064 = vsub.f32 0.0, %v5552
      %v6065 = vsub.f32 0.0, %v5553
      %v6066 = vsub.f32 0.0, %v5554
      %v6067 = vsub.f32 0.0, %v5555
      %v6068 = vsub.f32 0.0, %v5556
      %v6069 = vsub.f32 0.0, %v5557
      %v6070 = vsub.f32 0.0, %v5558
      %v6071 = vsub.f32 0.0, %v5559
      %v6072 = vsub.f32 0.0, %v5560
      %v6073 = vsub.f32 0.0, %v5561
      %v6074 = vsub.f32 0.0, %v5562
      %v6075 = vsub.f32 0.0, %v5563
      %v6076 = vsub.f32 0.0, %v5564
      %v6077 = vsub.f32 0.0, %v5565
      %v6078 = vsub.f32 0.0, %v5566
      %v6079 = vsub.f32 0.0, %v5567
      %v6080 = vsub.f32 0.0, %v5568
      %v6081 = vsub.f32 0.0, %v5569
      %v6082 = vsub.f32 0.0, %v5570
      %v6083 = vsub.f32 0.0, %v5571
      %v6084 = vsub.f32 0.0, %v5572
      %v6085 = vsub.f32 0.0, %v5573
      %v6086 = vsub.f32 0.0, %v5574
      %v6087 = vsub.f32 0.0, %v5575
      %v6088 = vsub.f32 0.0, %v5576
      %v6089 = vsub.f32 0.0, %v5577
      %v6090 = vsub.f32 0.0, %v5578
      %v6091 = vsub.f32 0.0, %v5579
      %v6092 = vsub.f32 0.0, %v5580
      %v6093 = vsub.f32 0.0, %v5581
      %v6094 = vsub.f32 0.0, %v5582
      %v6095 = vsub.f32 0.0, %v5583
      %v6096 = vsub.f32 0.0, %v5584
      %v6097 = vsub.f32 0.0, %v5585
      %v6098 = vsub.f32 0.0, %v5586
      %v6099 = vsub.f32 0.0, %v5587
      %v6100 = vsub.f32 0.0, %v5588
      %v6101 = vsub.f32 0.0, %v5589
      %v6102 = vsub.f32 0.0, %v5590
      %v6103 = vsub.f32 0.0, %v5591
      %v6104 = vsub.f32 0.0, %v5592
      %v6105 = vsub.f32 0.0, %v5593
      %v6106 = vsub.f32 0.0, %v5594
      %v6107 = vsub.f32 0.0, %v5595
      %v6108 = vsub.f32 0.0, %v5596
      %v6109 = vsub.f32 0.0, %v5597
      %v6110 = vsub.f32 0.0, %v5598
      %v6111 = vsub.f32 0.0, %v5599
      %v6112 = vsub.f32 0.0, %v5600
      %v6113 = vsub.f32 0.0, %v5601
      %v6114 = vsub.f32 0.0, %v5602
      %v6115 = vsub.f32 0.0, %v5603
      %v6116 = vsub.f32 0.0, %v5604
      %v6117 = vsub.f32 0.0, %v5605
      %v6118 = vsub.f32 0.0, %v5606
      %v6119 = vsub.f32 0.0, %v5607
      %v6120 = vsub.f32 0.0, %v5608
      %v6121 = vsub.f32 0.0, %v5609
      %v6122 = vsub.f32 0.0, %v5610
      %v6123 = vsub.f32 0.0, %v5611
      %v6124 = vsub.f32 0.0, %v5612
      %v6125 = vsub.f32 0.0, %v5613
      %v6126 = vsub.f32 0.0, %v5614
      %v6127 = vsub.f32 0.0, %v5615
      %v6128 = vsub.f32 0.0, %v5616
      %v6129 = vsub.f32 0.0, %v5617
      %v6130 = vsub.f32 0.0, %v5618
      %v6131 = vsub.f32 0.0, %v5619
      %v6132 = vsub.f32 0.0, %v5620
      %v6133 = vsub.f32 0.0, %v5621
      %v6134 = vsub.f32 0.0, %v5622
      %v6135 = vsub.f32 0.0, %v5623
      %v6136 = vsub.f32 0.0, %v5624
      %v6137 = vsub.f32 0.0, %v5625
      %v6138 = vsub.f32 0.0, %v5626
      %v6139 = vsub.f32 0.0, %v5627
      %v6140 = vsub.f32 0.0, %v5628
      %v6141 = vsub.f32 0.0, %v5629
      %v6142 = vsub.f32 0.0, %v5630
      %v6143 = vsub.f32 0.0, %v5631
      %v6144 = vsub.f32 0.0, %v5632
      %v6145 = vsub.f32 0.0, %v5633
      %v6146 = vsub.f32 0.0, %v5634
      %v6147 = vsub.f32 0.0, %v5635
      %v6148 = vsub.f32 0.0, %v5636
      %v6149 = vsub.f32 0.0, %v5637
      %v6150 = vsub.f32 0.0, %v5638
      %v6151 = vsub.f32 0.0, %v5639
      %v6152 = vsub.f32 0.0, %v5640
      %v6153 = vsub.f32 0.0, %v5641
      %v6154 = vsub.f32 0.0, %v5642
      %v6155 = vsub.f32 0.0, %v5643
      %v6156 = vsub.f32 0.0, %v5644
      %v6157 = vsub.f32 0.0, %v5645
      %v6158 = vsub.f32 0.0, %v5646
      %v6159 = vsub.f32 0.0, %v5647
      %v6160 = vsub.f32 0.0, %v5648
      %v6161 = vsub.f32 0.0, %v5649
      %v6162 = vsub.f32 0.0, %v5650
      %v6163 = vsub.f32 0.0, %v5651
      %v6164 = vsub.f32 0.0, %v5652
      %v6165 = vsub.f32 0.0, %v5653
      %v6166 = vsub.f32 0.0, %v5654
      %v6167 = vsub.f32 0.0, %v5655
      %v6168 = vsub.f32 0.0, %v5656
      %v6169 = vsub.f32 0.0, %v5657
      %v6170 = vsub.f32 0.0, %v5658
      %v6171 = vsub.f32 0.0, %v5659
      %v6172 = vsub.f32 0.0, %v5660
      %v6173 = vsub.f32 0.0, %v5661
      %v6174 = vsub.f32 0.0, %v5662
      %v6175 = vsub.f32 0.0, %v5663
      %v6176 = vsub.f32 0.0, %v5664
      %v6177 = vsub.f32 0.0, %v5665
      %v6178 = vsub.f32 0.0, %v5666
      %v6179 = vsub.f32 0.0, %v5667
      %v6180 = vsub.f32 0.0, %v5668
      %v6181 = vsub.f32 0.0, %v5669
      %v6182 = vsub.f32 0.0, %v5670
      %v6183 = vsub.f32 0.0, %v5671
      %v6184 = vsub.f32 0.0, %v5672
      %v6185 = vsub.f32 0.0, %v5673
      %v6186 = vsub.f32 0.0, %v5674
      %v6187 = vsub.f32 0.0, %v5675
      %v6188 = vsub.f32 0.0, %v5676
      %v6189 = vsub.f32 0.0, %v5677
      %v6190 = vsub.f32 0.0, %v5678
      %v6191 = vsub.f32 0.0, %v5679
      %v6192 = vsub.f32 0.0, %v5680
      %v6193 = vsub.f32 0.0, %v5681
      %v6194 = vsub.f32 0.0, %v5682
      %v6195 = vsub.f32 0.0, %v5683
      %v6196 = vsub.f32 0.0, %v5684
      %v6197 = vsub.f32 0.0, %v5685
      %v6198 = vsub.f32 0.0, %v5686
      %v6199 = vsub.f32 0.0, %v5687
      %v6200 = vsub.f32 0.0, %v5688
      %v6201 = vsub.f32 0.0, %v5689
      %v6202 = vsub.f32 0.0, %v5690
      %v6203 = vsub.f32 0.0, %v5691
      %v6204 = vsub.f32 0.0, %v5692
      %v6205 = vsub.f32 0.0, %v5693
      %v6206 = vsub.f32 0.0, %v5694
      %v6207 = vsub.f32 0.0, %v5695
      %v6208 = vsub.f32 0.0, %v5696
      %v6209 = vsub.f32 0.0, %v5697
      %v6210 = vsub.f32 0.0, %v5698
      %v6211 = vsub.f32 0.0, %v5699
      %v6212 = vsub.f32 0.0, %v5700
      %v6213 = vsub.f32 0.0, %v5701
      %v6214 = vsub.f32 0.0, %v5702
      %v6215 = vsub.f32 0.0, %v5703
      %v6216 = vsub.f32 0.0, %v5704
      %v6217 = vsub.f32 0.0, %v5705
      %v6218 = vsub.f32 0.0, %v5706
      %v6219 = vsub.f32 0.0, %v5707
      %v6220 = vsub.f32 0.0, %v5708
      %v6221 = vsub.f32 0.0, %v5709
      %v6222 = vsub.f32 0.0, %v5710
      %v6223 = vsub.f32 0.0, %v5711
      %v6224 = vsub.f32 0.0, %v5712
      %v6225 = vsub.f32 0.0, %v5713
      %v6226 = vsub.f32 0.0, %v5714
      %v6227 = vsub.f32 0.0, %v5715
      %v6228 = vsub.f32 0.0, %v5716
      %v6229 = vsub.f32 0.0, %v5717
      %v6230 = vsub.f32 0.0, %v5718
      %v6231 = vsub.f32 0.0, %v5719
      %v6232 = vsub.f32 0.0, %v5720
      %v6233 = vsub.f32 0.0, %v5721
      %v6234 = vsub.f32 0.0, %v5722
      %v6235 = vsub.f32 0.0, %v5723
      %v6236 = vsub.f32 0.0, %v5724
      %v6237 = vsub.f32 0.0, %v5725
      %v6238 = vsub.f32 0.0, %v5726
      %v6239 = vsub.f32 0.0, %v5727
      %v6240 = vsub.f32 0.0, %v5728
      %v6241 = vsub.f32 0.0, %v5729
      %v6242 = vsub.f32 0.0, %v5730
      %v6243 = vsub.f32 0.0, %v5731
      %v6244 = vsub.f32 0.0, %v5732
      %v6245 = vsub.f32 0.0, %v5733
      %v6246 = vsub.f32 0.0, %v5734
      %v6247 = vsub.f32 0.0, %v5735
      %v6248 = vsub.f32 0.0, %v5736
      %v6249 = vsub.f32 0.0, %v5737
      %v6250 = vsub.f32 0.0, %v5738
      %v6251 = vsub.f32 0.0, %v5739
      %v6252 = vsub.f32 0.0, %v5740
      %v6253 = vsub.f32 0.0, %v5741
      %v6254 = vsub.f32 0.0, %v5742
      %v6255 = vsub.f32 0.0, %v5743
      %v6256 = vsub.f32 0.0, %v5744
      %v6257 = vsub.f32 0.0, %v5745
      %v6258 = vsub.f32 0.0, %v5746
      %v6259 = vsub.f32 0.0, %v5747
      %v6260 = vsub.f32 0.0, %v5748
      %v6261 = vsub.f32 0.0, %v5749
      %v6262 = vsub.f32 0.0, %v5750
      %v6263 = vsub.f32 0.0, %v5751
      %v6264 = vsub.f32 0.0, %v5752
      %v6265 = vsub.f32 0.0, %v5753
      %v6266 = vsub.f32 0.0, %v5754
      %v6267 = vsub.f32 0.0, %v5755
      %v6268 = vsub.f32 0.0, %v5756
      %v6269 = vsub.f32 0.0, %v5757
      %v6270 = vsub.f32 0.0, %v5758
      %v6271 = vsub.f32 0.0, %v5759
      %v6272 = vsub.f32 0.0, %v5760
      %v6273 = vsub.f32 0.0, %v5761
      %v6274 = vsub.f32 0.0, %v5762
      %v6275 = vsub.f32 0.0, %v5763
      %v6276 = vsub.f32 0.0, %v5764
      %v6277 = vsub.f32 0.0, %v5765
      %v6278 = vsub.f32 0.0, %v5766
      %v6279 = vsub.f32 0.0, %v5767
      %v6280 = vsub.f32 0.0, %v5768
      %v6281 = vsub.f32 0.0, %v5769
      %v6282 = vsub.f32 0.0, %v5770
      %v6283 = vsub.f32 0.0, %v5771
      %v6284 = vsub.f32 0.0, %v5772
      %v6285 = vsub.f32 0.0, %v5773
      %v6286 = vsub.f32 0.0, %v5774
      %v6287 = vsub.f32 0.0, %v5775
      %v6288 = vsub.f32 0.0, %v5776
      %v6289 = vsub.f32 0.0, %v5777
      %v6290 = vsub.f32 0.0, %v5778
      %v6291 = vsub.f32 0.0, %v5779
      %v6292 = vsub.f32 0.0, %v5780
      %v6293 = vsub.f32 0.0, %v5781
      %v6294 = vsub.f32 0.0, %v5782
      %v6295 = vsub.f32 0.0, %v5783
      %v6296 = vsub.f32 0.0, %v5784
      %v6297 = vsub.f32 0.0, %v5785
      %v6298 = vsub.f32 0.0, %v5786
      %v6299 = vsub.f32 0.0, %v5787
      %v6300 = vsub.f32 0.0, %v5788
      %v6301 = vsub.f32 0.0, %v5789
      %v6302 = vsub.f32 0.0, %v5790
      %v6303 = vsub.f32 0.0, %v5791
      %v6304 = vsub.f32 0.0, %v5792
      %v6305 = vsub.f32 0.0, %v5793
      %v6306 = vsub.f32 0.0, %v5794
      %v6307 = vsub.f32 0.0, %v5795
      %v6308 = vsub.f32 0.0, %v5796
      %v6309 = vsub.f32 0.0, %v5797
      %v6310 = vsub.f32 0.0, %v5798
      %v6311 = vsub.f32 0.0, %v5799
      %v6312 = vsub.f32 0.0, %v5800
      %v6313 = vsub.f32 0.0, %v5801
      %v6314 = vsub.f32 0.0, %v5802
      %v6315 = vsub.f32 0.0, %v5803
      %v6316 = vsub.f32 0.0, %v5804
      %v6317 = vsub.f32 0.0, %v5805
      %v6318 = vsub.f32 0.0, %v5806
      %v6319 = vsub.f32 0.0, %v5807
      %v6320 = vsub.f32 0.0, %v5808
      %v6321 = vsub.f32 0.0, %v5809
      %v6322 = vsub.f32 0.0, %v5810
      %v6323 = vsub.f32 0.0, %v5811
      %v6324 = vsub.f32 0.0, %v5812
      %v6325 = vsub.f32 0.0, %v5813
      %v6326 = vsub.f32 0.0, %v5814
      %v6327 = vsub.f32 0.0, %v5815
      %v6328 = vsub.f32 0.0, %v5816
      %v6329 = vsub.f32 0.0, %v5817
      %v6330 = vsub.f32 0.0, %v5818
      %v6331 = vsub.f32 0.0, %v5819
      %v6332 = vsub.f32 0.0, %v5820
      %v6333 = vsub.f32 0.0, %v5821
      %v6334 = vsub.f32 0.0, %v5822
      %v6335 = vsub.f32 0.0, %v5823
      %v6336 = vsub.f32 0.0, %v5824
      %v6337 = vsub.f32 0.0, %v5825
      %v6338 = vsub.f32 0.0, %v5826
      %v6339 = vsub.f32 0.0, %v5827
      %v6340 = vsub.f32 0.0, %v5828
      %v6341 = vsub.f32 0.0, %v5829
      %v6342 = vsub.f32 0.0, %v5830
      %v6343 = vsub.f32 0.0, %v5831
      %v6344 = vsub.f32 0.0, %v5832
      %v6345 = vsub.f32 0.0, %v5833
      %v6346 = vsub.f32 0.0, %v5834
      %v6347 = vsub.f32 0.0, %v5835
      %v6348 = vsub.f32 0.0, %v5836
      %v6349 = vsub.f32 0.0, %v5837
      %v6350 = vsub.f32 0.0, %v5838
      %v6351 = vsub.f32 0.0, %v5839
      %v6352 = vsub.f32 0.0, %v5840
      %v6353 = vsub.f32 0.0, %v5841
      %v6354 = vsub.f32 0.0, %v5842
      %v6355 = vsub.f32 0.0, %v5843
      %v6356 = vsub.f32 0.0, %v5844
      %v6357 = vsub.f32 0.0, %v5845
      %v6358 = vsub.f32 0.0, %v5846
      %v6359 = vsub.f32 0.0, %v5847
      %v6360 = vsub.f32 0.0, %v5848
      %v6361 = vsub.f32 0.0, %v5849
      %v6362 = vsub.f32 0.0, %v5850
      %v6363 = vsub.f32 0.0, %v5851
      %v6364 = vsub.f32 0.0, %v5852
      %v6365 = vsub.f32 0.0, %v5853
      %v6366 = vsub.f32 0.0, %v5854
      %v6367 = vsub.f32 0.0, %v5855
      %v6368 = vsub.f32 0.0, %v5856
      %v6369 = vsub.f32 0.0, %v5857
      %v6370 = vsub.f32 0.0, %v5858
      %v6371 = vsub.f32 0.0, %v5859
      %v6372 = vsub.f32 0.0, %v5860
      %v6373 = vsub.f32 0.0, %v5861
      %v6374 = vsub.f32 0.0, %v5862
      %v6375 = vsub.f32 0.0, %v5863
      %v6376 = vsub.f32 0.0, %v5864
      %v6377 = vsub.f32 0.0, %v5865
      %v6378 = vsub.f32 0.0, %v5866
      %v6379 = vsub.f32 0.0, %v5867
      %v6380 = vsub.f32 0.0, %v5868
      %v6381 = vsub.f32 0.0, %v5869
      %v6382 = vsub.f32 0.0, %v5870
      %v6383 = vsub.f32 0.0, %v5871
      %v6384 = vsub.f32 0.0, %v5872
      %v6385 = vsub.f32 0.0, %v5873
      %v6386 = vsub.f32 0.0, %v5874
      %v6387 = vsub.f32 0.0, %v5875
      %v6388 = vsub.f32 0.0, %v5876
      %v6389 = vsub.f32 0.0, %v5877
      %v6390 = vsub.f32 0.0, %v5878
      %v6391 = vsub.f32 0.0, %v5879
      %v6392 = vsub.f32 0.0, %v5880
      %v6393 = vsub.f32 0.0, %v5881
      %v6394 = vsub.f32 0.0, %v5882
      %v6395 = vsub.f32 0.0, %v5883
      %v6396 = vsub.f32 0.0, %v5884
      %v6397 = vsub.f32 0.0, %v5885
      %v6398 = vsub.f32 0.0, %v5886
      %v6399 = vsub.f32 0.0, %v5887
      %v6400 = vsub.f32 0.0, %v5888
      %v6401 = vsub.f32 0.0, %v5889
      %v6402 = vsub.f32 0.0, %v5890
      %v6403 = vsub.f32 0.0, %v5891
      %v6404 = vsub.f32 0.0, %v5892
      %v6405 = vsub.f32 0.0, %v5893
      %v6406 = vsub.f32 0.0, %v5894
      %v6407 = vsub.f32 0.0, %v5895
      %v6408 = vsub.f32 0.0, %v5896
      %v6409 = vsub.f32 0.0, %v5897
      %v6410 = vsub.f32 0.0, %v5898
      %v6411 = vsub.f32 0.0, %v5899
      %v6412 = vsub.f32 0.0, %v5900
      %v6413 = vsub.f32 0.0, %v5901
      %v6414 = vsub.f32 0.0, %v5902
      %v6415 = vsub.f32 0.0, %v5903
      %v6416 = vsub.f32 0.0, %v5904
      %v6417 = vsub.f32 0.0, %v5905
      %v6418 = vsub.f32 0.0, %v5906
      %v6419 = vsub.f32 0.0, %v5907
      %v6420 = vsub.f32 0.0, %v5908
      %v6421 = vsub.f32 0.0, %v5909
      %v6422 = vsub.f32 0.0, %v5910
      %v6423 = vsub.f32 0.0, %v5911
      %v6424 = vsub.f32 0.0, %v5912
      %v6425 = vsub.f32 0.0, %v5913
      %v6426 = vsub.f32 0.0, %v5914
      %v6427 = vsub.f32 0.0, %v5915
      %v6428 = vsub.f32 0.0, %v5916
      %v6429 = vsub.f32 0.0, %v5917
      %v6430 = vsub.f32 0.0, %v5918
      %v6431 = vsub.f32 0.0, %v5919
      %v6432 = vsub.f32 0.0, %v5920
      %v6433 = vsub.f32 0.0, %v5921
      %v6434 = vsub.f32 0.0, %v5922
      %v6435 = vsub.f32 0.0, %v5923
      %v6436 = vsub.f32 0.0, %v5924
      %v6437 = vsub.f32 0.0, %v5925
      %v6438 = vsub.f32 0.0, %v5926
      %v6439 = vsub.f32 0.0, %v5927
      %v6440 = vsub.f32 0.0, %v5928
      %v6441 = vsub.f32 0.0, %v5929
      %v6442 = vsub.f32 0.0, %v5930
      %v6443 = vsub.f32 0.0, %v5931
      %v6444 = vsub.f32 0.0, %v5932
      %v6445 = vsub.f32 0.0, %v5933
      %v6446 = vsub.f32 0.0, %v5934
      %v6447 = vsub.f32 0.0, %v5935
      %v6448 = vsub.f32 0.0, %v5936
      %v6449 = vsub.f32 0.0, %v5937
      %v6450 = vsub.f32 0.0, %v5938
      %v6451 = vsub.f32 0.0, %v5939
      %v6452 = vsub.f32 0.0, %v5940
      %v6453 = vsub.f32 0.0, %v5941
      %v6454 = vsub.f32 0.0, %v5942
      %v6455 = vsub.f32 0.0, %v5943
      %v6456 = vsub.f32 0.0, %v5944
      %v6457 = vsub.f32 0.0, %v5945
      %v6458 = vsub.f32 0.0, %v5946
      %v6459 = vsub.f32 0.0, %v5947
      %v6460 = vsub.f32 0.0, %v5948
      %v6461 = vsub.f32 0.0, %v5949
      %v6462 = vsub.f32 0.0, %v5950
      %v6463 = vsub.f32 0.0, %v5951
      %v6464 = vsub.f32 0.0, %v5952
      %v6465 = vsub.f32 0.0, %v5953
      %v6466 = vsub.f32 0.0, %v5954
      %v6467 = vsub.f32 0.0, %v5955
      %v6468 = vsub.f32 0.0, %v5956
      %v6469 = vsub.f32 0.0, %v5957
      %v6470 = vsub.f32 0.0, %v5958
      %v6471 = vsub.f32 0.0, %v5959
      %v6472 = vsub.f32 0.0, %v5960
      %v6473 = vsub.f32 0.0, %v5961
      %v6474 = vsub.f32 0.0, %v5962
      %v6475 = vsub.f32 0.0, %v5963
      %v6476 = vsub.f32 0.0, %v5964
      %v6477 = vsub.f32 0.0, %v5965
      %v6478 = vsub.f32 0.0, %v5966
      %v6479 = vsub.f32 0.0, %v5967
      %v6480 = vsub.f32 0.0, %v5968
      %v6481 = vmul.f32 %v5969, 1.442695
      %v6482 = vpow.pop %v6481
      %v6483 = vmul.f32 %v5970, 1.442695
      %v6484 = vpow.pop %v6483
      %v6485 = vmul.f32 %v5971, 1.442695
      %v6486 = vpow.pop %v6485
      %v6487 = vmul.f32 %v5972, 1.442695
      %v6488 = vpow.pop %v6487
      %v6489 = vmul.f32 %v5973, 1.442695
      %v6490 = vpow.pop %v6489
      %v6491 = vmul.f32 %v5974, 1.442695
      %v6492 = vpow.pop %v6491
      %v6493 = vmul.f32 %v5975, 1.442695
      %v6494 = vpow.pop %v6493
      %v6495 = vmul.f32 %v5976, 1.442695
      %v6496 = vpow.pop %v6495
      %v6497 = vmul.f32 %v5977, 1.442695
      %v6498 = vpow.pop %v6497
      %v6499 = vmul.f32 %v5978, 1.442695
      %v6500 = vpow.pop %v6499
      %v6501 = vmul.f32 %v5979, 1.442695
      %v6502 = vpow.pop %v6501
      %v6503 = vmul.f32 %v5980, 1.442695
      %v6504 = vpow.pop %v6503
      %v6505 = vmul.f32 %v5981, 1.442695
      %v6506 = vpow.pop %v6505
      %v6507 = vmul.f32 %v5982, 1.442695
      %v6508 = vpow.pop %v6507
      %v6509 = vmul.f32 %v5983, 1.442695
      %v6510 = vpow.pop %v6509
      %v6511 = vmul.f32 %v5984, 1.442695
      %v6512 = vpow.pop %v6511
      %v6513 = vmul.f32 %v5985, 1.442695
      %v6514 = vpow.pop %v6513
      %v6515 = vmul.f32 %v5986, 1.442695
      %v6516 = vpow.pop %v6515
      %v6517 = vmul.f32 %v5987, 1.442695
      %v6518 = vpow.pop %v6517
      %v6519 = vmul.f32 %v5988, 1.442695
      %v6520 = vpow.pop %v6519
      %v6521 = vmul.f32 %v5989, 1.442695
      %v6522 = vpow.pop %v6521
      %v6523 = vmul.f32 %v5990, 1.442695
      %v6524 = vpow.pop %v6523
      %v6525 = vmul.f32 %v5991, 1.442695
      %v6526 = vpow.pop %v6525
      %v6527 = vmul.f32 %v5992, 1.442695
      %v6528 = vpow.pop %v6527
      %v6529 = vmul.f32 %v5993, 1.442695
      %v6530 = vpow.pop %v6529
      %v6531 = vmul.f32 %v5994, 1.442695
      %v6532 = vpow.pop %v6531
      %v6533 = vmul.f32 %v5995, 1.442695
      %v6534 = vpow.pop %v6533
      %v6535 = vmul.f32 %v5996, 1.442695
      %v6536 = vpow.pop %v6535
      %v6537 = vmul.f32 %v5997, 1.442695
      %v6538 = vpow.pop %v6537
      %v6539 = vmul.f32 %v5998, 1.442695
      %v6540 = vpow.pop %v6539
      %v6541 = vmul.f32 %v5999, 1.442695
      %v6542 = vpow.pop %v6541
      %v6543 = vmul.f32 %v6000, 1.442695
      %v6544 = vpow.pop %v6543
      %v6545 = vmul.f32 %v6001, 1.442695
      %v6546 = vpow.pop %v6545
      %v6547 = vmul.f32 %v6002, 1.442695
      %v6548 = vpow.pop %v6547
      %v6549 = vmul.f32 %v6003, 1.442695
      %v6550 = vpow.pop %v6549
      %v6551 = vmul.f32 %v6004, 1.442695
      %v6552 = vpow.pop %v6551
      %v6553 = vmul.f32 %v6005, 1.442695
      %v6554 = vpow.pop %v6553
      %v6555 = vmul.f32 %v6006, 1.442695
      %v6556 = vpow.pop %v6555
      %v6557 = vmul.f32 %v6007, 1.442695
      %v6558 = vpow.pop %v6557
      %v6559 = vmul.f32 %v6008, 1.442695
      %v6560 = vpow.pop %v6559
      %v6561 = vmul.f32 %v6009, 1.442695
      %v6562 = vpow.pop %v6561
      %v6563 = vmul.f32 %v6010, 1.442695
      %v6564 = vpow.pop %v6563
      %v6565 = vmul.f32 %v6011, 1.442695
      %v6566 = vpow.pop %v6565
      %v6567 = vmul.f32 %v6012, 1.442695
      %v6568 = vpow.pop %v6567
      %v6569 = vmul.f32 %v6013, 1.442695
      %v6570 = vpow.pop %v6569
      %v6571 = vmul.f32 %v6014, 1.442695
      %v6572 = vpow.pop %v6571
      %v6573 = vmul.f32 %v6015, 1.442695
      %v6574 = vpow.pop %v6573
      %v6575 = vmul.f32 %v6016, 1.442695
      %v6576 = vpow.pop %v6575
      %v6577 = vmul.f32 %v6017, 1.442695
      %v6578 = vpow.pop %v6577
      %v6579 = vmul.f32 %v6018, 1.442695
      %v6580 = vpow.pop %v6579
      %v6581 = vmul.f32 %v6019, 1.442695
      %v6582 = vpow.pop %v6581
      %v6583 = vmul.f32 %v6020, 1.442695
      %v6584 = vpow.pop %v6583
      %v6585 = vmul.f32 %v6021, 1.442695
      %v6586 = vpow.pop %v6585
      %v6587 = vmul.f32 %v6022, 1.442695
      %v6588 = vpow.pop %v6587
      %v6589 = vmul.f32 %v6023, 1.442695
      %v6590 = vpow.pop %v6589
      %v6591 = vmul.f32 %v6024, 1.442695
      %v6592 = vpow.pop %v6591
      %v6593 = vmul.f32 %v6025, 1.442695
      %v6594 = vpow.pop %v6593
      %v6595 = vmul.f32 %v6026, 1.442695
      %v6596 = vpow.pop %v6595
      %v6597 = vmul.f32 %v6027, 1.442695
      %v6598 = vpow.pop %v6597
      %v6599 = vmul.f32 %v6028, 1.442695
      %v6600 = vpow.pop %v6599
      %v6601 = vmul.f32 %v6029, 1.442695
      %v6602 = vpow.pop %v6601
      %v6603 = vmul.f32 %v6030, 1.442695
      %v6604 = vpow.pop %v6603
      %v6605 = vmul.f32 %v6031, 1.442695
      %v6606 = vpow.pop %v6605
      %v6607 = vmul.f32 %v6032, 1.442695
      %v6608 = vpow.pop %v6607
      %v6609 = vmul.f32 %v6033, 1.442695
      %v6610 = vpow.pop %v6609
      %v6611 = vmul.f32 %v6034, 1.442695
      %v6612 = vpow.pop %v6611
      %v6613 = vmul.f32 %v6035, 1.442695
      %v6614 = vpow.pop %v6613
      %v6615 = vmul.f32 %v6036, 1.442695
      %v6616 = vpow.pop %v6615
      %v6617 = vmul.f32 %v6037, 1.442695
      %v6618 = vpow.pop %v6617
      %v6619 = vmul.f32 %v6038, 1.442695
      %v6620 = vpow.pop %v6619
      %v6621 = vmul.f32 %v6039, 1.442695
      %v6622 = vpow.pop %v6621
      %v6623 = vmul.f32 %v6040, 1.442695
      %v6624 = vpow.pop %v6623
      %v6625 = vmul.f32 %v6041, 1.442695
      %v6626 = vpow.pop %v6625
      %v6627 = vmul.f32 %v6042, 1.442695
      %v6628 = vpow.pop %v6627
      %v6629 = vmul.f32 %v6043, 1.442695
      %v6630 = vpow.pop %v6629
      %v6631 = vmul.f32 %v6044, 1.442695
      %v6632 = vpow.pop %v6631
      %v6633 = vmul.f32 %v6045, 1.442695
      %v6634 = vpow.pop %v6633
      %v6635 = vmul.f32 %v6046, 1.442695
      %v6636 = vpow.pop %v6635
      %v6637 = vmul.f32 %v6047, 1.442695
      %v6638 = vpow.pop %v6637
      %v6639 = vmul.f32 %v6048, 1.442695
      %v6640 = vpow.pop %v6639
      %v6641 = vmul.f32 %v6049, 1.442695
      %v6642 = vpow.pop %v6641
      %v6643 = vmul.f32 %v6050, 1.442695
      %v6644 = vpow.pop %v6643
      %v6645 = vmul.f32 %v6051, 1.442695
      %v6646 = vpow.pop %v6645
      %v6647 = vmul.f32 %v6052, 1.442695
      %v6648 = vpow.pop %v6647
      %v6649 = vmul.f32 %v6053, 1.442695
      %v6650 = vpow.pop %v6649
      %v6651 = vmul.f32 %v6054, 1.442695
      %v6652 = vpow.pop %v6651
      %v6653 = vmul.f32 %v6055, 1.442695
      %v6654 = vpow.pop %v6653
      %v6655 = vmul.f32 %v6056, 1.442695
      %v6656 = vpow.pop %v6655
      %v6657 = vmul.f32 %v6057, 1.442695
      %v6658 = vpow.pop %v6657
      %v6659 = vmul.f32 %v6058, 1.442695
      %v6660 = vpow.pop %v6659
      %v6661 = vmul.f32 %v6059, 1.442695
      %v6662 = vpow.pop %v6661
      %v6663 = vmul.f32 %v6060, 1.442695
      %v6664 = vpow.pop %v6663
      %v6665 = vmul.f32 %v6061, 1.442695
      %v6666 = vpow.pop %v6665
      %v6667 = vmul.f32 %v6062, 1.442695
      %v6668 = vpow.pop %v6667
      %v6669 = vmul.f32 %v6063, 1.442695
      %v6670 = vpow.pop %v6669
      %v6671 = vmul.f32 %v6064, 1.442695
      %v6672 = vpow.pop %v6671
      %v6673 = vmul.f32 %v6065, 1.442695
      %v6674 = vpow.pop %v6673
      %v6675 = vmul.f32 %v6066, 1.442695
      %v6676 = vpow.pop %v6675
      %v6677 = vmul.f32 %v6067, 1.442695
      %v6678 = vpow.pop %v6677
      %v6679 = vmul.f32 %v6068, 1.442695
      %v6680 = vpow.pop %v6679
      %v6681 = vmul.f32 %v6069, 1.442695
      %v6682 = vpow.pop %v6681
      %v6683 = vmul.f32 %v6070, 1.442695
      %v6684 = vpow.pop %v6683
      %v6685 = vmul.f32 %v6071, 1.442695
      %v6686 = vpow.pop %v6685
      %v6687 = vmul.f32 %v6072, 1.442695
      %v6688 = vpow.pop %v6687
      %v6689 = vmul.f32 %v6073, 1.442695
      %v6690 = vpow.pop %v6689
      %v6691 = vmul.f32 %v6074, 1.442695
      %v6692 = vpow.pop %v6691
      %v6693 = vmul.f32 %v6075, 1.442695
      %v6694 = vpow.pop %v6693
      %v6695 = vmul.f32 %v6076, 1.442695
      %v6696 = vpow.pop %v6695
      %v6697 = vmul.f32 %v6077, 1.442695
      %v6698 = vpow.pop %v6697
      %v6699 = vmul.f32 %v6078, 1.442695
      %v6700 = vpow.pop %v6699
      %v6701 = vmul.f32 %v6079, 1.442695
      %v6702 = vpow.pop %v6701
      %v6703 = vmul.f32 %v6080, 1.442695
      %v6704 = vpow.pop %v6703
      %v6705 = vmul.f32 %v6081, 1.442695
      %v6706 = vpow.pop %v6705
      %v6707 = vmul.f32 %v6082, 1.442695
      %v6708 = vpow.pop %v6707
      %v6709 = vmul.f32 %v6083, 1.442695
      %v6710 = vpow.pop %v6709
      %v6711 = vmul.f32 %v6084, 1.442695
      %v6712 = vpow.pop %v6711
      %v6713 = vmul.f32 %v6085, 1.442695
      %v6714 = vpow.pop %v6713
      %v6715 = vmul.f32 %v6086, 1.442695
      %v6716 = vpow.pop %v6715
      %v6717 = vmul.f32 %v6087, 1.442695
      %v6718 = vpow.pop %v6717
      %v6719 = vmul.f32 %v6088, 1.442695
      %v6720 = vpow.pop %v6719
      %v6721 = vmul.f32 %v6089, 1.442695
      %v6722 = vpow.pop %v6721
      %v6723 = vmul.f32 %v6090, 1.442695
      %v6724 = vpow.pop %v6723
      %v6725 = vmul.f32 %v6091, 1.442695
      %v6726 = vpow.pop %v6725
      %v6727 = vmul.f32 %v6092, 1.442695
      %v6728 = vpow.pop %v6727
      %v6729 = vmul.f32 %v6093, 1.442695
      %v6730 = vpow.pop %v6729
      %v6731 = vmul.f32 %v6094, 1.442695
      %v6732 = vpow.pop %v6731
      %v6733 = vmul.f32 %v6095, 1.442695
      %v6734 = vpow.pop %v6733
      %v6735 = vmul.f32 %v6096, 1.442695
      %v6736 = vpow.pop %v6735
      %v6737 = vmul.f32 %v6097, 1.442695
      %v6738 = vpow.pop %v6737
      %v6739 = vmul.f32 %v6098, 1.442695
      %v6740 = vpow.pop %v6739
      %v6741 = vmul.f32 %v6099, 1.442695
      %v6742 = vpow.pop %v6741
      %v6743 = vmul.f32 %v6100, 1.442695
      %v6744 = vpow.pop %v6743
      %v6745 = vmul.f32 %v6101, 1.442695
      %v6746 = vpow.pop %v6745
      %v6747 = vmul.f32 %v6102, 1.442695
      %v6748 = vpow.pop %v6747
      %v6749 = vmul.f32 %v6103, 1.442695
      %v6750 = vpow.pop %v6749
      %v6751 = vmul.f32 %v6104, 1.442695
      %v6752 = vpow.pop %v6751
      %v6753 = vmul.f32 %v6105, 1.442695
      %v6754 = vpow.pop %v6753
      %v6755 = vmul.f32 %v6106, 1.442695
      %v6756 = vpow.pop %v6755
      %v6757 = vmul.f32 %v6107, 1.442695
      %v6758 = vpow.pop %v6757
      %v6759 = vmul.f32 %v6108, 1.442695
      %v6760 = vpow.pop %v6759
      %v6761 = vmul.f32 %v6109, 1.442695
      %v6762 = vpow.pop %v6761
      %v6763 = vmul.f32 %v6110, 1.442695
      %v6764 = vpow.pop %v6763
      %v6765 = vmul.f32 %v6111, 1.442695
      %v6766 = vpow.pop %v6765
      %v6767 = vmul.f32 %v6112, 1.442695
      %v6768 = vpow.pop %v6767
      %v6769 = vmul.f32 %v6113, 1.442695
      %v6770 = vpow.pop %v6769
      %v6771 = vmul.f32 %v6114, 1.442695
      %v6772 = vpow.pop %v6771
      %v6773 = vmul.f32 %v6115, 1.442695
      %v6774 = vpow.pop %v6773
      %v6775 = vmul.f32 %v6116, 1.442695
      %v6776 = vpow.pop %v6775
      %v6777 = vmul.f32 %v6117, 1.442695
      %v6778 = vpow.pop %v6777
      %v6779 = vmul.f32 %v6118, 1.442695
      %v6780 = vpow.pop %v6779
      %v6781 = vmul.f32 %v6119, 1.442695
      %v6782 = vpow.pop %v6781
      %v6783 = vmul.f32 %v6120, 1.442695
      %v6784 = vpow.pop %v6783
      %v6785 = vmul.f32 %v6121, 1.442695
      %v6786 = vpow.pop %v6785
      %v6787 = vmul.f32 %v6122, 1.442695
      %v6788 = vpow.pop %v6787
      %v6789 = vmul.f32 %v6123, 1.442695
      %v6790 = vpow.pop %v6789
      %v6791 = vmul.f32 %v6124, 1.442695
      %v6792 = vpow.pop %v6791
      %v6793 = vmul.f32 %v6125, 1.442695
      %v6794 = vpow.pop %v6793
      %v6795 = vmul.f32 %v6126, 1.442695
      %v6796 = vpow.pop %v6795
      %v6797 = vmul.f32 %v6127, 1.442695
      %v6798 = vpow.pop %v6797
      %v6799 = vmul.f32 %v6128, 1.442695
      %v6800 = vpow.pop %v6799
      %v6801 = vmul.f32 %v6129, 1.442695
      %v6802 = vpow.pop %v6801
      %v6803 = vmul.f32 %v6130, 1.442695
      %v6804 = vpow.pop %v6803
      %v6805 = vmul.f32 %v6131, 1.442695
      %v6806 = vpow.pop %v6805
      %v6807 = vmul.f32 %v6132, 1.442695
      %v6808 = vpow.pop %v6807
      %v6809 = vmul.f32 %v6133, 1.442695
      %v6810 = vpow.pop %v6809
      %v6811 = vmul.f32 %v6134, 1.442695
      %v6812 = vpow.pop %v6811
      %v6813 = vmul.f32 %v6135, 1.442695
      %v6814 = vpow.pop %v6813
      %v6815 = vmul.f32 %v6136, 1.442695
      %v6816 = vpow.pop %v6815
      %v6817 = vmul.f32 %v6137, 1.442695
      %v6818 = vpow.pop %v6817
      %v6819 = vmul.f32 %v6138, 1.442695
      %v6820 = vpow.pop %v6819
      %v6821 = vmul.f32 %v6139, 1.442695
      %v6822 = vpow.pop %v6821
      %v6823 = vmul.f32 %v6140, 1.442695
      %v6824 = vpow.pop %v6823
      %v6825 = vmul.f32 %v6141, 1.442695
      %v6826 = vpow.pop %v6825
      %v6827 = vmul.f32 %v6142, 1.442695
      %v6828 = vpow.pop %v6827
      %v6829 = vmul.f32 %v6143, 1.442695
      %v6830 = vpow.pop %v6829
      %v6831 = vmul.f32 %v6144, 1.442695
      %v6832 = vpow.pop %v6831
      %v6833 = vmul.f32 %v6145, 1.442695
      %v6834 = vpow.pop %v6833
      %v6835 = vmul.f32 %v6146, 1.442695
      %v6836 = vpow.pop %v6835
      %v6837 = vmul.f32 %v6147, 1.442695
      %v6838 = vpow.pop %v6837
      %v6839 = vmul.f32 %v6148, 1.442695
      %v6840 = vpow.pop %v6839
      %v6841 = vmul.f32 %v6149, 1.442695
      %v6842 = vpow.pop %v6841
      %v6843 = vmul.f32 %v6150, 1.442695
      %v6844 = vpow.pop %v6843
      %v6845 = vmul.f32 %v6151, 1.442695
      %v6846 = vpow.pop %v6845
      %v6847 = vmul.f32 %v6152, 1.442695
      %v6848 = vpow.pop %v6847
      %v6849 = vmul.f32 %v6153, 1.442695
      %v6850 = vpow.pop %v6849
      %v6851 = vmul.f32 %v6154, 1.442695
      %v6852 = vpow.pop %v6851
      %v6853 = vmul.f32 %v6155, 1.442695
      %v6854 = vpow.pop %v6853
      %v6855 = vmul.f32 %v6156, 1.442695
      %v6856 = vpow.pop %v6855
      %v6857 = vmul.f32 %v6157, 1.442695
      %v6858 = vpow.pop %v6857
      %v6859 = vmul.f32 %v6158, 1.442695
      %v6860 = vpow.pop %v6859
      %v6861 = vmul.f32 %v6159, 1.442695
      %v6862 = vpow.pop %v6861
      %v6863 = vmul.f32 %v6160, 1.442695
      %v6864 = vpow.pop %v6863
      %v6865 = vmul.f32 %v6161, 1.442695
      %v6866 = vpow.pop %v6865
      %v6867 = vmul.f32 %v6162, 1.442695
      %v6868 = vpow.pop %v6867
      %v6869 = vmul.f32 %v6163, 1.442695
      %v6870 = vpow.pop %v6869
      %v6871 = vmul.f32 %v6164, 1.442695
      %v6872 = vpow.pop %v6871
      %v6873 = vmul.f32 %v6165, 1.442695
      %v6874 = vpow.pop %v6873
      %v6875 = vmul.f32 %v6166, 1.442695
      %v6876 = vpow.pop %v6875
      %v6877 = vmul.f32 %v6167, 1.442695
      %v6878 = vpow.pop %v6877
      %v6879 = vmul.f32 %v6168, 1.442695
      %v6880 = vpow.pop %v6879
      %v6881 = vmul.f32 %v6169, 1.442695
      %v6882 = vpow.pop %v6881
      %v6883 = vmul.f32 %v6170, 1.442695
      %v6884 = vpow.pop %v6883
      %v6885 = vmul.f32 %v6171, 1.442695
      %v6886 = vpow.pop %v6885
      %v6887 = vmul.f32 %v6172, 1.442695
      %v6888 = vpow.pop %v6887
      %v6889 = vmul.f32 %v6173, 1.442695
      %v6890 = vpow.pop %v6889
      %v6891 = vmul.f32 %v6174, 1.442695
      %v6892 = vpow.pop %v6891
      %v6893 = vmul.f32 %v6175, 1.442695
      %v6894 = vpow.pop %v6893
      %v6895 = vmul.f32 %v6176, 1.442695
      %v6896 = vpow.pop %v6895
      %v6897 = vmul.f32 %v6177, 1.442695
      %v6898 = vpow.pop %v6897
      %v6899 = vmul.f32 %v6178, 1.442695
      %v6900 = vpow.pop %v6899
      %v6901 = vmul.f32 %v6179, 1.442695
      %v6902 = vpow.pop %v6901
      %v6903 = vmul.f32 %v6180, 1.442695
      %v6904 = vpow.pop %v6903
      %v6905 = vmul.f32 %v6181, 1.442695
      %v6906 = vpow.pop %v6905
      %v6907 = vmul.f32 %v6182, 1.442695
      %v6908 = vpow.pop %v6907
      %v6909 = vmul.f32 %v6183, 1.442695
      %v6910 = vpow.pop %v6909
      %v6911 = vmul.f32 %v6184, 1.442695
      %v6912 = vpow.pop %v6911
      %v6913 = vmul.f32 %v6185, 1.442695
      %v6914 = vpow.pop %v6913
      %v6915 = vmul.f32 %v6186, 1.442695
      %v6916 = vpow.pop %v6915
      %v6917 = vmul.f32 %v6187, 1.442695
      %v6918 = vpow.pop %v6917
      %v6919 = vmul.f32 %v6188, 1.442695
      %v6920 = vpow.pop %v6919
      %v6921 = vmul.f32 %v6189, 1.442695
      %v6922 = vpow.pop %v6921
      %v6923 = vmul.f32 %v6190, 1.442695
      %v6924 = vpow.pop %v6923
      %v6925 = vmul.f32 %v6191, 1.442695
      %v6926 = vpow.pop %v6925
      %v6927 = vmul.f32 %v6192, 1.442695
      %v6928 = vpow.pop %v6927
      %v6929 = vmul.f32 %v6193, 1.442695
      %v6930 = vpow.pop %v6929
      %v6931 = vmul.f32 %v6194, 1.442695
      %v6932 = vpow.pop %v6931
      %v6933 = vmul.f32 %v6195, 1.442695
      %v6934 = vpow.pop %v6933
      %v6935 = vmul.f32 %v6196, 1.442695
      %v6936 = vpow.pop %v6935
      %v6937 = vmul.f32 %v6197, 1.442695
      %v6938 = vpow.pop %v6937
      %v6939 = vmul.f32 %v6198, 1.442695
      %v6940 = vpow.pop %v6939
      %v6941 = vmul.f32 %v6199, 1.442695
      %v6942 = vpow.pop %v6941
      %v6943 = vmul.f32 %v6200, 1.442695
      %v6944 = vpow.pop %v6943
      %v6945 = vmul.f32 %v6201, 1.442695
      %v6946 = vpow.pop %v6945
      %v6947 = vmul.f32 %v6202, 1.442695
      %v6948 = vpow.pop %v6947
      %v6949 = vmul.f32 %v6203, 1.442695
      %v6950 = vpow.pop %v6949
      %v6951 = vmul.f32 %v6204, 1.442695
      %v6952 = vpow.pop %v6951
      %v6953 = vmul.f32 %v6205, 1.442695
      %v6954 = vpow.pop %v6953
      %v6955 = vmul.f32 %v6206, 1.442695
      %v6956 = vpow.pop %v6955
      %v6957 = vmul.f32 %v6207, 1.442695
      %v6958 = vpow.pop %v6957
      %v6959 = vmul.f32 %v6208, 1.442695
      %v6960 = vpow.pop %v6959
      %v6961 = vmul.f32 %v6209, 1.442695
      %v6962 = vpow.pop %v6961
      %v6963 = vmul.f32 %v6210, 1.442695
      %v6964 = vpow.pop %v6963
      %v6965 = vmul.f32 %v6211, 1.442695
      %v6966 = vpow.pop %v6965
      %v6967 = vmul.f32 %v6212, 1.442695
      %v6968 = vpow.pop %v6967
      %v6969 = vmul.f32 %v6213, 1.442695
      %v6970 = vpow.pop %v6969
      %v6971 = vmul.f32 %v6214, 1.442695
      %v6972 = vpow.pop %v6971
      %v6973 = vmul.f32 %v6215, 1.442695
      %v6974 = vpow.pop %v6973
      %v6975 = vmul.f32 %v6216, 1.442695
      %v6976 = vpow.pop %v6975
      %v6977 = vmul.f32 %v6217, 1.442695
      %v6978 = vpow.pop %v6977
      %v6979 = vmul.f32 %v6218, 1.442695
      %v6980 = vpow.pop %v6979
      %v6981 = vmul.f32 %v6219, 1.442695
      %v6982 = vpow.pop %v6981
      %v6983 = vmul.f32 %v6220, 1.442695
      %v6984 = vpow.pop %v6983
      %v6985 = vmul.f32 %v6221, 1.442695
      %v6986 = vpow.pop %v6985
      %v6987 = vmul.f32 %v6222, 1.442695
      %v6988 = vpow.pop %v6987
      %v6989 = vmul.f32 %v6223, 1.442695
      %v6990 = vpow.pop %v6989
      %v6991 = vmul.f32 %v6224, 1.442695
      %v6992 = vpow.pop %v6991
      %v6993 = vmul.f32 %v6225, 1.442695
      %v6994 = vpow.pop %v6993
      %v6995 = vmul.f32 %v6226, 1.442695
      %v6996 = vpow.pop %v6995
      %v6997 = vmul.f32 %v6227, 1.442695
      %v6998 = vpow.pop %v6997
      %v6999 = vmul.f32 %v6228, 1.442695
      %v7000 = vpow.pop %v6999
      %v7001 = vmul.f32 %v6229, 1.442695
      %v7002 = vpow.pop %v7001
      %v7003 = vmul.f32 %v6230, 1.442695
      %v7004 = vpow.pop %v7003
      %v7005 = vmul.f32 %v6231, 1.442695
      %v7006 = vpow.pop %v7005
      %v7007 = vmul.f32 %v6232, 1.442695
      %v7008 = vpow.pop %v7007
      %v7009 = vmul.f32 %v6233, 1.442695
      %v7010 = vpow.pop %v7009
      %v7011 = vmul.f32 %v6234, 1.442695
      %v7012 = vpow.pop %v7011
      %v7013 = vmul.f32 %v6235, 1.442695
      %v7014 = vpow.pop %v7013
      %v7015 = vmul.f32 %v6236, 1.442695
      %v7016 = vpow.pop %v7015
      %v7017 = vmul.f32 %v6237, 1.442695
      %v7018 = vpow.pop %v7017
      %v7019 = vmul.f32 %v6238, 1.442695
      %v7020 = vpow.pop %v7019
      %v7021 = vmul.f32 %v6239, 1.442695
      %v7022 = vpow.pop %v7021
      %v7023 = vmul.f32 %v6240, 1.442695
      %v7024 = vpow.pop %v7023
      %v7025 = vmul.f32 %v6241, 1.442695
      %v7026 = vpow.pop %v7025
      %v7027 = vmul.f32 %v6242, 1.442695
      %v7028 = vpow.pop %v7027
      %v7029 = vmul.f32 %v6243, 1.442695
      %v7030 = vpow.pop %v7029
      %v7031 = vmul.f32 %v6244, 1.442695
      %v7032 = vpow.pop %v7031
      %v7033 = vmul.f32 %v6245, 1.442695
      %v7034 = vpow.pop %v7033
      %v7035 = vmul.f32 %v6246, 1.442695
      %v7036 = vpow.pop %v7035
      %v7037 = vmul.f32 %v6247, 1.442695
      %v7038 = vpow.pop %v7037
      %v7039 = vmul.f32 %v6248, 1.442695
      %v7040 = vpow.pop %v7039
      %v7041 = vmul.f32 %v6249, 1.442695
      %v7042 = vpow.pop %v7041
      %v7043 = vmul.f32 %v6250, 1.442695
      %v7044 = vpow.pop %v7043
      %v7045 = vmul.f32 %v6251, 1.442695
      %v7046 = vpow.pop %v7045
      %v7047 = vmul.f32 %v6252, 1.442695
      %v7048 = vpow.pop %v7047
      %v7049 = vmul.f32 %v6253, 1.442695
      %v7050 = vpow.pop %v7049
      %v7051 = vmul.f32 %v6254, 1.442695
      %v7052 = vpow.pop %v7051
      %v7053 = vmul.f32 %v6255, 1.442695
      %v7054 = vpow.pop %v7053
      %v7055 = vmul.f32 %v6256, 1.442695
      %v7056 = vpow.pop %v7055
      %v7057 = vmul.f32 %v6257, 1.442695
      %v7058 = vpow.pop %v7057
      %v7059 = vmul.f32 %v6258, 1.442695
      %v7060 = vpow.pop %v7059
      %v7061 = vmul.f32 %v6259, 1.442695
      %v7062 = vpow.pop %v7061
      %v7063 = vmul.f32 %v6260, 1.442695
      %v7064 = vpow.pop %v7063
      %v7065 = vmul.f32 %v6261, 1.442695
      %v7066 = vpow.pop %v7065
      %v7067 = vmul.f32 %v6262, 1.442695
      %v7068 = vpow.pop %v7067
      %v7069 = vmul.f32 %v6263, 1.442695
      %v7070 = vpow.pop %v7069
      %v7071 = vmul.f32 %v6264, 1.442695
      %v7072 = vpow.pop %v7071
      %v7073 = vmul.f32 %v6265, 1.442695
      %v7074 = vpow.pop %v7073
      %v7075 = vmul.f32 %v6266, 1.442695
      %v7076 = vpow.pop %v7075
      %v7077 = vmul.f32 %v6267, 1.442695
      %v7078 = vpow.pop %v7077
      %v7079 = vmul.f32 %v6268, 1.442695
      %v7080 = vpow.pop %v7079
      %v7081 = vmul.f32 %v6269, 1.442695
      %v7082 = vpow.pop %v7081
      %v7083 = vmul.f32 %v6270, 1.442695
      %v7084 = vpow.pop %v7083
      %v7085 = vmul.f32 %v6271, 1.442695
      %v7086 = vpow.pop %v7085
      %v7087 = vmul.f32 %v6272, 1.442695
      %v7088 = vpow.pop %v7087
      %v7089 = vmul.f32 %v6273, 1.442695
      %v7090 = vpow.pop %v7089
      %v7091 = vmul.f32 %v6274, 1.442695
      %v7092 = vpow.pop %v7091
      %v7093 = vmul.f32 %v6275, 1.442695
      %v7094 = vpow.pop %v7093
      %v7095 = vmul.f32 %v6276, 1.442695
      %v7096 = vpow.pop %v7095
      %v7097 = vmul.f32 %v6277, 1.442695
      %v7098 = vpow.pop %v7097
      %v7099 = vmul.f32 %v6278, 1.442695
      %v7100 = vpow.pop %v7099
      %v7101 = vmul.f32 %v6279, 1.442695
      %v7102 = vpow.pop %v7101
      %v7103 = vmul.f32 %v6280, 1.442695
      %v7104 = vpow.pop %v7103
      %v7105 = vmul.f32 %v6281, 1.442695
      %v7106 = vpow.pop %v7105
      %v7107 = vmul.f32 %v6282, 1.442695
      %v7108 = vpow.pop %v7107
      %v7109 = vmul.f32 %v6283, 1.442695
      %v7110 = vpow.pop %v7109
      %v7111 = vmul.f32 %v6284, 1.442695
      %v7112 = vpow.pop %v7111
      %v7113 = vmul.f32 %v6285, 1.442695
      %v7114 = vpow.pop %v7113
      %v7115 = vmul.f32 %v6286, 1.442695
      %v7116 = vpow.pop %v7115
      %v7117 = vmul.f32 %v6287, 1.442695
      %v7118 = vpow.pop %v7117
      %v7119 = vmul.f32 %v6288, 1.442695
      %v7120 = vpow.pop %v7119
      %v7121 = vmul.f32 %v6289, 1.442695
      %v7122 = vpow.pop %v7121
      %v7123 = vmul.f32 %v6290, 1.442695
      %v7124 = vpow.pop %v7123
      %v7125 = vmul.f32 %v6291, 1.442695
      %v7126 = vpow.pop %v7125
      %v7127 = vmul.f32 %v6292, 1.442695
      %v7128 = vpow.pop %v7127
      %v7129 = vmul.f32 %v6293, 1.442695
      %v7130 = vpow.pop %v7129
      %v7131 = vmul.f32 %v6294, 1.442695
      %v7132 = vpow.pop %v7131
      %v7133 = vmul.f32 %v6295, 1.442695
      %v7134 = vpow.pop %v7133
      %v7135 = vmul.f32 %v6296, 1.442695
      %v7136 = vpow.pop %v7135
      %v7137 = vmul.f32 %v6297, 1.442695
      %v7138 = vpow.pop %v7137
      %v7139 = vmul.f32 %v6298, 1.442695
      %v7140 = vpow.pop %v7139
      %v7141 = vmul.f32 %v6299, 1.442695
      %v7142 = vpow.pop %v7141
      %v7143 = vmul.f32 %v6300, 1.442695
      %v7144 = vpow.pop %v7143
      %v7145 = vmul.f32 %v6301, 1.442695
      %v7146 = vpow.pop %v7145
      %v7147 = vmul.f32 %v6302, 1.442695
      %v7148 = vpow.pop %v7147
      %v7149 = vmul.f32 %v6303, 1.442695
      %v7150 = vpow.pop %v7149
      %v7151 = vmul.f32 %v6304, 1.442695
      %v7152 = vpow.pop %v7151
      %v7153 = vmul.f32 %v6305, 1.442695
      %v7154 = vpow.pop %v7153
      %v7155 = vmul.f32 %v6306, 1.442695
      %v7156 = vpow.pop %v7155
      %v7157 = vmul.f32 %v6307, 1.442695
      %v7158 = vpow.pop %v7157
      %v7159 = vmul.f32 %v6308, 1.442695
      %v7160 = vpow.pop %v7159
      %v7161 = vmul.f32 %v6309, 1.442695
      %v7162 = vpow.pop %v7161
      %v7163 = vmul.f32 %v6310, 1.442695
      %v7164 = vpow.pop %v7163
      %v7165 = vmul.f32 %v6311, 1.442695
      %v7166 = vpow.pop %v7165
      %v7167 = vmul.f32 %v6312, 1.442695
      %v7168 = vpow.pop %v7167
      %v7169 = vmul.f32 %v6313, 1.442695
      %v7170 = vpow.pop %v7169
      %v7171 = vmul.f32 %v6314, 1.442695
      %v7172 = vpow.pop %v7171
      %v7173 = vmul.f32 %v6315, 1.442695
      %v7174 = vpow.pop %v7173
      %v7175 = vmul.f32 %v6316, 1.442695
      %v7176 = vpow.pop %v7175
      %v7177 = vmul.f32 %v6317, 1.442695
      %v7178 = vpow.pop %v7177
      %v7179 = vmul.f32 %v6318, 1.442695
      %v7180 = vpow.pop %v7179
      %v7181 = vmul.f32 %v6319, 1.442695
      %v7182 = vpow.pop %v7181
      %v7183 = vmul.f32 %v6320, 1.442695
      %v7184 = vpow.pop %v7183
      %v7185 = vmul.f32 %v6321, 1.442695
      %v7186 = vpow.pop %v7185
      %v7187 = vmul.f32 %v6322, 1.442695
      %v7188 = vpow.pop %v7187
      %v7189 = vmul.f32 %v6323, 1.442695
      %v7190 = vpow.pop %v7189
      %v7191 = vmul.f32 %v6324, 1.442695
      %v7192 = vpow.pop %v7191
      %v7193 = vmul.f32 %v6325, 1.442695
      %v7194 = vpow.pop %v7193
      %v7195 = vmul.f32 %v6326, 1.442695
      %v7196 = vpow.pop %v7195
      %v7197 = vmul.f32 %v6327, 1.442695
      %v7198 = vpow.pop %v7197
      %v7199 = vmul.f32 %v6328, 1.442695
      %v7200 = vpow.pop %v7199
      %v7201 = vmul.f32 %v6329, 1.442695
      %v7202 = vpow.pop %v7201
      %v7203 = vmul.f32 %v6330, 1.442695
      %v7204 = vpow.pop %v7203
      %v7205 = vmul.f32 %v6331, 1.442695
      %v7206 = vpow.pop %v7205
      %v7207 = vmul.f32 %v6332, 1.442695
      %v7208 = vpow.pop %v7207
      %v7209 = vmul.f32 %v6333, 1.442695
      %v7210 = vpow.pop %v7209
      %v7211 = vmul.f32 %v6334, 1.442695
      %v7212 = vpow.pop %v7211
      %v7213 = vmul.f32 %v6335, 1.442695
      %v7214 = vpow.pop %v7213
      %v7215 = vmul.f32 %v6336, 1.442695
      %v7216 = vpow.pop %v7215
      %v7217 = vmul.f32 %v6337, 1.442695
      %v7218 = vpow.pop %v7217
      %v7219 = vmul.f32 %v6338, 1.442695
      %v7220 = vpow.pop %v7219
      %v7221 = vmul.f32 %v6339, 1.442695
      %v7222 = vpow.pop %v7221
      %v7223 = vmul.f32 %v6340, 1.442695
      %v7224 = vpow.pop %v7223
      %v7225 = vmul.f32 %v6341, 1.442695
      %v7226 = vpow.pop %v7225
      %v7227 = vmul.f32 %v6342, 1.442695
      %v7228 = vpow.pop %v7227
      %v7229 = vmul.f32 %v6343, 1.442695
      %v7230 = vpow.pop %v7229
      %v7231 = vmul.f32 %v6344, 1.442695
      %v7232 = vpow.pop %v7231
      %v7233 = vmul.f32 %v6345, 1.442695
      %v7234 = vpow.pop %v7233
      %v7235 = vmul.f32 %v6346, 1.442695
      %v7236 = vpow.pop %v7235
      %v7237 = vmul.f32 %v6347, 1.442695
      %v7238 = vpow.pop %v7237
      %v7239 = vmul.f32 %v6348, 1.442695
      %v7240 = vpow.pop %v7239
      %v7241 = vmul.f32 %v6349, 1.442695
      %v7242 = vpow.pop %v7241
      %v7243 = vmul.f32 %v6350, 1.442695
      %v7244 = vpow.pop %v7243
      %v7245 = vmul.f32 %v6351, 1.442695
      %v7246 = vpow.pop %v7245
      %v7247 = vmul.f32 %v6352, 1.442695
      %v7248 = vpow.pop %v7247
      %v7249 = vmul.f32 %v6353, 1.442695
      %v7250 = vpow.pop %v7249
      %v7251 = vmul.f32 %v6354, 1.442695
      %v7252 = vpow.pop %v7251
      %v7253 = vmul.f32 %v6355, 1.442695
      %v7254 = vpow.pop %v7253
      %v7255 = vmul.f32 %v6356, 1.442695
      %v7256 = vpow.pop %v7255
      %v7257 = vmul.f32 %v6357, 1.442695
      %v7258 = vpow.pop %v7257
      %v7259 = vmul.f32 %v6358, 1.442695
      %v7260 = vpow.pop %v7259
      %v7261 = vmul.f32 %v6359, 1.442695
      %v7262 = vpow.pop %v7261
      %v7263 = vmul.f32 %v6360, 1.442695
      %v7264 = vpow.pop %v7263
      %v7265 = vmul.f32 %v6361, 1.442695
      %v7266 = vpow.pop %v7265
      %v7267 = vmul.f32 %v6362, 1.442695
      %v7268 = vpow.pop %v7267
      %v7269 = vmul.f32 %v6363, 1.442695
      %v7270 = vpow.pop %v7269
      %v7271 = vmul.f32 %v6364, 1.442695
      %v7272 = vpow.pop %v7271
      %v7273 = vmul.f32 %v6365, 1.442695
      %v7274 = vpow.pop %v7273
      %v7275 = vmul.f32 %v6366, 1.442695
      %v7276 = vpow.pop %v7275
      %v7277 = vmul.f32 %v6367, 1.442695
      %v7278 = vpow.pop %v7277
      %v7279 = vmul.f32 %v6368, 1.442695
      %v7280 = vpow.pop %v7279
      %v7281 = vmul.f32 %v6369, 1.442695
      %v7282 = vpow.pop %v7281
      %v7283 = vmul.f32 %v6370, 1.442695
      %v7284 = vpow.pop %v7283
      %v7285 = vmul.f32 %v6371, 1.442695
      %v7286 = vpow.pop %v7285
      %v7287 = vmul.f32 %v6372, 1.442695
      %v7288 = vpow.pop %v7287
      %v7289 = vmul.f32 %v6373, 1.442695
      %v7290 = vpow.pop %v7289
      %v7291 = vmul.f32 %v6374, 1.442695
      %v7292 = vpow.pop %v7291
      %v7293 = vmul.f32 %v6375, 1.442695
      %v7294 = vpow.pop %v7293
      %v7295 = vmul.f32 %v6376, 1.442695
      %v7296 = vpow.pop %v7295
      %v7297 = vmul.f32 %v6377, 1.442695
      %v7298 = vpow.pop %v7297
      %v7299 = vmul.f32 %v6378, 1.442695
      %v7300 = vpow.pop %v7299
      %v7301 = vmul.f32 %v6379, 1.442695
      %v7302 = vpow.pop %v7301
      %v7303 = vmul.f32 %v6380, 1.442695
      %v7304 = vpow.pop %v7303
      %v7305 = vmul.f32 %v6381, 1.442695
      %v7306 = vpow.pop %v7305
      %v7307 = vmul.f32 %v6382, 1.442695
      %v7308 = vpow.pop %v7307
      %v7309 = vmul.f32 %v6383, 1.442695
      %v7310 = vpow.pop %v7309
      %v7311 = vmul.f32 %v6384, 1.442695
      %v7312 = vpow.pop %v7311
      %v7313 = vmul.f32 %v6385, 1.442695
      %v7314 = vpow.pop %v7313
      %v7315 = vmul.f32 %v6386, 1.442695
      %v7316 = vpow.pop %v7315
      %v7317 = vmul.f32 %v6387, 1.442695
      %v7318 = vpow.pop %v7317
      %v7319 = vmul.f32 %v6388, 1.442695
      %v7320 = vpow.pop %v7319
      %v7321 = vmul.f32 %v6389, 1.442695
      %v7322 = vpow.pop %v7321
      %v7323 = vmul.f32 %v6390, 1.442695
      %v7324 = vpow.pop %v7323
      %v7325 = vmul.f32 %v6391, 1.442695
      %v7326 = vpow.pop %v7325
      %v7327 = vmul.f32 %v6392, 1.442695
      %v7328 = vpow.pop %v7327
      %v7329 = vmul.f32 %v6393, 1.442695
      %v7330 = vpow.pop %v7329
      %v7331 = vmul.f32 %v6394, 1.442695
      %v7332 = vpow.pop %v7331
      %v7333 = vmul.f32 %v6395, 1.442695
      %v7334 = vpow.pop %v7333
      %v7335 = vmul.f32 %v6396, 1.442695
      %v7336 = vpow.pop %v7335
      %v7337 = vmul.f32 %v6397, 1.442695
      %v7338 = vpow.pop %v7337
      %v7339 = vmul.f32 %v6398, 1.442695
      %v7340 = vpow.pop %v7339
      %v7341 = vmul.f32 %v6399, 1.442695
      %v7342 = vpow.pop %v7341
      %v7343 = vmul.f32 %v6400, 1.442695
      %v7344 = vpow.pop %v7343
      %v7345 = vmul.f32 %v6401, 1.442695
      %v7346 = vpow.pop %v7345
      %v7347 = vmul.f32 %v6402, 1.442695
      %v7348 = vpow.pop %v7347
      %v7349 = vmul.f32 %v6403, 1.442695
      %v7350 = vpow.pop %v7349
      %v7351 = vmul.f32 %v6404, 1.442695
      %v7352 = vpow.pop %v7351
      %v7353 = vmul.f32 %v6405, 1.442695
      %v7354 = vpow.pop %v7353
      %v7355 = vmul.f32 %v6406, 1.442695
      %v7356 = vpow.pop %v7355
      %v7357 = vmul.f32 %v6407, 1.442695
      %v7358 = vpow.pop %v7357
      %v7359 = vmul.f32 %v6408, 1.442695
      %v7360 = vpow.pop %v7359
      %v7361 = vmul.f32 %v6409, 1.442695
      %v7362 = vpow.pop %v7361
      %v7363 = vmul.f32 %v6410, 1.442695
      %v7364 = vpow.pop %v7363
      %v7365 = vmul.f32 %v6411, 1.442695
      %v7366 = vpow.pop %v7365
      %v7367 = vmul.f32 %v6412, 1.442695
      %v7368 = vpow.pop %v7367
      %v7369 = vmul.f32 %v6413, 1.442695
      %v7370 = vpow.pop %v7369
      %v7371 = vmul.f32 %v6414, 1.442695
      %v7372 = vpow.pop %v7371
      %v7373 = vmul.f32 %v6415, 1.442695
      %v7374 = vpow.pop %v7373
      %v7375 = vmul.f32 %v6416, 1.442695
      %v7376 = vpow.pop %v7375
      %v7377 = vmul.f32 %v6417, 1.442695
      %v7378 = vpow.pop %v7377
      %v7379 = vmul.f32 %v6418, 1.442695
      %v7380 = vpow.pop %v7379
      %v7381 = vmul.f32 %v6419, 1.442695
      %v7382 = vpow.pop %v7381
      %v7383 = vmul.f32 %v6420, 1.442695
      %v7384 = vpow.pop %v7383
      %v7385 = vmul.f32 %v6421, 1.442695
      %v7386 = vpow.pop %v7385
      %v7387 = vmul.f32 %v6422, 1.442695
      %v7388 = vpow.pop %v7387
      %v7389 = vmul.f32 %v6423, 1.442695
      %v7390 = vpow.pop %v7389
      %v7391 = vmul.f32 %v6424, 1.442695
      %v7392 = vpow.pop %v7391
      %v7393 = vmul.f32 %v6425, 1.442695
      %v7394 = vpow.pop %v7393
      %v7395 = vmul.f32 %v6426, 1.442695
      %v7396 = vpow.pop %v7395
      %v7397 = vmul.f32 %v6427, 1.442695
      %v7398 = vpow.pop %v7397
      %v7399 = vmul.f32 %v6428, 1.442695
      %v7400 = vpow.pop %v7399
      %v7401 = vmul.f32 %v6429, 1.442695
      %v7402 = vpow.pop %v7401
      %v7403 = vmul.f32 %v6430, 1.442695
      %v7404 = vpow.pop %v7403
      %v7405 = vmul.f32 %v6431, 1.442695
      %v7406 = vpow.pop %v7405
      %v7407 = vmul.f32 %v6432, 1.442695
      %v7408 = vpow.pop %v7407
      %v7409 = vmul.f32 %v6433, 1.442695
      %v7410 = vpow.pop %v7409
      %v7411 = vmul.f32 %v6434, 1.442695
      %v7412 = vpow.pop %v7411
      %v7413 = vmul.f32 %v6435, 1.442695
      %v7414 = vpow.pop %v7413
      %v7415 = vmul.f32 %v6436, 1.442695
      %v7416 = vpow.pop %v7415
      %v7417 = vmul.f32 %v6437, 1.442695
      %v7418 = vpow.pop %v7417
      %v7419 = vmul.f32 %v6438, 1.442695
      %v7420 = vpow.pop %v7419
      %v7421 = vmul.f32 %v6439, 1.442695
      %v7422 = vpow.pop %v7421
      %v7423 = vmul.f32 %v6440, 1.442695
      %v7424 = vpow.pop %v7423
      %v7425 = vmul.f32 %v6441, 1.442695
      %v7426 = vpow.pop %v7425
      %v7427 = vmul.f32 %v6442, 1.442695
      %v7428 = vpow.pop %v7427
      %v7429 = vmul.f32 %v6443, 1.442695
      %v7430 = vpow.pop %v7429
      %v7431 = vmul.f32 %v6444, 1.442695
      %v7432 = vpow.pop %v7431
      %v7433 = vmul.f32 %v6445, 1.442695
      %v7434 = vpow.pop %v7433
      %v7435 = vmul.f32 %v6446, 1.442695
      %v7436 = vpow.pop %v7435
      %v7437 = vmul.f32 %v6447, 1.442695
      %v7438 = vpow.pop %v7437
      %v7439 = vmul.f32 %v6448, 1.442695
      %v7440 = vpow.pop %v7439
      %v7441 = vmul.f32 %v6449, 1.442695
      %v7442 = vpow.pop %v7441
      %v7443 = vmul.f32 %v6450, 1.442695
      %v7444 = vpow.pop %v7443
      %v7445 = vmul.f32 %v6451, 1.442695
      %v7446 = vpow.pop %v7445
      %v7447 = vmul.f32 %v6452, 1.442695
      %v7448 = vpow.pop %v7447
      %v7449 = vmul.f32 %v6453, 1.442695
      %v7450 = vpow.pop %v7449
      %v7451 = vmul.f32 %v6454, 1.442695
      %v7452 = vpow.pop %v7451
      %v7453 = vmul.f32 %v6455, 1.442695
      %v7454 = vpow.pop %v7453
      %v7455 = vmul.f32 %v6456, 1.442695
      %v7456 = vpow.pop %v7455
      %v7457 = vmul.f32 %v6457, 1.442695
      %v7458 = vpow.pop %v7457
      %v7459 = vmul.f32 %v6458, 1.442695
      %v7460 = vpow.pop %v7459
      %v7461 = vmul.f32 %v6459, 1.442695
      %v7462 = vpow.pop %v7461
      %v7463 = vmul.f32 %v6460, 1.442695
      %v7464 = vpow.pop %v7463
      %v7465 = vmul.f32 %v6461, 1.442695
      %v7466 = vpow.pop %v7465
      %v7467 = vmul.f32 %v6462, 1.442695
      %v7468 = vpow.pop %v7467
      %v7469 = vmul.f32 %v6463, 1.442695
      %v7470 = vpow.pop %v7469
      %v7471 = vmul.f32 %v6464, 1.442695
      %v7472 = vpow.pop %v7471
      %v7473 = vmul.f32 %v6465, 1.442695
      %v7474 = vpow.pop %v7473
      %v7475 = vmul.f32 %v6466, 1.442695
      %v7476 = vpow.pop %v7475
      %v7477 = vmul.f32 %v6467, 1.442695
      %v7478 = vpow.pop %v7477
      %v7479 = vmul.f32 %v6468, 1.442695
      %v7480 = vpow.pop %v7479
      %v7481 = vmul.f32 %v6469, 1.442695
      %v7482 = vpow.pop %v7481
      %v7483 = vmul.f32 %v6470, 1.442695
      %v7484 = vpow.pop %v7483
      %v7485 = vmul.f32 %v6471, 1.442695
      %v7486 = vpow.pop %v7485
      %v7487 = vmul.f32 %v6472, 1.442695
      %v7488 = vpow.pop %v7487
      %v7489 = vmul.f32 %v6473, 1.442695
      %v7490 = vpow.pop %v7489
      %v7491 = vmul.f32 %v6474, 1.442695
      %v7492 = vpow.pop %v7491
      %v7493 = vmul.f32 %v6475, 1.442695
      %v7494 = vpow.pop %v7493
      %v7495 = vmul.f32 %v6476, 1.442695
      %v7496 = vpow.pop %v7495
      %v7497 = vmul.f32 %v6477, 1.442695
      %v7498 = vpow.pop %v7497
      %v7499 = vmul.f32 %v6478, 1.442695
      %v7500 = vpow.pop %v7499
      %v7501 = vmul.f32 %v6479, 1.442695
      %v7502 = vpow.pop %v7501
      %v7503 = vmul.f32 %v6480, 1.442695
      %v7504 = vpow.pop %v7503
      %v7505 = vadd.f32 %v6482, 1.0
      %v7506 = vadd.f32 %v6484, 1.0
      %v7507 = vadd.f32 %v6486, 1.0
      %v7508 = vadd.f32 %v6488, 1.0
      %v7509 = vadd.f32 %v6490, 1.0
      %v7510 = vadd.f32 %v6492, 1.0
      %v7511 = vadd.f32 %v6494, 1.0
      %v7512 = vadd.f32 %v6496, 1.0
      %v7513 = vadd.f32 %v6498, 1.0
      %v7514 = vadd.f32 %v6500, 1.0
      %v7515 = vadd.f32 %v6502, 1.0
      %v7516 = vadd.f32 %v6504, 1.0
      %v7517 = vadd.f32 %v6506, 1.0
      %v7518 = vadd.f32 %v6508, 1.0
      %v7519 = vadd.f32 %v6510, 1.0
      %v7520 = vadd.f32 %v6512, 1.0
      %v7521 = vadd.f32 %v6514, 1.0
      %v7522 = vadd.f32 %v6516, 1.0
      %v7523 = vadd.f32 %v6518, 1.0
      %v7524 = vadd.f32 %v6520, 1.0
      %v7525 = vadd.f32 %v6522, 1.0
      %v7526 = vadd.f32 %v6524, 1.0
      %v7527 = vadd.f32 %v6526, 1.0
      %v7528 = vadd.f32 %v6528, 1.0
      %v7529 = vadd.f32 %v6530, 1.0
      %v7530 = vadd.f32 %v6532, 1.0
      %v7531 = vadd.f32 %v6534, 1.0
      %v7532 = vadd.f32 %v6536, 1.0
      %v7533 = vadd.f32 %v6538, 1.0
      %v7534 = vadd.f32 %v6540, 1.0
      %v7535 = vadd.f32 %v6542, 1.0
      %v7536 = vadd.f32 %v6544, 1.0
      %v7537 = vadd.f32 %v6546, 1.0
      %v7538 = vadd.f32 %v6548, 1.0
      %v7539 = vadd.f32 %v6550, 1.0
      %v7540 = vadd.f32 %v6552, 1.0
      %v7541 = vadd.f32 %v6554, 1.0
      %v7542 = vadd.f32 %v6556, 1.0
      %v7543 = vadd.f32 %v6558, 1.0
      %v7544 = vadd.f32 %v6560, 1.0
      %v7545 = vadd.f32 %v6562, 1.0
      %v7546 = vadd.f32 %v6564, 1.0
      %v7547 = vadd.f32 %v6566, 1.0
      %v7548 = vadd.f32 %v6568, 1.0
      %v7549 = vadd.f32 %v6570, 1.0
      %v7550 = vadd.f32 %v6572, 1.0
      %v7551 = vadd.f32 %v6574, 1.0
      %v7552 = vadd.f32 %v6576, 1.0
      %v7553 = vadd.f32 %v6578, 1.0
      %v7554 = vadd.f32 %v6580, 1.0
      %v7555 = vadd.f32 %v6582, 1.0
      %v7556 = vadd.f32 %v6584, 1.0
      %v7557 = vadd.f32 %v6586, 1.0
      %v7558 = vadd.f32 %v6588, 1.0
      %v7559 = vadd.f32 %v6590, 1.0
      %v7560 = vadd.f32 %v6592, 1.0
      %v7561 = vadd.f32 %v6594, 1.0
      %v7562 = vadd.f32 %v6596, 1.0
      %v7563 = vadd.f32 %v6598, 1.0
      %v7564 = vadd.f32 %v6600, 1.0
      %v7565 = vadd.f32 %v6602, 1.0
      %v7566 = vadd.f32 %v6604, 1.0
      %v7567 = vadd.f32 %v6606, 1.0
      %v7568 = vadd.f32 %v6608, 1.0
      %v7569 = vadd.f32 %v6610, 1.0
      %v7570 = vadd.f32 %v6612, 1.0
      %v7571 = vadd.f32 %v6614, 1.0
      %v7572 = vadd.f32 %v6616, 1.0
      %v7573 = vadd.f32 %v6618, 1.0
      %v7574 = vadd.f32 %v6620, 1.0
      %v7575 = vadd.f32 %v6622, 1.0
      %v7576 = vadd.f32 %v6624, 1.0
      %v7577 = vadd.f32 %v6626, 1.0
      %v7578 = vadd.f32 %v6628, 1.0
      %v7579 = vadd.f32 %v6630, 1.0
      %v7580 = vadd.f32 %v6632, 1.0
      %v7581 = vadd.f32 %v6634, 1.0
      %v7582 = vadd.f32 %v6636, 1.0
      %v7583 = vadd.f32 %v6638, 1.0
      %v7584 = vadd.f32 %v6640, 1.0
      %v7585 = vadd.f32 %v6642, 1.0
      %v7586 = vadd.f32 %v6644, 1.0
      %v7587 = vadd.f32 %v6646, 1.0
      %v7588 = vadd.f32 %v6648, 1.0
      %v7589 = vadd.f32 %v6650, 1.0
      %v7590 = vadd.f32 %v6652, 1.0
      %v7591 = vadd.f32 %v6654, 1.0
      %v7592 = vadd.f32 %v6656, 1.0
      %v7593 = vadd.f32 %v6658, 1.0
      %v7594 = vadd.f32 %v6660, 1.0
      %v7595 = vadd.f32 %v6662, 1.0
      %v7596 = vadd.f32 %v6664, 1.0
      %v7597 = vadd.f32 %v6666, 1.0
      %v7598 = vadd.f32 %v6668, 1.0
      %v7599 = vadd.f32 %v6670, 1.0
      %v7600 = vadd.f32 %v6672, 1.0
      %v7601 = vadd.f32 %v6674, 1.0
      %v7602 = vadd.f32 %v6676, 1.0
      %v7603 = vadd.f32 %v6678, 1.0
      %v7604 = vadd.f32 %v6680, 1.0
      %v7605 = vadd.f32 %v6682, 1.0
      %v7606 = vadd.f32 %v6684, 1.0
      %v7607 = vadd.f32 %v6686, 1.0
      %v7608 = vadd.f32 %v6688, 1.0
      %v7609 = vadd.f32 %v6690, 1.0
      %v7610 = vadd.f32 %v6692, 1.0
      %v7611 = vadd.f32 %v6694, 1.0
      %v7612 = vadd.f32 %v6696, 1.0
      %v7613 = vadd.f32 %v6698, 1.0
      %v7614 = vadd.f32 %v6700, 1.0
      %v7615 = vadd.f32 %v6702, 1.0
      %v7616 = vadd.f32 %v6704, 1.0
      %v7617 = vadd.f32 %v6706, 1.0
      %v7618 = vadd.f32 %v6708, 1.0
      %v7619 = vadd.f32 %v6710, 1.0
      %v7620 = vadd.f32 %v6712, 1.0
      %v7621 = vadd.f32 %v6714, 1.0
      %v7622 = vadd.f32 %v6716, 1.0
      %v7623 = vadd.f32 %v6718, 1.0
      %v7624 = vadd.f32 %v6720, 1.0
      %v7625 = vadd.f32 %v6722, 1.0
      %v7626 = vadd.f32 %v6724, 1.0
      %v7627 = vadd.f32 %v6726, 1.0
      %v7628 = vadd.f32 %v6728, 1.0
      %v7629 = vadd.f32 %v6730, 1.0
      %v7630 = vadd.f32 %v6732, 1.0
      %v7631 = vadd.f32 %v6734, 1.0
      %v7632 = vadd.f32 %v6736, 1.0
      %v7633 = vadd.f32 %v6738, 1.0
      %v7634 = vadd.f32 %v6740, 1.0
      %v7635 = vadd.f32 %v6742, 1.0
      %v7636 = vadd.f32 %v6744, 1.0
      %v7637 = vadd.f32 %v6746, 1.0
      %v7638 = vadd.f32 %v6748, 1.0
      %v7639 = vadd.f32 %v6750, 1.0
      %v7640 = vadd.f32 %v6752, 1.0
      %v7641 = vadd.f32 %v6754, 1.0
      %v7642 = vadd.f32 %v6756, 1.0
      %v7643 = vadd.f32 %v6758, 1.0
      %v7644 = vadd.f32 %v6760, 1.0
      %v7645 = vadd.f32 %v6762, 1.0
      %v7646 = vadd.f32 %v6764, 1.0
      %v7647 = vadd.f32 %v6766, 1.0
      %v7648 = vadd.f32 %v6768, 1.0
      %v7649 = vadd.f32 %v6770, 1.0
      %v7650 = vadd.f32 %v6772, 1.0
      %v7651 = vadd.f32 %v6774, 1.0
      %v7652 = vadd.f32 %v6776, 1.0
      %v7653 = vadd.f32 %v6778, 1.0
      %v7654 = vadd.f32 %v6780, 1.0
      %v7655 = vadd.f32 %v6782, 1.0
      %v7656 = vadd.f32 %v6784, 1.0
      %v7657 = vadd.f32 %v6786, 1.0
      %v7658 = vadd.f32 %v6788, 1.0
      %v7659 = vadd.f32 %v6790, 1.0
      %v7660 = vadd.f32 %v6792, 1.0
      %v7661 = vadd.f32 %v6794, 1.0
      %v7662 = vadd.f32 %v6796, 1.0
      %v7663 = vadd.f32 %v6798, 1.0
      %v7664 = vadd.f32 %v6800, 1.0
      %v7665 = vadd.f32 %v6802, 1.0
      %v7666 = vadd.f32 %v6804, 1.0
      %v7667 = vadd.f32 %v6806, 1.0
      %v7668 = vadd.f32 %v6808, 1.0
      %v7669 = vadd.f32 %v6810, 1.0
      %v7670 = vadd.f32 %v6812, 1.0
      %v7671 = vadd.f32 %v6814, 1.0
      %v7672 = vadd.f32 %v6816, 1.0
      %v7673 = vadd.f32 %v6818, 1.0
      %v7674 = vadd.f32 %v6820, 1.0
      %v7675 = vadd.f32 %v6822, 1.0
      %v7676 = vadd.f32 %v6824, 1.0
      %v7677 = vadd.f32 %v6826, 1.0
      %v7678 = vadd.f32 %v6828, 1.0
      %v7679 = vadd.f32 %v6830, 1.0
      %v7680 = vadd.f32 %v6832, 1.0
      %v7681 = vadd.f32 %v6834, 1.0
      %v7682 = vadd.f32 %v6836, 1.0
      %v7683 = vadd.f32 %v6838, 1.0
      %v7684 = vadd.f32 %v6840, 1.0
      %v7685 = vadd.f32 %v6842, 1.0
      %v7686 = vadd.f32 %v6844, 1.0
      %v7687 = vadd.f32 %v6846, 1.0
      %v7688 = vadd.f32 %v6848, 1.0
      %v7689 = vadd.f32 %v6850, 1.0
      %v7690 = vadd.f32 %v6852, 1.0
      %v7691 = vadd.f32 %v6854, 1.0
      %v7692 = vadd.f32 %v6856, 1.0
      %v7693 = vadd.f32 %v6858, 1.0
      %v7694 = vadd.f32 %v6860, 1.0
      %v7695 = vadd.f32 %v6862, 1.0
      %v7696 = vadd.f32 %v6864, 1.0
      %v7697 = vadd.f32 %v6866, 1.0
      %v7698 = vadd.f32 %v6868, 1.0
      %v7699 = vadd.f32 %v6870, 1.0
      %v7700 = vadd.f32 %v6872, 1.0
      %v7701 = vadd.f32 %v6874, 1.0
      %v7702 = vadd.f32 %v6876, 1.0
      %v7703 = vadd.f32 %v6878, 1.0
      %v7704 = vadd.f32 %v6880, 1.0
      %v7705 = vadd.f32 %v6882, 1.0
      %v7706 = vadd.f32 %v6884, 1.0
      %v7707 = vadd.f32 %v6886, 1.0
      %v7708 = vadd.f32 %v6888, 1.0
      %v7709 = vadd.f32 %v6890, 1.0
      %v7710 = vadd.f32 %v6892, 1.0
      %v7711 = vadd.f32 %v6894, 1.0
      %v7712 = vadd.f32 %v6896, 1.0
      %v7713 = vadd.f32 %v6898, 1.0
      %v7714 = vadd.f32 %v6900, 1.0
      %v7715 = vadd.f32 %v6902, 1.0
      %v7716 = vadd.f32 %v6904, 1.0
      %v7717 = vadd.f32 %v6906, 1.0
      %v7718 = vadd.f32 %v6908, 1.0
      %v7719 = vadd.f32 %v6910, 1.0
      %v7720 = vadd.f32 %v6912, 1.0
      %v7721 = vadd.f32 %v6914, 1.0
      %v7722 = vadd.f32 %v6916, 1.0
      %v7723 = vadd.f32 %v6918, 1.0
      %v7724 = vadd.f32 %v6920, 1.0
      %v7725 = vadd.f32 %v6922, 1.0
      %v7726 = vadd.f32 %v6924, 1.0
      %v7727 = vadd.f32 %v6926, 1.0
      %v7728 = vadd.f32 %v6928, 1.0
      %v7729 = vadd.f32 %v6930, 1.0
      %v7730 = vadd.f32 %v6932, 1.0
      %v7731 = vadd.f32 %v6934, 1.0
      %v7732 = vadd.f32 %v6936, 1.0
      %v7733 = vadd.f32 %v6938, 1.0
      %v7734 = vadd.f32 %v6940, 1.0
      %v7735 = vadd.f32 %v6942, 1.0
      %v7736 = vadd.f32 %v6944, 1.0
      %v7737 = vadd.f32 %v6946, 1.0
      %v7738 = vadd.f32 %v6948, 1.0
      %v7739 = vadd.f32 %v6950, 1.0
      %v7740 = vadd.f32 %v6952, 1.0
      %v7741 = vadd.f32 %v6954, 1.0
      %v7742 = vadd.f32 %v6956, 1.0
      %v7743 = vadd.f32 %v6958, 1.0
      %v7744 = vadd.f32 %v6960, 1.0
      %v7745 = vadd.f32 %v6962, 1.0
      %v7746 = vadd.f32 %v6964, 1.0
      %v7747 = vadd.f32 %v6966, 1.0
      %v7748 = vadd.f32 %v6968, 1.0
      %v7749 = vadd.f32 %v6970, 1.0
      %v7750 = vadd.f32 %v6972, 1.0
      %v7751 = vadd.f32 %v6974, 1.0
      %v7752 = vadd.f32 %v6976, 1.0
      %v7753 = vadd.f32 %v6978, 1.0
      %v7754 = vadd.f32 %v6980, 1.0
      %v7755 = vadd.f32 %v6982, 1.0
      %v7756 = vadd.f32 %v6984, 1.0
      %v7757 = vadd.f32 %v6986, 1.0
      %v7758 = vadd.f32 %v6988, 1.0
      %v7759 = vadd.f32 %v6990, 1.0
      %v7760 = vadd.f32 %v6992, 1.0
      %v7761 = vadd.f32 %v6994, 1.0
      %v7762 = vadd.f32 %v6996, 1.0
      %v7763 = vadd.f32 %v6998, 1.0
      %v7764 = vadd.f32 %v7000, 1.0
      %v7765 = vadd.f32 %v7002, 1.0
      %v7766 = vadd.f32 %v7004, 1.0
      %v7767 = vadd.f32 %v7006, 1.0
      %v7768 = vadd.f32 %v7008, 1.0
      %v7769 = vadd.f32 %v7010, 1.0
      %v7770 = vadd.f32 %v7012, 1.0
      %v7771 = vadd.f32 %v7014, 1.0
      %v7772 = vadd.f32 %v7016, 1.0
      %v7773 = vadd.f32 %v7018, 1.0
      %v7774 = vadd.f32 %v7020, 1.0
      %v7775 = vadd.f32 %v7022, 1.0
      %v7776 = vadd.f32 %v7024, 1.0
      %v7777 = vadd.f32 %v7026, 1.0
      %v7778 = vadd.f32 %v7028, 1.0
      %v7779 = vadd.f32 %v7030, 1.0
      %v7780 = vadd.f32 %v7032, 1.0
      %v7781 = vadd.f32 %v7034, 1.0
      %v7782 = vadd.f32 %v7036, 1.0
      %v7783 = vadd.f32 %v7038, 1.0
      %v7784 = vadd.f32 %v7040, 1.0
      %v7785 = vadd.f32 %v7042, 1.0
      %v7786 = vadd.f32 %v7044, 1.0
      %v7787 = vadd.f32 %v7046, 1.0
      %v7788 = vadd.f32 %v7048, 1.0
      %v7789 = vadd.f32 %v7050, 1.0
      %v7790 = vadd.f32 %v7052, 1.0
      %v7791 = vadd.f32 %v7054, 1.0
      %v7792 = vadd.f32 %v7056, 1.0
      %v7793 = vadd.f32 %v7058, 1.0
      %v7794 = vadd.f32 %v7060, 1.0
      %v7795 = vadd.f32 %v7062, 1.0
      %v7796 = vadd.f32 %v7064, 1.0
      %v7797 = vadd.f32 %v7066, 1.0
      %v7798 = vadd.f32 %v7068, 1.0
      %v7799 = vadd.f32 %v7070, 1.0
      %v7800 = vadd.f32 %v7072, 1.0
      %v7801 = vadd.f32 %v7074, 1.0
      %v7802 = vadd.f32 %v7076, 1.0
      %v7803 = vadd.f32 %v7078, 1.0
      %v7804 = vadd.f32 %v7080, 1.0
      %v7805 = vadd.f32 %v7082, 1.0
      %v7806 = vadd.f32 %v7084, 1.0
      %v7807 = vadd.f32 %v7086, 1.0
      %v7808 = vadd.f32 %v7088, 1.0
      %v7809 = vadd.f32 %v7090, 1.0
      %v7810 = vadd.f32 %v7092, 1.0
      %v7811 = vadd.f32 %v7094, 1.0
      %v7812 = vadd.f32 %v7096, 1.0
      %v7813 = vadd.f32 %v7098, 1.0
      %v7814 = vadd.f32 %v7100, 1.0
      %v7815 = vadd.f32 %v7102, 1.0
      %v7816 = vadd.f32 %v7104, 1.0
      %v7817 = vadd.f32 %v7106, 1.0
      %v7818 = vadd.f32 %v7108, 1.0
      %v7819 = vadd.f32 %v7110, 1.0
      %v7820 = vadd.f32 %v7112, 1.0
      %v7821 = vadd.f32 %v7114, 1.0
      %v7822 = vadd.f32 %v7116, 1.0
      %v7823 = vadd.f32 %v7118, 1.0
      %v7824 = vadd.f32 %v7120, 1.0
      %v7825 = vadd.f32 %v7122, 1.0
      %v7826 = vadd.f32 %v7124, 1.0
      %v7827 = vadd.f32 %v7126, 1.0
      %v7828 = vadd.f32 %v7128, 1.0
      %v7829 = vadd.f32 %v7130, 1.0
      %v7830 = vadd.f32 %v7132, 1.0
      %v7831 = vadd.f32 %v7134, 1.0
      %v7832 = vadd.f32 %v7136, 1.0
      %v7833 = vadd.f32 %v7138, 1.0
      %v7834 = vadd.f32 %v7140, 1.0
      %v7835 = vadd.f32 %v7142, 1.0
      %v7836 = vadd.f32 %v7144, 1.0
      %v7837 = vadd.f32 %v7146, 1.0
      %v7838 = vadd.f32 %v7148, 1.0
      %v7839 = vadd.f32 %v7150, 1.0
      %v7840 = vadd.f32 %v7152, 1.0
      %v7841 = vadd.f32 %v7154, 1.0
      %v7842 = vadd.f32 %v7156, 1.0
      %v7843 = vadd.f32 %v7158, 1.0
      %v7844 = vadd.f32 %v7160, 1.0
      %v7845 = vadd.f32 %v7162, 1.0
      %v7846 = vadd.f32 %v7164, 1.0
      %v7847 = vadd.f32 %v7166, 1.0
      %v7848 = vadd.f32 %v7168, 1.0
      %v7849 = vadd.f32 %v7170, 1.0
      %v7850 = vadd.f32 %v7172, 1.0
      %v7851 = vadd.f32 %v7174, 1.0
      %v7852 = vadd.f32 %v7176, 1.0
      %v7853 = vadd.f32 %v7178, 1.0
      %v7854 = vadd.f32 %v7180, 1.0
      %v7855 = vadd.f32 %v7182, 1.0
      %v7856 = vadd.f32 %v7184, 1.0
      %v7857 = vadd.f32 %v7186, 1.0
      %v7858 = vadd.f32 %v7188, 1.0
      %v7859 = vadd.f32 %v7190, 1.0
      %v7860 = vadd.f32 %v7192, 1.0
      %v7861 = vadd.f32 %v7194, 1.0
      %v7862 = vadd.f32 %v7196, 1.0
      %v7863 = vadd.f32 %v7198, 1.0
      %v7864 = vadd.f32 %v7200, 1.0
      %v7865 = vadd.f32 %v7202, 1.0
      %v7866 = vadd.f32 %v7204, 1.0
      %v7867 = vadd.f32 %v7206, 1.0
      %v7868 = vadd.f32 %v7208, 1.0
      %v7869 = vadd.f32 %v7210, 1.0
      %v7870 = vadd.f32 %v7212, 1.0
      %v7871 = vadd.f32 %v7214, 1.0
      %v7872 = vadd.f32 %v7216, 1.0
      %v7873 = vadd.f32 %v7218, 1.0
      %v7874 = vadd.f32 %v7220, 1.0
      %v7875 = vadd.f32 %v7222, 1.0
      %v7876 = vadd.f32 %v7224, 1.0
      %v7877 = vadd.f32 %v7226, 1.0
      %v7878 = vadd.f32 %v7228, 1.0
      %v7879 = vadd.f32 %v7230, 1.0
      %v7880 = vadd.f32 %v7232, 1.0
      %v7881 = vadd.f32 %v7234, 1.0
      %v7882 = vadd.f32 %v7236, 1.0
      %v7883 = vadd.f32 %v7238, 1.0
      %v7884 = vadd.f32 %v7240, 1.0
      %v7885 = vadd.f32 %v7242, 1.0
      %v7886 = vadd.f32 %v7244, 1.0
      %v7887 = vadd.f32 %v7246, 1.0
      %v7888 = vadd.f32 %v7248, 1.0
      %v7889 = vadd.f32 %v7250, 1.0
      %v7890 = vadd.f32 %v7252, 1.0
      %v7891 = vadd.f32 %v7254, 1.0
      %v7892 = vadd.f32 %v7256, 1.0
      %v7893 = vadd.f32 %v7258, 1.0
      %v7894 = vadd.f32 %v7260, 1.0
      %v7895 = vadd.f32 %v7262, 1.0
      %v7896 = vadd.f32 %v7264, 1.0
      %v7897 = vadd.f32 %v7266, 1.0
      %v7898 = vadd.f32 %v7268, 1.0
      %v7899 = vadd.f32 %v7270, 1.0
      %v7900 = vadd.f32 %v7272, 1.0
      %v7901 = vadd.f32 %v7274, 1.0
      %v7902 = vadd.f32 %v7276, 1.0
      %v7903 = vadd.f32 %v7278, 1.0
      %v7904 = vadd.f32 %v7280, 1.0
      %v7905 = vadd.f32 %v7282, 1.0
      %v7906 = vadd.f32 %v7284, 1.0
      %v7907 = vadd.f32 %v7286, 1.0
      %v7908 = vadd.f32 %v7288, 1.0
      %v7909 = vadd.f32 %v7290, 1.0
      %v7910 = vadd.f32 %v7292, 1.0
      %v7911 = vadd.f32 %v7294, 1.0
      %v7912 = vadd.f32 %v7296, 1.0
      %v7913 = vadd.f32 %v7298, 1.0
      %v7914 = vadd.f32 %v7300, 1.0
      %v7915 = vadd.f32 %v7302, 1.0
      %v7916 = vadd.f32 %v7304, 1.0
      %v7917 = vadd.f32 %v7306, 1.0
      %v7918 = vadd.f32 %v7308, 1.0
      %v7919 = vadd.f32 %v7310, 1.0
      %v7920 = vadd.f32 %v7312, 1.0
      %v7921 = vadd.f32 %v7314, 1.0
      %v7922 = vadd.f32 %v7316, 1.0
      %v7923 = vadd.f32 %v7318, 1.0
      %v7924 = vadd.f32 %v7320, 1.0
      %v7925 = vadd.f32 %v7322, 1.0
      %v7926 = vadd.f32 %v7324, 1.0
      %v7927 = vadd.f32 %v7326, 1.0
      %v7928 = vadd.f32 %v7328, 1.0
      %v7929 = vadd.f32 %v7330, 1.0
      %v7930 = vadd.f32 %v7332, 1.0
      %v7931 = vadd.f32 %v7334, 1.0
      %v7932 = vadd.f32 %v7336, 1.0
      %v7933 = vadd.f32 %v7338, 1.0
      %v7934 = vadd.f32 %v7340, 1.0
      %v7935 = vadd.f32 %v7342, 1.0
      %v7936 = vadd.f32 %v7344, 1.0
      %v7937 = vadd.f32 %v7346, 1.0
      %v7938 = vadd.f32 %v7348, 1.0
      %v7939 = vadd.f32 %v7350, 1.0
      %v7940 = vadd.f32 %v7352, 1.0
      %v7941 = vadd.f32 %v7354, 1.0
      %v7942 = vadd.f32 %v7356, 1.0
      %v7943 = vadd.f32 %v7358, 1.0
      %v7944 = vadd.f32 %v7360, 1.0
      %v7945 = vadd.f32 %v7362, 1.0
      %v7946 = vadd.f32 %v7364, 1.0
      %v7947 = vadd.f32 %v7366, 1.0
      %v7948 = vadd.f32 %v7368, 1.0
      %v7949 = vadd.f32 %v7370, 1.0
      %v7950 = vadd.f32 %v7372, 1.0
      %v7951 = vadd.f32 %v7374, 1.0
      %v7952 = vadd.f32 %v7376, 1.0
      %v7953 = vadd.f32 %v7378, 1.0
      %v7954 = vadd.f32 %v7380, 1.0
      %v7955 = vadd.f32 %v7382, 1.0
      %v7956 = vadd.f32 %v7384, 1.0
      %v7957 = vadd.f32 %v7386, 1.0
      %v7958 = vadd.f32 %v7388, 1.0
      %v7959 = vadd.f32 %v7390, 1.0
      %v7960 = vadd.f32 %v7392, 1.0
      %v7961 = vadd.f32 %v7394, 1.0
      %v7962 = vadd.f32 %v7396, 1.0
      %v7963 = vadd.f32 %v7398, 1.0
      %v7964 = vadd.f32 %v7400, 1.0
      %v7965 = vadd.f32 %v7402, 1.0
      %v7966 = vadd.f32 %v7404, 1.0
      %v7967 = vadd.f32 %v7406, 1.0
      %v7968 = vadd.f32 %v7408, 1.0
      %v7969 = vadd.f32 %v7410, 1.0
      %v7970 = vadd.f32 %v7412, 1.0
      %v7971 = vadd.f32 %v7414, 1.0
      %v7972 = vadd.f32 %v7416, 1.0
      %v7973 = vadd.f32 %v7418, 1.0
      %v7974 = vadd.f32 %v7420, 1.0
      %v7975 = vadd.f32 %v7422, 1.0
      %v7976 = vadd.f32 %v7424, 1.0
      %v7977 = vadd.f32 %v7426, 1.0
      %v7978 = vadd.f32 %v7428, 1.0
      %v7979 = vadd.f32 %v7430, 1.0
      %v7980 = vadd.f32 %v7432, 1.0
      %v7981 = vadd.f32 %v7434, 1.0
      %v7982 = vadd.f32 %v7436, 1.0
      %v7983 = vadd.f32 %v7438, 1.0
      %v7984 = vadd.f32 %v7440, 1.0
      %v7985 = vadd.f32 %v7442, 1.0
      %v7986 = vadd.f32 %v7444, 1.0
      %v7987 = vadd.f32 %v7446, 1.0
      %v7988 = vadd.f32 %v7448, 1.0
      %v7989 = vadd.f32 %v7450, 1.0
      %v7990 = vadd.f32 %v7452, 1.0
      %v7991 = vadd.f32 %v7454, 1.0
      %v7992 = vadd.f32 %v7456, 1.0
      %v7993 = vadd.f32 %v7458, 1.0
      %v7994 = vadd.f32 %v7460, 1.0
      %v7995 = vadd.f32 %v7462, 1.0
      %v7996 = vadd.f32 %v7464, 1.0
      %v7997 = vadd.f32 %v7466, 1.0
      %v7998 = vadd.f32 %v7468, 1.0
      %v7999 = vadd.f32 %v7470, 1.0
      %v8000 = vadd.f32 %v7472, 1.0
      %v8001 = vadd.f32 %v7474, 1.0
      %v8002 = vadd.f32 %v7476, 1.0
      %v8003 = vadd.f32 %v7478, 1.0
      %v8004 = vadd.f32 %v7480, 1.0
      %v8005 = vadd.f32 %v7482, 1.0
      %v8006 = vadd.f32 %v7484, 1.0
      %v8007 = vadd.f32 %v7486, 1.0
      %v8008 = vadd.f32 %v7488, 1.0
      %v8009 = vadd.f32 %v7490, 1.0
      %v8010 = vadd.f32 %v7492, 1.0
      %v8011 = vadd.f32 %v7494, 1.0
      %v8012 = vadd.f32 %v7496, 1.0
      %v8013 = vadd.f32 %v7498, 1.0
      %v8014 = vadd.f32 %v7500, 1.0
      %v8015 = vadd.f32 %v7502, 1.0
      %v8016 = vadd.f32 %v7504, 1.0
      %v8017 = vrcp.pop %v7505
      %v8018 = vrcp.pop %v7506
      %v8019 = vrcp.pop %v7507
      %v8020 = vrcp.pop %v7508
      %v8021 = vrcp.pop %v7509
      %v8022 = vrcp.pop %v7510
      %v8023 = vrcp.pop %v7511
      %v8024 = vrcp.pop %v7512
      %v8025 = vrcp.pop %v7513
      %v8026 = vrcp.pop %v7514
      %v8027 = vrcp.pop %v7515
      %v8028 = vrcp.pop %v7516
      %v8029 = vrcp.pop %v7517
      %v8030 = vrcp.pop %v7518
      %v8031 = vrcp.pop %v7519
      %v8032 = vrcp.pop %v7520
      %v8033 = vrcp.pop %v7521
      %v8034 = vrcp.pop %v7522
      %v8035 = vrcp.pop %v7523
      %v8036 = vrcp.pop %v7524
      %v8037 = vrcp.pop %v7525
      %v8038 = vrcp.pop %v7526
      %v8039 = vrcp.pop %v7527
      %v8040 = vrcp.pop %v7528
      %v8041 = vrcp.pop %v7529
      %v8042 = vrcp.pop %v7530
      %v8043 = vrcp.pop %v7531
      %v8044 = vrcp.pop %v7532
      %v8045 = vrcp.pop %v7533
      %v8046 = vrcp.pop %v7534
      %v8047 = vrcp.pop %v7535
      %v8048 = vrcp.pop %v7536
      %v8049 = vrcp.pop %v7537
      %v8050 = vrcp.pop %v7538
      %v8051 = vrcp.pop %v7539
      %v8052 = vrcp.pop %v7540
      %v8053 = vrcp.pop %v7541
      %v8054 = vrcp.pop %v7542
      %v8055 = vrcp.pop %v7543
      %v8056 = vrcp.pop %v7544
      %v8057 = vrcp.pop %v7545
      %v8058 = vrcp.pop %v7546
      %v8059 = vrcp.pop %v7547
      %v8060 = vrcp.pop %v7548
      %v8061 = vrcp.pop %v7549
      %v8062 = vrcp.pop %v7550
      %v8063 = vrcp.pop %v7551
      %v8064 = vrcp.pop %v7552
      %v8065 = vrcp.pop %v7553
      %v8066 = vrcp.pop %v7554
      %v8067 = vrcp.pop %v7555
      %v8068 = vrcp.pop %v7556
      %v8069 = vrcp.pop %v7557
      %v8070 = vrcp.pop %v7558
      %v8071 = vrcp.pop %v7559
      %v8072 = vrcp.pop %v7560
      %v8073 = vrcp.pop %v7561
      %v8074 = vrcp.pop %v7562
      %v8075 = vrcp.pop %v7563
      %v8076 = vrcp.pop %v7564
      %v8077 = vrcp.pop %v7565
      %v8078 = vrcp.pop %v7566
      %v8079 = vrcp.pop %v7567
      %v8080 = vrcp.pop %v7568
      %v8081 = vrcp.pop %v7569
      %v8082 = vrcp.pop %v7570
      %v8083 = vrcp.pop %v7571
      %v8084 = vrcp.pop %v7572
      %v8085 = vrcp.pop %v7573
      %v8086 = vrcp.pop %v7574
      %v8087 = vrcp.pop %v7575
      %v8088 = vrcp.pop %v7576
      %v8089 = vrcp.pop %v7577
      %v8090 = vrcp.pop %v7578
      %v8091 = vrcp.pop %v7579
      %v8092 = vrcp.pop %v7580
      %v8093 = vrcp.pop %v7581
      %v8094 = vrcp.pop %v7582
      %v8095 = vrcp.pop %v7583
      %v8096 = vrcp.pop %v7584
      %v8097 = vrcp.pop %v7585
      %v8098 = vrcp.pop %v7586
      %v8099 = vrcp.pop %v7587
      %v8100 = vrcp.pop %v7588
      %v8101 = vrcp.pop %v7589
      %v8102 = vrcp.pop %v7590
      %v8103 = vrcp.pop %v7591
      %v8104 = vrcp.pop %v7592
      %v8105 = vrcp.pop %v7593
      %v8106 = vrcp.pop %v7594
      %v8107 = vrcp.pop %v7595
      %v8108 = vrcp.pop %v7596
      %v8109 = vrcp.pop %v7597
      %v8110 = vrcp.pop %v7598
      %v8111 = vrcp.pop %v7599
      %v8112 = vrcp.pop %v7600
      %v8113 = vrcp.pop %v7601
      %v8114 = vrcp.pop %v7602
      %v8115 = vrcp.pop %v7603
      %v8116 = vrcp.pop %v7604
      %v8117 = vrcp.pop %v7605
      %v8118 = vrcp.pop %v7606
      %v8119 = vrcp.pop %v7607
      %v8120 = vrcp.pop %v7608
      %v8121 = vrcp.pop %v7609
      %v8122 = vrcp.pop %v7610
      %v8123 = vrcp.pop %v7611
      %v8124 = vrcp.pop %v7612
      %v8125 = vrcp.pop %v7613
      %v8126 = vrcp.pop %v7614
      %v8127 = vrcp.pop %v7615
      %v8128 = vrcp.pop %v7616
      %v8129 = vrcp.pop %v7617
      %v8130 = vrcp.pop %v7618
      %v8131 = vrcp.pop %v7619
      %v8132 = vrcp.pop %v7620
      %v8133 = vrcp.pop %v7621
      %v8134 = vrcp.pop %v7622
      %v8135 = vrcp.pop %v7623
      %v8136 = vrcp.pop %v7624
      %v8137 = vrcp.pop %v7625
      %v8138 = vrcp.pop %v7626
      %v8139 = vrcp.pop %v7627
      %v8140 = vrcp.pop %v7628
      %v8141 = vrcp.pop %v7629
      %v8142 = vrcp.pop %v7630
      %v8143 = vrcp.pop %v7631
      %v8144 = vrcp.pop %v7632
      %v8145 = vrcp.pop %v7633
      %v8146 = vrcp.pop %v7634
      %v8147 = vrcp.pop %v7635
      %v8148 = vrcp.pop %v7636
      %v8149 = vrcp.pop %v7637
      %v8150 = vrcp.pop %v7638
      %v8151 = vrcp.pop %v7639
      %v8152 = vrcp.pop %v7640
      %v8153 = vrcp.pop %v7641
      %v8154 = vrcp.pop %v7642
      %v8155 = vrcp.pop %v7643
      %v8156 = vrcp.pop %v7644
      %v8157 = vrcp.pop %v7645
      %v8158 = vrcp.pop %v7646
      %v8159 = vrcp.pop %v7647
      %v8160 = vrcp.pop %v7648
      %v8161 = vrcp.pop %v7649
      %v8162 = vrcp.pop %v7650
      %v8163 = vrcp.pop %v7651
      %v8164 = vrcp.pop %v7652
      %v8165 = vrcp.pop %v7653
      %v8166 = vrcp.pop %v7654
      %v8167 = vrcp.pop %v7655
      %v8168 = vrcp.pop %v7656
      %v8169 = vrcp.pop %v7657
      %v8170 = vrcp.pop %v7658
      %v8171 = vrcp.pop %v7659
      %v8172 = vrcp.pop %v7660
      %v8173 = vrcp.pop %v7661
      %v8174 = vrcp.pop %v7662
      %v8175 = vrcp.pop %v7663
      %v8176 = vrcp.pop %v7664
      %v8177 = vrcp.pop %v7665
      %v8178 = vrcp.pop %v7666
      %v8179 = vrcp.pop %v7667
      %v8180 = vrcp.pop %v7668
      %v8181 = vrcp.pop %v7669
      %v8182 = vrcp.pop %v7670
      %v8183 = vrcp.pop %v7671
      %v8184 = vrcp.pop %v7672
      %v8185 = vrcp.pop %v7673
      %v8186 = vrcp.pop %v7674
      %v8187 = vrcp.pop %v7675
      %v8188 = vrcp.pop %v7676
      %v8189 = vrcp.pop %v7677
      %v8190 = vrcp.pop %v7678
      %v8191 = vrcp.pop %v7679
      %v8192 = vrcp.pop %v7680
      %v8193 = vrcp.pop %v7681
      %v8194 = vrcp.pop %v7682
      %v8195 = vrcp.pop %v7683
      %v8196 = vrcp.pop %v7684
      %v8197 = vrcp.pop %v7685
      %v8198 = vrcp.pop %v7686
      %v8199 = vrcp.pop %v7687
      %v8200 = vrcp.pop %v7688
      %v8201 = vrcp.pop %v7689
      %v8202 = vrcp.pop %v7690
      %v8203 = vrcp.pop %v7691
      %v8204 = vrcp.pop %v7692
      %v8205 = vrcp.pop %v7693
      %v8206 = vrcp.pop %v7694
      %v8207 = vrcp.pop %v7695
      %v8208 = vrcp.pop %v7696
      %v8209 = vrcp.pop %v7697
      %v8210 = vrcp.pop %v7698
      %v8211 = vrcp.pop %v7699
      %v8212 = vrcp.pop %v7700
      %v8213 = vrcp.pop %v7701
      %v8214 = vrcp.pop %v7702
      %v8215 = vrcp.pop %v7703
      %v8216 = vrcp.pop %v7704
      %v8217 = vrcp.pop %v7705
      %v8218 = vrcp.pop %v7706
      %v8219 = vrcp.pop %v7707
      %v8220 = vrcp.pop %v7708
      %v8221 = vrcp.pop %v7709
      %v8222 = vrcp.pop %v7710
      %v8223 = vrcp.pop %v7711
      %v8224 = vrcp.pop %v7712
      %v8225 = vrcp.pop %v7713
      %v8226 = vrcp.pop %v7714
      %v8227 = vrcp.pop %v7715
      %v8228 = vrcp.pop %v7716
      %v8229 = vrcp.pop %v7717
      %v8230 = vrcp.pop %v7718
      %v8231 = vrcp.pop %v7719
      %v8232 = vrcp.pop %v7720
      %v8233 = vrcp.pop %v7721
      %v8234 = vrcp.pop %v7722
      %v8235 = vrcp.pop %v7723
      %v8236 = vrcp.pop %v7724
      %v8237 = vrcp.pop %v7725
      %v8238 = vrcp.pop %v7726
      %v8239 = vrcp.pop %v7727
      %v8240 = vrcp.pop %v7728
      %v8241 = vrcp.pop %v7729
      %v8242 = vrcp.pop %v7730
      %v8243 = vrcp.pop %v7731
      %v8244 = vrcp.pop %v7732
      %v8245 = vrcp.pop %v7733
      %v8246 = vrcp.pop %v7734
      %v8247 = vrcp.pop %v7735
      %v8248 = vrcp.pop %v7736
      %v8249 = vrcp.pop %v7737
      %v8250 = vrcp.pop %v7738
      %v8251 = vrcp.pop %v7739
      %v8252 = vrcp.pop %v7740
      %v8253 = vrcp.pop %v7741
      %v8254 = vrcp.pop %v7742
      %v8255 = vrcp.pop %v7743
      %v8256 = vrcp.pop %v7744
      %v8257 = vrcp.pop %v7745
      %v8258 = vrcp.pop %v7746
      %v8259 = vrcp.pop %v7747
      %v8260 = vrcp.pop %v7748
      %v8261 = vrcp.pop %v7749
      %v8262 = vrcp.pop %v7750
      %v8263 = vrcp.pop %v7751
      %v8264 = vrcp.pop %v7752
      %v8265 = vrcp.pop %v7753
      %v8266 = vrcp.pop %v7754
      %v8267 = vrcp.pop %v7755
      %v8268 = vrcp.pop %v7756
      %v8269 = vrcp.pop %v7757
      %v8270 = vrcp.pop %v7758
      %v8271 = vrcp.pop %v7759
      %v8272 = vrcp.pop %v7760
      %v8273 = vrcp.pop %v7761
      %v8274 = vrcp.pop %v7762
      %v8275 = vrcp.pop %v7763
      %v8276 = vrcp.pop %v7764
      %v8277 = vrcp.pop %v7765
      %v8278 = vrcp.pop %v7766
      %v8279 = vrcp.pop %v7767
      %v8280 = vrcp.pop %v7768
      %v8281 = vrcp.pop %v7769
      %v8282 = vrcp.pop %v7770
      %v8283 = vrcp.pop %v7771
      %v8284 = vrcp.pop %v7772
      %v8285 = vrcp.pop %v7773
      %v8286 = vrcp.pop %v7774
      %v8287 = vrcp.pop %v7775
      %v8288 = vrcp.pop %v7776
      %v8289 = vrcp.pop %v7777
      %v8290 = vrcp.pop %v7778
      %v8291 = vrcp.pop %v7779
      %v8292 = vrcp.pop %v7780
      %v8293 = vrcp.pop %v7781
      %v8294 = vrcp.pop %v7782
      %v8295 = vrcp.pop %v7783
      %v8296 = vrcp.pop %v7784
      %v8297 = vrcp.pop %v7785
      %v8298 = vrcp.pop %v7786
      %v8299 = vrcp.pop %v7787
      %v8300 = vrcp.pop %v7788
      %v8301 = vrcp.pop %v7789
      %v8302 = vrcp.pop %v7790
      %v8303 = vrcp.pop %v7791
      %v8304 = vrcp.pop %v7792
      %v8305 = vrcp.pop %v7793
      %v8306 = vrcp.pop %v7794
      %v8307 = vrcp.pop %v7795
      %v8308 = vrcp.pop %v7796
      %v8309 = vrcp.pop %v7797
      %v8310 = vrcp.pop %v7798
      %v8311 = vrcp.pop %v7799
      %v8312 = vrcp.pop %v7800
      %v8313 = vrcp.pop %v7801
      %v8314 = vrcp.pop %v7802
      %v8315 = vrcp.pop %v7803
      %v8316 = vrcp.pop %v7804
      %v8317 = vrcp.pop %v7805
      %v8318 = vrcp.pop %v7806
      %v8319 = vrcp.pop %v7807
      %v8320 = vrcp.pop %v7808
      %v8321 = vrcp.pop %v7809
      %v8322 = vrcp.pop %v7810
      %v8323 = vrcp.pop %v7811
      %v8324 = vrcp.pop %v7812
      %v8325 = vrcp.pop %v7813
      %v8326 = vrcp.pop %v7814
      %v8327 = vrcp.pop %v7815
      %v8328 = vrcp.pop %v7816
      %v8329 = vrcp.pop %v7817
      %v8330 = vrcp.pop %v7818
      %v8331 = vrcp.pop %v7819
      %v8332 = vrcp.pop %v7820
      %v8333 = vrcp.pop %v7821
      %v8334 = vrcp.pop %v7822
      %v8335 = vrcp.pop %v7823
      %v8336 = vrcp.pop %v7824
      %v8337 = vrcp.pop %v7825
      %v8338 = vrcp.pop %v7826
      %v8339 = vrcp.pop %v7827
      %v8340 = vrcp.pop %v7828
      %v8341 = vrcp.pop %v7829
      %v8342 = vrcp.pop %v7830
      %v8343 = vrcp.pop %v7831
      %v8344 = vrcp.pop %v7832
      %v8345 = vrcp.pop %v7833
      %v8346 = vrcp.pop %v7834
      %v8347 = vrcp.pop %v7835
      %v8348 = vrcp.pop %v7836
      %v8349 = vrcp.pop %v7837
      %v8350 = vrcp.pop %v7838
      %v8351 = vrcp.pop %v7839
      %v8352 = vrcp.pop %v7840
      %v8353 = vrcp.pop %v7841
      %v8354 = vrcp.pop %v7842
      %v8355 = vrcp.pop %v7843
      %v8356 = vrcp.pop %v7844
      %v8357 = vrcp.pop %v7845
      %v8358 = vrcp.pop %v7846
      %v8359 = vrcp.pop %v7847
      %v8360 = vrcp.pop %v7848
      %v8361 = vrcp.pop %v7849
      %v8362 = vrcp.pop %v7850
      %v8363 = vrcp.pop %v7851
      %v8364 = vrcp.pop %v7852
      %v8365 = vrcp.pop %v7853
      %v8366 = vrcp.pop %v7854
      %v8367 = vrcp.pop %v7855
      %v8368 = vrcp.pop %v7856
      %v8369 = vrcp.pop %v7857
      %v8370 = vrcp.pop %v7858
      %v8371 = vrcp.pop %v7859
      %v8372 = vrcp.pop %v7860
      %v8373 = vrcp.pop %v7861
      %v8374 = vrcp.pop %v7862
      %v8375 = vrcp.pop %v7863
      %v8376 = vrcp.pop %v7864
      %v8377 = vrcp.pop %v7865
      %v8378 = vrcp.pop %v7866
      %v8379 = vrcp.pop %v7867
      %v8380 = vrcp.pop %v7868
      %v8381 = vrcp.pop %v7869
      %v8382 = vrcp.pop %v7870
      %v8383 = vrcp.pop %v7871
      %v8384 = vrcp.pop %v7872
      %v8385 = vrcp.pop %v7873
      %v8386 = vrcp.pop %v7874
      %v8387 = vrcp.pop %v7875
      %v8388 = vrcp.pop %v7876
      %v8389 = vrcp.pop %v7877
      %v8390 = vrcp.pop %v7878
      %v8391 = vrcp.pop %v7879
      %v8392 = vrcp.pop %v7880
      %v8393 = vrcp.pop %v7881
      %v8394 = vrcp.pop %v7882
      %v8395 = vrcp.pop %v7883
      %v8396 = vrcp.pop %v7884
      %v8397 = vrcp.pop %v7885
      %v8398 = vrcp.pop %v7886
      %v8399 = vrcp.pop %v7887
      %v8400 = vrcp.pop %v7888
      %v8401 = vrcp.pop %v7889
      %v8402 = vrcp.pop %v7890
      %v8403 = vrcp.pop %v7891
      %v8404 = vrcp.pop %v7892
      %v8405 = vrcp.pop %v7893
      %v8406 = vrcp.pop %v7894
      %v8407 = vrcp.pop %v7895
      %v8408 = vrcp.pop %v7896
      %v8409 = vrcp.pop %v7897
      %v8410 = vrcp.pop %v7898
      %v8411 = vrcp.pop %v7899
      %v8412 = vrcp.pop %v7900
      %v8413 = vrcp.pop %v7901
      %v8414 = vrcp.pop %v7902
      %v8415 = vrcp.pop %v7903
      %v8416 = vrcp.pop %v7904
      %v8417 = vrcp.pop %v7905
      %v8418 = vrcp.pop %v7906
      %v8419 = vrcp.pop %v7907
      %v8420 = vrcp.pop %v7908
      %v8421 = vrcp.pop %v7909
      %v8422 = vrcp.pop %v7910
      %v8423 = vrcp.pop %v7911
      %v8424 = vrcp.pop %v7912
      %v8425 = vrcp.pop %v7913
      %v8426 = vrcp.pop %v7914
      %v8427 = vrcp.pop %v7915
      %v8428 = vrcp.pop %v7916
      %v8429 = vrcp.pop %v7917
      %v8430 = vrcp.pop %v7918
      %v8431 = vrcp.pop %v7919
      %v8432 = vrcp.pop %v7920
      %v8433 = vrcp.pop %v7921
      %v8434 = vrcp.pop %v7922
      %v8435 = vrcp.pop %v7923
      %v8436 = vrcp.pop %v7924
      %v8437 = vrcp.pop %v7925
      %v8438 = vrcp.pop %v7926
      %v8439 = vrcp.pop %v7927
      %v8440 = vrcp.pop %v7928
      %v8441 = vrcp.pop %v7929
      %v8442 = vrcp.pop %v7930
      %v8443 = vrcp.pop %v7931
      %v8444 = vrcp.pop %v7932
      %v8445 = vrcp.pop %v7933
      %v8446 = vrcp.pop %v7934
      %v8447 = vrcp.pop %v7935
      %v8448 = vrcp.pop %v7936
      %v8449 = vrcp.pop %v7937
      %v8450 = vrcp.pop %v7938
      %v8451 = vrcp.pop %v7939
      %v8452 = vrcp.pop %v7940
      %v8453 = vrcp.pop %v7941
      %v8454 = vrcp.pop %v7942
      %v8455 = vrcp.pop %v7943
      %v8456 = vrcp.pop %v7944
      %v8457 = vrcp.pop %v7945
      %v8458 = vrcp.pop %v7946
      %v8459 = vrcp.pop %v7947
      %v8460 = vrcp.pop %v7948
      %v8461 = vrcp.pop %v7949
      %v8462 = vrcp.pop %v7950
      %v8463 = vrcp.pop %v7951
      %v8464 = vrcp.pop %v7952
      %v8465 = vrcp.pop %v7953
      %v8466 = vrcp.pop %v7954
      %v8467 = vrcp.pop %v7955
      %v8468 = vrcp.pop %v7956
      %v8469 = vrcp.pop %v7957
      %v8470 = vrcp.pop %v7958
      %v8471 = vrcp.pop %v7959
      %v8472 = vrcp.pop %v7960
      %v8473 = vrcp.pop %v7961
      %v8474 = vrcp.pop %v7962
      %v8475 = vrcp.pop %v7963
      %v8476 = vrcp.pop %v7964
      %v8477 = vrcp.pop %v7965
      %v8478 = vrcp.pop %v7966
      %v8479 = vrcp.pop %v7967
      %v8480 = vrcp.pop %v7968
      %v8481 = vrcp.pop %v7969
      %v8482 = vrcp.pop %v7970
      %v8483 = vrcp.pop %v7971
      %v8484 = vrcp.pop %v7972
      %v8485 = vrcp.pop %v7973
      %v8486 = vrcp.pop %v7974
      %v8487 = vrcp.pop %v7975
      %v8488 = vrcp.pop %v7976
      %v8489 = vrcp.pop %v7977
      %v8490 = vrcp.pop %v7978
      %v8491 = vrcp.pop %v7979
      %v8492 = vrcp.pop %v7980
      %v8493 = vrcp.pop %v7981
      %v8494 = vrcp.pop %v7982
      %v8495 = vrcp.pop %v7983
      %v8496 = vrcp.pop %v7984
      %v8497 = vrcp.pop %v7985
      %v8498 = vrcp.pop %v7986
      %v8499 = vrcp.pop %v7987
      %v8500 = vrcp.pop %v7988
      %v8501 = vrcp.pop %v7989
      %v8502 = vrcp.pop %v7990
      %v8503 = vrcp.pop %v7991
      %v8504 = vrcp.pop %v7992
      %v8505 = vrcp.pop %v7993
      %v8506 = vrcp.pop %v7994
      %v8507 = vrcp.pop %v7995
      %v8508 = vrcp.pop %v7996
      %v8509 = vrcp.pop %v7997
      %v8510 = vrcp.pop %v7998
      %v8511 = vrcp.pop %v7999
      %v8512 = vrcp.pop %v8000
      %v8513 = vrcp.pop %v8001
      %v8514 = vrcp.pop %v8002
      %v8515 = vrcp.pop %v8003
      %v8516 = vrcp.pop %v8004
      %v8517 = vrcp.pop %v8005
      %v8518 = vrcp.pop %v8006
      %v8519 = vrcp.pop %v8007
      %v8520 = vrcp.pop %v8008
      %v8521 = vrcp.pop %v8009
      %v8522 = vrcp.pop %v8010
      %v8523 = vrcp.pop %v8011
      %v8524 = vrcp.pop %v8012
      %v8525 = vrcp.pop %v8013
      %v8526 = vrcp.pop %v8014
      %v8527 = vrcp.pop %v8015
      %v8528 = vrcp.pop %v8016
      %v8529 = vmul.f32 %v5457, %v8017
      %v8530 = vmul.f32 %v5458, %v8018
      %v8531 = vmul.f32 %v5459, %v8019
      %v8532 = vmul.f32 %v5460, %v8020
      %v8533 = vmul.f32 %v5461, %v8021
      %v8534 = vmul.f32 %v5462, %v8022
      %v8535 = vmul.f32 %v5463, %v8023
      %v8536 = vmul.f32 %v5464, %v8024
      %v8537 = vmul.f32 %v5465, %v8025
      %v8538 = vmul.f32 %v5466, %v8026
      %v8539 = vmul.f32 %v5467, %v8027
      %v8540 = vmul.f32 %v5468, %v8028
      %v8541 = vmul.f32 %v5469, %v8029
      %v8542 = vmul.f32 %v5470, %v8030
      %v8543 = vmul.f32 %v5471, %v8031
      %v8544 = vmul.f32 %v5472, %v8032
      %v8545 = vmul.f32 %v5473, %v8033
      %v8546 = vmul.f32 %v5474, %v8034
      %v8547 = vmul.f32 %v5475, %v8035
      %v8548 = vmul.f32 %v5476, %v8036
      %v8549 = vmul.f32 %v5477, %v8037
      %v8550 = vmul.f32 %v5478, %v8038
      %v8551 = vmul.f32 %v5479, %v8039
      %v8552 = vmul.f32 %v5480, %v8040
      %v8553 = vmul.f32 %v5481, %v8041
      %v8554 = vmul.f32 %v5482, %v8042
      %v8555 = vmul.f32 %v5483, %v8043
      %v8556 = vmul.f32 %v5484, %v8044
      %v8557 = vmul.f32 %v5485, %v8045
      %v8558 = vmul.f32 %v5486, %v8046
      %v8559 = vmul.f32 %v5487, %v8047
      %v8560 = vmul.f32 %v5488, %v8048
      %v8561 = vmul.f32 %v5489, %v8049
      %v8562 = vmul.f32 %v5490, %v8050
      %v8563 = vmul.f32 %v5491, %v8051
      %v8564 = vmul.f32 %v5492, %v8052
      %v8565 = vmul.f32 %v5493, %v8053
      %v8566 = vmul.f32 %v5494, %v8054
      %v8567 = vmul.f32 %v5495, %v8055
      %v8568 = vmul.f32 %v5496, %v8056
      %v8569 = vmul.f32 %v5497, %v8057
      %v8570 = vmul.f32 %v5498, %v8058
      %v8571 = vmul.f32 %v5499, %v8059
      %v8572 = vmul.f32 %v5500, %v8060
      %v8573 = vmul.f32 %v5501, %v8061
      %v8574 = vmul.f32 %v5502, %v8062
      %v8575 = vmul.f32 %v5503, %v8063
      %v8576 = vmul.f32 %v5504, %v8064
      %v8577 = vmul.f32 %v5505, %v8065
      %v8578 = vmul.f32 %v5506, %v8066
      %v8579 = vmul.f32 %v5507, %v8067
      %v8580 = vmul.f32 %v5508, %v8068
      %v8581 = vmul.f32 %v5509, %v8069
      %v8582 = vmul.f32 %v5510, %v8070
      %v8583 = vmul.f32 %v5511, %v8071
      %v8584 = vmul.f32 %v5512, %v8072
      %v8585 = vmul.f32 %v5513, %v8073
      %v8586 = vmul.f32 %v5514, %v8074
      %v8587 = vmul.f32 %v5515, %v8075
      %v8588 = vmul.f32 %v5516, %v8076
      %v8589 = vmul.f32 %v5517, %v8077
      %v8590 = vmul.f32 %v5518, %v8078
      %v8591 = vmul.f32 %v5519, %v8079
      %v8592 = vmul.f32 %v5520, %v8080
      %v8593 = vmul.f32 %v5521, %v8081
      %v8594 = vmul.f32 %v5522, %v8082
      %v8595 = vmul.f32 %v5523, %v8083
      %v8596 = vmul.f32 %v5524, %v8084
      %v8597 = vmul.f32 %v5525, %v8085
      %v8598 = vmul.f32 %v5526, %v8086
      %v8599 = vmul.f32 %v5527, %v8087
      %v8600 = vmul.f32 %v5528, %v8088
      %v8601 = vmul.f32 %v5529, %v8089
      %v8602 = vmul.f32 %v5530, %v8090
      %v8603 = vmul.f32 %v5531, %v8091
      %v8604 = vmul.f32 %v5532, %v8092
      %v8605 = vmul.f32 %v5533, %v8093
      %v8606 = vmul.f32 %v5534, %v8094
      %v8607 = vmul.f32 %v5535, %v8095
      %v8608 = vmul.f32 %v5536, %v8096
      %v8609 = vmul.f32 %v5537, %v8097
      %v8610 = vmul.f32 %v5538, %v8098
      %v8611 = vmul.f32 %v5539, %v8099
      %v8612 = vmul.f32 %v5540, %v8100
      %v8613 = vmul.f32 %v5541, %v8101
      %v8614 = vmul.f32 %v5542, %v8102
      %v8615 = vmul.f32 %v5543, %v8103
      %v8616 = vmul.f32 %v5544, %v8104
      %v8617 = vmul.f32 %v5545, %v8105
      %v8618 = vmul.f32 %v5546, %v8106
      %v8619 = vmul.f32 %v5547, %v8107
      %v8620 = vmul.f32 %v5548, %v8108
      %v8621 = vmul.f32 %v5549, %v8109
      %v8622 = vmul.f32 %v5550, %v8110
      %v8623 = vmul.f32 %v5551, %v8111
      %v8624 = vmul.f32 %v5552, %v8112
      %v8625 = vmul.f32 %v5553, %v8113
      %v8626 = vmul.f32 %v5554, %v8114
      %v8627 = vmul.f32 %v5555, %v8115
      %v8628 = vmul.f32 %v5556, %v8116
      %v8629 = vmul.f32 %v5557, %v8117
      %v8630 = vmul.f32 %v5558, %v8118
      %v8631 = vmul.f32 %v5559, %v8119
      %v8632 = vmul.f32 %v5560, %v8120
      %v8633 = vmul.f32 %v5561, %v8121
      %v8634 = vmul.f32 %v5562, %v8122
      %v8635 = vmul.f32 %v5563, %v8123
      %v8636 = vmul.f32 %v5564, %v8124
      %v8637 = vmul.f32 %v5565, %v8125
      %v8638 = vmul.f32 %v5566, %v8126
      %v8639 = vmul.f32 %v5567, %v8127
      %v8640 = vmul.f32 %v5568, %v8128
      %v8641 = vmul.f32 %v5569, %v8129
      %v8642 = vmul.f32 %v5570, %v8130
      %v8643 = vmul.f32 %v5571, %v8131
      %v8644 = vmul.f32 %v5572, %v8132
      %v8645 = vmul.f32 %v5573, %v8133
      %v8646 = vmul.f32 %v5574, %v8134
      %v8647 = vmul.f32 %v5575, %v8135
      %v8648 = vmul.f32 %v5576, %v8136
      %v8649 = vmul.f32 %v5577, %v8137
      %v8650 = vmul.f32 %v5578, %v8138
      %v8651 = vmul.f32 %v5579, %v8139
      %v8652 = vmul.f32 %v5580, %v8140
      %v8653 = vmul.f32 %v5581, %v8141
      %v8654 = vmul.f32 %v5582, %v8142
      %v8655 = vmul.f32 %v5583, %v8143
      %v8656 = vmul.f32 %v5584, %v8144
      %v8657 = vmul.f32 %v5585, %v8145
      %v8658 = vmul.f32 %v5586, %v8146
      %v8659 = vmul.f32 %v5587, %v8147
      %v8660 = vmul.f32 %v5588, %v8148
      %v8661 = vmul.f32 %v5589, %v8149
      %v8662 = vmul.f32 %v5590, %v8150
      %v8663 = vmul.f32 %v5591, %v8151
      %v8664 = vmul.f32 %v5592, %v8152
      %v8665 = vmul.f32 %v5593, %v8153
      %v8666 = vmul.f32 %v5594, %v8154
      %v8667 = vmul.f32 %v5595, %v8155
      %v8668 = vmul.f32 %v5596, %v8156
      %v8669 = vmul.f32 %v5597, %v8157
      %v8670 = vmul.f32 %v5598, %v8158
      %v8671 = vmul.f32 %v5599, %v8159
      %v8672 = vmul.f32 %v5600, %v8160
      %v8673 = vmul.f32 %v5601, %v8161
      %v8674 = vmul.f32 %v5602, %v8162
      %v8675 = vmul.f32 %v5603, %v8163
      %v8676 = vmul.f32 %v5604, %v8164
      %v8677 = vmul.f32 %v5605, %v8165
      %v8678 = vmul.f32 %v5606, %v8166
      %v8679 = vmul.f32 %v5607, %v8167
      %v8680 = vmul.f32 %v5608, %v8168
      %v8681 = vmul.f32 %v5609, %v8169
      %v8682 = vmul.f32 %v5610, %v8170
      %v8683 = vmul.f32 %v5611, %v8171
      %v8684 = vmul.f32 %v5612, %v8172
      %v8685 = vmul.f32 %v5613, %v8173
      %v8686 = vmul.f32 %v5614, %v8174
      %v8687 = vmul.f32 %v5615, %v8175
      %v8688 = vmul.f32 %v5616, %v8176
      %v8689 = vmul.f32 %v5617, %v8177
      %v8690 = vmul.f32 %v5618, %v8178
      %v8691 = vmul.f32 %v5619, %v8179
      %v8692 = vmul.f32 %v5620, %v8180
      %v8693 = vmul.f32 %v5621, %v8181
      %v8694 = vmul.f32 %v5622, %v8182
      %v8695 = vmul.f32 %v5623, %v8183
      %v8696 = vmul.f32 %v5624, %v8184
      %v8697 = vmul.f32 %v5625, %v8185
      %v8698 = vmul.f32 %v5626, %v8186
      %v8699 = vmul.f32 %v5627, %v8187
      %v8700 = vmul.f32 %v5628, %v8188
      %v8701 = vmul.f32 %v5629, %v8189
      %v8702 = vmul.f32 %v5630, %v8190
      %v8703 = vmul.f32 %v5631, %v8191
      %v8704 = vmul.f32 %v5632, %v8192
      %v8705 = vmul.f32 %v5633, %v8193
      %v8706 = vmul.f32 %v5634, %v8194
      %v8707 = vmul.f32 %v5635, %v8195
      %v8708 = vmul.f32 %v5636, %v8196
      %v8709 = vmul.f32 %v5637, %v8197
      %v8710 = vmul.f32 %v5638, %v8198
      %v8711 = vmul.f32 %v5639, %v8199
      %v8712 = vmul.f32 %v5640, %v8200
      %v8713 = vmul.f32 %v5641, %v8201
      %v8714 = vmul.f32 %v5642, %v8202
      %v8715 = vmul.f32 %v5643, %v8203
      %v8716 = vmul.f32 %v5644, %v8204
      %v8717 = vmul.f32 %v5645, %v8205
      %v8718 = vmul.f32 %v5646, %v8206
      %v8719 = vmul.f32 %v5647, %v8207
      %v8720 = vmul.f32 %v5648, %v8208
      %v8721 = vmul.f32 %v5649, %v8209
      %v8722 = vmul.f32 %v5650, %v8210
      %v8723 = vmul.f32 %v5651, %v8211
      %v8724 = vmul.f32 %v5652, %v8212
      %v8725 = vmul.f32 %v5653, %v8213
      %v8726 = vmul.f32 %v5654, %v8214
      %v8727 = vmul.f32 %v5655, %v8215
      %v8728 = vmul.f32 %v5656, %v8216
      %v8729 = vmul.f32 %v5657, %v8217
      %v8730 = vmul.f32 %v5658, %v8218
      %v8731 = vmul.f32 %v5659, %v8219
      %v8732 = vmul.f32 %v5660, %v8220
      %v8733 = vmul.f32 %v5661, %v8221
      %v8734 = vmul.f32 %v5662, %v8222
      %v8735 = vmul.f32 %v5663, %v8223
      %v8736 = vmul.f32 %v5664, %v8224
      %v8737 = vmul.f32 %v5665, %v8225
      %v8738 = vmul.f32 %v5666, %v8226
      %v8739 = vmul.f32 %v5667, %v8227
      %v8740 = vmul.f32 %v5668, %v8228
      %v8741 = vmul.f32 %v5669, %v8229
      %v8742 = vmul.f32 %v5670, %v8230
      %v8743 = vmul.f32 %v5671, %v8231
      %v8744 = vmul.f32 %v5672, %v8232
      %v8745 = vmul.f32 %v5673, %v8233
      %v8746 = vmul.f32 %v5674, %v8234
      %v8747 = vmul.f32 %v5675, %v8235
      %v8748 = vmul.f32 %v5676, %v8236
      %v8749 = vmul.f32 %v5677, %v8237
      %v8750 = vmul.f32 %v5678, %v8238
      %v8751 = vmul.f32 %v5679, %v8239
      %v8752 = vmul.f32 %v5680, %v8240
      %v8753 = vmul.f32 %v5681, %v8241
      %v8754 = vmul.f32 %v5682, %v8242
      %v8755 = vmul.f32 %v5683, %v8243
      %v8756 = vmul.f32 %v5684, %v8244
      %v8757 = vmul.f32 %v5685, %v8245
      %v8758 = vmul.f32 %v5686, %v8246
      %v8759 = vmul.f32 %v5687, %v8247
      %v8760 = vmul.f32 %v5688, %v8248
      %v8761 = vmul.f32 %v5689, %v8249
      %v8762 = vmul.f32 %v5690, %v8250
      %v8763 = vmul.f32 %v5691, %v8251
      %v8764 = vmul.f32 %v5692, %v8252
      %v8765 = vmul.f32 %v5693, %v8253
      %v8766 = vmul.f32 %v5694, %v8254
      %v8767 = vmul.f32 %v5695, %v8255
      %v8768 = vmul.f32 %v5696, %v8256
      %v8769 = vmul.f32 %v5697, %v8257
      %v8770 = vmul.f32 %v5698, %v8258
      %v8771 = vmul.f32 %v5699, %v8259
      %v8772 = vmul.f32 %v5700, %v8260
      %v8773 = vmul.f32 %v5701, %v8261
      %v8774 = vmul.f32 %v5702, %v8262
      %v8775 = vmul.f32 %v5703, %v8263
      %v8776 = vmul.f32 %v5704, %v8264
      %v8777 = vmul.f32 %v5705, %v8265
      %v8778 = vmul.f32 %v5706, %v8266
      %v8779 = vmul.f32 %v5707, %v8267
      %v8780 = vmul.f32 %v5708, %v8268
      %v8781 = vmul.f32 %v5709, %v8269
      %v8782 = vmul.f32 %v5710, %v8270
      %v8783 = vmul.f32 %v5711, %v8271
      %v8784 = vmul.f32 %v5712, %v8272
      %v8785 = vmul.f32 %v5713, %v8273
      %v8786 = vmul.f32 %v5714, %v8274
      %v8787 = vmul.f32 %v5715, %v8275
      %v8788 = vmul.f32 %v5716, %v8276
      %v8789 = vmul.f32 %v5717, %v8277
      %v8790 = vmul.f32 %v5718, %v8278
      %v8791 = vmul.f32 %v5719, %v8279
      %v8792 = vmul.f32 %v5720, %v8280
      %v8793 = vmul.f32 %v5721, %v8281
      %v8794 = vmul.f32 %v5722, %v8282
      %v8795 = vmul.f32 %v5723, %v8283
      %v8796 = vmul.f32 %v5724, %v8284
      %v8797 = vmul.f32 %v5725, %v8285
      %v8798 = vmul.f32 %v5726, %v8286
      %v8799 = vmul.f32 %v5727, %v8287
      %v8800 = vmul.f32 %v5728, %v8288
      %v8801 = vmul.f32 %v5729, %v8289
      %v8802 = vmul.f32 %v5730, %v8290
      %v8803 = vmul.f32 %v5731, %v8291
      %v8804 = vmul.f32 %v5732, %v8292
      %v8805 = vmul.f32 %v5733, %v8293
      %v8806 = vmul.f32 %v5734, %v8294
      %v8807 = vmul.f32 %v5735, %v8295
      %v8808 = vmul.f32 %v5736, %v8296
      %v8809 = vmul.f32 %v5737, %v8297
      %v8810 = vmul.f32 %v5738, %v8298
      %v8811 = vmul.f32 %v5739, %v8299
      %v8812 = vmul.f32 %v5740, %v8300
      %v8813 = vmul.f32 %v5741, %v8301
      %v8814 = vmul.f32 %v5742, %v8302
      %v8815 = vmul.f32 %v5743, %v8303
      %v8816 = vmul.f32 %v5744, %v8304
      %v8817 = vmul.f32 %v5745, %v8305
      %v8818 = vmul.f32 %v5746, %v8306
      %v8819 = vmul.f32 %v5747, %v8307
      %v8820 = vmul.f32 %v5748, %v8308
      %v8821 = vmul.f32 %v5749, %v8309
      %v8822 = vmul.f32 %v5750, %v8310
      %v8823 = vmul.f32 %v5751, %v8311
      %v8824 = vmul.f32 %v5752, %v8312
      %v8825 = vmul.f32 %v5753, %v8313
      %v8826 = vmul.f32 %v5754, %v8314
      %v8827 = vmul.f32 %v5755, %v8315
      %v8828 = vmul.f32 %v5756, %v8316
      %v8829 = vmul.f32 %v5757, %v8317
      %v8830 = vmul.f32 %v5758, %v8318
      %v8831 = vmul.f32 %v5759, %v8319
      %v8832 = vmul.f32 %v5760, %v8320
      %v8833 = vmul.f32 %v5761, %v8321
      %v8834 = vmul.f32 %v5762, %v8322
      %v8835 = vmul.f32 %v5763, %v8323
      %v8836 = vmul.f32 %v5764, %v8324
      %v8837 = vmul.f32 %v5765, %v8325
      %v8838 = vmul.f32 %v5766, %v8326
      %v8839 = vmul.f32 %v5767, %v8327
      %v8840 = vmul.f32 %v5768, %v8328
      %v8841 = vmul.f32 %v5769, %v8329
      %v8842 = vmul.f32 %v5770, %v8330
      %v8843 = vmul.f32 %v5771, %v8331
      %v8844 = vmul.f32 %v5772, %v8332
      %v8845 = vmul.f32 %v5773, %v8333
      %v8846 = vmul.f32 %v5774, %v8334
      %v8847 = vmul.f32 %v5775, %v8335
      %v8848 = vmul.f32 %v5776, %v8336
      %v8849 = vmul.f32 %v5777, %v8337
      %v8850 = vmul.f32 %v5778, %v8338
      %v8851 = vmul.f32 %v5779, %v8339
      %v8852 = vmul.f32 %v5780, %v8340
      %v8853 = vmul.f32 %v5781, %v8341
      %v8854 = vmul.f32 %v5782, %v8342
      %v8855 = vmul.f32 %v5783, %v8343
      %v8856 = vmul.f32 %v5784, %v8344
      %v8857 = vmul.f32 %v5785, %v8345
      %v8858 = vmul.f32 %v5786, %v8346
      %v8859 = vmul.f32 %v5787, %v8347
      %v8860 = vmul.f32 %v5788, %v8348
      %v8861 = vmul.f32 %v5789, %v8349
      %v8862 = vmul.f32 %v5790, %v8350
      %v8863 = vmul.f32 %v5791, %v8351
      %v8864 = vmul.f32 %v5792, %v8352
      %v8865 = vmul.f32 %v5793, %v8353
      %v8866 = vmul.f32 %v5794, %v8354
      %v8867 = vmul.f32 %v5795, %v8355
      %v8868 = vmul.f32 %v5796, %v8356
      %v8869 = vmul.f32 %v5797, %v8357
      %v8870 = vmul.f32 %v5798, %v8358
      %v8871 = vmul.f32 %v5799, %v8359
      %v8872 = vmul.f32 %v5800, %v8360
      %v8873 = vmul.f32 %v5801, %v8361
      %v8874 = vmul.f32 %v5802, %v8362
      %v8875 = vmul.f32 %v5803, %v8363
      %v8876 = vmul.f32 %v5804, %v8364
      %v8877 = vmul.f32 %v5805, %v8365
      %v8878 = vmul.f32 %v5806, %v8366
      %v8879 = vmul.f32 %v5807, %v8367
      %v8880 = vmul.f32 %v5808, %v8368
      %v8881 = vmul.f32 %v5809, %v8369
      %v8882 = vmul.f32 %v5810, %v8370
      %v8883 = vmul.f32 %v5811, %v8371
      %v8884 = vmul.f32 %v5812, %v8372
      %v8885 = vmul.f32 %v5813, %v8373
      %v8886 = vmul.f32 %v5814, %v8374
      %v8887 = vmul.f32 %v5815, %v8375
      %v8888 = vmul.f32 %v5816, %v8376
      %v8889 = vmul.f32 %v5817, %v8377
      %v8890 = vmul.f32 %v5818, %v8378
      %v8891 = vmul.f32 %v5819, %v8379
      %v8892 = vmul.f32 %v5820, %v8380
      %v8893 = vmul.f32 %v5821, %v8381
      %v8894 = vmul.f32 %v5822, %v8382
      %v8895 = vmul.f32 %v5823, %v8383
      %v8896 = vmul.f32 %v5824, %v8384
      %v8897 = vmul.f32 %v5825, %v8385
      %v8898 = vmul.f32 %v5826, %v8386
      %v8899 = vmul.f32 %v5827, %v8387
      %v8900 = vmul.f32 %v5828, %v8388
      %v8901 = vmul.f32 %v5829, %v8389
      %v8902 = vmul.f32 %v5830, %v8390
      %v8903 = vmul.f32 %v5831, %v8391
      %v8904 = vmul.f32 %v5832, %v8392
      %v8905 = vmul.f32 %v5833, %v8393
      %v8906 = vmul.f32 %v5834, %v8394
      %v8907 = vmul.f32 %v5835, %v8395
      %v8908 = vmul.f32 %v5836, %v8396
      %v8909 = vmul.f32 %v5837, %v8397
      %v8910 = vmul.f32 %v5838, %v8398
      %v8911 = vmul.f32 %v5839, %v8399
      %v8912 = vmul.f32 %v5840, %v8400
      %v8913 = vmul.f32 %v5841, %v8401
      %v8914 = vmul.f32 %v5842, %v8402
      %v8915 = vmul.f32 %v5843, %v8403
      %v8916 = vmul.f32 %v5844, %v8404
      %v8917 = vmul.f32 %v5845, %v8405
      %v8918 = vmul.f32 %v5846, %v8406
      %v8919 = vmul.f32 %v5847, %v8407
      %v8920 = vmul.f32 %v5848, %v8408
      %v8921 = vmul.f32 %v5849, %v8409
      %v8922 = vmul.f32 %v5850, %v8410
      %v8923 = vmul.f32 %v5851, %v8411
      %v8924 = vmul.f32 %v5852, %v8412
      %v8925 = vmul.f32 %v5853, %v8413
      %v8926 = vmul.f32 %v5854, %v8414
      %v8927 = vmul.f32 %v5855, %v8415
      %v8928 = vmul.f32 %v5856, %v8416
      %v8929 = vmul.f32 %v5857, %v8417
      %v8930 = vmul.f32 %v5858, %v8418
      %v8931 = vmul.f32 %v5859, %v8419
      %v8932 = vmul.f32 %v5860, %v8420
      %v8933 = vmul.f32 %v5861, %v8421
      %v8934 = vmul.f32 %v5862, %v8422
      %v8935 = vmul.f32 %v5863, %v8423
      %v8936 = vmul.f32 %v5864, %v8424
      %v8937 = vmul.f32 %v5865, %v8425
      %v8938 = vmul.f32 %v5866, %v8426
      %v8939 = vmul.f32 %v5867, %v8427
      %v8940 = vmul.f32 %v5868, %v8428
      %v8941 = vmul.f32 %v5869, %v8429
      %v8942 = vmul.f32 %v5870, %v8430
      %v8943 = vmul.f32 %v5871, %v8431
      %v8944 = vmul.f32 %v5872, %v8432
      %v8945 = vmul.f32 %v5873, %v8433
      %v8946 = vmul.f32 %v5874, %v8434
      %v8947 = vmul.f32 %v5875, %v8435
      %v8948 = vmul.f32 %v5876, %v8436
      %v8949 = vmul.f32 %v5877, %v8437
      %v8950 = vmul.f32 %v5878, %v8438
      %v8951 = vmul.f32 %v5879, %v8439
      %v8952 = vmul.f32 %v5880, %v8440
      %v8953 = vmul.f32 %v5881, %v8441
      %v8954 = vmul.f32 %v5882, %v8442
      %v8955 = vmul.f32 %v5883, %v8443
      %v8956 = vmul.f32 %v5884, %v8444
      %v8957 = vmul.f32 %v5885, %v8445
      %v8958 = vmul.f32 %v5886, %v8446
      %v8959 = vmul.f32 %v5887, %v8447
      %v8960 = vmul.f32 %v5888, %v8448
      %v8961 = vmul.f32 %v5889, %v8449
      %v8962 = vmul.f32 %v5890, %v8450
      %v8963 = vmul.f32 %v5891, %v8451
      %v8964 = vmul.f32 %v5892, %v8452
      %v8965 = vmul.f32 %v5893, %v8453
      %v8966 = vmul.f32 %v5894, %v8454
      %v8967 = vmul.f32 %v5895, %v8455
      %v8968 = vmul.f32 %v5896, %v8456
      %v8969 = vmul.f32 %v5897, %v8457
      %v8970 = vmul.f32 %v5898, %v8458
      %v8971 = vmul.f32 %v5899, %v8459
      %v8972 = vmul.f32 %v5900, %v8460
      %v8973 = vmul.f32 %v5901, %v8461
      %v8974 = vmul.f32 %v5902, %v8462
      %v8975 = vmul.f32 %v5903, %v8463
      %v8976 = vmul.f32 %v5904, %v8464
      %v8977 = vmul.f32 %v5905, %v8465
      %v8978 = vmul.f32 %v5906, %v8466
      %v8979 = vmul.f32 %v5907, %v8467
      %v8980 = vmul.f32 %v5908, %v8468
      %v8981 = vmul.f32 %v5909, %v8469
      %v8982 = vmul.f32 %v5910, %v8470
      %v8983 = vmul.f32 %v5911, %v8471
      %v8984 = vmul.f32 %v5912, %v8472
      %v8985 = vmul.f32 %v5913, %v8473
      %v8986 = vmul.f32 %v5914, %v8474
      %v8987 = vmul.f32 %v5915, %v8475
      %v8988 = vmul.f32 %v5916, %v8476
      %v8989 = vmul.f32 %v5917, %v8477
      %v8990 = vmul.f32 %v5918, %v8478
      %v8991 = vmul.f32 %v5919, %v8479
      %v8992 = vmul.f32 %v5920, %v8480
      %v8993 = vmul.f32 %v5921, %v8481
      %v8994 = vmul.f32 %v5922, %v8482
      %v8995 = vmul.f32 %v5923, %v8483
      %v8996 = vmul.f32 %v5924, %v8484
      %v8997 = vmul.f32 %v5925, %v8485
      %v8998 = vmul.f32 %v5926, %v8486
      %v8999 = vmul.f32 %v5927, %v8487
      %v9000 = vmul.f32 %v5928, %v8488
      %v9001 = vmul.f32 %v5929, %v8489
      %v9002 = vmul.f32 %v5930, %v8490
      %v9003 = vmul.f32 %v5931, %v8491
      %v9004 = vmul.f32 %v5932, %v8492
      %v9005 = vmul.f32 %v5933, %v8493
      %v9006 = vmul.f32 %v5934, %v8494
      %v9007 = vmul.f32 %v5935, %v8495
      %v9008 = vmul.f32 %v5936, %v8496
      %v9009 = vmul.f32 %v5937, %v8497
      %v9010 = vmul.f32 %v5938, %v8498
      %v9011 = vmul.f32 %v5939, %v8499
      %v9012 = vmul.f32 %v5940, %v8500
      %v9013 = vmul.f32 %v5941, %v8501
      %v9014 = vmul.f32 %v5942, %v8502
      %v9015 = vmul.f32 %v5943, %v8503
      %v9016 = vmul.f32 %v5944, %v8504
      %v9017 = vmul.f32 %v5945, %v8505
      %v9018 = vmul.f32 %v5946, %v8506
      %v9019 = vmul.f32 %v5947, %v8507
      %v9020 = vmul.f32 %v5948, %v8508
      %v9021 = vmul.f32 %v5949, %v8509
      %v9022 = vmul.f32 %v5950, %v8510
      %v9023 = vmul.f32 %v5951, %v8511
      %v9024 = vmul.f32 %v5952, %v8512
      %v9025 = vmul.f32 %v5953, %v8513
      %v9026 = vmul.f32 %v5954, %v8514
      %v9027 = vmul.f32 %v5955, %v8515
      %v9028 = vmul.f32 %v5956, %v8516
      %v9029 = vmul.f32 %v5957, %v8517
      %v9030 = vmul.f32 %v5958, %v8518
      %v9031 = vmul.f32 %v5959, %v8519
      %v9032 = vmul.f32 %v5960, %v8520
      %v9033 = vmul.f32 %v5961, %v8521
      %v9034 = vmul.f32 %v5962, %v8522
      %v9035 = vmul.f32 %v5963, %v8523
      %v9036 = vmul.f32 %v5964, %v8524
      %v9037 = vmul.f32 %v5965, %v8525
      %v9038 = vmul.f32 %v5966, %v8526
      %v9039 = vmul.f32 %v5967, %v8527
      %v9040 = vmul.f32 %v5968, %v8528
      %v9041 = vpack.c.bf16 %v8530, %v8529
      %v9042 = vpack.c.bf16 %v8532, %v8531
      %v9043 = vpack.c.bf16 %v8534, %v8533
      %v9044 = vpack.c.bf16 %v8536, %v8535
      %v9045 = vpack.c.bf16 %v8538, %v8537
      %v9046 = vpack.c.bf16 %v8540, %v8539
      %v9047 = vpack.c.bf16 %v8542, %v8541
      %v9048 = vpack.c.bf16 %v8544, %v8543
      %v9049 = vpack.c.bf16 %v8546, %v8545
      %v9050 = vpack.c.bf16 %v8548, %v8547
      %v9051 = vpack.c.bf16 %v8550, %v8549
      %v9052 = vpack.c.bf16 %v8552, %v8551
      %v9053 = vpack.c.bf16 %v8554, %v8553
      %v9054 = vpack.c.bf16 %v8556, %v8555
      %v9055 = vpack.c.bf16 %v8558, %v8557
      %v9056 = vpack.c.bf16 %v8560, %v8559
      %v9057 = vpack.c.bf16 %v8562, %v8561
      %v9058 = vpack.c.bf16 %v8564, %v8563
      %v9059 = vpack.c.bf16 %v8566, %v8565
      %v9060 = vpack.c.bf16 %v8568, %v8567
      %v9061 = vpack.c.bf16 %v8570, %v8569
      %v9062 = vpack.c.bf16 %v8572, %v8571
      %v9063 = vpack.c.bf16 %v8574, %v8573
      %v9064 = vpack.c.bf16 %v8576, %v8575
      %v9065 = vpack.c.bf16 %v8578, %v8577
      %v9066 = vpack.c.bf16 %v8580, %v8579
      %v9067 = vpack.c.bf16 %v8582, %v8581
      %v9068 = vpack.c.bf16 %v8584, %v8583
      %v9069 = vpack.c.bf16 %v8586, %v8585
      %v9070 = vpack.c.bf16 %v8588, %v8587
      %v9071 = vpack.c.bf16 %v8590, %v8589
      %v9072 = vpack.c.bf16 %v8592, %v8591
      %v9073 = vpack.c.bf16 %v8594, %v8593
      %v9074 = vpack.c.bf16 %v8596, %v8595
      %v9075 = vpack.c.bf16 %v8598, %v8597
      %v9076 = vpack.c.bf16 %v8600, %v8599
      %v9077 = vpack.c.bf16 %v8602, %v8601
      %v9078 = vpack.c.bf16 %v8604, %v8603
      %v9079 = vpack.c.bf16 %v8606, %v8605
      %v9080 = vpack.c.bf16 %v8608, %v8607
      %v9081 = vpack.c.bf16 %v8610, %v8609
      %v9082 = vpack.c.bf16 %v8612, %v8611
      %v9083 = vpack.c.bf16 %v8614, %v8613
      %v9084 = vpack.c.bf16 %v8616, %v8615
      %v9085 = vpack.c.bf16 %v8618, %v8617
      %v9086 = vpack.c.bf16 %v8620, %v8619
      %v9087 = vpack.c.bf16 %v8622, %v8621
      %v9088 = vpack.c.bf16 %v8624, %v8623
      %v9089 = vpack.c.bf16 %v8626, %v8625
      %v9090 = vpack.c.bf16 %v8628, %v8627
      %v9091 = vpack.c.bf16 %v8630, %v8629
      %v9092 = vpack.c.bf16 %v8632, %v8631
      %v9093 = vpack.c.bf16 %v8634, %v8633
      %v9094 = vpack.c.bf16 %v8636, %v8635
      %v9095 = vpack.c.bf16 %v8638, %v8637
      %v9096 = vpack.c.bf16 %v8640, %v8639
      %v9097 = vpack.c.bf16 %v8642, %v8641
      %v9098 = vpack.c.bf16 %v8644, %v8643
      %v9099 = vpack.c.bf16 %v8646, %v8645
      %v9100 = vpack.c.bf16 %v8648, %v8647
      %v9101 = vpack.c.bf16 %v8650, %v8649
      %v9102 = vpack.c.bf16 %v8652, %v8651
      %v9103 = vpack.c.bf16 %v8654, %v8653
      %v9104 = vpack.c.bf16 %v8656, %v8655
      %v9105 = vpack.c.bf16 %v8658, %v8657
      %v9106 = vpack.c.bf16 %v8660, %v8659
      %v9107 = vpack.c.bf16 %v8662, %v8661
      %v9108 = vpack.c.bf16 %v8664, %v8663
      %v9109 = vpack.c.bf16 %v8666, %v8665
      %v9110 = vpack.c.bf16 %v8668, %v8667
      %v9111 = vpack.c.bf16 %v8670, %v8669
      %v9112 = vpack.c.bf16 %v8672, %v8671
      %v9113 = vpack.c.bf16 %v8674, %v8673
      %v9114 = vpack.c.bf16 %v8676, %v8675
      %v9115 = vpack.c.bf16 %v8678, %v8677
      %v9116 = vpack.c.bf16 %v8680, %v8679
      %v9117 = vpack.c.bf16 %v8682, %v8681
      %v9118 = vpack.c.bf16 %v8684, %v8683
      %v9119 = vpack.c.bf16 %v8686, %v8685
      %v9120 = vpack.c.bf16 %v8688, %v8687
      %v9121 = vpack.c.bf16 %v8690, %v8689
      %v9122 = vpack.c.bf16 %v8692, %v8691
      %v9123 = vpack.c.bf16 %v8694, %v8693
      %v9124 = vpack.c.bf16 %v8696, %v8695
      %v9125 = vpack.c.bf16 %v8698, %v8697
      %v9126 = vpack.c.bf16 %v8700, %v8699
      %v9127 = vpack.c.bf16 %v8702, %v8701
      %v9128 = vpack.c.bf16 %v8704, %v8703
      %v9129 = vpack.c.bf16 %v8706, %v8705
      %v9130 = vpack.c.bf16 %v8708, %v8707
      %v9131 = vpack.c.bf16 %v8710, %v8709
      %v9132 = vpack.c.bf16 %v8712, %v8711
      %v9133 = vpack.c.bf16 %v8714, %v8713
      %v9134 = vpack.c.bf16 %v8716, %v8715
      %v9135 = vpack.c.bf16 %v8718, %v8717
      %v9136 = vpack.c.bf16 %v8720, %v8719
      %v9137 = vpack.c.bf16 %v8722, %v8721
      %v9138 = vpack.c.bf16 %v8724, %v8723
      %v9139 = vpack.c.bf16 %v8726, %v8725
      %v9140 = vpack.c.bf16 %v8728, %v8727
      %v9141 = vpack.c.bf16 %v8730, %v8729
      %v9142 = vpack.c.bf16 %v8732, %v8731
      %v9143 = vpack.c.bf16 %v8734, %v8733
      %v9144 = vpack.c.bf16 %v8736, %v8735
      %v9145 = vpack.c.bf16 %v8738, %v8737
      %v9146 = vpack.c.bf16 %v8740, %v8739
      %v9147 = vpack.c.bf16 %v8742, %v8741
      %v9148 = vpack.c.bf16 %v8744, %v8743
      %v9149 = vpack.c.bf16 %v8746, %v8745
      %v9150 = vpack.c.bf16 %v8748, %v8747
      %v9151 = vpack.c.bf16 %v8750, %v8749
      %v9152 = vpack.c.bf16 %v8752, %v8751
      %v9153 = vpack.c.bf16 %v8754, %v8753
      %v9154 = vpack.c.bf16 %v8756, %v8755
      %v9155 = vpack.c.bf16 %v8758, %v8757
      %v9156 = vpack.c.bf16 %v8760, %v8759
      %v9157 = vpack.c.bf16 %v8762, %v8761
      %v9158 = vpack.c.bf16 %v8764, %v8763
      %v9159 = vpack.c.bf16 %v8766, %v8765
      %v9160 = vpack.c.bf16 %v8768, %v8767
      %v9161 = vpack.c.bf16 %v8770, %v8769
      %v9162 = vpack.c.bf16 %v8772, %v8771
      %v9163 = vpack.c.bf16 %v8774, %v8773
      %v9164 = vpack.c.bf16 %v8776, %v8775
      %v9165 = vpack.c.bf16 %v8778, %v8777
      %v9166 = vpack.c.bf16 %v8780, %v8779
      %v9167 = vpack.c.bf16 %v8782, %v8781
      %v9168 = vpack.c.bf16 %v8784, %v8783
      %v9169 = vpack.c.bf16 %v8786, %v8785
      %v9170 = vpack.c.bf16 %v8788, %v8787
      %v9171 = vpack.c.bf16 %v8790, %v8789
      %v9172 = vpack.c.bf16 %v8792, %v8791
      %v9173 = vpack.c.bf16 %v8794, %v8793
      %v9174 = vpack.c.bf16 %v8796, %v8795
      %v9175 = vpack.c.bf16 %v8798, %v8797
      %v9176 = vpack.c.bf16 %v8800, %v8799
      %v9177 = vpack.c.bf16 %v8802, %v8801
      %v9178 = vpack.c.bf16 %v8804, %v8803
      %v9179 = vpack.c.bf16 %v8806, %v8805
      %v9180 = vpack.c.bf16 %v8808, %v8807
      %v9181 = vpack.c.bf16 %v8810, %v8809
      %v9182 = vpack.c.bf16 %v8812, %v8811
      %v9183 = vpack.c.bf16 %v8814, %v8813
      %v9184 = vpack.c.bf16 %v8816, %v8815
      %v9185 = vpack.c.bf16 %v8818, %v8817
      %v9186 = vpack.c.bf16 %v8820, %v8819
      %v9187 = vpack.c.bf16 %v8822, %v8821
      %v9188 = vpack.c.bf16 %v8824, %v8823
      %v9189 = vpack.c.bf16 %v8826, %v8825
      %v9190 = vpack.c.bf16 %v8828, %v8827
      %v9191 = vpack.c.bf16 %v8830, %v8829
      %v9192 = vpack.c.bf16 %v8832, %v8831
      %v9193 = vpack.c.bf16 %v8834, %v8833
      %v9194 = vpack.c.bf16 %v8836, %v8835
      %v9195 = vpack.c.bf16 %v8838, %v8837
      %v9196 = vpack.c.bf16 %v8840, %v8839
      %v9197 = vpack.c.bf16 %v8842, %v8841
      %v9198 = vpack.c.bf16 %v8844, %v8843
      %v9199 = vpack.c.bf16 %v8846, %v8845
      %v9200 = vpack.c.bf16 %v8848, %v8847
      %v9201 = vpack.c.bf16 %v8850, %v8849
      %v9202 = vpack.c.bf16 %v8852, %v8851
      %v9203 = vpack.c.bf16 %v8854, %v8853
      %v9204 = vpack.c.bf16 %v8856, %v8855
      %v9205 = vpack.c.bf16 %v8858, %v8857
      %v9206 = vpack.c.bf16 %v8860, %v8859
      %v9207 = vpack.c.bf16 %v8862, %v8861
      %v9208 = vpack.c.bf16 %v8864, %v8863
      %v9209 = vpack.c.bf16 %v8866, %v8865
      %v9210 = vpack.c.bf16 %v8868, %v8867
      %v9211 = vpack.c.bf16 %v8870, %v8869
      %v9212 = vpack.c.bf16 %v8872, %v8871
      %v9213 = vpack.c.bf16 %v8874, %v8873
      %v9214 = vpack.c.bf16 %v8876, %v8875
      %v9215 = vpack.c.bf16 %v8878, %v8877
      %v9216 = vpack.c.bf16 %v8880, %v8879
      %v9217 = vpack.c.bf16 %v8882, %v8881
      %v9218 = vpack.c.bf16 %v8884, %v8883
      %v9219 = vpack.c.bf16 %v8886, %v8885
      %v9220 = vpack.c.bf16 %v8888, %v8887
      %v9221 = vpack.c.bf16 %v8890, %v8889
      %v9222 = vpack.c.bf16 %v8892, %v8891
      %v9223 = vpack.c.bf16 %v8894, %v8893
      %v9224 = vpack.c.bf16 %v8896, %v8895
      %v9225 = vpack.c.bf16 %v8898, %v8897
      %v9226 = vpack.c.bf16 %v8900, %v8899
      %v9227 = vpack.c.bf16 %v8902, %v8901
      %v9228 = vpack.c.bf16 %v8904, %v8903
      %v9229 = vpack.c.bf16 %v8906, %v8905
      %v9230 = vpack.c.bf16 %v8908, %v8907
      %v9231 = vpack.c.bf16 %v8910, %v8909
      %v9232 = vpack.c.bf16 %v8912, %v8911
      %v9233 = vpack.c.bf16 %v8914, %v8913
      %v9234 = vpack.c.bf16 %v8916, %v8915
      %v9235 = vpack.c.bf16 %v8918, %v8917
      %v9236 = vpack.c.bf16 %v8920, %v8919
      %v9237 = vpack.c.bf16 %v8922, %v8921
      %v9238 = vpack.c.bf16 %v8924, %v8923
      %v9239 = vpack.c.bf16 %v8926, %v8925
      %v9240 = vpack.c.bf16 %v8928, %v8927
      %v9241 = vpack.c.bf16 %v8930, %v8929
      %v9242 = vpack.c.bf16 %v8932, %v8931
      %v9243 = vpack.c.bf16 %v8934, %v8933
      %v9244 = vpack.c.bf16 %v8936, %v8935
      %v9245 = vpack.c.bf16 %v8938, %v8937
      %v9246 = vpack.c.bf16 %v8940, %v8939
      %v9247 = vpack.c.bf16 %v8942, %v8941
      %v9248 = vpack.c.bf16 %v8944, %v8943
      %v9249 = vpack.c.bf16 %v8946, %v8945
      %v9250 = vpack.c.bf16 %v8948, %v8947
      %v9251 = vpack.c.bf16 %v8950, %v8949
      %v9252 = vpack.c.bf16 %v8952, %v8951
      %v9253 = vpack.c.bf16 %v8954, %v8953
      %v9254 = vpack.c.bf16 %v8956, %v8955
      %v9255 = vpack.c.bf16 %v8958, %v8957
      %v9256 = vpack.c.bf16 %v8960, %v8959
      %v9257 = vpack.c.bf16 %v8962, %v8961
      %v9258 = vpack.c.bf16 %v8964, %v8963
      %v9259 = vpack.c.bf16 %v8966, %v8965
      %v9260 = vpack.c.bf16 %v8968, %v8967
      %v9261 = vpack.c.bf16 %v8970, %v8969
      %v9262 = vpack.c.bf16 %v8972, %v8971
      %v9263 = vpack.c.bf16 %v8974, %v8973
      %v9264 = vpack.c.bf16 %v8976, %v8975
      %v9265 = vpack.c.bf16 %v8978, %v8977
      %v9266 = vpack.c.bf16 %v8980, %v8979
      %v9267 = vpack.c.bf16 %v8982, %v8981
      %v9268 = vpack.c.bf16 %v8984, %v8983
      %v9269 = vpack.c.bf16 %v8986, %v8985
      %v9270 = vpack.c.bf16 %v8988, %v8987
      %v9271 = vpack.c.bf16 %v8990, %v8989
      %v9272 = vpack.c.bf16 %v8992, %v8991
      %v9273 = vpack.c.bf16 %v8994, %v8993
      %v9274 = vpack.c.bf16 %v8996, %v8995
      %v9275 = vpack.c.bf16 %v8998, %v8997
      %v9276 = vpack.c.bf16 %v9000, %v8999
      %v9277 = vpack.c.bf16 %v9002, %v9001
      %v9278 = vpack.c.bf16 %v9004, %v9003
      %v9279 = vpack.c.bf16 %v9006, %v9005
      %v9280 = vpack.c.bf16 %v9008, %v9007
      %v9281 = vpack.c.bf16 %v9010, %v9009
      %v9282 = vpack.c.bf16 %v9012, %v9011
      %v9283 = vpack.c.bf16 %v9014, %v9013
      %v9284 = vpack.c.bf16 %v9016, %v9015
      %v9285 = vpack.c.bf16 %v9018, %v9017
      %v9286 = vpack.c.bf16 %v9020, %v9019
      %v9287 = vpack.c.bf16 %v9022, %v9021
      %v9288 = vpack.c.bf16 %v9024, %v9023
      %v9289 = vpack.c.bf16 %v9026, %v9025
      %v9290 = vpack.c.bf16 %v9028, %v9027
      %v9291 = vpack.c.bf16 %v9030, %v9029
      %v9292 = vpack.c.bf16 %v9032, %v9031
      %v9293 = vpack.c.bf16 %v9034, %v9033
      %v9294 = vpack.c.bf16 %v9036, %v9035
      %v9295 = vpack.c.bf16 %v9038, %v9037
      %v9296 = vpack.c.bf16 %v9040, %v9039
      %v9553 = vunpack.c.l.b16 %v9041
      %v9554 = vunpack.c.h.b16 %v9041
      %v9555 = vunpack.c.l.b16 %v9042
      %v9556 = vunpack.c.h.b16 %v9042
      %v9557 = vunpack.c.l.b16 %v9043
      %v9558 = vunpack.c.h.b16 %v9043
      %v9559 = vunpack.c.l.b16 %v9044
      %v9560 = vunpack.c.h.b16 %v9044
      %v9561 = vunpack.c.l.b16 %v9045
      %v9562 = vunpack.c.h.b16 %v9045
      %v9563 = vunpack.c.l.b16 %v9046
      %v9564 = vunpack.c.h.b16 %v9046
      %v9565 = vunpack.c.l.b16 %v9047
      %v9566 = vunpack.c.h.b16 %v9047
      %v9567 = vunpack.c.l.b16 %v9048
      %v9568 = vunpack.c.h.b16 %v9048
      %v9569 = vunpack.c.l.b16 %v9049
      %v9570 = vunpack.c.h.b16 %v9049
      %v9571 = vunpack.c.l.b16 %v9050
      %v9572 = vunpack.c.h.b16 %v9050
      %v9573 = vunpack.c.l.b16 %v9051
      %v9574 = vunpack.c.h.b16 %v9051
      %v9575 = vunpack.c.l.b16 %v9052
      %v9576 = vunpack.c.h.b16 %v9052
      %v9577 = vunpack.c.l.b16 %v9053
      %v9578 = vunpack.c.h.b16 %v9053
      %v9579 = vunpack.c.l.b16 %v9054
      %v9580 = vunpack.c.h.b16 %v9054
      %v9581 = vunpack.c.l.b16 %v9055
      %v9582 = vunpack.c.h.b16 %v9055
      %v9583 = vunpack.c.l.b16 %v9056
      %v9584 = vunpack.c.h.b16 %v9056
      %v9585 = vunpack.c.l.b16 %v9057
      %v9586 = vunpack.c.h.b16 %v9057
      %v9587 = vunpack.c.l.b16 %v9058
      %v9588 = vunpack.c.h.b16 %v9058
      %v9589 = vunpack.c.l.b16 %v9059
      %v9590 = vunpack.c.h.b16 %v9059
      %v9591 = vunpack.c.l.b16 %v9060
      %v9592 = vunpack.c.h.b16 %v9060
      %v9593 = vunpack.c.l.b16 %v9061
      %v9594 = vunpack.c.h.b16 %v9061
      %v9595 = vunpack.c.l.b16 %v9062
      %v9596 = vunpack.c.h.b16 %v9062
      %v9597 = vunpack.c.l.b16 %v9063
      %v9598 = vunpack.c.h.b16 %v9063
      %v9599 = vunpack.c.l.b16 %v9064
      %v9600 = vunpack.c.h.b16 %v9064
      %v9601 = vunpack.c.l.b16 %v9065
      %v9602 = vunpack.c.h.b16 %v9065
      %v9603 = vunpack.c.l.b16 %v9066
      %v9604 = vunpack.c.h.b16 %v9066
      %v9605 = vunpack.c.l.b16 %v9067
      %v9606 = vunpack.c.h.b16 %v9067
      %v9607 = vunpack.c.l.b16 %v9068
      %v9608 = vunpack.c.h.b16 %v9068
      %v9609 = vunpack.c.l.b16 %v9069
      %v9610 = vunpack.c.h.b16 %v9069
      %v9611 = vunpack.c.l.b16 %v9070
      %v9612 = vunpack.c.h.b16 %v9070
      %v9613 = vunpack.c.l.b16 %v9071
      %v9614 = vunpack.c.h.b16 %v9071
      %v9615 = vunpack.c.l.b16 %v9072
      %v9616 = vunpack.c.h.b16 %v9072
      %v9617 = vunpack.c.l.b16 %v9073
      %v9618 = vunpack.c.h.b16 %v9073
      %v9619 = vunpack.c.l.b16 %v9074
      %v9620 = vunpack.c.h.b16 %v9074
      %v9621 = vunpack.c.l.b16 %v9075
      %v9622 = vunpack.c.h.b16 %v9075
      %v9623 = vunpack.c.l.b16 %v9076
      %v9624 = vunpack.c.h.b16 %v9076
      %v9625 = vunpack.c.l.b16 %v9077
      %v9626 = vunpack.c.h.b16 %v9077
      %v9627 = vunpack.c.l.b16 %v9078
      %v9628 = vunpack.c.h.b16 %v9078
      %v9629 = vunpack.c.l.b16 %v9079
      %v9630 = vunpack.c.h.b16 %v9079
      %v9631 = vunpack.c.l.b16 %v9080
      %v9632 = vunpack.c.h.b16 %v9080
      %v9633 = vunpack.c.l.b16 %v9081
      %v9634 = vunpack.c.h.b16 %v9081
      %v9635 = vunpack.c.l.b16 %v9082
      %v9636 = vunpack.c.h.b16 %v9082
      %v9637 = vunpack.c.l.b16 %v9083
      %v9638 = vunpack.c.h.b16 %v9083
      %v9639 = vunpack.c.l.b16 %v9084
      %v9640 = vunpack.c.h.b16 %v9084
      %v9641 = vunpack.c.l.b16 %v9085
      %v9642 = vunpack.c.h.b16 %v9085
      %v9643 = vunpack.c.l.b16 %v9086
      %v9644 = vunpack.c.h.b16 %v9086
      %v9645 = vunpack.c.l.b16 %v9087
      %v9646 = vunpack.c.h.b16 %v9087
      %v9647 = vunpack.c.l.b16 %v9088
      %v9648 = vunpack.c.h.b16 %v9088
      %v9649 = vunpack.c.l.b16 %v9089
      %v9650 = vunpack.c.h.b16 %v9089
      %v9651 = vunpack.c.l.b16 %v9090
      %v9652 = vunpack.c.h.b16 %v9090
      %v9653 = vunpack.c.l.b16 %v9091
      %v9654 = vunpack.c.h.b16 %v9091
      %v9655 = vunpack.c.l.b16 %v9092
      %v9656 = vunpack.c.h.b16 %v9092
      %v9657 = vunpack.c.l.b16 %v9093
      %v9658 = vunpack.c.h.b16 %v9093
      %v9659 = vunpack.c.l.b16 %v9094
      %v9660 = vunpack.c.h.b16 %v9094
      %v9661 = vunpack.c.l.b16 %v9095
      %v9662 = vunpack.c.h.b16 %v9095
      %v9663 = vunpack.c.l.b16 %v9096
      %v9664 = vunpack.c.h.b16 %v9096
      %v9665 = vunpack.c.l.b16 %v9097
      %v9666 = vunpack.c.h.b16 %v9097
      %v9667 = vunpack.c.l.b16 %v9098
      %v9668 = vunpack.c.h.b16 %v9098
      %v9669 = vunpack.c.l.b16 %v9099
      %v9670 = vunpack.c.h.b16 %v9099
      %v9671 = vunpack.c.l.b16 %v9100
      %v9672 = vunpack.c.h.b16 %v9100
      %v9673 = vunpack.c.l.b16 %v9101
      %v9674 = vunpack.c.h.b16 %v9101
      %v9675 = vunpack.c.l.b16 %v9102
      %v9676 = vunpack.c.h.b16 %v9102
      %v9677 = vunpack.c.l.b16 %v9103
      %v9678 = vunpack.c.h.b16 %v9103
      %v9679 = vunpack.c.l.b16 %v9104
      %v9680 = vunpack.c.h.b16 %v9104
      %v9681 = vunpack.c.l.b16 %v9105
      %v9682 = vunpack.c.h.b16 %v9105
      %v9683 = vunpack.c.l.b16 %v9106
      %v9684 = vunpack.c.h.b16 %v9106
      %v9685 = vunpack.c.l.b16 %v9107
      %v9686 = vunpack.c.h.b16 %v9107
      %v9687 = vunpack.c.l.b16 %v9108
      %v9688 = vunpack.c.h.b16 %v9108
      %v9689 = vunpack.c.l.b16 %v9109
      %v9690 = vunpack.c.h.b16 %v9109
      %v9691 = vunpack.c.l.b16 %v9110
      %v9692 = vunpack.c.h.b16 %v9110
      %v9693 = vunpack.c.l.b16 %v9111
      %v9694 = vunpack.c.h.b16 %v9111
      %v9695 = vunpack.c.l.b16 %v9112
      %v9696 = vunpack.c.h.b16 %v9112
      %v9697 = vunpack.c.l.b16 %v9113
      %v9698 = vunpack.c.h.b16 %v9113
      %v9699 = vunpack.c.l.b16 %v9114
      %v9700 = vunpack.c.h.b16 %v9114
      %v9701 = vunpack.c.l.b16 %v9115
      %v9702 = vunpack.c.h.b16 %v9115
      %v9703 = vunpack.c.l.b16 %v9116
      %v9704 = vunpack.c.h.b16 %v9116
      %v9705 = vunpack.c.l.b16 %v9117
      %v9706 = vunpack.c.h.b16 %v9117
      %v9707 = vunpack.c.l.b16 %v9118
      %v9708 = vunpack.c.h.b16 %v9118
      %v9709 = vunpack.c.l.b16 %v9119
      %v9710 = vunpack.c.h.b16 %v9119
      %v9711 = vunpack.c.l.b16 %v9120
      %v9712 = vunpack.c.h.b16 %v9120
      %v9713 = vunpack.c.l.b16 %v9121
      %v9714 = vunpack.c.h.b16 %v9121
      %v9715 = vunpack.c.l.b16 %v9122
      %v9716 = vunpack.c.h.b16 %v9122
      %v9717 = vunpack.c.l.b16 %v9123
      %v9718 = vunpack.c.h.b16 %v9123
      %v9719 = vunpack.c.l.b16 %v9124
      %v9720 = vunpack.c.h.b16 %v9124
      %v9721 = vunpack.c.l.b16 %v9125
      %v9722 = vunpack.c.h.b16 %v9125
      %v9723 = vunpack.c.l.b16 %v9126
      %v9724 = vunpack.c.h.b16 %v9126
      %v9725 = vunpack.c.l.b16 %v9127
      %v9726 = vunpack.c.h.b16 %v9127
      %v9727 = vunpack.c.l.b16 %v9128
      %v9728 = vunpack.c.h.b16 %v9128
      %v9729 = vunpack.c.l.b16 %v9129
      %v9730 = vunpack.c.h.b16 %v9129
      %v9731 = vunpack.c.l.b16 %v9130
      %v9732 = vunpack.c.h.b16 %v9130
      %v9733 = vunpack.c.l.b16 %v9131
      %v9734 = vunpack.c.h.b16 %v9131
      %v9735 = vunpack.c.l.b16 %v9132
      %v9736 = vunpack.c.h.b16 %v9132
      %v9737 = vunpack.c.l.b16 %v9133
      %v9738 = vunpack.c.h.b16 %v9133
      %v9739 = vunpack.c.l.b16 %v9134
      %v9740 = vunpack.c.h.b16 %v9134
      %v9741 = vunpack.c.l.b16 %v9135
      %v9742 = vunpack.c.h.b16 %v9135
      %v9743 = vunpack.c.l.b16 %v9136
      %v9744 = vunpack.c.h.b16 %v9136
      %v9745 = vunpack.c.l.b16 %v9137
      %v9746 = vunpack.c.h.b16 %v9137
      %v9747 = vunpack.c.l.b16 %v9138
      %v9748 = vunpack.c.h.b16 %v9138
      %v9749 = vunpack.c.l.b16 %v9139
      %v9750 = vunpack.c.h.b16 %v9139
      %v9751 = vunpack.c.l.b16 %v9140
      %v9752 = vunpack.c.h.b16 %v9140
      %v9753 = vunpack.c.l.b16 %v9141
      %v9754 = vunpack.c.h.b16 %v9141
      %v9755 = vunpack.c.l.b16 %v9142
      %v9756 = vunpack.c.h.b16 %v9142
      %v9757 = vunpack.c.l.b16 %v9143
      %v9758 = vunpack.c.h.b16 %v9143
      %v9759 = vunpack.c.l.b16 %v9144
      %v9760 = vunpack.c.h.b16 %v9144
      %v9761 = vunpack.c.l.b16 %v9145
      %v9762 = vunpack.c.h.b16 %v9145
      %v9763 = vunpack.c.l.b16 %v9146
      %v9764 = vunpack.c.h.b16 %v9146
      %v9765 = vunpack.c.l.b16 %v9147
      %v9766 = vunpack.c.h.b16 %v9147
      %v9767 = vunpack.c.l.b16 %v9148
      %v9768 = vunpack.c.h.b16 %v9148
      %v9769 = vunpack.c.l.b16 %v9149
      %v9770 = vunpack.c.h.b16 %v9149
      %v9771 = vunpack.c.l.b16 %v9150
      %v9772 = vunpack.c.h.b16 %v9150
      %v9773 = vunpack.c.l.b16 %v9151
      %v9774 = vunpack.c.h.b16 %v9151
      %v9775 = vunpack.c.l.b16 %v9152
      %v9776 = vunpack.c.h.b16 %v9152
      %v9777 = vunpack.c.l.b16 %v9153
      %v9778 = vunpack.c.h.b16 %v9153
      %v9779 = vunpack.c.l.b16 %v9154
      %v9780 = vunpack.c.h.b16 %v9154
      %v9781 = vunpack.c.l.b16 %v9155
      %v9782 = vunpack.c.h.b16 %v9155
      %v9783 = vunpack.c.l.b16 %v9156
      %v9784 = vunpack.c.h.b16 %v9156
      %v9785 = vunpack.c.l.b16 %v9157
      %v9786 = vunpack.c.h.b16 %v9157
      %v9787 = vunpack.c.l.b16 %v9158
      %v9788 = vunpack.c.h.b16 %v9158
      %v9789 = vunpack.c.l.b16 %v9159
      %v9790 = vunpack.c.h.b16 %v9159
      %v9791 = vunpack.c.l.b16 %v9160
      %v9792 = vunpack.c.h.b16 %v9160
      %v9793 = vunpack.c.l.b16 %v9161
      %v9794 = vunpack.c.h.b16 %v9161
      %v9795 = vunpack.c.l.b16 %v9162
      %v9796 = vunpack.c.h.b16 %v9162
      %v9797 = vunpack.c.l.b16 %v9163
      %v9798 = vunpack.c.h.b16 %v9163
      %v9799 = vunpack.c.l.b16 %v9164
      %v9800 = vunpack.c.h.b16 %v9164
      %v9801 = vunpack.c.l.b16 %v9165
      %v9802 = vunpack.c.h.b16 %v9165
      %v9803 = vunpack.c.l.b16 %v9166
      %v9804 = vunpack.c.h.b16 %v9166
      %v9805 = vunpack.c.l.b16 %v9167
      %v9806 = vunpack.c.h.b16 %v9167
      %v9807 = vunpack.c.l.b16 %v9168
      %v9808 = vunpack.c.h.b16 %v9168
      %v9809 = vunpack.c.l.b16 %v9169
      %v9810 = vunpack.c.h.b16 %v9169
      %v9811 = vunpack.c.l.b16 %v9170
      %v9812 = vunpack.c.h.b16 %v9170
      %v9813 = vunpack.c.l.b16 %v9171
      %v9814 = vunpack.c.h.b16 %v9171
      %v9815 = vunpack.c.l.b16 %v9172
      %v9816 = vunpack.c.h.b16 %v9172
      %v9817 = vunpack.c.l.b16 %v9173
      %v9818 = vunpack.c.h.b16 %v9173
      %v9819 = vunpack.c.l.b16 %v9174
      %v9820 = vunpack.c.h.b16 %v9174
      %v9821 = vunpack.c.l.b16 %v9175
      %v9822 = vunpack.c.h.b16 %v9175
      %v9823 = vunpack.c.l.b16 %v9176
      %v9824 = vunpack.c.h.b16 %v9176
      %v9825 = vunpack.c.l.b16 %v9177
      %v9826 = vunpack.c.h.b16 %v9177
      %v9827 = vunpack.c.l.b16 %v9178
      %v9828 = vunpack.c.h.b16 %v9178
      %v9829 = vunpack.c.l.b16 %v9179
      %v9830 = vunpack.c.h.b16 %v9179
      %v9831 = vunpack.c.l.b16 %v9180
      %v9832 = vunpack.c.h.b16 %v9180
      %v9833 = vunpack.c.l.b16 %v9181
      %v9834 = vunpack.c.h.b16 %v9181
      %v9835 = vunpack.c.l.b16 %v9182
      %v9836 = vunpack.c.h.b16 %v9182
      %v9837 = vunpack.c.l.b16 %v9183
      %v9838 = vunpack.c.h.b16 %v9183
      %v9839 = vunpack.c.l.b16 %v9184
      %v9840 = vunpack.c.h.b16 %v9184
      %v9841 = vunpack.c.l.b16 %v9185
      %v9842 = vunpack.c.h.b16 %v9185
      %v9843 = vunpack.c.l.b16 %v9186
      %v9844 = vunpack.c.h.b16 %v9186
      %v9845 = vunpack.c.l.b16 %v9187
      %v9846 = vunpack.c.h.b16 %v9187
      %v9847 = vunpack.c.l.b16 %v9188
      %v9848 = vunpack.c.h.b16 %v9188
      %v9849 = vunpack.c.l.b16 %v9189
      %v9850 = vunpack.c.h.b16 %v9189
      %v9851 = vunpack.c.l.b16 %v9190
      %v9852 = vunpack.c.h.b16 %v9190
      %v9853 = vunpack.c.l.b16 %v9191
      %v9854 = vunpack.c.h.b16 %v9191
      %v9855 = vunpack.c.l.b16 %v9192
      %v9856 = vunpack.c.h.b16 %v9192
      %v9857 = vunpack.c.l.b16 %v9193
      %v9858 = vunpack.c.h.b16 %v9193
      %v9859 = vunpack.c.l.b16 %v9194
      %v9860 = vunpack.c.h.b16 %v9194
      %v9861 = vunpack.c.l.b16 %v9195
      %v9862 = vunpack.c.h.b16 %v9195
      %v9863 = vunpack.c.l.b16 %v9196
      %v9864 = vunpack.c.h.b16 %v9196
      %v9865 = vunpack.c.l.b16 %v9197
      %v9866 = vunpack.c.h.b16 %v9197
      %v9867 = vunpack.c.l.b16 %v9198
      %v9868 = vunpack.c.h.b16 %v9198
      %v9869 = vunpack.c.l.b16 %v9199
      %v9870 = vunpack.c.h.b16 %v9199
      %v9871 = vunpack.c.l.b16 %v9200
      %v9872 = vunpack.c.h.b16 %v9200
      %v9873 = vunpack.c.l.b16 %v9201
      %v9874 = vunpack.c.h.b16 %v9201
      %v9875 = vunpack.c.l.b16 %v9202
      %v9876 = vunpack.c.h.b16 %v9202
      %v9877 = vunpack.c.l.b16 %v9203
      %v9878 = vunpack.c.h.b16 %v9203
      %v9879 = vunpack.c.l.b16 %v9204
      %v9880 = vunpack.c.h.b16 %v9204
      %v9881 = vunpack.c.l.b16 %v9205
      %v9882 = vunpack.c.h.b16 %v9205
      %v9883 = vunpack.c.l.b16 %v9206
      %v9884 = vunpack.c.h.b16 %v9206
      %v9885 = vunpack.c.l.b16 %v9207
      %v9886 = vunpack.c.h.b16 %v9207
      %v9887 = vunpack.c.l.b16 %v9208
      %v9888 = vunpack.c.h.b16 %v9208
      %v9889 = vunpack.c.l.b16 %v9209
      %v9890 = vunpack.c.h.b16 %v9209
      %v9891 = vunpack.c.l.b16 %v9210
      %v9892 = vunpack.c.h.b16 %v9210
      %v9893 = vunpack.c.l.b16 %v9211
      %v9894 = vunpack.c.h.b16 %v9211
      %v9895 = vunpack.c.l.b16 %v9212
      %v9896 = vunpack.c.h.b16 %v9212
      %v9897 = vunpack.c.l.b16 %v9213
      %v9898 = vunpack.c.h.b16 %v9213
      %v9899 = vunpack.c.l.b16 %v9214
      %v9900 = vunpack.c.h.b16 %v9214
      %v9901 = vunpack.c.l.b16 %v9215
      %v9902 = vunpack.c.h.b16 %v9215
      %v9903 = vunpack.c.l.b16 %v9216
      %v9904 = vunpack.c.h.b16 %v9216
      %v9905 = vunpack.c.l.b16 %v9217
      %v9906 = vunpack.c.h.b16 %v9217
      %v9907 = vunpack.c.l.b16 %v9218
      %v9908 = vunpack.c.h.b16 %v9218
      %v9909 = vunpack.c.l.b16 %v9219
      %v9910 = vunpack.c.h.b16 %v9219
      %v9911 = vunpack.c.l.b16 %v9220
      %v9912 = vunpack.c.h.b16 %v9220
      %v9913 = vunpack.c.l.b16 %v9221
      %v9914 = vunpack.c.h.b16 %v9221
      %v9915 = vunpack.c.l.b16 %v9222
      %v9916 = vunpack.c.h.b16 %v9222
      %v9917 = vunpack.c.l.b16 %v9223
      %v9918 = vunpack.c.h.b16 %v9223
      %v9919 = vunpack.c.l.b16 %v9224
      %v9920 = vunpack.c.h.b16 %v9224
      %v9921 = vunpack.c.l.b16 %v9225
      %v9922 = vunpack.c.h.b16 %v9225
      %v9923 = vunpack.c.l.b16 %v9226
      %v9924 = vunpack.c.h.b16 %v9226
      %v9925 = vunpack.c.l.b16 %v9227
      %v9926 = vunpack.c.h.b16 %v9227
      %v9927 = vunpack.c.l.b16 %v9228
      %v9928 = vunpack.c.h.b16 %v9228
      %v9929 = vunpack.c.l.b16 %v9229
      %v9930 = vunpack.c.h.b16 %v9229
      %v9931 = vunpack.c.l.b16 %v9230
      %v9932 = vunpack.c.h.b16 %v9230
      %v9933 = vunpack.c.l.b16 %v9231
      %v9934 = vunpack.c.h.b16 %v9231
      %v9935 = vunpack.c.l.b16 %v9232
      %v9936 = vunpack.c.h.b16 %v9232
      %v9937 = vunpack.c.l.b16 %v9233
      %v9938 = vunpack.c.h.b16 %v9233
      %v9939 = vunpack.c.l.b16 %v9234
      %v9940 = vunpack.c.h.b16 %v9234
      %v9941 = vunpack.c.l.b16 %v9235
      %v9942 = vunpack.c.h.b16 %v9235
      %v9943 = vunpack.c.l.b16 %v9236
      %v9944 = vunpack.c.h.b16 %v9236
      %v9945 = vunpack.c.l.b16 %v9237
      %v9946 = vunpack.c.h.b16 %v9237
      %v9947 = vunpack.c.l.b16 %v9238
      %v9948 = vunpack.c.h.b16 %v9238
      %v9949 = vunpack.c.l.b16 %v9239
      %v9950 = vunpack.c.h.b16 %v9239
      %v9951 = vunpack.c.l.b16 %v9240
      %v9952 = vunpack.c.h.b16 %v9240
      %v9953 = vunpack.c.l.b16 %v9241
      %v9954 = vunpack.c.h.b16 %v9241
      %v9955 = vunpack.c.l.b16 %v9242
      %v9956 = vunpack.c.h.b16 %v9242
      %v9957 = vunpack.c.l.b16 %v9243
      %v9958 = vunpack.c.h.b16 %v9243
      %v9959 = vunpack.c.l.b16 %v9244
      %v9960 = vunpack.c.h.b16 %v9244
      %v9961 = vunpack.c.l.b16 %v9245
      %v9962 = vunpack.c.h.b16 %v9245
      %v9963 = vunpack.c.l.b16 %v9246
      %v9964 = vunpack.c.h.b16 %v9246
      %v9965 = vunpack.c.l.b16 %v9247
      %v9966 = vunpack.c.h.b16 %v9247
      %v9967 = vunpack.c.l.b16 %v9248
      %v9968 = vunpack.c.h.b16 %v9248
      %v9969 = vunpack.c.l.b16 %v9249
      %v9970 = vunpack.c.h.b16 %v9249
      %v9971 = vunpack.c.l.b16 %v9250
      %v9972 = vunpack.c.h.b16 %v9250
      %v9973 = vunpack.c.l.b16 %v9251
      %v9974 = vunpack.c.h.b16 %v9251
      %v9975 = vunpack.c.l.b16 %v9252
      %v9976 = vunpack.c.h.b16 %v9252
      %v9977 = vunpack.c.l.b16 %v9253
      %v9978 = vunpack.c.h.b16 %v9253
      %v9979 = vunpack.c.l.b16 %v9254
      %v9980 = vunpack.c.h.b16 %v9254
      %v9981 = vunpack.c.l.b16 %v9255
      %v9982 = vunpack.c.h.b16 %v9255
      %v9983 = vunpack.c.l.b16 %v9256
      %v9984 = vunpack.c.h.b16 %v9256
      %v9985 = vunpack.c.l.b16 %v9257
      %v9986 = vunpack.c.h.b16 %v9257
      %v9987 = vunpack.c.l.b16 %v9258
      %v9988 = vunpack.c.h.b16 %v9258
      %v9989 = vunpack.c.l.b16 %v9259
      %v9990 = vunpack.c.h.b16 %v9259
      %v9991 = vunpack.c.l.b16 %v9260
      %v9992 = vunpack.c.h.b16 %v9260
      %v9993 = vunpack.c.l.b16 %v9261
      %v9994 = vunpack.c.h.b16 %v9261
      %v9995 = vunpack.c.l.b16 %v9262
      %v9996 = vunpack.c.h.b16 %v9262
      %v9997 = vunpack.c.l.b16 %v9263
      %v9998 = vunpack.c.h.b16 %v9263
      %v9999 = vunpack.c.l.b16 %v9264
      %v10000 = vunpack.c.h.b16 %v9264
      %v10001 = vunpack.c.l.b16 %v9265
      %v10002 = vunpack.c.h.b16 %v9265
      %v10003 = vunpack.c.l.b16 %v9266
      %v10004 = vunpack.c.h.b16 %v9266
      %v10005 = vunpack.c.l.b16 %v9267
      %v10006 = vunpack.c.h.b16 %v9267
      %v10007 = vunpack.c.l.b16 %v9268
      %v10008 = vunpack.c.h.b16 %v9268
      %v10009 = vunpack.c.l.b16 %v9269
      %v10010 = vunpack.c.h.b16 %v9269
      %v10011 = vunpack.c.l.b16 %v9270
      %v10012 = vunpack.c.h.b16 %v9270
      %v10013 = vunpack.c.l.b16 %v9271
      %v10014 = vunpack.c.h.b16 %v9271
      %v10015 = vunpack.c.l.b16 %v9272
      %v10016 = vunpack.c.h.b16 %v9272
      %v10017 = vunpack.c.l.b16 %v9273
      %v10018 = vunpack.c.h.b16 %v9273
      %v10019 = vunpack.c.l.b16 %v9274
      %v10020 = vunpack.c.h.b16 %v9274
      %v10021 = vunpack.c.l.b16 %v9275
      %v10022 = vunpack.c.h.b16 %v9275
      %v10023 = vunpack.c.l.b16 %v9276
      %v10024 = vunpack.c.h.b16 %v9276
      %v10025 = vunpack.c.l.b16 %v9277
      %v10026 = vunpack.c.h.b16 %v9277
      %v10027 = vunpack.c.l.b16 %v9278
      %v10028 = vunpack.c.h.b16 %v9278
      %v10029 = vunpack.c.l.b16 %v9279
      %v10030 = vunpack.c.h.b16 %v9279
      %v10031 = vunpack.c.l.b16 %v9280
      %v10032 = vunpack.c.h.b16 %v9280
      %v10033 = vunpack.c.l.b16 %v9281
      %v10034 = vunpack.c.h.b16 %v9281
      %v10035 = vunpack.c.l.b16 %v9282
      %v10036 = vunpack.c.h.b16 %v9282
      %v10037 = vunpack.c.l.b16 %v9283
      %v10038 = vunpack.c.h.b16 %v9283
      %v10039 = vunpack.c.l.b16 %v9284
      %v10040 = vunpack.c.h.b16 %v9284
      %v10041 = vunpack.c.l.b16 %v9285
      %v10042 = vunpack.c.h.b16 %v9285
      %v10043 = vunpack.c.l.b16 %v9286
      %v10044 = vunpack.c.h.b16 %v9286
      %v10045 = vunpack.c.l.b16 %v9287
      %v10046 = vunpack.c.h.b16 %v9287
      %v10047 = vunpack.c.l.b16 %v9288
      %v10048 = vunpack.c.h.b16 %v9288
      %v10049 = vunpack.c.l.b16 %v9289
      %v10050 = vunpack.c.h.b16 %v9289
      %v10051 = vunpack.c.l.b16 %v9290
      %v10052 = vunpack.c.h.b16 %v9290
      %v10053 = vunpack.c.l.b16 %v9291
      %v10054 = vunpack.c.h.b16 %v9291
      %v10055 = vunpack.c.l.b16 %v9292
      %v10056 = vunpack.c.h.b16 %v9292
      %v10057 = vunpack.c.l.b16 %v9293
      %v10058 = vunpack.c.h.b16 %v9293
      %v10059 = vunpack.c.l.b16 %v9294
      %v10060 = vunpack.c.h.b16 %v9294
      %v10061 = vunpack.c.l.b16 %v9295
      %v10062 = vunpack.c.h.b16 %v9295
      %v10063 = vunpack.c.l.b16 %v9296
      %v10064 = vunpack.c.h.b16 %v9296
      %v10065 = vpack.c.b16 %v9553, %v9553
      %v10066 = vpack.c.b16 %v9554, %v9554
      %v10067 = vpack.c.b16 %v9555, %v9555
      %v10068 = vpack.c.b16 %v9556, %v9556
      %v10069 = vpack.c.b16 %v9557, %v9557
      %v10070 = vpack.c.b16 %v9558, %v9558
      %v10071 = vpack.c.b16 %v9559, %v9559
      %v10072 = vpack.c.b16 %v9560, %v9560
      %v10073 = vpack.c.b16 %v9561, %v9561
      %v10074 = vpack.c.b16 %v9562, %v9562
      %v10075 = vpack.c.b16 %v9563, %v9563
      %v10076 = vpack.c.b16 %v9564, %v9564
      %v10077 = vpack.c.b16 %v9565, %v9565
      %v10078 = vpack.c.b16 %v9566, %v9566
      %v10079 = vpack.c.b16 %v9567, %v9567
      %v10080 = vpack.c.b16 %v9568, %v9568
      %v10081 = vpack.c.b16 %v9569, %v9569
      %v10082 = vpack.c.b16 %v9570, %v9570
      %v10083 = vpack.c.b16 %v9571, %v9571
      %v10084 = vpack.c.b16 %v9572, %v9572
      %v10085 = vpack.c.b16 %v9573, %v9573
      %v10086 = vpack.c.b16 %v9574, %v9574
      %v10087 = vpack.c.b16 %v9575, %v9575
      %v10088 = vpack.c.b16 %v9576, %v9576
      %v10089 = vpack.c.b16 %v9577, %v9577
      %v10090 = vpack.c.b16 %v9578, %v9578
      %v10091 = vpack.c.b16 %v9579, %v9579
      %v10092 = vpack.c.b16 %v9580, %v9580
      %v10093 = vpack.c.b16 %v9581, %v9581
      %v10094 = vpack.c.b16 %v9582, %v9582
      %v10095 = vpack.c.b16 %v9583, %v9583
      %v10096 = vpack.c.b16 %v9584, %v9584
      %v10097 = vpack.c.b16 %v9585, %v9585
      %v10098 = vpack.c.b16 %v9586, %v9586
      %v10099 = vpack.c.b16 %v9587, %v9587
      %v10100 = vpack.c.b16 %v9588, %v9588
      %v10101 = vpack.c.b16 %v9589, %v9589
      %v10102 = vpack.c.b16 %v9590, %v9590
      %v10103 = vpack.c.b16 %v9591, %v9591
      %v10104 = vpack.c.b16 %v9592, %v9592
      %v10105 = vpack.c.b16 %v9593, %v9593
      %v10106 = vpack.c.b16 %v9594, %v9594
      %v10107 = vpack.c.b16 %v9595, %v9595
      %v10108 = vpack.c.b16 %v9596, %v9596
      %v10109 = vpack.c.b16 %v9597, %v9597
      %v10110 = vpack.c.b16 %v9598, %v9598
      %v10111 = vpack.c.b16 %v9599, %v9599
      %v10112 = vpack.c.b16 %v9600, %v9600
      %v10113 = vpack.c.b16 %v9601, %v9601
      %v10114 = vpack.c.b16 %v9602, %v9602
      %v10115 = vpack.c.b16 %v9603, %v9603
      %v10116 = vpack.c.b16 %v9604, %v9604
      %v10117 = vpack.c.b16 %v9605, %v9605
      %v10118 = vpack.c.b16 %v9606, %v9606
      %v10119 = vpack.c.b16 %v9607, %v9607
      %v10120 = vpack.c.b16 %v9608, %v9608
      %v10121 = vpack.c.b16 %v9609, %v9609
      %v10122 = vpack.c.b16 %v9610, %v9610
      %v10123 = vpack.c.b16 %v9611, %v9611
      %v10124 = vpack.c.b16 %v9612, %v9612
      %v10125 = vpack.c.b16 %v9613, %v9613
      %v10126 = vpack.c.b16 %v9614, %v9614
      %v10127 = vpack.c.b16 %v9615, %v9615
      %v10128 = vpack.c.b16 %v9616, %v9616
      %v10129 = vpack.c.b16 %v9617, %v9617
      %v10130 = vpack.c.b16 %v9618, %v9618
      %v10131 = vpack.c.b16 %v9619, %v9619
      %v10132 = vpack.c.b16 %v9620, %v9620
      %v10133 = vpack.c.b16 %v9621, %v9621
      %v10134 = vpack.c.b16 %v9622, %v9622
      %v10135 = vpack.c.b16 %v9623, %v9623
      %v10136 = vpack.c.b16 %v9624, %v9624
      %v10137 = vpack.c.b16 %v9625, %v9625
      %v10138 = vpack.c.b16 %v9626, %v9626
      %v10139 = vpack.c.b16 %v9627, %v9627
      %v10140 = vpack.c.b16 %v9628, %v9628
      %v10141 = vpack.c.b16 %v9629, %v9629
      %v10142 = vpack.c.b16 %v9630, %v9630
      %v10143 = vpack.c.b16 %v9631, %v9631
      %v10144 = vpack.c.b16 %v9632, %v9632
      %v10145 = vpack.c.b16 %v9633, %v9633
      %v10146 = vpack.c.b16 %v9634, %v9634
      %v10147 = vpack.c.b16 %v9635, %v9635
      %v10148 = vpack.c.b16 %v9636, %v9636
      %v10149 = vpack.c.b16 %v9637, %v9637
      %v10150 = vpack.c.b16 %v9638, %v9638
      %v10151 = vpack.c.b16 %v9639, %v9639
      %v10152 = vpack.c.b16 %v9640, %v9640
      %v10153 = vpack.c.b16 %v9641, %v9641
      %v10154 = vpack.c.b16 %v9642, %v9642
      %v10155 = vpack.c.b16 %v9643, %v9643
      %v10156 = vpack.c.b16 %v9644, %v9644
      %v10157 = vpack.c.b16 %v9645, %v9645
      %v10158 = vpack.c.b16 %v9646, %v9646
      %v10159 = vpack.c.b16 %v9647, %v9647
      %v10160 = vpack.c.b16 %v9648, %v9648
      %v10161 = vpack.c.b16 %v9649, %v9649
      %v10162 = vpack.c.b16 %v9650, %v9650
      %v10163 = vpack.c.b16 %v9651, %v9651
      %v10164 = vpack.c.b16 %v9652, %v9652
      %v10165 = vpack.c.b16 %v9653, %v9653
      %v10166 = vpack.c.b16 %v9654, %v9654
      %v10167 = vpack.c.b16 %v9655, %v9655
      %v10168 = vpack.c.b16 %v9656, %v9656
      %v10169 = vpack.c.b16 %v9657, %v9657
      %v10170 = vpack.c.b16 %v9658, %v9658
      %v10171 = vpack.c.b16 %v9659, %v9659
      %v10172 = vpack.c.b16 %v9660, %v9660
      %v10173 = vpack.c.b16 %v9661, %v9661
      %v10174 = vpack.c.b16 %v9662, %v9662
      %v10175 = vpack.c.b16 %v9663, %v9663
      %v10176 = vpack.c.b16 %v9664, %v9664
      %v10177 = vpack.c.b16 %v9665, %v9665
      %v10178 = vpack.c.b16 %v9666, %v9666
      %v10179 = vpack.c.b16 %v9667, %v9667
      %v10180 = vpack.c.b16 %v9668, %v9668
      %v10181 = vpack.c.b16 %v9669, %v9669
      %v10182 = vpack.c.b16 %v9670, %v9670
      %v10183 = vpack.c.b16 %v9671, %v9671
      %v10184 = vpack.c.b16 %v9672, %v9672
      %v10185 = vpack.c.b16 %v9673, %v9673
      %v10186 = vpack.c.b16 %v9674, %v9674
      %v10187 = vpack.c.b16 %v9675, %v9675
      %v10188 = vpack.c.b16 %v9676, %v9676
      %v10189 = vpack.c.b16 %v9677, %v9677
      %v10190 = vpack.c.b16 %v9678, %v9678
      %v10191 = vpack.c.b16 %v9679, %v9679
      %v10192 = vpack.c.b16 %v9680, %v9680
      %v10193 = vpack.c.b16 %v9681, %v9681
      %v10194 = vpack.c.b16 %v9682, %v9682
      %v10195 = vpack.c.b16 %v9683, %v9683
      %v10196 = vpack.c.b16 %v9684, %v9684
      %v10197 = vpack.c.b16 %v9685, %v9685
      %v10198 = vpack.c.b16 %v9686, %v9686
      %v10199 = vpack.c.b16 %v9687, %v9687
      %v10200 = vpack.c.b16 %v9688, %v9688
      %v10201 = vpack.c.b16 %v9689, %v9689
      %v10202 = vpack.c.b16 %v9690, %v9690
      %v10203 = vpack.c.b16 %v9691, %v9691
      %v10204 = vpack.c.b16 %v9692, %v9692
      %v10205 = vpack.c.b16 %v9693, %v9693
      %v10206 = vpack.c.b16 %v9694, %v9694
      %v10207 = vpack.c.b16 %v9695, %v9695
      %v10208 = vpack.c.b16 %v9696, %v9696
      %v10209 = vpack.c.b16 %v9697, %v9697
      %v10210 = vpack.c.b16 %v9698, %v9698
      %v10211 = vpack.c.b16 %v9699, %v9699
      %v10212 = vpack.c.b16 %v9700, %v9700
      %v10213 = vpack.c.b16 %v9701, %v9701
      %v10214 = vpack.c.b16 %v9702, %v9702
      %v10215 = vpack.c.b16 %v9703, %v9703
      %v10216 = vpack.c.b16 %v9704, %v9704
      %v10217 = vpack.c.b16 %v9705, %v9705
      %v10218 = vpack.c.b16 %v9706, %v9706
      %v10219 = vpack.c.b16 %v9707, %v9707
      %v10220 = vpack.c.b16 %v9708, %v9708
      %v10221 = vpack.c.b16 %v9709, %v9709
      %v10222 = vpack.c.b16 %v9710, %v9710
      %v10223 = vpack.c.b16 %v9711, %v9711
      %v10224 = vpack.c.b16 %v9712, %v9712
      %v10225 = vpack.c.b16 %v9713, %v9713
      %v10226 = vpack.c.b16 %v9714, %v9714
      %v10227 = vpack.c.b16 %v9715, %v9715
      %v10228 = vpack.c.b16 %v9716, %v9716
      %v10229 = vpack.c.b16 %v9717, %v9717
      %v10230 = vpack.c.b16 %v9718, %v9718
      %v10231 = vpack.c.b16 %v9719, %v9719
      %v10232 = vpack.c.b16 %v9720, %v9720
      %v10233 = vpack.c.b16 %v9721, %v9721
      %v10234 = vpack.c.b16 %v9722, %v9722
      %v10235 = vpack.c.b16 %v9723, %v9723
      %v10236 = vpack.c.b16 %v9724, %v9724
      %v10237 = vpack.c.b16 %v9725, %v9725
      %v10238 = vpack.c.b16 %v9726, %v9726
      %v10239 = vpack.c.b16 %v9727, %v9727
      %v10240 = vpack.c.b16 %v9728, %v9728
      %v10241 = vpack.c.b16 %v9729, %v9729
      %v10242 = vpack.c.b16 %v9730, %v9730
      %v10243 = vpack.c.b16 %v9731, %v9731
      %v10244 = vpack.c.b16 %v9732, %v9732
      %v10245 = vpack.c.b16 %v9733, %v9733
      %v10246 = vpack.c.b16 %v9734, %v9734
      %v10247 = vpack.c.b16 %v9735, %v9735
      %v10248 = vpack.c.b16 %v9736, %v9736
      %v10249 = vpack.c.b16 %v9737, %v9737
      %v10250 = vpack.c.b16 %v9738, %v9738
      %v10251 = vpack.c.b16 %v9739, %v9739
      %v10252 = vpack.c.b16 %v9740, %v9740
      %v10253 = vpack.c.b16 %v9741, %v9741
      %v10254 = vpack.c.b16 %v9742, %v9742
      %v10255 = vpack.c.b16 %v9743, %v9743
      %v10256 = vpack.c.b16 %v9744, %v9744
      %v10257 = vpack.c.b16 %v9745, %v9745
      %v10258 = vpack.c.b16 %v9746, %v9746
      %v10259 = vpack.c.b16 %v9747, %v9747
      %v10260 = vpack.c.b16 %v9748, %v9748
      %v10261 = vpack.c.b16 %v9749, %v9749
      %v10262 = vpack.c.b16 %v9750, %v9750
      %v10263 = vpack.c.b16 %v9751, %v9751
      %v10264 = vpack.c.b16 %v9752, %v9752
      %v10265 = vpack.c.b16 %v9753, %v9753
      %v10266 = vpack.c.b16 %v9754, %v9754
      %v10267 = vpack.c.b16 %v9755, %v9755
      %v10268 = vpack.c.b16 %v9756, %v9756
      %v10269 = vpack.c.b16 %v9757, %v9757
      %v10270 = vpack.c.b16 %v9758, %v9758
      %v10271 = vpack.c.b16 %v9759, %v9759
      %v10272 = vpack.c.b16 %v9760, %v9760
      %v10273 = vpack.c.b16 %v9761, %v9761
      %v10274 = vpack.c.b16 %v9762, %v9762
      %v10275 = vpack.c.b16 %v9763, %v9763
      %v10276 = vpack.c.b16 %v9764, %v9764
      %v10277 = vpack.c.b16 %v9765, %v9765
      %v10278 = vpack.c.b16 %v9766, %v9766
      %v10279 = vpack.c.b16 %v9767, %v9767
      %v10280 = vpack.c.b16 %v9768, %v9768
      %v10281 = vpack.c.b16 %v9769, %v9769
      %v10282 = vpack.c.b16 %v9770, %v9770
      %v10283 = vpack.c.b16 %v9771, %v9771
      %v10284 = vpack.c.b16 %v9772, %v9772
      %v10285 = vpack.c.b16 %v9773, %v9773
      %v10286 = vpack.c.b16 %v9774, %v9774
      %v10287 = vpack.c.b16 %v9775, %v9775
      %v10288 = vpack.c.b16 %v9776, %v9776
      %v10289 = vpack.c.b16 %v9777, %v9777
      %v10290 = vpack.c.b16 %v9778, %v9778
      %v10291 = vpack.c.b16 %v9779, %v9779
      %v10292 = vpack.c.b16 %v9780, %v9780
      %v10293 = vpack.c.b16 %v9781, %v9781
      %v10294 = vpack.c.b16 %v9782, %v9782
      %v10295 = vpack.c.b16 %v9783, %v9783
      %v10296 = vpack.c.b16 %v9784, %v9784
      %v10297 = vpack.c.b16 %v9785, %v9785
      %v10298 = vpack.c.b16 %v9786, %v9786
      %v10299 = vpack.c.b16 %v9787, %v9787
      %v10300 = vpack.c.b16 %v9788, %v9788
      %v10301 = vpack.c.b16 %v9789, %v9789
      %v10302 = vpack.c.b16 %v9790, %v9790
      %v10303 = vpack.c.b16 %v9791, %v9791
      %v10304 = vpack.c.b16 %v9792, %v9792
      %v10305 = vpack.c.b16 %v9793, %v9793
      %v10306 = vpack.c.b16 %v9794, %v9794
      %v10307 = vpack.c.b16 %v9795, %v9795
      %v10308 = vpack.c.b16 %v9796, %v9796
      %v10309 = vpack.c.b16 %v9797, %v9797
      %v10310 = vpack.c.b16 %v9798, %v9798
      %v10311 = vpack.c.b16 %v9799, %v9799
      %v10312 = vpack.c.b16 %v9800, %v9800
      %v10313 = vpack.c.b16 %v9801, %v9801
      %v10314 = vpack.c.b16 %v9802, %v9802
      %v10315 = vpack.c.b16 %v9803, %v9803
      %v10316 = vpack.c.b16 %v9804, %v9804
      %v10317 = vpack.c.b16 %v9805, %v9805
      %v10318 = vpack.c.b16 %v9806, %v9806
      %v10319 = vpack.c.b16 %v9807, %v9807
      %v10320 = vpack.c.b16 %v9808, %v9808
      %v10321 = vpack.c.b16 %v9809, %v9809
      %v10322 = vpack.c.b16 %v9810, %v9810
      %v10323 = vpack.c.b16 %v9811, %v9811
      %v10324 = vpack.c.b16 %v9812, %v9812
      %v10325 = vpack.c.b16 %v9813, %v9813
      %v10326 = vpack.c.b16 %v9814, %v9814
      %v10327 = vpack.c.b16 %v9815, %v9815
      %v10328 = vpack.c.b16 %v9816, %v9816
      %v10329 = vpack.c.b16 %v9817, %v9817
      %v10330 = vpack.c.b16 %v9818, %v9818
      %v10331 = vpack.c.b16 %v9819, %v9819
      %v10332 = vpack.c.b16 %v9820, %v9820
      %v10333 = vpack.c.b16 %v9821, %v9821
      %v10334 = vpack.c.b16 %v9822, %v9822
      %v10335 = vpack.c.b16 %v9823, %v9823
      %v10336 = vpack.c.b16 %v9824, %v9824
      %v10337 = vpack.c.b16 %v9825, %v9825
      %v10338 = vpack.c.b16 %v9826, %v9826
      %v10339 = vpack.c.b16 %v9827, %v9827
      %v10340 = vpack.c.b16 %v9828, %v9828
      %v10341 = vpack.c.b16 %v9829, %v9829
      %v10342 = vpack.c.b16 %v9830, %v9830
      %v10343 = vpack.c.b16 %v9831, %v9831
      %v10344 = vpack.c.b16 %v9832, %v9832
      %v10345 = vpack.c.b16 %v9833, %v9833
      %v10346 = vpack.c.b16 %v9834, %v9834
      %v10347 = vpack.c.b16 %v9835, %v9835
      %v10348 = vpack.c.b16 %v9836, %v9836
      %v10349 = vpack.c.b16 %v9837, %v9837
      %v10350 = vpack.c.b16 %v9838, %v9838
      %v10351 = vpack.c.b16 %v9839, %v9839
      %v10352 = vpack.c.b16 %v9840, %v9840
      %v10353 = vpack.c.b16 %v9841, %v9841
      %v10354 = vpack.c.b16 %v9842, %v9842
      %v10355 = vpack.c.b16 %v9843, %v9843
      %v10356 = vpack.c.b16 %v9844, %v9844
      %v10357 = vpack.c.b16 %v9845, %v9845
      %v10358 = vpack.c.b16 %v9846, %v9846
      %v10359 = vpack.c.b16 %v9847, %v9847
      %v10360 = vpack.c.b16 %v9848, %v9848
      %v10361 = vpack.c.b16 %v9849, %v9849
      %v10362 = vpack.c.b16 %v9850, %v9850
      %v10363 = vpack.c.b16 %v9851, %v9851
      %v10364 = vpack.c.b16 %v9852, %v9852
      %v10365 = vpack.c.b16 %v9853, %v9853
      %v10366 = vpack.c.b16 %v9854, %v9854
      %v10367 = vpack.c.b16 %v9855, %v9855
      %v10368 = vpack.c.b16 %v9856, %v9856
      %v10369 = vpack.c.b16 %v9857, %v9857
      %v10370 = vpack.c.b16 %v9858, %v9858
      %v10371 = vpack.c.b16 %v9859, %v9859
      %v10372 = vpack.c.b16 %v9860, %v9860
      %v10373 = vpack.c.b16 %v9861, %v9861
      %v10374 = vpack.c.b16 %v9862, %v9862
      %v10375 = vpack.c.b16 %v9863, %v9863
      %v10376 = vpack.c.b16 %v9864, %v9864
      %v10377 = vpack.c.b16 %v9865, %v9865
      %v10378 = vpack.c.b16 %v9866, %v9866
      %v10379 = vpack.c.b16 %v9867, %v9867
      %v10380 = vpack.c.b16 %v9868, %v9868
      %v10381 = vpack.c.b16 %v9869, %v9869
      %v10382 = vpack.c.b16 %v9870, %v9870
      %v10383 = vpack.c.b16 %v9871, %v9871
      %v10384 = vpack.c.b16 %v9872, %v9872
      %v10385 = vpack.c.b16 %v9873, %v9873
      %v10386 = vpack.c.b16 %v9874, %v9874
      %v10387 = vpack.c.b16 %v9875, %v9875
      %v10388 = vpack.c.b16 %v9876, %v9876
      %v10389 = vpack.c.b16 %v9877, %v9877
      %v10390 = vpack.c.b16 %v9878, %v9878
      %v10391 = vpack.c.b16 %v9879, %v9879
      %v10392 = vpack.c.b16 %v9880, %v9880
      %v10393 = vpack.c.b16 %v9881, %v9881
      %v10394 = vpack.c.b16 %v9882, %v9882
      %v10395 = vpack.c.b16 %v9883, %v9883
      %v10396 = vpack.c.b16 %v9884, %v9884
      %v10397 = vpack.c.b16 %v9885, %v9885
      %v10398 = vpack.c.b16 %v9886, %v9886
      %v10399 = vpack.c.b16 %v9887, %v9887
      %v10400 = vpack.c.b16 %v9888, %v9888
      %v10401 = vpack.c.b16 %v9889, %v9889
      %v10402 = vpack.c.b16 %v9890, %v9890
      %v10403 = vpack.c.b16 %v9891, %v9891
      %v10404 = vpack.c.b16 %v9892, %v9892
      %v10405 = vpack.c.b16 %v9893, %v9893
      %v10406 = vpack.c.b16 %v9894, %v9894
      %v10407 = vpack.c.b16 %v9895, %v9895
      %v10408 = vpack.c.b16 %v9896, %v9896
      %v10409 = vpack.c.b16 %v9897, %v9897
      %v10410 = vpack.c.b16 %v9898, %v9898
      %v10411 = vpack.c.b16 %v9899, %v9899
      %v10412 = vpack.c.b16 %v9900, %v9900
      %v10413 = vpack.c.b16 %v9901, %v9901
      %v10414 = vpack.c.b16 %v9902, %v9902
      %v10415 = vpack.c.b16 %v9903, %v9903
      %v10416 = vpack.c.b16 %v9904, %v9904
      %v10417 = vpack.c.b16 %v9905, %v9905
      %v10418 = vpack.c.b16 %v9906, %v9906
      %v10419 = vpack.c.b16 %v9907, %v9907
      %v10420 = vpack.c.b16 %v9908, %v9908
      %v10421 = vpack.c.b16 %v9909, %v9909
      %v10422 = vpack.c.b16 %v9910, %v9910
      %v10423 = vpack.c.b16 %v9911, %v9911
      %v10424 = vpack.c.b16 %v9912, %v9912
      %v10425 = vpack.c.b16 %v9913, %v9913
      %v10426 = vpack.c.b16 %v9914, %v9914
      %v10427 = vpack.c.b16 %v9915, %v9915
      %v10428 = vpack.c.b16 %v9916, %v9916
      %v10429 = vpack.c.b16 %v9917, %v9917
      %v10430 = vpack.c.b16 %v9918, %v9918
      %v10431 = vpack.c.b16 %v9919, %v9919
      %v10432 = vpack.c.b16 %v9920, %v9920
      %v10433 = vpack.c.b16 %v9921, %v9921
      %v10434 = vpack.c.b16 %v9922, %v9922
      %v10435 = vpack.c.b16 %v9923, %v9923
      %v10436 = vpack.c.b16 %v9924, %v9924
      %v10437 = vpack.c.b16 %v9925, %v9925
      %v10438 = vpack.c.b16 %v9926, %v9926
      %v10439 = vpack.c.b16 %v9927, %v9927
      %v10440 = vpack.c.b16 %v9928, %v9928
      %v10441 = vpack.c.b16 %v9929, %v9929
      %v10442 = vpack.c.b16 %v9930, %v9930
      %v10443 = vpack.c.b16 %v9931, %v9931
      %v10444 = vpack.c.b16 %v9932, %v9932
      %v10445 = vpack.c.b16 %v9933, %v9933
      %v10446 = vpack.c.b16 %v9934, %v9934
      %v10447 = vpack.c.b16 %v9935, %v9935
      %v10448 = vpack.c.b16 %v9936, %v9936
      %v10449 = vpack.c.b16 %v9937, %v9937
      %v10450 = vpack.c.b16 %v9938, %v9938
      %v10451 = vpack.c.b16 %v9939, %v9939
      %v10452 = vpack.c.b16 %v9940, %v9940
      %v10453 = vpack.c.b16 %v9941, %v9941
      %v10454 = vpack.c.b16 %v9942, %v9942
      %v10455 = vpack.c.b16 %v9943, %v9943
      %v10456 = vpack.c.b16 %v9944, %v9944
      %v10457 = vpack.c.b16 %v9945, %v9945
      %v10458 = vpack.c.b16 %v9946, %v9946
      %v10459 = vpack.c.b16 %v9947, %v9947
      %v10460 = vpack.c.b16 %v9948, %v9948
      %v10461 = vpack.c.b16 %v9949, %v9949
      %v10462 = vpack.c.b16 %v9950, %v9950
      %v10463 = vpack.c.b16 %v9951, %v9951
      %v10464 = vpack.c.b16 %v9952, %v9952
      %v10465 = vpack.c.b16 %v9953, %v9953
      %v10466 = vpack.c.b16 %v9954, %v9954
      %v10467 = vpack.c.b16 %v9955, %v9955
      %v10468 = vpack.c.b16 %v9956, %v9956
      %v10469 = vpack.c.b16 %v9957, %v9957
      %v10470 = vpack.c.b16 %v9958, %v9958
      %v10471 = vpack.c.b16 %v9959, %v9959
      %v10472 = vpack.c.b16 %v9960, %v9960
      %v10473 = vpack.c.b16 %v9961, %v9961
      %v10474 = vpack.c.b16 %v9962, %v9962
      %v10475 = vpack.c.b16 %v9963, %v9963
      %v10476 = vpack.c.b16 %v9964, %v9964
      %v10477 = vpack.c.b16 %v9965, %v9965
      %v10478 = vpack.c.b16 %v9966, %v9966
      %v10479 = vpack.c.b16 %v9967, %v9967
      %v10480 = vpack.c.b16 %v9968, %v9968
      %v10481 = vpack.c.b16 %v9969, %v9969
      %v10482 = vpack.c.b16 %v9970, %v9970
      %v10483 = vpack.c.b16 %v9971, %v9971
      %v10484 = vpack.c.b16 %v9972, %v9972
      %v10485 = vpack.c.b16 %v9973, %v9973
      %v10486 = vpack.c.b16 %v9974, %v9974
      %v10487 = vpack.c.b16 %v9975, %v9975
      %v10488 = vpack.c.b16 %v9976, %v9976
      %v10489 = vpack.c.b16 %v9977, %v9977
      %v10490 = vpack.c.b16 %v9978, %v9978
      %v10491 = vpack.c.b16 %v9979, %v9979
      %v10492 = vpack.c.b16 %v9980, %v9980
      %v10493 = vpack.c.b16 %v9981, %v9981
      %v10494 = vpack.c.b16 %v9982, %v9982
      %v10495 = vpack.c.b16 %v9983, %v9983
      %v10496 = vpack.c.b16 %v9984, %v9984
      %v10497 = vpack.c.b16 %v9985, %v9985
      %v10498 = vpack.c.b16 %v9986, %v9986
      %v10499 = vpack.c.b16 %v9987, %v9987
      %v10500 = vpack.c.b16 %v9988, %v9988
      %v10501 = vpack.c.b16 %v9989, %v9989
      %v10502 = vpack.c.b16 %v9990, %v9990
      %v10503 = vpack.c.b16 %v9991, %v9991
      %v10504 = vpack.c.b16 %v9992, %v9992
      %v10505 = vpack.c.b16 %v9993, %v9993
      %v10506 = vpack.c.b16 %v9994, %v9994
      %v10507 = vpack.c.b16 %v9995, %v9995
      %v10508 = vpack.c.b16 %v9996, %v9996
      %v10509 = vpack.c.b16 %v9997, %v9997
      %v10510 = vpack.c.b16 %v9998, %v9998
      %v10511 = vpack.c.b16 %v9999, %v9999
      %v10512 = vpack.c.b16 %v10000, %v10000
      %v10513 = vpack.c.b16 %v10001, %v10001
      %v10514 = vpack.c.b16 %v10002, %v10002
      %v10515 = vpack.c.b16 %v10003, %v10003
      %v10516 = vpack.c.b16 %v10004, %v10004
      %v10517 = vpack.c.b16 %v10005, %v10005
      %v10518 = vpack.c.b16 %v10006, %v10006
      %v10519 = vpack.c.b16 %v10007, %v10007
      %v10520 = vpack.c.b16 %v10008, %v10008
      %v10521 = vpack.c.b16 %v10009, %v10009
      %v10522 = vpack.c.b16 %v10010, %v10010
      %v10523 = vpack.c.b16 %v10011, %v10011
      %v10524 = vpack.c.b16 %v10012, %v10012
      %v10525 = vpack.c.b16 %v10013, %v10013
      %v10526 = vpack.c.b16 %v10014, %v10014
      %v10527 = vpack.c.b16 %v10015, %v10015
      %v10528 = vpack.c.b16 %v10016, %v10016
      %v10529 = vpack.c.b16 %v10017, %v10017
      %v10530 = vpack.c.b16 %v10018, %v10018
      %v10531 = vpack.c.b16 %v10019, %v10019
      %v10532 = vpack.c.b16 %v10020, %v10020
      %v10533 = vpack.c.b16 %v10021, %v10021
      %v10534 = vpack.c.b16 %v10022, %v10022
      %v10535 = vpack.c.b16 %v10023, %v10023
      %v10536 = vpack.c.b16 %v10024, %v10024
      %v10537 = vpack.c.b16 %v10025, %v10025
      %v10538 = vpack.c.b16 %v10026, %v10026
      %v10539 = vpack.c.b16 %v10027, %v10027
      %v10540 = vpack.c.b16 %v10028, %v10028
      %v10541 = vpack.c.b16 %v10029, %v10029
      %v10542 = vpack.c.b16 %v10030, %v10030
      %v10543 = vpack.c.b16 %v10031, %v10031
      %v10544 = vpack.c.b16 %v10032, %v10032
      %v10545 = vpack.c.b16 %v10033, %v10033
      %v10546 = vpack.c.b16 %v10034, %v10034
      %v10547 = vpack.c.b16 %v10035, %v10035
      %v10548 = vpack.c.b16 %v10036, %v10036
      %v10549 = vpack.c.b16 %v10037, %v10037
      %v10550 = vpack.c.b16 %v10038, %v10038
      %v10551 = vpack.c.b16 %v10039, %v10039
      %v10552 = vpack.c.b16 %v10040, %v10040
      %v10553 = vpack.c.b16 %v10041, %v10041
      %v10554 = vpack.c.b16 %v10042, %v10042
      %v10555 = vpack.c.b16 %v10043, %v10043
      %v10556 = vpack.c.b16 %v10044, %v10044
      %v10557 = vpack.c.b16 %v10045, %v10045
      %v10558 = vpack.c.b16 %v10046, %v10046
      %v10559 = vpack.c.b16 %v10047, %v10047
      %v10560 = vpack.c.b16 %v10048, %v10048
      %v10561 = vpack.c.b16 %v10049, %v10049
      %v10562 = vpack.c.b16 %v10050, %v10050
      %v10563 = vpack.c.b16 %v10051, %v10051
      %v10564 = vpack.c.b16 %v10052, %v10052
      %v10565 = vpack.c.b16 %v10053, %v10053
      %v10566 = vpack.c.b16 %v10054, %v10054
      %v10567 = vpack.c.b16 %v10055, %v10055
      %v10568 = vpack.c.b16 %v10056, %v10056
      %v10569 = vpack.c.b16 %v10057, %v10057
      %v10570 = vpack.c.b16 %v10058, %v10058
      %v10571 = vpack.c.b16 %v10059, %v10059
      %v10572 = vpack.c.b16 %v10060, %v10060
      %v10573 = vpack.c.b16 %v10061, %v10061
      %v10574 = vpack.c.b16 %v10062, %v10062
      %v10575 = vpack.c.b16 %v10063, %v10063
      %v10576 = vpack.c.b16 %v10064, %v10064
      %vm11089 = vcmask 257024
      %11090 = vst.msk [vmem:[%s264] sm:$0xf] %vm11089, %v10065
      %11091 = vst.msk [vmem:[%s264 + $0x4] sm:$0xf] %vm11089, %v10066
      %11092 = vst.msk [vmem:[%s264 + $0x8] sm:$0xf] %vm11089, %v10067
      %11093 = vst.msk [vmem:[%s264 + $0xc] sm:$0xf] %vm11089, %v10068
      %11094 = vst.msk [vmem:[%s264 + $0x10] sm:$0xf] %vm11089, %v10069
      %11095 = vst.msk [vmem:[%s264 + $0x14] sm:$0xf] %vm11089, %v10070
      %11096 = vst.msk [vmem:[%s264 + $0x18] sm:$0xf] %vm11089, %v10071
      %11097 = vst.msk [vmem:[%s264 + $0x1c] sm:$0xf] %vm11089, %v10072
      %11098 = vst.msk [vmem:[%s264 + $0x20] sm:$0xf] %vm11089, %v10073
      %11099 = vst.msk [vmem:[%s264 + $0x24] sm:$0xf] %vm11089, %v10074
      %11100 = vst.msk [vmem:[%s264 + $0x28] sm:$0xf] %vm11089, %v10075
      %11101 = vst.msk [vmem:[%s264 + $0x2c] sm:$0xf] %vm11089, %v10076
      %11102 = vst.msk [vmem:[%s264 + $0x30] sm:$0xf] %vm11089, %v10077
      %11103 = vst.msk [vmem:[%s264 + $0x34] sm:$0xf] %vm11089, %v10078
      %11104 = vst.msk [vmem:[%s264 + $0x38] sm:$0xf] %vm11089, %v10079
      %11105 = vst.msk [vmem:[%s264 + $0x3c] sm:$0xf] %vm11089, %v10080
      %11106 = vst.msk [vmem:[%s264 + $0x40] sm:$0xf] %vm11089, %v10081
      %11107 = vst.msk [vmem:[%s264 + $0x44] sm:$0xf] %vm11089, %v10082
      %11108 = vst.msk [vmem:[%s264 + $0x48] sm:$0xf] %vm11089, %v10083
      %11109 = vst.msk [vmem:[%s264 + $0x4c] sm:$0xf] %vm11089, %v10084
      %11110 = vst.msk [vmem:[%s264 + $0x50] sm:$0xf] %vm11089, %v10085
      %11111 = vst.msk [vmem:[%s264 + $0x54] sm:$0xf] %vm11089, %v10086
      %11112 = vst.msk [vmem:[%s264 + $0x58] sm:$0xf] %vm11089, %v10087
      %11113 = vst.msk [vmem:[%s264 + $0x5c] sm:$0xf] %vm11089, %v10088
      %11114 = vst.msk [vmem:[%s264 + $0x60] sm:$0xf] %vm11089, %v10089
      %11115 = vst.msk [vmem:[%s264 + $0x64] sm:$0xf] %vm11089, %v10090
      %11116 = vst.msk [vmem:[%s264 + $0x68] sm:$0xf] %vm11089, %v10091
      %11117 = vst.msk [vmem:[%s264 + $0x6c] sm:$0xf] %vm11089, %v10092
      %11118 = vst.msk [vmem:[%s264 + $0x70] sm:$0xf] %vm11089, %v10093
      %11119 = vst.msk [vmem:[%s264 + $0x74] sm:$0xf] %vm11089, %v10094
      %11120 = vst.msk [vmem:[%s264 + $0x78] sm:$0xf] %vm11089, %v10095
      %11121 = vst.msk [vmem:[%s264 + $0x7c] sm:$0xf] %vm11089, %v10096
      %11122 = vst.msk [vmem:[%s264 + $0x80] sm:$0xf] %vm11089, %v10097
      %11123 = vst.msk [vmem:[%s264 + $0x84] sm:$0xf] %vm11089, %v10098
      %11124 = vst.msk [vmem:[%s264 + $0x88] sm:$0xf] %vm11089, %v10099
      %11125 = vst.msk [vmem:[%s264 + $0x8c] sm:$0xf] %vm11089, %v10100
      %11126 = vst.msk [vmem:[%s264 + $0x90] sm:$0xf] %vm11089, %v10101
      %11127 = vst.msk [vmem:[%s264 + $0x94] sm:$0xf] %vm11089, %v10102
      %11128 = vst.msk [vmem:[%s264 + $0x98] sm:$0xf] %vm11089, %v10103
      %11129 = vst.msk [vmem:[%s264 + $0x9c] sm:$0xf] %vm11089, %v10104
      %11130 = vst.msk [vmem:[%s264 + $0xa0] sm:$0xf] %vm11089, %v10105
      %11131 = vst.msk [vmem:[%s264 + $0xa4] sm:$0xf] %vm11089, %v10106
      %11132 = vst.msk [vmem:[%s264 + $0xa8] sm:$0xf] %vm11089, %v10107
      %11133 = vst.msk [vmem:[%s264 + $0xac] sm:$0xf] %vm11089, %v10108
      %11134 = vst.msk [vmem:[%s264 + $0xb0] sm:$0xf] %vm11089, %v10109
      %11135 = vst.msk [vmem:[%s264 + $0xb4] sm:$0xf] %vm11089, %v10110
      %11136 = vst.msk [vmem:[%s264 + $0xb8] sm:$0xf] %vm11089, %v10111
      %11137 = vst.msk [vmem:[%s264 + $0xbc] sm:$0xf] %vm11089, %v10112
      %11138 = vst.msk [vmem:[%s264 + $0xc0] sm:$0xf] %vm11089, %v10113
      %11139 = vst.msk [vmem:[%s264 + $0xc4] sm:$0xf] %vm11089, %v10114
      %11140 = vst.msk [vmem:[%s264 + $0xc8] sm:$0xf] %vm11089, %v10115
      %11141 = vst.msk [vmem:[%s264 + $0xcc] sm:$0xf] %vm11089, %v10116
      %11142 = vst.msk [vmem:[%s264 + $0xd0] sm:$0xf] %vm11089, %v10117
      %11143 = vst.msk [vmem:[%s264 + $0xd4] sm:$0xf] %vm11089, %v10118
      %11144 = vst.msk [vmem:[%s264 + $0xd8] sm:$0xf] %vm11089, %v10119
      %11145 = vst.msk [vmem:[%s264 + $0xdc] sm:$0xf] %vm11089, %v10120
      %11146 = vst.msk [vmem:[%s264 + $0xe0] sm:$0xf] %vm11089, %v10121
      %11147 = vst.msk [vmem:[%s264 + $0xe4] sm:$0xf] %vm11089, %v10122
      %11148 = vst.msk [vmem:[%s264 + $0xe8] sm:$0xf] %vm11089, %v10123
      %11149 = vst.msk [vmem:[%s264 + $0xec] sm:$0xf] %vm11089, %v10124
      %11150 = vst.msk [vmem:[%s264 + $0xf0] sm:$0xf] %vm11089, %v10125
      %11151 = vst.msk [vmem:[%s264 + $0xf4] sm:$0xf] %vm11089, %v10126
      %11152 = vst.msk [vmem:[%s264 + $0xf8] sm:$0xf] %vm11089, %v10127
      %11153 = vst.msk [vmem:[%s264 + $0xfc] sm:$0xf] %vm11089, %v10128
      %11154 = vst.msk [vmem:[%s264 + $0x100] sm:$0xf] %vm11089, %v10129
      %11155 = vst.msk [vmem:[%s264 + $0x104] sm:$0xf] %vm11089, %v10130
      %11156 = vst.msk [vmem:[%s264 + $0x108] sm:$0xf] %vm11089, %v10131
      %11157 = vst.msk [vmem:[%s264 + $0x10c] sm:$0xf] %vm11089, %v10132
      %11158 = vst.msk [vmem:[%s264 + $0x110] sm:$0xf] %vm11089, %v10133
      %11159 = vst.msk [vmem:[%s264 + $0x114] sm:$0xf] %vm11089, %v10134
      %11160 = vst.msk [vmem:[%s264 + $0x118] sm:$0xf] %vm11089, %v10135
      %11161 = vst.msk [vmem:[%s264 + $0x11c] sm:$0xf] %vm11089, %v10136
      %11162 = vst.msk [vmem:[%s264 + $0x120] sm:$0xf] %vm11089, %v10137
      %11163 = vst.msk [vmem:[%s264 + $0x124] sm:$0xf] %vm11089, %v10138
      %11164 = vst.msk [vmem:[%s264 + $0x128] sm:$0xf] %vm11089, %v10139
      %11165 = vst.msk [vmem:[%s264 + $0x12c] sm:$0xf] %vm11089, %v10140
      %11166 = vst.msk [vmem:[%s264 + $0x130] sm:$0xf] %vm11089, %v10141
      %11167 = vst.msk [vmem:[%s264 + $0x134] sm:$0xf] %vm11089, %v10142
      %11168 = vst.msk [vmem:[%s264 + $0x138] sm:$0xf] %vm11089, %v10143
      %11169 = vst.msk [vmem:[%s264 + $0x13c] sm:$0xf] %vm11089, %v10144
      %11170 = vst.msk [vmem:[%s264 + $0x140] sm:$0xf] %vm11089, %v10145
      %11171 = vst.msk [vmem:[%s264 + $0x144] sm:$0xf] %vm11089, %v10146
      %11172 = vst.msk [vmem:[%s264 + $0x148] sm:$0xf] %vm11089, %v10147
      %11173 = vst.msk [vmem:[%s264 + $0x14c] sm:$0xf] %vm11089, %v10148
      %11174 = vst.msk [vmem:[%s264 + $0x150] sm:$0xf] %vm11089, %v10149
      %11175 = vst.msk [vmem:[%s264 + $0x154] sm:$0xf] %vm11089, %v10150
      %11176 = vst.msk [vmem:[%s264 + $0x158] sm:$0xf] %vm11089, %v10151
      %11177 = vst.msk [vmem:[%s264 + $0x15c] sm:$0xf] %vm11089, %v10152
      %11178 = vst.msk [vmem:[%s264 + $0x160] sm:$0xf] %vm11089, %v10153
      %11179 = vst.msk [vmem:[%s264 + $0x164] sm:$0xf] %vm11089, %v10154
      %11180 = vst.msk [vmem:[%s264 + $0x168] sm:$0xf] %vm11089, %v10155
      %11181 = vst.msk [vmem:[%s264 + $0x16c] sm:$0xf] %vm11089, %v10156
      %11182 = vst.msk [vmem:[%s264 + $0x170] sm:$0xf] %vm11089, %v10157
      %11183 = vst.msk [vmem:[%s264 + $0x174] sm:$0xf] %vm11089, %v10158
      %11184 = vst.msk [vmem:[%s264 + $0x178] sm:$0xf] %vm11089, %v10159
      %11185 = vst.msk [vmem:[%s264 + $0x17c] sm:$0xf] %vm11089, %v10160
      %11186 = vst.msk [vmem:[%s264 + $0x180] sm:$0xf] %vm11089, %v10161
      %11187 = vst.msk [vmem:[%s264 + $0x184] sm:$0xf] %vm11089, %v10162
      %11188 = vst.msk [vmem:[%s264 + $0x188] sm:$0xf] %vm11089, %v10163
      %11189 = vst.msk [vmem:[%s264 + $0x18c] sm:$0xf] %vm11089, %v10164
      %11190 = vst.msk [vmem:[%s264 + $0x190] sm:$0xf] %vm11089, %v10165
      %11191 = vst.msk [vmem:[%s264 + $0x194] sm:$0xf] %vm11089, %v10166
      %11192 = vst.msk [vmem:[%s264 + $0x198] sm:$0xf] %vm11089, %v10167
      %11193 = vst.msk [vmem:[%s264 + $0x19c] sm:$0xf] %vm11089, %v10168
      %11194 = vst.msk [vmem:[%s264 + $0x1a0] sm:$0xf] %vm11089, %v10169
      %11195 = vst.msk [vmem:[%s264 + $0x1a4] sm:$0xf] %vm11089, %v10170
      %11196 = vst.msk [vmem:[%s264 + $0x1a8] sm:$0xf] %vm11089, %v10171
      %11197 = vst.msk [vmem:[%s264 + $0x1ac] sm:$0xf] %vm11089, %v10172
      %11198 = vst.msk [vmem:[%s264 + $0x1b0] sm:$0xf] %vm11089, %v10173
      %11199 = vst.msk [vmem:[%s264 + $0x1b4] sm:$0xf] %vm11089, %v10174
      %11200 = vst.msk [vmem:[%s264 + $0x1b8] sm:$0xf] %vm11089, %v10175
      %11201 = vst.msk [vmem:[%s264 + $0x1bc] sm:$0xf] %vm11089, %v10176
      %11202 = vst.msk [vmem:[%s264 + $0x1c0] sm:$0xf] %vm11089, %v10177
      %11203 = vst.msk [vmem:[%s264 + $0x1c4] sm:$0xf] %vm11089, %v10178
      %11204 = vst.msk [vmem:[%s264 + $0x1c8] sm:$0xf] %vm11089, %v10179
      %11205 = vst.msk [vmem:[%s264 + $0x1cc] sm:$0xf] %vm11089, %v10180
      %11206 = vst.msk [vmem:[%s264 + $0x1d0] sm:$0xf] %vm11089, %v10181
      %11207 = vst.msk [vmem:[%s264 + $0x1d4] sm:$0xf] %vm11089, %v10182
      %11208 = vst.msk [vmem:[%s264 + $0x1d8] sm:$0xf] %vm11089, %v10183
      %11209 = vst.msk [vmem:[%s264 + $0x1dc] sm:$0xf] %vm11089, %v10184
      %11210 = vst.msk [vmem:[%s264 + $0x1e0] sm:$0xf] %vm11089, %v10185
      %11211 = vst.msk [vmem:[%s264 + $0x1e4] sm:$0xf] %vm11089, %v10186
      %11212 = vst.msk [vmem:[%s264 + $0x1e8] sm:$0xf] %vm11089, %v10187
      %11213 = vst.msk [vmem:[%s264 + $0x1ec] sm:$0xf] %vm11089, %v10188
      %11214 = vst.msk [vmem:[%s264 + $0x1f0] sm:$0xf] %vm11089, %v10189
      %11215 = vst.msk [vmem:[%s264 + $0x1f4] sm:$0xf] %vm11089, %v10190
      %11216 = vst.msk [vmem:[%s264 + $0x1f8] sm:$0xf] %vm11089, %v10191
      %11217 = vst.msk [vmem:[%s264 + $0x1fc] sm:$0xf] %vm11089, %v10192
      %11218 = vst.msk [vmem:[%s264 + $0x200] sm:$0xf] %vm11089, %v10193
      %11219 = vst.msk [vmem:[%s264 + $0x204] sm:$0xf] %vm11089, %v10194
      %11220 = vst.msk [vmem:[%s264 + $0x208] sm:$0xf] %vm11089, %v10195
      %11221 = vst.msk [vmem:[%s264 + $0x20c] sm:$0xf] %vm11089, %v10196
      %11222 = vst.msk [vmem:[%s264 + $0x210] sm:$0xf] %vm11089, %v10197
      %11223 = vst.msk [vmem:[%s264 + $0x214] sm:$0xf] %vm11089, %v10198
      %11224 = vst.msk [vmem:[%s264 + $0x218] sm:$0xf] %vm11089, %v10199
      %11225 = vst.msk [vmem:[%s264 + $0x21c] sm:$0xf] %vm11089, %v10200
      %11226 = vst.msk [vmem:[%s264 + $0x220] sm:$0xf] %vm11089, %v10201
      %11227 = vst.msk [vmem:[%s264 + $0x224] sm:$0xf] %vm11089, %v10202
      %11228 = vst.msk [vmem:[%s264 + $0x228] sm:$0xf] %vm11089, %v10203
      %11229 = vst.msk [vmem:[%s264 + $0x22c] sm:$0xf] %vm11089, %v10204
      %11230 = vst.msk [vmem:[%s264 + $0x230] sm:$0xf] %vm11089, %v10205
      %11231 = vst.msk [vmem:[%s264 + $0x234] sm:$0xf] %vm11089, %v10206
      %11232 = vst.msk [vmem:[%s264 + $0x238] sm:$0xf] %vm11089, %v10207
      %11233 = vst.msk [vmem:[%s264 + $0x23c] sm:$0xf] %vm11089, %v10208
      %11234 = vst.msk [vmem:[%s264 + $0x240] sm:$0xf] %vm11089, %v10209
      %11235 = vst.msk [vmem:[%s264 + $0x244] sm:$0xf] %vm11089, %v10210
      %11236 = vst.msk [vmem:[%s264 + $0x248] sm:$0xf] %vm11089, %v10211
      %11237 = vst.msk [vmem:[%s264 + $0x24c] sm:$0xf] %vm11089, %v10212
      %11238 = vst.msk [vmem:[%s264 + $0x250] sm:$0xf] %vm11089, %v10213
      %11239 = vst.msk [vmem:[%s264 + $0x254] sm:$0xf] %vm11089, %v10214
      %11240 = vst.msk [vmem:[%s264 + $0x258] sm:$0xf] %vm11089, %v10215
      %11241 = vst.msk [vmem:[%s264 + $0x25c] sm:$0xf] %vm11089, %v10216
      %11242 = vst.msk [vmem:[%s264 + $0x260] sm:$0xf] %vm11089, %v10217
      %11243 = vst.msk [vmem:[%s264 + $0x264] sm:$0xf] %vm11089, %v10218
      %11244 = vst.msk [vmem:[%s264 + $0x268] sm:$0xf] %vm11089, %v10219
      %11245 = vst.msk [vmem:[%s264 + $0x26c] sm:$0xf] %vm11089, %v10220
      %11246 = vst.msk [vmem:[%s264 + $0x270] sm:$0xf] %vm11089, %v10221
      %11247 = vst.msk [vmem:[%s264 + $0x274] sm:$0xf] %vm11089, %v10222
      %11248 = vst.msk [vmem:[%s264 + $0x278] sm:$0xf] %vm11089, %v10223
      %11249 = vst.msk [vmem:[%s264 + $0x27c] sm:$0xf] %vm11089, %v10224
      %11250 = vst.msk [vmem:[%s264 + $0x280] sm:$0xf] %vm11089, %v10225
      %11251 = vst.msk [vmem:[%s264 + $0x284] sm:$0xf] %vm11089, %v10226
      %11252 = vst.msk [vmem:[%s264 + $0x288] sm:$0xf] %vm11089, %v10227
      %11253 = vst.msk [vmem:[%s264 + $0x28c] sm:$0xf] %vm11089, %v10228
      %11254 = vst.msk [vmem:[%s264 + $0x290] sm:$0xf] %vm11089, %v10229
      %11255 = vst.msk [vmem:[%s264 + $0x294] sm:$0xf] %vm11089, %v10230
      %11256 = vst.msk [vmem:[%s264 + $0x298] sm:$0xf] %vm11089, %v10231
      %11257 = vst.msk [vmem:[%s264 + $0x29c] sm:$0xf] %vm11089, %v10232
      %11258 = vst.msk [vmem:[%s264 + $0x2a0] sm:$0xf] %vm11089, %v10233
      %11259 = vst.msk [vmem:[%s264 + $0x2a4] sm:$0xf] %vm11089, %v10234
      %11260 = vst.msk [vmem:[%s264 + $0x2a8] sm:$0xf] %vm11089, %v10235
      %11261 = vst.msk [vmem:[%s264 + $0x2ac] sm:$0xf] %vm11089, %v10236
      %11262 = vst.msk [vmem:[%s264 + $0x2b0] sm:$0xf] %vm11089, %v10237
      %11263 = vst.msk [vmem:[%s264 + $0x2b4] sm:$0xf] %vm11089, %v10238
      %11264 = vst.msk [vmem:[%s264 + $0x2b8] sm:$0xf] %vm11089, %v10239
      %11265 = vst.msk [vmem:[%s264 + $0x2bc] sm:$0xf] %vm11089, %v10240
      %11266 = vst.msk [vmem:[%s264 + $0x2c0] sm:$0xf] %vm11089, %v10241
      %11267 = vst.msk [vmem:[%s264 + $0x2c4] sm:$0xf] %vm11089, %v10242
      %11268 = vst.msk [vmem:[%s264 + $0x2c8] sm:$0xf] %vm11089, %v10243
      %11269 = vst.msk [vmem:[%s264 + $0x2cc] sm:$0xf] %vm11089, %v10244
      %11270 = vst.msk [vmem:[%s264 + $0x2d0] sm:$0xf] %vm11089, %v10245
      %11271 = vst.msk [vmem:[%s264 + $0x2d4] sm:$0xf] %vm11089, %v10246
      %11272 = vst.msk [vmem:[%s264 + $0x2d8] sm:$0xf] %vm11089, %v10247
      %11273 = vst.msk [vmem:[%s264 + $0x2dc] sm:$0xf] %vm11089, %v10248
      %11274 = vst.msk [vmem:[%s264 + $0x2e0] sm:$0xf] %vm11089, %v10249
      %11275 = vst.msk [vmem:[%s264 + $0x2e4] sm:$0xf] %vm11089, %v10250
      %11276 = vst.msk [vmem:[%s264 + $0x2e8] sm:$0xf] %vm11089, %v10251
      %11277 = vst.msk [vmem:[%s264 + $0x2ec] sm:$0xf] %vm11089, %v10252
      %11278 = vst.msk [vmem:[%s264 + $0x2f0] sm:$0xf] %vm11089, %v10253
      %11279 = vst.msk [vmem:[%s264 + $0x2f4] sm:$0xf] %vm11089, %v10254
      %11280 = vst.msk [vmem:[%s264 + $0x2f8] sm:$0xf] %vm11089, %v10255
      %11281 = vst.msk [vmem:[%s264 + $0x2fc] sm:$0xf] %vm11089, %v10256
      %11282 = vst.msk [vmem:[%s264 + $0x300] sm:$0xf] %vm11089, %v10257
      %11283 = vst.msk [vmem:[%s264 + $0x304] sm:$0xf] %vm11089, %v10258
      %11284 = vst.msk [vmem:[%s264 + $0x308] sm:$0xf] %vm11089, %v10259
      %11285 = vst.msk [vmem:[%s264 + $0x30c] sm:$0xf] %vm11089, %v10260
      %11286 = vst.msk [vmem:[%s264 + $0x310] sm:$0xf] %vm11089, %v10261
      %11287 = vst.msk [vmem:[%s264 + $0x314] sm:$0xf] %vm11089, %v10262
      %11288 = vst.msk [vmem:[%s264 + $0x318] sm:$0xf] %vm11089, %v10263
      %11289 = vst.msk [vmem:[%s264 + $0x31c] sm:$0xf] %vm11089, %v10264
      %11290 = vst.msk [vmem:[%s264 + $0x320] sm:$0xf] %vm11089, %v10265
      %11291 = vst.msk [vmem:[%s264 + $0x324] sm:$0xf] %vm11089, %v10266
      %11292 = vst.msk [vmem:[%s264 + $0x328] sm:$0xf] %vm11089, %v10267
      %11293 = vst.msk [vmem:[%s264 + $0x32c] sm:$0xf] %vm11089, %v10268
      %11294 = vst.msk [vmem:[%s264 + $0x330] sm:$0xf] %vm11089, %v10269
      %11295 = vst.msk [vmem:[%s264 + $0x334] sm:$0xf] %vm11089, %v10270
      %11296 = vst.msk [vmem:[%s264 + $0x338] sm:$0xf] %vm11089, %v10271
      %11297 = vst.msk [vmem:[%s264 + $0x33c] sm:$0xf] %vm11089, %v10272
      %11298 = vst.msk [vmem:[%s264 + $0x340] sm:$0xf] %vm11089, %v10273
      %11299 = vst.msk [vmem:[%s264 + $0x344] sm:$0xf] %vm11089, %v10274
      %11300 = vst.msk [vmem:[%s264 + $0x348] sm:$0xf] %vm11089, %v10275
      %11301 = vst.msk [vmem:[%s264 + $0x34c] sm:$0xf] %vm11089, %v10276
      %11302 = vst.msk [vmem:[%s264 + $0x350] sm:$0xf] %vm11089, %v10277
      %11303 = vst.msk [vmem:[%s264 + $0x354] sm:$0xf] %vm11089, %v10278
      %11304 = vst.msk [vmem:[%s264 + $0x358] sm:$0xf] %vm11089, %v10279
      %11305 = vst.msk [vmem:[%s264 + $0x35c] sm:$0xf] %vm11089, %v10280
      %11306 = vst.msk [vmem:[%s264 + $0x360] sm:$0xf] %vm11089, %v10281
      %11307 = vst.msk [vmem:[%s264 + $0x364] sm:$0xf] %vm11089, %v10282
      %11308 = vst.msk [vmem:[%s264 + $0x368] sm:$0xf] %vm11089, %v10283
      %11309 = vst.msk [vmem:[%s264 + $0x36c] sm:$0xf] %vm11089, %v10284
      %11310 = vst.msk [vmem:[%s264 + $0x370] sm:$0xf] %vm11089, %v10285
      %11311 = vst.msk [vmem:[%s264 + $0x374] sm:$0xf] %vm11089, %v10286
      %11312 = vst.msk [vmem:[%s264 + $0x378] sm:$0xf] %vm11089, %v10287
      %11313 = vst.msk [vmem:[%s264 + $0x37c] sm:$0xf] %vm11089, %v10288
      %11314 = vst.msk [vmem:[%s264 + $0x380] sm:$0xf] %vm11089, %v10289
      %11315 = vst.msk [vmem:[%s264 + $0x384] sm:$0xf] %vm11089, %v10290
      %11316 = vst.msk [vmem:[%s264 + $0x388] sm:$0xf] %vm11089, %v10291
      %11317 = vst.msk [vmem:[%s264 + $0x38c] sm:$0xf] %vm11089, %v10292
      %11318 = vst.msk [vmem:[%s264 + $0x390] sm:$0xf] %vm11089, %v10293
      %11319 = vst.msk [vmem:[%s264 + $0x394] sm:$0xf] %vm11089, %v10294
      %11320 = vst.msk [vmem:[%s264 + $0x398] sm:$0xf] %vm11089, %v10295
      %11321 = vst.msk [vmem:[%s264 + $0x39c] sm:$0xf] %vm11089, %v10296
      %11322 = vst.msk [vmem:[%s264 + $0x3a0] sm:$0xf] %vm11089, %v10297
      %11323 = vst.msk [vmem:[%s264 + $0x3a4] sm:$0xf] %vm11089, %v10298
      %11324 = vst.msk [vmem:[%s264 + $0x3a8] sm:$0xf] %vm11089, %v10299
      %11325 = vst.msk [vmem:[%s264 + $0x3ac] sm:$0xf] %vm11089, %v10300
      %11326 = vst.msk [vmem:[%s264 + $0x3b0] sm:$0xf] %vm11089, %v10301
      %11327 = vst.msk [vmem:[%s264 + $0x3b4] sm:$0xf] %vm11089, %v10302
      %11328 = vst.msk [vmem:[%s264 + $0x3b8] sm:$0xf] %vm11089, %v10303
      %11329 = vst.msk [vmem:[%s264 + $0x3bc] sm:$0xf] %vm11089, %v10304
      %11330 = vst.msk [vmem:[%s264 + $0x3c0] sm:$0xf] %vm11089, %v10305
      %11331 = vst.msk [vmem:[%s264 + $0x3c4] sm:$0xf] %vm11089, %v10306
      %11332 = vst.msk [vmem:[%s264 + $0x3c8] sm:$0xf] %vm11089, %v10307
      %11333 = vst.msk [vmem:[%s264 + $0x3cc] sm:$0xf] %vm11089, %v10308
      %11334 = vst.msk [vmem:[%s264 + $0x3d0] sm:$0xf] %vm11089, %v10309
      %11335 = vst.msk [vmem:[%s264 + $0x3d4] sm:$0xf] %vm11089, %v10310
      %11336 = vst.msk [vmem:[%s264 + $0x3d8] sm:$0xf] %vm11089, %v10311
      %11337 = vst.msk [vmem:[%s264 + $0x3dc] sm:$0xf] %vm11089, %v10312
      %11338 = vst.msk [vmem:[%s264 + $0x3e0] sm:$0xf] %vm11089, %v10313
      %11339 = vst.msk [vmem:[%s264 + $0x3e4] sm:$0xf] %vm11089, %v10314
      %11340 = vst.msk [vmem:[%s264 + $0x3e8] sm:$0xf] %vm11089, %v10315
      %11341 = vst.msk [vmem:[%s264 + $0x3ec] sm:$0xf] %vm11089, %v10316
      %11342 = vst.msk [vmem:[%s264 + $0x3f0] sm:$0xf] %vm11089, %v10317
      %11343 = vst.msk [vmem:[%s264 + $0x3f4] sm:$0xf] %vm11089, %v10318
      %11344 = vst.msk [vmem:[%s264 + $0x3f8] sm:$0xf] %vm11089, %v10319
      %11345 = vst.msk [vmem:[%s264 + $0x3fc] sm:$0xf] %vm11089, %v10320
      %11346 = vst.msk [vmem:[%s264 + $0x400] sm:$0xf] %vm11089, %v10321
      %11347 = vst.msk [vmem:[%s264 + $0x404] sm:$0xf] %vm11089, %v10322
      %11348 = vst.msk [vmem:[%s264 + $0x408] sm:$0xf] %vm11089, %v10323
      %11349 = vst.msk [vmem:[%s264 + $0x40c] sm:$0xf] %vm11089, %v10324
      %11350 = vst.msk [vmem:[%s264 + $0x410] sm:$0xf] %vm11089, %v10325
      %11351 = vst.msk [vmem:[%s264 + $0x414] sm:$0xf] %vm11089, %v10326
      %11352 = vst.msk [vmem:[%s264 + $0x418] sm:$0xf] %vm11089, %v10327
      %11353 = vst.msk [vmem:[%s264 + $0x41c] sm:$0xf] %vm11089, %v10328
      %11354 = vst.msk [vmem:[%s264 + $0x420] sm:$0xf] %vm11089, %v10329
      %11355 = vst.msk [vmem:[%s264 + $0x424] sm:$0xf] %vm11089, %v10330
      %11356 = vst.msk [vmem:[%s264 + $0x428] sm:$0xf] %vm11089, %v10331
      %11357 = vst.msk [vmem:[%s264 + $0x42c] sm:$0xf] %vm11089, %v10332
      %11358 = vst.msk [vmem:[%s264 + $0x430] sm:$0xf] %vm11089, %v10333
      %11359 = vst.msk [vmem:[%s264 + $0x434] sm:$0xf] %vm11089, %v10334
      %11360 = vst.msk [vmem:[%s264 + $0x438] sm:$0xf] %vm11089, %v10335
      %11361 = vst.msk [vmem:[%s264 + $0x43c] sm:$0xf] %vm11089, %v10336
      %11362 = vst.msk [vmem:[%s264 + $0x440] sm:$0xf] %vm11089, %v10337
      %11363 = vst.msk [vmem:[%s264 + $0x444] sm:$0xf] %vm11089, %v10338
      %11364 = vst.msk [vmem:[%s264 + $0x448] sm:$0xf] %vm11089, %v10339
      %11365 = vst.msk [vmem:[%s264 + $0x44c] sm:$0xf] %vm11089, %v10340
      %11366 = vst.msk [vmem:[%s264 + $0x450] sm:$0xf] %vm11089, %v10341
      %11367 = vst.msk [vmem:[%s264 + $0x454] sm:$0xf] %vm11089, %v10342
      %11368 = vst.msk [vmem:[%s264 + $0x458] sm:$0xf] %vm11089, %v10343
      %11369 = vst.msk [vmem:[%s264 + $0x45c] sm:$0xf] %vm11089, %v10344
      %11370 = vst.msk [vmem:[%s264 + $0x460] sm:$0xf] %vm11089, %v10345
      %11371 = vst.msk [vmem:[%s264 + $0x464] sm:$0xf] %vm11089, %v10346
      %11372 = vst.msk [vmem:[%s264 + $0x468] sm:$0xf] %vm11089, %v10347
      %11373 = vst.msk [vmem:[%s264 + $0x46c] sm:$0xf] %vm11089, %v10348
      %11374 = vst.msk [vmem:[%s264 + $0x470] sm:$0xf] %vm11089, %v10349
      %11375 = vst.msk [vmem:[%s264 + $0x474] sm:$0xf] %vm11089, %v10350
      %11376 = vst.msk [vmem:[%s264 + $0x478] sm:$0xf] %vm11089, %v10351
      %11377 = vst.msk [vmem:[%s264 + $0x47c] sm:$0xf] %vm11089, %v10352
      %11378 = vst.msk [vmem:[%s264 + $0x480] sm:$0xf] %vm11089, %v10353
      %11379 = vst.msk [vmem:[%s264 + $0x484] sm:$0xf] %vm11089, %v10354
      %11380 = vst.msk [vmem:[%s264 + $0x488] sm:$0xf] %vm11089, %v10355
      %11381 = vst.msk [vmem:[%s264 + $0x48c] sm:$0xf] %vm11089, %v10356
      %11382 = vst.msk [vmem:[%s264 + $0x490] sm:$0xf] %vm11089, %v10357
      %11383 = vst.msk [vmem:[%s264 + $0x494] sm:$0xf] %vm11089, %v10358
      %11384 = vst.msk [vmem:[%s264 + $0x498] sm:$0xf] %vm11089, %v10359
      %11385 = vst.msk [vmem:[%s264 + $0x49c] sm:$0xf] %vm11089, %v10360
      %11386 = vst.msk [vmem:[%s264 + $0x4a0] sm:$0xf] %vm11089, %v10361
      %11387 = vst.msk [vmem:[%s264 + $0x4a4] sm:$0xf] %vm11089, %v10362
      %11388 = vst.msk [vmem:[%s264 + $0x4a8] sm:$0xf] %vm11089, %v10363
      %11389 = vst.msk [vmem:[%s264 + $0x4ac] sm:$0xf] %vm11089, %v10364
      %11390 = vst.msk [vmem:[%s264 + $0x4b0] sm:$0xf] %vm11089, %v10365
      %11391 = vst.msk [vmem:[%s264 + $0x4b4] sm:$0xf] %vm11089, %v10366
      %11392 = vst.msk [vmem:[%s264 + $0x4b8] sm:$0xf] %vm11089, %v10367
      %11393 = vst.msk [vmem:[%s264 + $0x4bc] sm:$0xf] %vm11089, %v10368
      %11394 = vst.msk [vmem:[%s264 + $0x4c0] sm:$0xf] %vm11089, %v10369
      %11395 = vst.msk [vmem:[%s264 + $0x4c4] sm:$0xf] %vm11089, %v10370
      %11396 = vst.msk [vmem:[%s264 + $0x4c8] sm:$0xf] %vm11089, %v10371
      %11397 = vst.msk [vmem:[%s264 + $0x4cc] sm:$0xf] %vm11089, %v10372
      %11398 = vst.msk [vmem:[%s264 + $0x4d0] sm:$0xf] %vm11089, %v10373
      %11399 = vst.msk [vmem:[%s264 + $0x4d4] sm:$0xf] %vm11089, %v10374
      %11400 = vst.msk [vmem:[%s264 + $0x4d8] sm:$0xf] %vm11089, %v10375
      %11401 = vst.msk [vmem:[%s264 + $0x4dc] sm:$0xf] %vm11089, %v10376
      %11402 = vst.msk [vmem:[%s264 + $0x4e0] sm:$0xf] %vm11089, %v10377
      %11403 = vst.msk [vmem:[%s264 + $0x4e4] sm:$0xf] %vm11089, %v10378
      %11404 = vst.msk [vmem:[%s264 + $0x4e8] sm:$0xf] %vm11089, %v10379
      %11405 = vst.msk [vmem:[%s264 + $0x4ec] sm:$0xf] %vm11089, %v10380
      %11406 = vst.msk [vmem:[%s264 + $0x4f0] sm:$0xf] %vm11089, %v10381
      %11407 = vst.msk [vmem:[%s264 + $0x4f4] sm:$0xf] %vm11089, %v10382
      %11408 = vst.msk [vmem:[%s264 + $0x4f8] sm:$0xf] %vm11089, %v10383
      %11409 = vst.msk [vmem:[%s264 + $0x4fc] sm:$0xf] %vm11089, %v10384
      %11410 = vst.msk [vmem:[%s264 + $0x500] sm:$0xf] %vm11089, %v10385
      %11411 = vst.msk [vmem:[%s264 + $0x504] sm:$0xf] %vm11089, %v10386
      %11412 = vst.msk [vmem:[%s264 + $0x508] sm:$0xf] %vm11089, %v10387
      %11413 = vst.msk [vmem:[%s264 + $0x50c] sm:$0xf] %vm11089, %v10388
      %11414 = vst.msk [vmem:[%s264 + $0x510] sm:$0xf] %vm11089, %v10389
      %11415 = vst.msk [vmem:[%s264 + $0x514] sm:$0xf] %vm11089, %v10390
      %11416 = vst.msk [vmem:[%s264 + $0x518] sm:$0xf] %vm11089, %v10391
      %11417 = vst.msk [vmem:[%s264 + $0x51c] sm:$0xf] %vm11089, %v10392
      %11418 = vst.msk [vmem:[%s264 + $0x520] sm:$0xf] %vm11089, %v10393
      %11419 = vst.msk [vmem:[%s264 + $0x524] sm:$0xf] %vm11089, %v10394
      %11420 = vst.msk [vmem:[%s264 + $0x528] sm:$0xf] %vm11089, %v10395
      %11421 = vst.msk [vmem:[%s264 + $0x52c] sm:$0xf] %vm11089, %v10396
      %11422 = vst.msk [vmem:[%s264 + $0x530] sm:$0xf] %vm11089, %v10397
      %11423 = vst.msk [vmem:[%s264 + $0x534] sm:$0xf] %vm11089, %v10398
      %11424 = vst.msk [vmem:[%s264 + $0x538] sm:$0xf] %vm11089, %v10399
      %11425 = vst.msk [vmem:[%s264 + $0x53c] sm:$0xf] %vm11089, %v10400
      %11426 = vst.msk [vmem:[%s264 + $0x540] sm:$0xf] %vm11089, %v10401
      %11427 = vst.msk [vmem:[%s264 + $0x544] sm:$0xf] %vm11089, %v10402
      %11428 = vst.msk [vmem:[%s264 + $0x548] sm:$0xf] %vm11089, %v10403
      %11429 = vst.msk [vmem:[%s264 + $0x54c] sm:$0xf] %vm11089, %v10404
      %11430 = vst.msk [vmem:[%s264 + $0x550] sm:$0xf] %vm11089, %v10405
      %11431 = vst.msk [vmem:[%s264 + $0x554] sm:$0xf] %vm11089, %v10406
      %11432 = vst.msk [vmem:[%s264 + $0x558] sm:$0xf] %vm11089, %v10407
      %11433 = vst.msk [vmem:[%s264 + $0x55c] sm:$0xf] %vm11089, %v10408
      %11434 = vst.msk [vmem:[%s264 + $0x560] sm:$0xf] %vm11089, %v10409
      %11435 = vst.msk [vmem:[%s264 + $0x564] sm:$0xf] %vm11089, %v10410
      %11436 = vst.msk [vmem:[%s264 + $0x568] sm:$0xf] %vm11089, %v10411
      %11437 = vst.msk [vmem:[%s264 + $0x56c] sm:$0xf] %vm11089, %v10412
      %11438 = vst.msk [vmem:[%s264 + $0x570] sm:$0xf] %vm11089, %v10413
      %11439 = vst.msk [vmem:[%s264 + $0x574] sm:$0xf] %vm11089, %v10414
      %11440 = vst.msk [vmem:[%s264 + $0x578] sm:$0xf] %vm11089, %v10415
      %11441 = vst.msk [vmem:[%s264 + $0x57c] sm:$0xf] %vm11089, %v10416
      %11442 = vst.msk [vmem:[%s264 + $0x580] sm:$0xf] %vm11089, %v10417
      %11443 = vst.msk [vmem:[%s264 + $0x584] sm:$0xf] %vm11089, %v10418
      %11444 = vst.msk [vmem:[%s264 + $0x588] sm:$0xf] %vm11089, %v10419
      %11445 = vst.msk [vmem:[%s264 + $0x58c] sm:$0xf] %vm11089, %v10420
      %11446 = vst.msk [vmem:[%s264 + $0x590] sm:$0xf] %vm11089, %v10421
      %11447 = vst.msk [vmem:[%s264 + $0x594] sm:$0xf] %vm11089, %v10422
      %11448 = vst.msk [vmem:[%s264 + $0x598] sm:$0xf] %vm11089, %v10423
      %11449 = vst.msk [vmem:[%s264 + $0x59c] sm:$0xf] %vm11089, %v10424
      %11450 = vst.msk [vmem:[%s264 + $0x5a0] sm:$0xf] %vm11089, %v10425
      %11451 = vst.msk [vmem:[%s264 + $0x5a4] sm:$0xf] %vm11089, %v10426
      %11452 = vst.msk [vmem:[%s264 + $0x5a8] sm:$0xf] %vm11089, %v10427
      %11453 = vst.msk [vmem:[%s264 + $0x5ac] sm:$0xf] %vm11089, %v10428
      %11454 = vst.msk [vmem:[%s264 + $0x5b0] sm:$0xf] %vm11089, %v10429
      %11455 = vst.msk [vmem:[%s264 + $0x5b4] sm:$0xf] %vm11089, %v10430
      %11456 = vst.msk [vmem:[%s264 + $0x5b8] sm:$0xf] %vm11089, %v10431
      %11457 = vst.msk [vmem:[%s264 + $0x5bc] sm:$0xf] %vm11089, %v10432
      %11458 = vst.msk [vmem:[%s264 + $0x5c0] sm:$0xf] %vm11089, %v10433
      %11459 = vst.msk [vmem:[%s264 + $0x5c4] sm:$0xf] %vm11089, %v10434
      %11460 = vst.msk [vmem:[%s264 + $0x5c8] sm:$0xf] %vm11089, %v10435
      %11461 = vst.msk [vmem:[%s264 + $0x5cc] sm:$0xf] %vm11089, %v10436
      %11462 = vst.msk [vmem:[%s264 + $0x5d0] sm:$0xf] %vm11089, %v10437
      %11463 = vst.msk [vmem:[%s264 + $0x5d4] sm:$0xf] %vm11089, %v10438
      %11464 = vst.msk [vmem:[%s264 + $0x5d8] sm:$0xf] %vm11089, %v10439
      %11465 = vst.msk [vmem:[%s264 + $0x5dc] sm:$0xf] %vm11089, %v10440
      %11466 = vst.msk [vmem:[%s264 + $0x5e0] sm:$0xf] %vm11089, %v10441
      %11467 = vst.msk [vmem:[%s264 + $0x5e4] sm:$0xf] %vm11089, %v10442
      %11468 = vst.msk [vmem:[%s264 + $0x5e8] sm:$0xf] %vm11089, %v10443
      %11469 = vst.msk [vmem:[%s264 + $0x5ec] sm:$0xf] %vm11089, %v10444
      %11470 = vst.msk [vmem:[%s264 + $0x5f0] sm:$0xf] %vm11089, %v10445
      %11471 = vst.msk [vmem:[%s264 + $0x5f4] sm:$0xf] %vm11089, %v10446
      %11472 = vst.msk [vmem:[%s264 + $0x5f8] sm:$0xf] %vm11089, %v10447
      %11473 = vst.msk [vmem:[%s264 + $0x5fc] sm:$0xf] %vm11089, %v10448
      %11474 = vst.msk [vmem:[%s264 + $0x600] sm:$0xf] %vm11089, %v10449
      %11475 = vst.msk [vmem:[%s264 + $0x604] sm:$0xf] %vm11089, %v10450
      %11476 = vst.msk [vmem:[%s264 + $0x608] sm:$0xf] %vm11089, %v10451
      %11477 = vst.msk [vmem:[%s264 + $0x60c] sm:$0xf] %vm11089, %v10452
      %11478 = vst.msk [vmem:[%s264 + $0x610] sm:$0xf] %vm11089, %v10453
      %11479 = vst.msk [vmem:[%s264 + $0x614] sm:$0xf] %vm11089, %v10454
      %11480 = vst.msk [vmem:[%s264 + $0x618] sm:$0xf] %vm11089, %v10455
      %11481 = vst.msk [vmem:[%s264 + $0x61c] sm:$0xf] %vm11089, %v10456
      %11482 = vst.msk [vmem:[%s264 + $0x620] sm:$0xf] %vm11089, %v10457
      %11483 = vst.msk [vmem:[%s264 + $0x624] sm:$0xf] %vm11089, %v10458
      %11484 = vst.msk [vmem:[%s264 + $0x628] sm:$0xf] %vm11089, %v10459
      %11485 = vst.msk [vmem:[%s264 + $0x62c] sm:$0xf] %vm11089, %v10460
      %11486 = vst.msk [vmem:[%s264 + $0x630] sm:$0xf] %vm11089, %v10461
      %11487 = vst.msk [vmem:[%s264 + $0x634] sm:$0xf] %vm11089, %v10462
      %11488 = vst.msk [vmem:[%s264 + $0x638] sm:$0xf] %vm11089, %v10463
      %11489 = vst.msk [vmem:[%s264 + $0x63c] sm:$0xf] %vm11089, %v10464
      %11490 = vst.msk [vmem:[%s264 + $0x640] sm:$0xf] %vm11089, %v10465
      %11491 = vst.msk [vmem:[%s264 + $0x644] sm:$0xf] %vm11089, %v10466
      %11492 = vst.msk [vmem:[%s264 + $0x648] sm:$0xf] %vm11089, %v10467
      %11493 = vst.msk [vmem:[%s264 + $0x64c] sm:$0xf] %vm11089, %v10468
      %11494 = vst.msk [vmem:[%s264 + $0x650] sm:$0xf] %vm11089, %v10469
      %11495 = vst.msk [vmem:[%s264 + $0x654] sm:$0xf] %vm11089, %v10470
      %11496 = vst.msk [vmem:[%s264 + $0x658] sm:$0xf] %vm11089, %v10471
      %11497 = vst.msk [vmem:[%s264 + $0x65c] sm:$0xf] %vm11089, %v10472
      %11498 = vst.msk [vmem:[%s264 + $0x660] sm:$0xf] %vm11089, %v10473
      %11499 = vst.msk [vmem:[%s264 + $0x664] sm:$0xf] %vm11089, %v10474
      %11500 = vst.msk [vmem:[%s264 + $0x668] sm:$0xf] %vm11089, %v10475
      %11501 = vst.msk [vmem:[%s264 + $0x66c] sm:$0xf] %vm11089, %v10476
      %11502 = vst.msk [vmem:[%s264 + $0x670] sm:$0xf] %vm11089, %v10477
      %11503 = vst.msk [vmem:[%s264 + $0x674] sm:$0xf] %vm11089, %v10478
      %11504 = vst.msk [vmem:[%s264 + $0x678] sm:$0xf] %vm11089, %v10479
      %11505 = vst.msk [vmem:[%s264 + $0x67c] sm:$0xf] %vm11089, %v10480
      %11506 = vst.msk [vmem:[%s264 + $0x680] sm:$0xf] %vm11089, %v10481
      %11507 = vst.msk [vmem:[%s264 + $0x684] sm:$0xf] %vm11089, %v10482
      %11508 = vst.msk [vmem:[%s264 + $0x688] sm:$0xf] %vm11089, %v10483
      %11509 = vst.msk [vmem:[%s264 + $0x68c] sm:$0xf] %vm11089, %v10484
      %11510 = vst.msk [vmem:[%s264 + $0x690] sm:$0xf] %vm11089, %v10485
      %11511 = vst.msk [vmem:[%s264 + $0x694] sm:$0xf] %vm11089, %v10486
      %11512 = vst.msk [vmem:[%s264 + $0x698] sm:$0xf] %vm11089, %v10487
      %11513 = vst.msk [vmem:[%s264 + $0x69c] sm:$0xf] %vm11089, %v10488
      %11514 = vst.msk [vmem:[%s264 + $0x6a0] sm:$0xf] %vm11089, %v10489
      %11515 = vst.msk [vmem:[%s264 + $0x6a4] sm:$0xf] %vm11089, %v10490
      %11516 = vst.msk [vmem:[%s264 + $0x6a8] sm:$0xf] %vm11089, %v10491
      %11517 = vst.msk [vmem:[%s264 + $0x6ac] sm:$0xf] %vm11089, %v10492
      %11518 = vst.msk [vmem:[%s264 + $0x6b0] sm:$0xf] %vm11089, %v10493
      %11519 = vst.msk [vmem:[%s264 + $0x6b4] sm:$0xf] %vm11089, %v10494
      %11520 = vst.msk [vmem:[%s264 + $0x6b8] sm:$0xf] %vm11089, %v10495
      %11521 = vst.msk [vmem:[%s264 + $0x6bc] sm:$0xf] %vm11089, %v10496
      %11522 = vst.msk [vmem:[%s264 + $0x6c0] sm:$0xf] %vm11089, %v10497
      %11523 = vst.msk [vmem:[%s264 + $0x6c4] sm:$0xf] %vm11089, %v10498
      %11524 = vst.msk [vmem:[%s264 + $0x6c8] sm:$0xf] %vm11089, %v10499
      %11525 = vst.msk [vmem:[%s264 + $0x6cc] sm:$0xf] %vm11089, %v10500
      %11526 = vst.msk [vmem:[%s264 + $0x6d0] sm:$0xf] %vm11089, %v10501
      %11527 = vst.msk [vmem:[%s264 + $0x6d4] sm:$0xf] %vm11089, %v10502
      %11528 = vst.msk [vmem:[%s264 + $0x6d8] sm:$0xf] %vm11089, %v10503
      %11529 = vst.msk [vmem:[%s264 + $0x6dc] sm:$0xf] %vm11089, %v10504
      %11530 = vst.msk [vmem:[%s264 + $0x6e0] sm:$0xf] %vm11089, %v10505
      %11531 = vst.msk [vmem:[%s264 + $0x6e4] sm:$0xf] %vm11089, %v10506
      %11532 = vst.msk [vmem:[%s264 + $0x6e8] sm:$0xf] %vm11089, %v10507
      %11533 = vst.msk [vmem:[%s264 + $0x6ec] sm:$0xf] %vm11089, %v10508
      %11534 = vst.msk [vmem:[%s264 + $0x6f0] sm:$0xf] %vm11089, %v10509
      %11535 = vst.msk [vmem:[%s264 + $0x6f4] sm:$0xf] %vm11089, %v10510
      %11536 = vst.msk [vmem:[%s264 + $0x6f8] sm:$0xf] %vm11089, %v10511
      %11537 = vst.msk [vmem:[%s264 + $0x6fc] sm:$0xf] %vm11089, %v10512
      %11538 = vst.msk [vmem:[%s264 + $0x700] sm:$0xf] %vm11089, %v10513
      %11539 = vst.msk [vmem:[%s264 + $0x704] sm:$0xf] %vm11089, %v10514
      %11540 = vst.msk [vmem:[%s264 + $0x708] sm:$0xf] %vm11089, %v10515
      %11541 = vst.msk [vmem:[%s264 + $0x70c] sm:$0xf] %vm11089, %v10516
      %11542 = vst.msk [vmem:[%s264 + $0x710] sm:$0xf] %vm11089, %v10517
      %11543 = vst.msk [vmem:[%s264 + $0x714] sm:$0xf] %vm11089, %v10518
      %11544 = vst.msk [vmem:[%s264 + $0x718] sm:$0xf] %vm11089, %v10519
      %11545 = vst.msk [vmem:[%s264 + $0x71c] sm:$0xf] %vm11089, %v10520
      %11546 = vst.msk [vmem:[%s264 + $0x720] sm:$0xf] %vm11089, %v10521
      %11547 = vst.msk [vmem:[%s264 + $0x724] sm:$0xf] %vm11089, %v10522
      %11548 = vst.msk [vmem:[%s264 + $0x728] sm:$0xf] %vm11089, %v10523
      %11549 = vst.msk [vmem:[%s264 + $0x72c] sm:$0xf] %vm11089, %v10524
      %11550 = vst.msk [vmem:[%s264 + $0x730] sm:$0xf] %vm11089, %v10525
      %11551 = vst.msk [vmem:[%s264 + $0x734] sm:$0xf] %vm11089, %v10526
      %11552 = vst.msk [vmem:[%s264 + $0x738] sm:$0xf] %vm11089, %v10527
      %11553 = vst.msk [vmem:[%s264 + $0x73c] sm:$0xf] %vm11089, %v10528
      %11554 = vst.msk [vmem:[%s264 + $0x740] sm:$0xf] %vm11089, %v10529
      %11555 = vst.msk [vmem:[%s264 + $0x744] sm:$0xf] %vm11089, %v10530
      %11556 = vst.msk [vmem:[%s264 + $0x748] sm:$0xf] %vm11089, %v10531
      %11557 = vst.msk [vmem:[%s264 + $0x74c] sm:$0xf] %vm11089, %v10532
      %11558 = vst.msk [vmem:[%s264 + $0x750] sm:$0xf] %vm11089, %v10533
      %11559 = vst.msk [vmem:[%s264 + $0x754] sm:$0xf] %vm11089, %v10534
      %11560 = vst.msk [vmem:[%s264 + $0x758] sm:$0xf] %vm11089, %v10535
      %11561 = vst.msk [vmem:[%s264 + $0x75c] sm:$0xf] %vm11089, %v10536
      %11562 = vst.msk [vmem:[%s264 + $0x760] sm:$0xf] %vm11089, %v10537
      %11563 = vst.msk [vmem:[%s264 + $0x764] sm:$0xf] %vm11089, %v10538
      %11564 = vst.msk [vmem:[%s264 + $0x768] sm:$0xf] %vm11089, %v10539
      %11565 = vst.msk [vmem:[%s264 + $0x76c] sm:$0xf] %vm11089, %v10540
      %11566 = vst.msk [vmem:[%s264 + $0x770] sm:$0xf] %vm11089, %v10541
      %11567 = vst.msk [vmem:[%s264 + $0x774] sm:$0xf] %vm11089, %v10542
      %11568 = vst.msk [vmem:[%s264 + $0x778] sm:$0xf] %vm11089, %v10543
      %11569 = vst.msk [vmem:[%s264 + $0x77c] sm:$0xf] %vm11089, %v10544
      %11570 = vst.msk [vmem:[%s264 + $0x780] sm:$0xf] %vm11089, %v10545
      %11571 = vst.msk [vmem:[%s264 + $0x784] sm:$0xf] %vm11089, %v10546
      %11572 = vst.msk [vmem:[%s264 + $0x788] sm:$0xf] %vm11089, %v10547
      %11573 = vst.msk [vmem:[%s264 + $0x78c] sm:$0xf] %vm11089, %v10548
      %11574 = vst.msk [vmem:[%s264 + $0x790] sm:$0xf] %vm11089, %v10549
      %11575 = vst.msk [vmem:[%s264 + $0x794] sm:$0xf] %vm11089, %v10550
      %11576 = vst.msk [vmem:[%s264 + $0x798] sm:$0xf] %vm11089, %v10551
      %11577 = vst.msk [vmem:[%s264 + $0x79c] sm:$0xf] %vm11089, %v10552
      %11578 = vst.msk [vmem:[%s264 + $0x7a0] sm:$0xf] %vm11089, %v10553
      %11579 = vst.msk [vmem:[%s264 + $0x7a4] sm:$0xf] %vm11089, %v10554
      %11580 = vst.msk [vmem:[%s264 + $0x7a8] sm:$0xf] %vm11089, %v10555
      %11581 = vst.msk [vmem:[%s264 + $0x7ac] sm:$0xf] %vm11089, %v10556
      %11582 = vst.msk [vmem:[%s264 + $0x7b0] sm:$0xf] %vm11089, %v10557
      %11583 = vst.msk [vmem:[%s264 + $0x7b4] sm:$0xf] %vm11089, %v10558
      %11584 = vst.msk [vmem:[%s264 + $0x7b8] sm:$0xf] %vm11089, %v10559
      %11585 = vst.msk [vmem:[%s264 + $0x7bc] sm:$0xf] %vm11089, %v10560
      %11586 = vst.msk [vmem:[%s264 + $0x7c0] sm:$0xf] %vm11089, %v10561
      %11587 = vst.msk [vmem:[%s264 + $0x7c4] sm:$0xf] %vm11089, %v10562
      %11588 = vst.msk [vmem:[%s264 + $0x7c8] sm:$0xf] %vm11089, %v10563
      %11589 = vst.msk [vmem:[%s264 + $0x7cc] sm:$0xf] %vm11089, %v10564
      %11590 = vst.msk [vmem:[%s264 + $0x7d0] sm:$0xf] %vm11089, %v10565
      %11591 = vst.msk [vmem:[%s264 + $0x7d4] sm:$0xf] %vm11089, %v10566
      %11592 = vst.msk [vmem:[%s264 + $0x7d8] sm:$0xf] %vm11089, %v10567
      %11593 = vst.msk [vmem:[%s264 + $0x7dc] sm:$0xf] %vm11089, %v10568
      %11594 = vst.msk [vmem:[%s264 + $0x7e0] sm:$0xf] %vm11089, %v10569
      %11595 = vst.msk [vmem:[%s264 + $0x7e4] sm:$0xf] %vm11089, %v10570
      %11596 = vst.msk [vmem:[%s264 + $0x7e8] sm:$0xf] %vm11089, %v10571
      %11597 = vst.msk [vmem:[%s264 + $0x7ec] sm:$0xf] %vm11089, %v10572
      %11598 = vst.msk [vmem:[%s264 + $0x7f0] sm:$0xf] %vm11089, %v10573
      %11599 = vst.msk [vmem:[%s264 + $0x7f4] sm:$0xf] %vm11089, %v10574
      %11600 = vst.msk [vmem:[%s264 + $0x7f8] sm:$0xf] %vm11089, %v10575
      %11601 = vst.msk [vmem:[%s264 + $0x7fc] sm:$0xf] %vm11089, %v10576
      %s11602 = smul.u32 512, %s19
      %p11603 = scmp.lt.s32.totalorder %s11602, 1023
      %s11604 = scalar_select %p11603, %s11602, 1023
      %p11605 = scmp.lt.s32.totalorder %s20, 0
      %s11606 = scalar_select %p11605, %s20, 0
      %s11607 = sadd.s32 %s11606, %s11604
      %s11608 = smul.addr %s11607, 4
      %s11609 = scalar_lea.vmem %s4, %s11608
      // Predicated region
      $region37: #{tpu_custom_call.1} parent=35 // pred_check
        %p11610 = pneg %p151
      $region38: #{tpu_custom_call.1} parent=35 // pred_check_branch
        %11612 = sbr.rel (%p11610) target = $region40
      $region39: #{tpu_custom_call.1} parent=35 // pred_region
        %s11613 = smul.u32 512, %s19
      $region40: #{tpu_custom_call.1} parent=35 // pred_fallthru
        _
    $region36: #{tpu_custom_call.1} parent=5 // pred_fallthru
      _
    %p11614 = scmp.le.s32.totalorder 2, %s10
    // Predicated region
    $region41: #{tpu_custom_call.1} parent=5 // pred_check
      %p11615 = pneg %p11614
    $region42: #{tpu_custom_call.1} parent=5 // pred_check_branch
      %11617 = sbr.rel (%p11615) target = $region44
    $region43: #{tpu_custom_call.1} parent=5 // pred_region
      %s11618 = ssub.s32 %s10, 2
      // Predicated region
      $region45: #{tpu_custom_call.1} parent=43 // pred_check
        %p11619 = pneg %p157
      $region46: #{tpu_custom_call.1} parent=43 // pred_check_branch
        %11621 = sbr.rel (%p11619) target = $region48
      $region47: #{tpu_custom_call.1} parent=43 // pred_region
        %s11622 = smul.u32 512, %s21
        %p11623 = scmp.lt.s32.totalorder %s11622, 1023
        %s11624 = scalar_select %p11623, %s11622, 1023
        %p11625 = scmp.lt.s32.totalorder %s22, 0
        %s11626 = scalar_select %p11625, %s22, 0
        %s11627 = sadd.s32 %s11626, %s11624
        %s11628 = smul.addr %s11627, 4
        %s11629 = scalar_lea.vmem %s4, %s11628
      $region48: #{tpu_custom_call.1} parent=43 // pred_fallthru
        _
    $region44: #{tpu_custom_call.1} parent=5 // pred_fallthru
      _
  $region6: #{tpu_custom_call.1} parent=0 // loop_footer
    %s14 = sadd.s32 1, %s10
  $region7: #{tpu_custom_call.1} parent=0 // loop_footer_branch
    %9 = sbr.rel target = $region3
  $region8: #{tpu_custom_call.1} parent=0 // loop_exit
    _

</llo_original>
